<compile_context>
chip_gen: v7x
topology: tpu7x:2x2x1
jax: 0.10.0
libtpu: 0.0.40
codegen_flags: <defaults>
</compile_context>

<pallas_src>
import functools
import math

import jax
import jax.numpy as jnp
from jax.experimental import pallas as pl
from jax.experimental.pallas import tpu as pltpu

_MXU_DTYPE = jnp.bfloat16   # matmul operands; accumulation is always float32
_ACT_DTYPE = jnp.bfloat16   # inter-kernel activation dtype
_LN_EPS = 1e-5

_PARALLEL = pltpu.CompilerParams(dimension_semantics=("parallel",))


# ----------------------------------------------------------------------------
# In-kernel helpers
# ----------------------------------------------------------------------------
def _mm(a, w):
    """MXU matmul: bf16 operands, f32 accumulation."""
    return jnp.dot(a.astype(_MXU_DTYPE), w.astype(_MXU_DTYPE),
                   preferred_element_type=jnp.float32)


def _layer_norm(x, g, b, eps):
    mu = jnp.mean(x, axis=-1, keepdims=True)
    xc = x - mu
    var = jnp.mean(xc * xc, axis=-1, keepdims=True)
    return xc * jax.lax.rsqrt(var + eps) * g + b


def _gelu(x):
    return 0.5 * x * (1.0 + jax.lax.erf(x * (1.0 / math.sqrt(2.0))))


def _activation(x, kind):
    return _gelu(x) if kind == 'gelu' else jnp.maximum(x, 0.0)


def _shift_prev(x):
    """Circular shift along the sequence (sublane) axis: out[t] = x[t-1]."""
    return jnp.concatenate([x[-1:, :], x[:-1, :]], axis=0)


def _shift_next(x):
    """Circular shift along the sequence (sublane) axis: out[t] = x[t+1]."""
    return jnp.concatenate([x[1:, :], x[:1, :]], axis=0)


def _attention_heads(q, k, v, n_heads, causal):
    """All-head softmax attention on 2-D (L, D) operands.

    q is pre-scaled (1/sqrt(dh) folded into the projection weights).  Head
    outputs are lane-concatenated so the caller can run a single output
    projection.  Scores / softmax stay in f32.
    """
    Lq, D = q.shape
    Lk = k.shape[0]
    dh = D // n_heads

    if causal:
        row = jax.lax.broadcasted_iota(jnp.int32, (Lq, Lk), 0)
        col = jax.lax.broadcasted_iota(jnp.int32, (Lq, Lk), 1)
        neg = jnp.where(col <= row, 0.0, -1e30)          # f32 additive mask

    outs = []
    for h in range(n_heads):                              # static unroll, H small
        sl = slice(h * dh, (h + 1) * dh)
        qh = q[:, sl].astype(_MXU_DTYPE)
        kh = k[:, sl].astype(_MXU_DTYPE)
        vh = v[:, sl].astype(_MXU_DTYPE)
        s = jax.lax.dot_general(qh, kh, (((1,), (1,)), ((), ())),
                                preferred_element_type=jnp.float32)
        if causal:
            s = s + neg
        m = jnp.max(s, axis=-1, keepdims=True)
        p = jnp.exp(s - m)
        l = jnp.sum(p, axis=-1, keepdims=True)
        oh = jnp.dot(p.astype(_MXU_DTYPE), vh,
                     preferred_element_type=jnp.float32)
        outs.append(oh * pl.reciprocal(l, approx=True))
    return jnp.concatenate(outs, axis=-1)                 # (Lq, D) f32


# ----------------------------------------------------------------------------
# Pallas kernels (grid = (batch,), each program handles one batch element)
# ----------------------------------------------------------------------------
def _embed_kernel(x_ref, xm_ref, pe_ref, w0_ref, w1_ref, w2_ref, wt_ref,
                  o_ref):
    """DataEmbedding: circular Conv1d(k=3, bias=False) token embedding +
    TimeFeature Linear (no bias) + positional embedding."""
    x = x_ref[0].astype(jnp.float32)                      # (L, C_in)
    xm = xm_ref[0]                                        # (L, C_mark)
    tok = (_mm(_shift_prev(x), w0_ref[...]) + _mm(x, w1_ref[...])
           + _mm(_shift_next(x), w2_ref[...]))
    tmp = _mm(xm, wt_ref[...])
    o_ref[0] = (tok + tmp + pe_ref[...].astype(jnp.float32)).astype(o_ref.dtype)


def _encoder_layer_kernel(x_ref, wqkv_ref, bqkv_ref, wo_ref, bo_ref,
                          ln1g_ref, ln1b_ref,
                          w1_ref, b1_ref, w2_ref, b2_ref,
                          ln2g_ref, ln2b_ref, *rest,
                          n_heads, activation, final_ln, eps):
    """Fused EncoderLayer: QKV proj + attention + out proj + LN1 + FFN + LN2
    (+ optional encoder-final LayerNorm)."""
    if final_ln:
        fg_ref, fb_ref, o_ref = rest
    else:
        (o_ref,) = rest

    x = x_ref[0].astype(jnp.float32)                      # (L, D)
    D = x.shape[1]

    qkv = _mm(x, wqkv_ref[...]) + bqkv_ref[...]           # (L, 3D); scale folded
    att = _attention_heads(qkv[:, :D], qkv[:, D:2 * D], qkv[:, 2 * D:],
                           n_heads, causal=False)
    att = _mm(att, wo_ref[...]) + bo_ref[...]
    y = _layer_norm(x + att, ln1g_ref[...], ln1b_ref[...], eps)

    h = _activation(_mm(y, w1_ref[...]) + b1_ref[...], activation)
    z = _mm(h, w2_ref[...]) + b2_ref[...]
    out = _layer_norm(y + z, ln2g_ref[...], ln2b_ref[...], eps)
    if final_ln:
        out = _layer_norm(out, fg_ref[...], fb_ref[...], eps)
    o_ref[0] = out.astype(o_ref.dtype)


def _decoder_layer_kernel(x_ref, cross_ref,
                          s_wqkv_ref, s_bqkv_ref, s_wo_ref, s_bo_ref,
                          ln1g_ref, ln1b_ref,
                          c_wq_ref, c_bq_ref, c_wkv_ref, c_bkv_ref,
                          c_wo_ref, c_bo_ref, ln2g_ref, ln2b_ref,
                          w1_ref, b1_ref, w2_ref, b2_ref,
                          ln3g_ref, ln3b_ref, o_ref,
                          *, n_heads, activation, eps):
    """Fused DecoderLayer: masked self-attn + LN1 + cross-attn + LN2 + FFN
    + LN3, all in one call."""
    x = x_ref[0].astype(jnp.float32)                      # (Ld, D)
    cr = cross_ref[0].astype(jnp.float32)                 # (Le, D)
    D = x.shape[1]

    # Masked self-attention (dense causal approximation of ProbAttention).
    qkv = _mm(x, s_wqkv_ref[...]) + s_bqkv_ref[...]
    att = _attention_heads(qkv[:, :D], qkv[:, D:2 * D], qkv[:, 2 * D:],
                           n_heads, causal=True)
    att = _mm(att, s_wo_ref[...]) + s_bo_ref[...]
    x = _layer_norm(x + att, ln1g_ref[...], ln1b_ref[...], eps)

    # Cross attention (q from decoder state, fused K|V from encoder output).
    q = _mm(x, c_wq_ref[...]) + c_bq_ref[...]
    kv = _mm(cr, c_wkv_ref[...]) + c_bkv_ref[...]
    att = _attention_heads(q, kv[:, :D], kv[:, D:], n_heads, causal=False)
    att = _mm(att, c_wo_ref[...]) + c_bo_ref[...]
    y = _layer_norm(x + att, ln2g_ref[...], ln2b_ref[...], eps)

    h = _activation(_mm(y, w1_ref[...]) + b1_ref[...], activation)
    z = _mm(h, w2_ref[...]) + b2_ref[...]
    o_ref[0] = _layer_norm(y + z, ln3g_ref[...], ln3b_ref[...], eps
                           ).astype(o_ref.dtype)


def _conv_pool_kernel(x_ref, w0_ref, w1_ref, w2_ref, b_ref, o_ref):
    """Distilling ConvLayer: circular Conv1d(k=3) with the eval-mode BatchNorm
    scale folded into the weights, ELU, then the MaxPool1d(3,2,1) window max
    at full resolution (the stride-2 decimation is done in the wrapper)."""
    x = x_ref[0].astype(jnp.float32)                      # (L, C)
    y = (_mm(_shift_prev(x), w0_ref[...]) + _mm(x, w1_ref[...])
         + _mm(_shift_next(x), w2_ref[...]) + b_ref[...])
    # ELU(alpha=1); clamp before exp so the unselected branch stays finite.
    y = jnp.where(y > 0.0, y, jnp.exp(jnp.minimum(y, 0.0)) - 1.0)
    # Neighborhood max with -inf-like boundary padding (non-circular).
    neg = jnp.full((1, y.shape[1]), -1e30, jnp.float32)
    y_prev = jnp.concatenate([neg, y[:-1, :]], axis=0)
    y_next = jnp.concatenate([y[1:, :], neg], axis=0)
    o_ref[0] = jnp.maximum(jnp.maximum(y_prev, y), y_next).astype(o_ref.dtype)


def _ln_proj_kernel(x_ref, g_ref, b_ref, w_ref, pb_ref, o_ref, *, eps):
    """Decoder-level LayerNorm fused with the final Linear projection; the
    projection output is a lane-dense 128-wide slab (c_out sliced in the
    wrapper)."""
    y = _layer_norm(x_ref[0].astype(jnp.float32), g_ref[...], b_ref[...], eps)
    o_ref[0] = (_mm(y, w_ref[...]) + pb_ref[...]).astype(o_ref.dtype)


# ----------------------------------------------------------------------------
# pallas_call wrappers
# ----------------------------------------------------------------------------
def _wspec(shape):
    """BlockSpec for a grid-invariant (shared) 2-D parameter."""
    return pl.BlockSpec(shape, lambda b: (0,) * len(shape))


def embed(x, x_mark, p, pe):
    B, L, Cin = x.shape
    Cm = x_mark.shape[-1]
    D = p['token_w1'].shape[1]
    pe_l = pe[:L]                                         # (L, D) f32
    return pl.pallas_call(
        _embed_kernel,
        grid=(B,),
        in_specs=[pl.BlockSpec((1, L, Cin), lambda b: (b, 0, 0)),
                  pl.BlockSpec((1, L, Cm), lambda b: (b, 0, 0)),
                  _wspec((L, D)),
                  _wspec(p['token_w0'].shape), _wspec(p['token_w1'].shape),
                  _wspec(p['token_w2'].shape), _wspec(p['temporal_w'].shape)],
        out_specs=pl.BlockSpec((1, L, D), lambda b: (b, 0, 0)),
        out_shape=jax.ShapeDtypeStruct((B, L, D), _ACT_DTYPE),
        compiler_params=_PARALLEL,
    )(x.astype(_ACT_DTYPE), x_mark.astype(_ACT_DTYPE), pe_l,
      p['token_w0'], p['token_w1'], p['token_w2'], p['temporal_w'])


def encoder_layer(x, lp, n_heads, activation, final_ln_params, eps=_LN_EPS):
    B, L, D = x.shape
    a = lp['attn']
    final_ln = final_ln_params is not None
    operands = [x,
                a['wqkv'], a['bqkv'], a['wo'], a['bo'], a['ln_g'], a['ln_b'],
                lp['ffn_w1'], lp['ffn_b1'], lp['ffn_w2'], lp['ffn_b2'],
                lp['ln_g'], lp['ln_b']]
    if final_ln:
        operands += [final_ln_params[0], final_ln_params[1]]
    in_specs = ([pl.BlockSpec((1, L, D), lambda b: (b, 0, 0))]
                + [_wspec(w.shape) for w in operands[1:]])
    return pl.pallas_call(
        functools.partial(_encoder_layer_kernel, n_heads=n_heads,
                          activation=activation, final_ln=final_ln, eps=eps),
        grid=(B,),
        in_specs=in_specs,
        out_specs=pl.BlockSpec((1, L, D), lambda b: (b, 0, 0)),
        out_shape=jax.ShapeDtypeStruct((B, L, D), _ACT_DTYPE),
        compiler_params=_PARALLEL,
    )(*operands)


def decoder_layer(x, cross, lp, n_heads, activation, eps=_LN_EPS):
    B, Ld, D = x.shape
    Le = cross.shape[1]
    sa, ca = lp['self_attn'], lp['cross_attn']
    operands = [x, cross,
                sa['wqkv'], sa['bqkv'], sa['wo'], sa['bo'],
                sa['ln_g'], sa['ln_b'],
                ca['wq'], ca['bq'], ca['wkv'], ca['bkv'],
                ca['wo'], ca['bo'], ca['ln_g'], ca['ln_b'],
                lp['ffn_w1'], lp['ffn_b1'], lp['ffn_w2'], lp['ffn_b2'],
                lp['ln_g'], lp['ln_b']]
    in_specs = ([pl.BlockSpec((1, Ld, D), lambda b: (b, 0, 0)),
                 pl.BlockSpec((1, Le, D), lambda b: (b, 0, 0))]
                + [_wspec(w.shape) for w in operands[2:]])
    return pl.pallas_call(
        functools.partial(_decoder_layer_kernel, n_heads=n_heads,
                          activation=activation, eps=eps),
        grid=(B,),
        in_specs=in_specs,
        out_specs=pl.BlockSpec((1, Ld, D), lambda b: (b, 0, 0)),
        out_shape=jax.ShapeDtypeStruct((B, Ld, D), _ACT_DTYPE),
        compiler_params=_PARALLEL,
    )(*operands)


def conv_distil(x, p):
    B, L, C = x.shape
    full_m = pl.pallas_call(
        _conv_pool_kernel,
        grid=(B,),
        in_specs=[pl.BlockSpec((1, L, C), lambda b: (b, 0, 0)),
                  _wspec(p['conv_w0'].shape), _wspec(p['conv_w1'].shape),
                  _wspec(p['conv_w2'].shape), _wspec(p['conv_b'].shape)],
        out_specs=pl.BlockSpec((1, L, C), lambda b: (b, 0, 0)),
        out_shape=jax.ShapeDtypeStruct((B, L, C), _ACT_DTYPE),
        compiler_params=_PARALLEL,
    )(x, p['conv_w0'], p['conv_w1'], p['conv_w2'], p['conv_b'])
    # MaxPool1d(kernel=3, stride=2, padding=1): the 3-wide window max is done
    # in-kernel; only the stride-2 decimation remains (one XLA slice).
    return full_m[:, ::2, :]


def ln_project(x, g, b, w_pad, pb_pad, c_out, eps=_LN_EPS):
    B, L, D = x.shape
    Np = w_pad.shape[1]
    out = pl.pallas_call(
        functools.partial(_ln_proj_kernel, eps=eps),
        grid=(B,),
        in_specs=[pl.BlockSpec((1, L, D), lambda b: (b, 0, 0)),
                  _wspec(g.shape), _wspec(b.shape),
                  _wspec(w_pad.shape), _wspec(pb_pad.shape)],
        out_specs=pl.BlockSpec((1, L, Np), lambda b: (b, 0, 0)),
        out_shape=jax.ShapeDtypeStruct((B, L, Np), jnp.float32),
        compiler_params=_PARALLEL,
    )(x, g, b, w_pad, pb_pad)
    return out[:, :, :c_out]


# ----------------------------------------------------------------------------
# Model forward (task_name == 'long_term_forecast')
# ----------------------------------------------------------------------------
def model_forward(params, cfg, x_enc, x_mark_enc, x_dec, x_mark_dec):
    n_heads = cfg['n_heads']
    act = cfg.get('activation', 'gelu')
    pe = params['pe']

    enc = embed(x_enc, x_mark_enc, params['enc_emb'], pe)
    dec = embed(x_dec, x_mark_dec, params['dec_emb'], pe)

    # Encoder: EncoderLayer -> ConvLayer (distil) -> ... -> EncoderLayer -> LN
    n_enc = len(params['enc_layers'])
    x = enc
    for i, lp in enumerate(params['enc_layers']):
        is_last = i == n_enc - 1
        fl = (params['enc_norm_g'], params['enc_norm_b']) if is_last else None
        x = encoder_layer(x, lp, n_heads, act, fl)
        if not is_last:
            x = conv_distil(x, params['enc_convs'][i])
    enc_out = x

    # Decoder: (masked self-attn -> cross-attn -> FFN) x d_layers -> LN -> proj
    x = dec
    for lp in params['dec_layers']:
        x = decoder_layer(x, enc_out, lp, n_heads, act)
    x = ln_project(x, params['dec_norm_g'], params['dec_norm_b'],
                   params['proj_w'], params['proj_b'], cfg['c_out'])

    return x[:, -cfg['pred_len']:, :]


# ----------------------------------------------------------------------------
# Parameter init (PyTorch-like layout) and one-time kernel-layout preparation
# ----------------------------------------------------------------------------
def positional_embedding(L, d_model):
    pos = jnp.arange(L, dtype=jnp.float32)[:, None]
    div = jnp.exp(jnp.arange(0, d_model, 2, dtype=jnp.float32) *
                  (-math.log(10000.0) / d_model))
    pe = jnp.zeros((L, d_model), jnp.float32)
    pe = pe.at[:, 0::2].set(jnp.sin(pos * div))
    pe = pe.at[:, 1::2].set(jnp.cos(pos * div))
    return pe


def init_params(key, cfg):
    d_model, d_ff = cfg['d_model'], cfg['d_ff']
    enc_in, dec_in = cfg['enc_in'], cfg['dec_in']
    c_out, mark_in = cfg['c_out'], cfg['mark_in']
    keys = iter(jax.random.split(key, 512))

    def w(shape, scale=0.05):
        return (scale * jax.random.normal(next(keys), shape)).astype(jnp.float32)

    zeros = lambda s: jnp.zeros(s, jnp.float32)
    ones = lambda s: jnp.ones(s, jnp.float32)

    def emb(c_in):
        return {'token_w': w((d_model, c_in, 3)),          # torch Conv1d layout
                'temporal_w': w((mark_in, d_model))}

    def attn():
        return {'wq': w((d_model, d_model)), 'bq': zeros((d_model,)),
                'wk': w((d_model, d_model)), 'bk': zeros((d_model,)),
                'wv': w((d_model, d_model)), 'bv': zeros((d_model,)),
                'wo': w((d_model, d_model)), 'bo': zeros((d_model,))}

    def enc_layer():
        return {'attn': attn(),
                'ffn_w1': w((d_model, d_ff)), 'ffn_b1': zeros((d_ff,)),
                'ffn_w2': w((d_ff, d_model)), 'ffn_b2': zeros((d_model,)),
                'ln1_g': ones((d_model,)), 'ln1_b': zeros((d_model,)),
                'ln2_g': ones((d_model,)), 'ln2_b': zeros((d_model,))}

    def conv():
        return {'conv_w': w((d_model, d_model, 3)), 'conv_b': zeros((d_model,))}

    def dec_layer():
        return {'self_attn': attn(), 'cross_attn': attn(),
                'ffn_w1': w((d_model, d_ff)), 'ffn_b1': zeros((d_ff,)),
                'ffn_w2': w((d_ff, d_model)), 'ffn_b2': zeros((d_model,)),
                'ln1_g': ones((d_model,)), 'ln1_b': zeros((d_model,)),
                'ln2_g': ones((d_model,)), 'ln2_b': zeros((d_model,)),
                'ln3_g': ones((d_model,)), 'ln3_b': zeros((d_model,))}

    return {
        'enc_emb': emb(enc_in),
        'dec_emb': emb(dec_in),
        'enc_layers': [enc_layer() for _ in range(cfg['e_layers'])],
        'enc_convs': [conv() for _ in range(cfg['e_layers'] - 1)],
        'enc_norm_g': ones((d_model,)), 'enc_norm_b': zeros((d_model,)),
        'dec_layers': [dec_layer() for _ in range(cfg['d_layers'])],
        'dec_norm_g': ones((d_model,)), 'dec_norm_b': zeros((d_model,)),
        'proj_w': w((d_model, c_out)), 'proj_b': zeros((c_out,)),
    }


def prepare_params(params, cfg):
    """One-time folding into kernel-friendly layout:
       * fuse Q|K|V (self-attn) / K|V (cross-attn) weights,
       * fold 1/sqrt(dh) attention scale into the Q projection,
       * fold the eval-mode BatchNorm scale into the distil conv,
       * split conv kernels into per-tap matmul weights,
       * cast matmul weights to bf16, reshape biases / LN params to (1, N),
       * pad the final projection to a lane-dense 128-wide slab,
       * precompute the positional-embedding table."""
    inv_bn = 1.0 / math.sqrt(1.0 + 1e-5)    # BatchNorm1d eval, default stats
    d_model = cfg['d_model']
    scale = 1.0 / math.sqrt(d_model // cfg['n_heads'])

    def row(v):
        return v.reshape(1, -1).astype(jnp.float32)

    def wcast(v):
        return v.astype(_MXU_DTYPE)

    def conv3_split(w_torch, s=1.0):
        # torch Conv1d weight (C_out, C_in, 3) -> three (C_in, C_out) matrices
        return tuple(wcast(s * w_torch[:, :, k].T) for k in range(3))

    def emb(p):
        w0, w1, w2 = conv3_split(p['token_w'])
        return {'token_w0': w0, 'token_w1': w1, 'token_w2': w2,
                'temporal_w': wcast(p['temporal_w'])}

    def self_attn(p, ln_g, ln_b):
        wqkv = jnp.concatenate([p['wq'] * scale, p['wk'], p['wv']], axis=1)
        bqkv = jnp.concatenate([p['bq'] * scale, p['bk'], p['bv']])
        return {'wqkv': wcast(wqkv), 'bqkv': row(bqkv),
                'wo': wcast(p['wo']), 'bo': row(p['bo']),
                'ln_g': row(ln_g), 'ln_b': row(ln_b)}

    def cross_attn(p, ln_g, ln_b):
        return {'wq': wcast(p['wq'] * scale), 'bq': row(p['bq'] * scale),
                'wkv': wcast(jnp.concatenate([p['wk'], p['wv']], axis=1)),
                'bkv': row(jnp.concatenate([p['bk'], p['bv']])),
                'wo': wcast(p['wo']), 'bo': row(p['bo']),
                'ln_g': row(ln_g), 'ln_b': row(ln_b)}

    enc_layers = []
    for lp in params['enc_layers']:
        enc_layers.append({
            'attn': self_attn(lp['attn'], lp['ln1_g'], lp['ln1_b']),
            'ffn_w1': wcast(lp['ffn_w1']), 'ffn_b1': row(lp['ffn_b1']),
            'ffn_w2': wcast(lp['ffn_w2']), 'ffn_b2': row(lp['ffn_b2']),
            'ln_g': row(lp['ln2_g']), 'ln_b': row(lp['ln2_b'])})

    enc_convs = []
    for cp in params['enc_convs']:
        w0, w1, w2 = conv3_split(cp['conv_w'], s=inv_bn)
        enc_convs.append({'conv_w0': w0, 'conv_w1': w1, 'conv_w2': w2,
                          'conv_b': row(cp['conv_b'] * inv_bn)})

    dec_layers = []
    for lp in params['dec_layers']:
        dec_layers.append({
            'self_attn': self_attn(lp['self_attn'], lp['ln1_g'], lp['ln1_b']),
            'cross_attn': cross_attn(lp['cross_attn'], lp['ln2_g'], lp['ln2_b']),
            'ffn_w1': wcast(lp['ffn_w1']), 'ffn_b1': row(lp['ffn_b1']),
            'ffn_w2': wcast(lp['ffn_w2']), 'ffn_b2': row(lp['ffn_b2']),
            'ln_g': row(lp['ln3_g']), 'ln_b': row(lp['ln3_b'])})

    # Lane-dense final projection: pad c_out up to a multiple of 128 lanes.
    c_out = cfg['c_out']
    n_pad = max(128, ((c_out + 127) // 128) * 128)
    proj_w = jnp.zeros((d_model, n_pad), jnp.float32
                       ).at[:, :c_out].set(params['proj_w'])
    proj_b = jnp.zeros((1, n_pad), jnp.float32
                       ).at[0, :c_out].set(params['proj_b'])

    max_len = max(cfg['seq_len'], cfg['label_len'] + cfg['pred_len'])
    return {
        'pe': positional_embedding(max_len, d_model),
        'enc_emb': emb(params['enc_emb']),
        'dec_emb': emb(params['dec_emb']),
        'enc_layers': enc_layers,
        'enc_convs': enc_convs,
        'enc_norm_g': row(params['enc_norm_g']),
        'enc_norm_b': row(params['enc_norm_b']),
        'dec_layers': dec_layers,
        'dec_norm_g': row(params['dec_norm_g']),
        'dec_norm_b': row(params['dec_norm_b']),
        'proj_w': wcast(proj_w), 'proj_b': proj_b,
    }


# ----------------------------------------------------------------------------
if __name__ == '__main__':
    cfg = dict(
        task_name='long_term_forecast',
        enc_in=4, dec_in=4, c_out=4, mark_in=4,      # embed='timeF', freq='h'
        d_model=32, n_heads=4, d_ff=64,
        e_layers=2, d_layers=1,
        seq_len=16, label_len=8, pred_len=8,
        activation='gelu',
    )

    root = jax.random.PRNGKey(0)
    k_params, k1, k2, k3, k4 = jax.random.split(root, 5)
    params = init_params(k_params, cfg)
    fast_params = prepare_params(params, cfg)

    B = 2
    x_enc = jax.random.normal(k1, (B, cfg['seq_len'], cfg['enc_in']), jnp.float32)
    x_mark_enc = jax.random.normal(k2, (B, cfg['seq_len'], cfg['mark_in']), jnp.float32)
    dec_len = cfg['label_len'] + cfg['pred_len']
    x_dec = jax.random.normal(k3, (B, dec_len, cfg['dec_in']), jnp.float32)
    x_mark_dec = jax.random.normal(k4, (B, dec_len, cfg['mark_in']), jnp.float32)

    fwd = jax.jit(lambda p, a, b, c, d: model_forward(p, cfg, a, b, c, d))
    out = fwd(fast_params, x_enc, x_mark_enc, x_dec, x_mark_dec)
    out = jax.block_until_ready(out)

    assert out.shape == (B, cfg['pred_len'], cfg['c_out']), out.shape
    assert bool(jnp.all(jnp.isfinite(out)))
    print("KERNEL_OK")
</pallas_src>

<mosaic_0001>
module attributes {stable_mosaic.version = 11 : i64} {
  func.func @_embed_kernel(%arg0: i32, %arg1: memref<1x16x4xbf16, #tpu.memory_space<vmem>>, %arg2: memref<1x16x4xbf16, #tpu.memory_space<vmem>>, %arg3: memref<16x32xf32, #tpu.memory_space<vmem>>, %arg4: memref<4x32xbf16, #tpu.memory_space<vmem>>, %arg5: memref<4x32xbf16, #tpu.memory_space<vmem>>, %arg6: memref<4x32xbf16, #tpu.memory_space<vmem>>, %arg7: memref<4x32xbf16, #tpu.memory_space<vmem>>, %arg8: memref<1x16x32xbf16, #tpu.memory_space<vmem>>) attributes {dimension_semantics = [#tpu.dimension_semantics<parallel>], iteration_bounds = array<i64: 2>, scalar_prefetch = 0 : i64, scratch_operands = 0 : i64, tpu.core_type = #tpu.core_type<tc>, window_params = [{transform_indices = @transform_0, window_bounds = array<i64: 1, 16, 4>}, {transform_indices = @transform_1, window_bounds = array<i64: 1, 16, 4>}, {pipeline_mode = #tpu.pipeline_mode<synchronous>, transform_indices = @transform_2, window_bounds = array<i64: 16, 32>}, {pipeline_mode = #tpu.pipeline_mode<synchronous>, transform_indices = @transform_3, window_bounds = array<i64: 4, 32>}, {pipeline_mode = #tpu.pipeline_mode<synchronous>, transform_indices = @transform_4, window_bounds = array<i64: 4, 32>}, {pipeline_mode = #tpu.pipeline_mode<synchronous>, transform_indices = @transform_5, window_bounds = array<i64: 4, 32>}, {pipeline_mode = #tpu.pipeline_mode<synchronous>, transform_indices = @transform_6, window_bounds = array<i64: 4, 32>}, {transform_indices = @transform_7, window_bounds = array<i64: 1, 16, 32>}]} {
    %c0 = arith.constant 0 : index
    %c0_0 = arith.constant 0 : index
    %c0_1 = arith.constant 0 : index
    %0 = vector.load %arg1[%c0, %c0_0, %c0_1] : memref<1x16x4xbf16, #tpu.memory_space<vmem>>, vector<1x16x4xbf16>
    %1 = vector.shape_cast %0 : vector<1x16x4xbf16> to vector<16x4xbf16>
    %2 = arith.extf %1 : vector<16x4xbf16> to vector<16x4xf32>
    %c0_2 = arith.constant 0 : index
    %c0_3 = arith.constant 0 : index
    %c0_4 = arith.constant 0 : index
    %3 = vector.load %arg2[%c0_2, %c0_3, %c0_4] : memref<1x16x4xbf16, #tpu.memory_space<vmem>>, vector<1x16x4xbf16>
    %4 = vector.shape_cast %3 : vector<1x16x4xbf16> to vector<16x4xbf16>
    %5 = vector.extract_strided_slice %2 {offsets = [15, 0], sizes = [1, 4], strides = [1, 1]} : vector<16x4xf32> to vector<1x4xf32>
    %6 = vector.extract_strided_slice %2 {offsets = [0, 0], sizes = [15, 4], strides = [1, 1]} : vector<16x4xf32> to vector<15x4xf32>
    %7 = tpu.concatenate %5, %6 in 0 : vector<1x4xf32>, vector<15x4xf32> -> vector<16x4xf32>
    %c0_5 = arith.constant 0 : index
    %c0_6 = arith.constant 0 : index
    %8 = vector.load %arg4[%c0_5, %c0_6] : memref<4x32xbf16, #tpu.memory_space<vmem>>, vector<4x32xbf16>
    %9 = arith.truncf %7 : vector<16x4xf32> to vector<16x4xbf16>
    %cst = arith.constant dense<0.000000e+00> : vector<16x32xf32>
    %10 = tpu.matmul %9, %8, %cst {dimension_numbers = #tpu.dot_dimension_numbers<[1], [0], [0], [1], [0, 0, 1, 1], [], []>} : vector<16x4xbf16>, vector<4x32xbf16>, vector<16x32xf32> -> vector<16x32xf32>
    %c0_7 = arith.constant 0 : index
    %c0_8 = arith.constant 0 : index
    %11 = vector.load %arg5[%c0_7, %c0_8] : memref<4x32xbf16, #tpu.memory_space<vmem>>, vector<4x32xbf16>
    %12 = arith.truncf %2 : vector<16x4xf32> to vector<16x4xbf16>
    %cst_9 = arith.constant dense<0.000000e+00> : vector<16x32xf32>
    %13 = tpu.matmul %12, %11, %cst_9 {dimension_numbers = #tpu.dot_dimension_numbers<[1], [0], [0], [1], [0, 0, 1, 1], [], []>} : vector<16x4xbf16>, vector<4x32xbf16>, vector<16x32xf32> -> vector<16x32xf32>
    %14 = arith.addf %10, %13 : vector<16x32xf32>
    %15 = vector.extract_strided_slice %2 {offsets = [1, 0], sizes = [15, 4], strides = [1, 1]} : vector<16x4xf32> to vector<15x4xf32>
    %16 = vector.extract_strided_slice %2 {offsets = [0, 0], sizes = [1, 4], strides = [1, 1]} : vector<16x4xf32> to vector<1x4xf32>
    %17 = tpu.concatenate %15, %16 in 0 : vector<15x4xf32>, vector<1x4xf32> -> vector<16x4xf32>
    %c0_10 = arith.constant 0 : index
    %c0_11 = arith.constant 0 : index
    %18 = vector.load %arg6[%c0_10, %c0_11] : memref<4x32xbf16, #tpu.memory_space<vmem>>, vector<4x32xbf16>
    %19 = arith.truncf %17 : vector<16x4xf32> to vector<16x4xbf16>
    %cst_12 = arith.constant dense<0.000000e+00> : vector<16x32xf32>
    %20 = tpu.matmul %19, %18, %cst_12 {dimension_numbers = #tpu.dot_dimension_numbers<[1], [0], [0], [1], [0, 0, 1, 1], [], []>} : vector<16x4xbf16>, vector<4x32xbf16>, vector<16x32xf32> -> vector<16x32xf32>
    %21 = arith.addf %14, %20 : vector<16x32xf32>
    %c0_13 = arith.constant 0 : index
    %c0_14 = arith.constant 0 : index
    %22 = vector.load %arg7[%c0_13, %c0_14] : memref<4x32xbf16, #tpu.memory_space<vmem>>, vector<4x32xbf16>
    %cst_15 = arith.constant dense<0.000000e+00> : vector<16x32xf32>
    %23 = tpu.matmul %4, %22, %cst_15 {dimension_numbers = #tpu.dot_dimension_numbers<[1], [0], [0], [1], [0, 0, 1, 1], [], []>} : vector<16x4xbf16>, vector<4x32xbf16>, vector<16x32xf32> -> vector<16x32xf32>
    %24 = arith.addf %21, %23 : vector<16x32xf32>
    %c0_16 = arith.constant 0 : index
    %c0_17 = arith.constant 0 : index
    %25 = vector.load %arg3[%c0_16, %c0_17] : memref<16x32xf32, #tpu.memory_space<vmem>>, vector<16x32xf32>
    %26 = arith.addf %24, %25 : vector<16x32xf32>
    %27 = arith.truncf %26 : vector<16x32xf32> to vector<16x32xbf16>
    %c0_18 = arith.constant 0 : index
    %c0_19 = arith.constant 0 : index
    %c0_20 = arith.constant 0 : index
    %28 = vector.load %arg8[%c0_18, %c0_19, %c0_20] : memref<1x16x32xbf16, #tpu.memory_space<vmem>>, vector<1x16x32xbf16>
    %29 = vector.shape_cast %28 : vector<1x16x32xbf16> to vector<16x32xbf16>
    %30 = vector.shape_cast %27 : vector<16x32xbf16> to vector<1x16x32xbf16>
    tpu.vector_store %arg8[%c0_18, %c0_19, %c0_20], %30 {strides = array<i32>} : memref<1x16x32xbf16, #tpu.memory_space<vmem>>, vector<1x16x32xbf16>,
    return
  }
  func.func @transform_0(%arg0: i32) -> (i32, i32, i32) {
    %c0_i32 = arith.constant 0 : i32
    %c0_i32_0 = arith.constant 0 : i32
    %c0_i32_1 = arith.constant 0 : i32
    return %arg0, %c0_i32, %c0_i32_0 : i32, i32, i32
  }
  func.func @transform_1(%arg0: i32) -> (i32, i32, i32) {
    %c0_i32 = arith.constant 0 : i32
    %c0_i32_0 = arith.constant 0 : i32
    %c0_i32_1 = arith.constant 0 : i32
    return %arg0, %c0_i32, %c0_i32_0 : i32, i32, i32
  }
  func.func @transform_2(%arg0: i32) -> (i32, i32) {
    %c0_i32 = arith.constant 0 : i32
    %c0_i32_0 = arith.constant 0 : i32
    %c0_i32_1 = arith.constant 0 : i32
    return %c0_i32, %c0_i32_0 : i32, i32
  }
  func.func @transform_3(%arg0: i32) -> (i32, i32) {
    %c0_i32 = arith.constant 0 : i32
    %c0_i32_0 = arith.constant 0 : i32
    %c0_i32_1 = arith.constant 0 : i32
    return %c0_i32, %c0_i32_0 : i32, i32
  }
  func.func @transform_4(%arg0: i32) -> (i32, i32) {
    %c0_i32 = arith.constant 0 : i32
    %c0_i32_0 = arith.constant 0 : i32
    %c0_i32_1 = arith.constant 0 : i32
    return %c0_i32, %c0_i32_0 : i32, i32
  }
  func.func @transform_5(%arg0: i32) -> (i32, i32) {
    %c0_i32 = arith.constant 0 : i32
    %c0_i32_0 = arith.constant 0 : i32
    %c0_i32_1 = arith.constant 0 : i32
    return %c0_i32, %c0_i32_0 : i32, i32
  }
  func.func @transform_6(%arg0: i32) -> (i32, i32) {
    %c0_i32 = arith.constant 0 : i32
    %c0_i32_0 = arith.constant 0 : i32
    %c0_i32_1 = arith.constant 0 : i32
    return %c0_i32, %c0_i32_0 : i32, i32
  }
  func.func @transform_7(%arg0: i32) -> (i32, i32, i32) {
    %c0_i32 = arith.constant 0 : i32
    %c0_i32_0 = arith.constant 0 : i32
    %c0_i32_1 = arith.constant 0 : i32
    return %arg0, %c0_i32, %c0_i32_0 : i32, i32, i32
  }
}

module attributes {stable_mosaic.version = 11 : i64} {
  func.func @_conv_pool_kernel(%arg0: i32, %arg1: memref<1x16x32xbf16, #tpu.memory_space<vmem>>, %arg2: memref<32x32xbf16, #tpu.memory_space<vmem>>, %arg3: memref<32x32xbf16, #tpu.memory_space<vmem>>, %arg4: memref<32x32xbf16, #tpu.memory_space<vmem>>, %arg5: memref<1x32xf32, #tpu.memory_space<vmem>>, %arg6: memref<1x16x32xbf16, #tpu.memory_space<vmem>>) attributes {dimension_semantics = [#tpu.dimension_semantics<parallel>], iteration_bounds = array<i64: 2>, scalar_prefetch = 0 : i64, scratch_operands = 0 : i64, tpu.core_type = #tpu.core_type<tc>, window_params = [{transform_indices = @transform_0, window_bounds = array<i64: 1, 16, 32>}, {pipeline_mode = #tpu.pipeline_mode<synchronous>, transform_indices = @transform_1, window_bounds = array<i64: 32, 32>}, {pipeline_mode = #tpu.pipeline_mode<synchronous>, transform_indices = @transform_2, window_bounds = array<i64: 32, 32>}, {pipeline_mode = #tpu.pipeline_mode<synchronous>, transform_indices = @transform_3, window_bounds = array<i64: 32, 32>}, {pipeline_mode = #tpu.pipeline_mode<synchronous>, transform_indices = @transform_4, window_bounds = array<i64: 1, 32>}, {transform_indices = @transform_5, window_bounds = array<i64: 1, 16, 32>}]} {
    %c0 = arith.constant 0 : index
    %c0_0 = arith.constant 0 : index
    %c0_1 = arith.constant 0 : index
    %0 = vector.load %arg1[%c0, %c0_0, %c0_1] : memref<1x16x32xbf16, #tpu.memory_space<vmem>>, vector<1x16x32xbf16>
    %1 = vector.shape_cast %0 : vector<1x16x32xbf16> to vector<16x32xbf16>
    %2 = arith.extf %1 : vector<16x32xbf16> to vector<16x32xf32>
    %3 = vector.extract_strided_slice %2 {offsets = [15, 0], sizes = [1, 32], strides = [1, 1]} : vector<16x32xf32> to vector<1x32xf32>
    %4 = vector.extract_strided_slice %2 {offsets = [0, 0], sizes = [15, 32], strides = [1, 1]} : vector<16x32xf32> to vector<15x32xf32>
    %5 = tpu.concatenate %3, %4 in 0 : vector<1x32xf32>, vector<15x32xf32> -> vector<16x32xf32>
    %c0_2 = arith.constant 0 : index
    %c0_3 = arith.constant 0 : index
    %6 = vector.load %arg2[%c0_2, %c0_3] : memref<32x32xbf16, #tpu.memory_space<vmem>>, vector<32x32xbf16>
    %7 = arith.truncf %5 : vector<16x32xf32> to vector<16x32xbf16>
    %cst = arith.constant dense<0.000000e+00> : vector<16x32xf32>
    %8 = tpu.matmul %7, %6, %cst {dimension_numbers = #tpu.dot_dimension_numbers<[1], [0], [0], [1], [0, 0, 1, 1], [], []>} : vector<16x32xbf16>, vector<32x32xbf16>, vector<16x32xf32> -> vector<16x32xf32>
    %c0_4 = arith.constant 0 : index
    %c0_5 = arith.constant 0 : index
    %9 = vector.load %arg3[%c0_4, %c0_5] : memref<32x32xbf16, #tpu.memory_space<vmem>>, vector<32x32xbf16>
    %10 = arith.truncf %2 : vector<16x32xf32> to vector<16x32xbf16>
    %cst_6 = arith.constant dense<0.000000e+00> : vector<16x32xf32>
    %11 = tpu.matmul %10, %9, %cst_6 {dimension_numbers = #tpu.dot_dimension_numbers<[1], [0], [0], [1], [0, 0, 1, 1], [], []>} : vector<16x32xbf16>, vector<32x32xbf16>, vector<16x32xf32> -> vector<16x32xf32>
    %12 = arith.addf %8, %11 : vector<16x32xf32>
    %13 = vector.extract_strided_slice %2 {offsets = [1, 0], sizes = [15, 32], strides = [1, 1]} : vector<16x32xf32> to vector<15x32xf32>
    %14 = vector.extract_strided_slice %2 {offsets = [0, 0], sizes = [1, 32], strides = [1, 1]} : vector<16x32xf32> to vector<1x32xf32>
    %15 = tpu.concatenate %13, %14 in 0 : vector<15x32xf32>, vector<1x32xf32> -> vector<16x32xf32>
    %c0_7 = arith.constant 0 : index
    %c0_8 = arith.constant 0 : index
    %16 = vector.load %arg4[%c0_7, %c0_8] : memref<32x32xbf16, #tpu.memory_space<vmem>>, vector<32x32xbf16>
    %17 = arith.truncf %15 : vector<16x32xf32> to vector<16x32xbf16>
    %cst_9 = arith.constant dense<0.000000e+00> : vector<16x32xf32>
    %18 = tpu.matmul %17, %16, %cst_9 {dimension_numbers = #tpu.dot_dimension_numbers<[1], [0], [0], [1], [0, 0, 1, 1], [], []>} : vector<16x32xbf16>, vector<32x32xbf16>, vector<16x32xf32> -> vector<16x32xf32>
    %19 = arith.addf %12, %18 : vector<16x32xf32>
    %c0_10 = arith.constant 0 : index
    %c0_11 = arith.constant 0 : index
    %20 = vector.load %arg5[%c0_10, %c0_11] : memref<1x32xf32, #tpu.memory_space<vmem>>, vector<1x32xf32>
    %21 = vector.broadcast %20 : vector<1x32xf32> to vector<16x32xf32>
    %22 = arith.addf %19, %21 : vector<16x32xf32>
    %cst_12 = arith.constant 0.000000e+00 : f32
    %23 = vector.broadcast %cst_12 : f32 to vector<16x32xf32>
    %24 = arith.cmpf ogt, %22, %23 : vector<16x32xf32>
    %cst_13 = arith.constant 0.000000e+00 : f32
    %25 = vector.broadcast %cst_13 : f32 to vector<16x32xf32>
    %26 = arith.minimumf %22, %25 : vector<16x32xf32>
    %27 = math.exp %26 : vector<16x32xf32>
    %cst_14 = arith.constant 1.000000e+00 : f32
    %28 = vector.broadcast %cst_14 : f32 to vector<16x32xf32>
    %29 = arith.subf %27, %28 : vector<16x32xf32>
    %30 = arith.select %24, %22, %29 : vector<16x32xi1>, vector<16x32xf32>
    %cst_15 = arith.constant -1.000000e+30 : f32
    %31 = vector.broadcast %cst_15 : f32 to vector<1x32xf32>
    %32 = vector.extract_strided_slice %30 {offsets = [0, 0], sizes = [15, 32], strides = [1, 1]} : vector<16x32xf32> to vector<15x32xf32>
    %33 = tpu.concatenate %31, %32 in 0 : vector<1x32xf32>, vector<15x32xf32> -> vector<16x32xf32>
    %34 = vector.extract_strided_slice %30 {offsets = [1, 0], sizes = [15, 32], strides = [1, 1]} : vector<16x32xf32> to vector<15x32xf32>
    %35 = tpu.concatenate %34, %31 in 0 : vector<15x32xf32>, vector<1x32xf32> -> vector<16x32xf32>
    %36 = arith.maximumf %33, %30 : vector<16x32xf32>
    %37 = arith.maximumf %36, %35 : vector<16x32xf32>
    %38 = arith.truncf %37 : vector<16x32xf32> to vector<16x32xbf16>
    %c0_16 = arith.constant 0 : index
    %c0_17 = arith.constant 0 : index
    %c0_18 = arith.constant 0 : index
    %39 = vector.load %arg6[%c0_16, %c0_17, %c0_18] : memref<1x16x32xbf16, #tpu.memory_space<vmem>>, vector<1x16x32xbf16>
    %40 = vector.shape_cast %39 : vector<1x16x32xbf16> to vector<16x32xbf16>
    %41 = vector.shape_cast %38 : vector<16x32xbf16> to vector<1x16x32xbf16>
    tpu.vector_store %arg6[%c0_16, %c0_17, %c0_18], %41 {strides = array<i32>} : memref<1x16x32xbf16, #tpu.memory_space<vmem>>, vector<1x16x32xbf16>,
    return
  }
  func.func @transform_0(%arg0: i32) -> (i32, i32, i32) {
    %c0_i32 = arith.constant 0 : i32
    %c0_i32_0 = arith.constant 0 : i32
    %c0_i32_1 = arith.constant 0 : i32
    return %arg0, %c0_i32, %c0_i32_0 : i32, i32, i32
  }
  func.func @transform_1(%arg0: i32) -> (i32, i32) {
    %c0_i32 = arith.constant 0 : i32
    %c0_i32_0 = arith.constant 0 : i32
    %c0_i32_1 = arith.constant 0 : i32
    return %c0_i32, %c0_i32_0 : i32, i32
  }
  func.func @transform_2(%arg0: i32) -> (i32, i32) {
    %c0_i32 = arith.constant 0 : i32
    %c0_i32_0 = arith.constant 0 : i32
    %c0_i32_1 = arith.constant 0 : i32
    return %c0_i32, %c0_i32_0 : i32, i32
  }
  func.func @transform_3(%arg0: i32) -> (i32, i32) {
    %c0_i32 = arith.constant 0 : i32
    %c0_i32_0 = arith.constant 0 : i32
    %c0_i32_1 = arith.constant 0 : i32
    return %c0_i32, %c0_i32_0 : i32, i32
  }
  func.func @transform_4(%arg0: i32) -> (i32, i32) {
    %c0_i32 = arith.constant 0 : i32
    %c0_i32_0 = arith.constant 0 : i32
    %c0_i32_1 = arith.constant 0 : i32
    return %c0_i32, %c0_i32_0 : i32, i32
  }
  func.func @transform_5(%arg0: i32) -> (i32, i32, i32) {
    %c0_i32 = arith.constant 0 : i32
    %c0_i32_0 = arith.constant 0 : i32
    %c0_i32_1 = arith.constant 0 : i32
    return %arg0, %c0_i32, %c0_i32_0 : i32, i32, i32
  }
}

module attributes {stable_mosaic.version = 11 : i64} {
  func.func @_encoder_layer_kernel(%arg0: i32, %arg1: memref<1x16x32xbf16, #tpu.memory_space<vmem>>, %arg2: memref<32x96xbf16, #tpu.memory_space<vmem>>, %arg3: memref<1x96xf32, #tpu.memory_space<vmem>>, %arg4: memref<32x32xbf16, #tpu.memory_space<vmem>>, %arg5: memref<1x32xf32, #tpu.memory_space<vmem>>, %arg6: memref<1x32xf32, #tpu.memory_space<vmem>>, %arg7: memref<1x32xf32, #tpu.memory_space<vmem>>, %arg8: memref<32x64xbf16, #tpu.memory_space<vmem>>, %arg9: memref<1x64xf32, #tpu.memory_space<vmem>>, %arg10: memref<64x32xbf16, #tpu.memory_space<vmem>>, %arg11: memref<1x32xf32, #tpu.memory_space<vmem>>, %arg12: memref<1x32xf32, #tpu.memory_space<vmem>>, %arg13: memref<1x32xf32, #tpu.memory_space<vmem>>, %arg14: memref<1x16x32xbf16, #tpu.memory_space<vmem>>) attributes {dimension_semantics = [#tpu.dimension_semantics<parallel>], iteration_bounds = array<i64: 2>, scalar_prefetch = 0 : i64, scratch_operands = 0 : i64, tpu.core_type = #tpu.core_type<tc>, window_params = [{transform_indices = @transform_0, window_bounds = array<i64: 1, 16, 32>}, {pipeline_mode = #tpu.pipeline_mode<synchronous>, transform_indices = @transform_1, window_bounds = array<i64: 32, 96>}, {pipeline_mode = #tpu.pipeline_mode<synchronous>, transform_indices = @transform_2, window_bounds = array<i64: 1, 96>}, {pipeline_mode = #tpu.pipeline_mode<synchronous>, transform_indices = @transform_3, window_bounds = array<i64: 32, 32>}, {pipeline_mode = #tpu.pipeline_mode<synchronous>, transform_indices = @transform_4, window_bounds = array<i64: 1, 32>}, {pipeline_mode = #tpu.pipeline_mode<synchronous>, transform_indices = @transform_5, window_bounds = array<i64: 1, 32>}, {pipeline_mode = #tpu.pipeline_mode<synchronous>, transform_indices = @transform_6, window_bounds = array<i64: 1, 32>}, {pipeline_mode = #tpu.pipeline_mode<synchronous>, transform_indices = @transform_7, window_bounds = array<i64: 32, 64>}, {pipeline_mode = #tpu.pipeline_mode<synchronous>, transform_indices = @transform_8, window_bounds = array<i64: 1, 64>}, {pipeline_mode = #tpu.pipeline_mode<synchronous>, transform_indices = @transform_9, window_bounds = array<i64: 64, 32>}, {pipeline_mode = #tpu.pipeline_mode<synchronous>, transform_indices = @transform_10, window_bounds = array<i64: 1, 32>}, {pipeline_mode = #tpu.pipeline_mode<synchronous>, transform_indices = @transform_11, window_bounds = array<i64: 1, 32>}, {pipeline_mode = #tpu.pipeline_mode<synchronous>, transform_indices = @transform_12, window_bounds = array<i64: 1, 32>}, {transform_indices = @transform_13, window_bounds = array<i64: 1, 16, 32>}]} {
    %c0 = arith.constant 0 : index
    %c0_0 = arith.constant 0 : index
    %c0_1 = arith.constant 0 : index
    %0 = vector.load %arg1[%c0, %c0_0, %c0_1] : memref<1x16x32xbf16, #tpu.memory_space<vmem>>, vector<1x16x32xbf16>
    %1 = vector.shape_cast %0 : vector<1x16x32xbf16> to vector<16x32xbf16>
    %2 = arith.extf %1 : vector<16x32xbf16> to vector<16x32xf32>
    %c0_2 = arith.constant 0 : index
    %c0_3 = arith.constant 0 : index
    %3 = vector.load %arg2[%c0_2, %c0_3] : memref<32x96xbf16, #tpu.memory_space<vmem>>, vector<32x96xbf16>
    %4 = arith.truncf %2 : vector<16x32xf32> to vector<16x32xbf16>
    %cst = arith.constant dense<0.000000e+00> : vector<16x96xf32>
    %5 = tpu.matmul %4, %3, %cst {dimension_numbers = #tpu.dot_dimension_numbers<[1], [0], [0], [1], [0, 0, 1, 1], [], []>} : vector<16x32xbf16>, vector<32x96xbf16>, vector<16x96xf32> -> vector<16x96xf32>
    %c0_4 = arith.constant 0 : index
    %c0_5 = arith.constant 0 : index
    %6 = vector.load %arg3[%c0_4, %c0_5] : memref<1x96xf32, #tpu.memory_space<vmem>>, vector<1x96xf32>
    %7 = vector.broadcast %6 : vector<1x96xf32> to vector<16x96xf32>
    %8 = arith.addf %5, %7 : vector<16x96xf32>
    %9 = vector.extract_strided_slice %8 {offsets = [0, 0], sizes = [16, 32], strides = [1, 1]} : vector<16x96xf32> to vector<16x32xf32>
    %10 = vector.extract_strided_slice %8 {offsets = [0, 32], sizes = [16, 32], strides = [1, 1]} : vector<16x96xf32> to vector<16x32xf32>
    %11 = vector.extract_strided_slice %8 {offsets = [0, 64], sizes = [16, 32], strides = [1, 1]} : vector<16x96xf32> to vector<16x32xf32>
    %12 = vector.extract_strided_slice %9 {offsets = [0, 0], sizes = [16, 8], strides = [1, 1]} : vector<16x32xf32> to vector<16x8xf32>
    %13 = arith.truncf %12 : vector<16x8xf32> to vector<16x8xbf16>
    %14 = vector.extract_strided_slice %10 {offsets = [0, 0], sizes = [16, 8], strides = [1, 1]} : vector<16x32xf32> to vector<16x8xf32>
    %15 = arith.truncf %14 : vector<16x8xf32> to vector<16x8xbf16>
    %16 = vector.extract_strided_slice %11 {offsets = [0, 0], sizes = [16, 8], strides = [1, 1]} : vector<16x32xf32> to vector<16x8xf32>
    %17 = arith.truncf %16 : vector<16x8xf32> to vector<16x8xbf16>
    %cst_6 = arith.constant dense<0.000000e+00> : vector<16x16xf32>
    %18 = tpu.matmul %13, %15, %cst_6 {dimension_numbers = #tpu.dot_dimension_numbers<[1], [1], [0], [0], [0, 0, 1, 0], [], []>} : vector<16x8xbf16>, vector<16x8xbf16>, vector<16x16xf32> -> vector<16x16xf32>
    %cst_7 = arith.constant dense<0xFF800000> : vector<16xf32>
    %19 = vector.multi_reduction <maximumf>, %18, %cst_7 [1] : vector<16x16xf32> to vector<16xf32>
    %20 = vector.shape_cast %19 : vector<16xf32> to vector<16x1xf32>
    %21 = vector.broadcast %20 : vector<16x1xf32> to vector<16x16xf32>
    %22 = arith.subf %18, %21 : vector<16x16xf32>
    %23 = math.exp %22 : vector<16x16xf32>
    %cst_8 = arith.constant dense<0.000000e+00> : vector<16xf32>
    %24 = vector.multi_reduction <add>, %23, %cst_8 [1] : vector<16x16xf32> to vector<16xf32>
    %25 = vector.shape_cast %24 : vector<16xf32> to vector<16x1xf32>
    %26 = arith.truncf %23 : vector<16x16xf32> to vector<16x16xbf16>
    %cst_9 = arith.constant dense<0.000000e+00> : vector<16x8xf32>
    %27 = tpu.matmul %26, %17, %cst_9 {dimension_numbers = #tpu.dot_dimension_numbers<[1], [0], [0], [1], [0, 0, 1, 1], [], []>} : vector<16x16xbf16>, vector<16x8xbf16>, vector<16x8xf32> -> vector<16x8xf32>
    %28 = tpu.reciprocal %25 {approx = true} : vector<16x1xf32> -> vector<16x1xf32>
    %29 = vector.broadcast %28 : vector<16x1xf32> to vector<16x8xf32>
    %30 = arith.mulf %27, %29 : vector<16x8xf32>
    %31 = vector.extract_strided_slice %9 {offsets = [0, 8], sizes = [16, 8], strides = [1, 1]} : vector<16x32xf32> to vector<16x8xf32>
    %32 = arith.truncf %31 : vector<16x8xf32> to vector<16x8xbf16>
    %33 = vector.extract_strided_slice %10 {offsets = [0, 8], sizes = [16, 8], strides = [1, 1]} : vector<16x32xf32> to vector<16x8xf32>
    %34 = arith.truncf %33 : vector<16x8xf32> to vector<16x8xbf16>
    %35 = vector.extract_strided_slice %11 {offsets = [0, 8], sizes = [16, 8], strides = [1, 1]} : vector<16x32xf32> to vector<16x8xf32>
    %36 = arith.truncf %35 : vector<16x8xf32> to vector<16x8xbf16>
    %cst_10 = arith.constant dense<0.000000e+00> : vector<16x16xf32>
    %37 = tpu.matmul %32, %34, %cst_10 {dimension_numbers = #tpu.dot_dimension_numbers<[1], [1], [0], [0], [0, 0, 1, 0], [], []>} : vector<16x8xbf16>, vector<16x8xbf16>, vector<16x16xf32> -> vector<16x16xf32>
    %cst_11 = arith.constant dense<0xFF800000> : vector<16xf32>
    %38 = vector.multi_reduction <maximumf>, %37, %cst_11 [1] : vector<16x16xf32> to vector<16xf32>
    %39 = vector.shape_cast %38 : vector<16xf32> to vector<16x1xf32>
    %40 = vector.broadcast %39 : vector<16x1xf32> to vector<16x16xf32>
    %41 = arith.subf %37, %40 : vector<16x16xf32>
    %42 = math.exp %41 : vector<16x16xf32>
    %cst_12 = arith.constant dense<0.000000e+00> : vector<16xf32>
    %43 = vector.multi_reduction <add>, %42, %cst_12 [1] : vector<16x16xf32> to vector<16xf32>
    %44 = vector.shape_cast %43 : vector<16xf32> to vector<16x1xf32>
    %45 = arith.truncf %42 : vector<16x16xf32> to vector<16x16xbf16>
    %cst_13 = arith.constant dense<0.000000e+00> : vector<16x8xf32>
    %46 = tpu.matmul %45, %36, %cst_13 {dimension_numbers = #tpu.dot_dimension_numbers<[1], [0], [0], [1], [0, 0, 1, 1], [], []>} : vector<16x16xbf16>, vector<16x8xbf16>, vector<16x8xf32> -> vector<16x8xf32>
    %47 = tpu.reciprocal %44 {approx = true} : vector<16x1xf32> -> vector<16x1xf32>
    %48 = vector.broadcast %47 : vector<16x1xf32> to vector<16x8xf32>
    %49 = arith.mulf %46, %48 : vector<16x8xf32>
    %50 = vector.extract_strided_slice %9 {offsets = [0, 16], sizes = [16, 8], strides = [1, 1]} : vector<16x32xf32> to vector<16x8xf32>
    %51 = arith.truncf %50 : vector<16x8xf32> to vector<16x8xbf16>
    %52 = vector.extract_strided_slice %10 {offsets = [0, 16], sizes = [16, 8], strides = [1, 1]} : vector<16x32xf32> to vector<16x8xf32>
    %53 = arith.truncf %52 : vector<16x8xf32> to vector<16x8xbf16>
    %54 = vector.extract_strided_slice %11 {offsets = [0, 16], sizes = [16, 8], strides = [1, 1]} : vector<16x32xf32> to vector<16x8xf32>
    %55 = arith.truncf %54 : vector<16x8xf32> to vector<16x8xbf16>
    %cst_14 = arith.constant dense<0.000000e+00> : vector<16x16xf32>
    %56 = tpu.matmul %51, %53, %cst_14 {dimension_numbers = #tpu.dot_dimension_numbers<[1], [1], [0], [0], [0, 0, 1, 0], [], []>} : vector<16x8xbf16>, vector<16x8xbf16>, vector<16x16xf32> -> vector<16x16xf32>
    %cst_15 = arith.constant dense<0xFF800000> : vector<16xf32>
    %57 = vector.multi_reduction <maximumf>, %56, %cst_15 [1] : vector<16x16xf32> to vector<16xf32>
    %58 = vector.shape_cast %57 : vector<16xf32> to vector<16x1xf32>
    %59 = vector.broadcast %58 : vector<16x1xf32> to vector<16x16xf32>
    %60 = arith.subf %56, %59 : vector<16x16xf32>
    %61 = math.exp %60 : vector<16x16xf32>
    %cst_16 = arith.constant dense<0.000000e+00> : vector<16xf32>
    %62 = vector.multi_reduction <add>, %61, %cst_16 [1] : vector<16x16xf32> to vector<16xf32>
    %63 = vector.shape_cast %62 : vector<16xf32> to vector<16x1xf32>
    %64 = arith.truncf %61 : vector<16x16xf32> to vector<16x16xbf16>
    %cst_17 = arith.constant dense<0.000000e+00> : vector<16x8xf32>
    %65 = tpu.matmul %64, %55, %cst_17 {dimension_numbers = #tpu.dot_dimension_numbers<[1], [0], [0], [1], [0, 0, 1, 1], [], []>} : vector<16x16xbf16>, vector<16x8xbf16>, vector<16x8xf32> -> vector<16x8xf32>
    %66 = tpu.reciprocal %63 {approx = true} : vector<16x1xf32> -> vector<16x1xf32>
    %67 = vector.broadcast %66 : vector<16x1xf32> to vector<16x8xf32>
    %68 = arith.mulf %65, %67 : vector<16x8xf32>
    %69 = vector.extract_strided_slice %9 {offsets = [0, 24], sizes = [16, 8], strides = [1, 1]} : vector<16x32xf32> to vector<16x8xf32>
    %70 = arith.truncf %69 : vector<16x8xf32> to vector<16x8xbf16>
    %71 = vector.extract_strided_slice %10 {offsets = [0, 24], sizes = [16, 8], strides = [1, 1]} : vector<16x32xf32> to vector<16x8xf32>
    %72 = arith.truncf %71 : vector<16x8xf32> to vector<16x8xbf16>
    %73 = vector.extract_strided_slice %11 {offsets = [0, 24], sizes = [16, 8], strides = [1, 1]} : vector<16x32xf32> to vector<16x8xf32>
    %74 = arith.truncf %73 : vector<16x8xf32> to vector<16x8xbf16>
    %cst_18 = arith.constant dense<0.000000e+00> : vector<16x16xf32>
    %75 = tpu.matmul %70, %72, %cst_18 {dimension_numbers = #tpu.dot_dimension_numbers<[1], [1], [0], [0], [0, 0, 1, 0], [], []>} : vector<16x8xbf16>, vector<16x8xbf16>, vector<16x16xf32> -> vector<16x16xf32>
    %cst_19 = arith.constant dense<0xFF800000> : vector<16xf32>
    %76 = vector.multi_reduction <maximumf>, %75, %cst_19 [1] : vector<16x16xf32> to vector<16xf32>
    %77 = vector.shape_cast %76 : vector<16xf32> to vector<16x1xf32>
    %78 = vector.broadcast %77 : vector<16x1xf32> to vector<16x16xf32>
    %79 = arith.subf %75, %78 : vector<16x16xf32>
    %80 = math.exp %79 : vector<16x16xf32>
    %cst_20 = arith.constant dense<0.000000e+00> : vector<16xf32>
    %81 = vector.multi_reduction <add>, %80, %cst_20 [1] : vector<16x16xf32> to vector<16xf32>
    %82 = vector.shape_cast %81 : vector<16xf32> to vector<16x1xf32>
    %83 = arith.truncf %80 : vector<16x16xf32> to vector<16x16xbf16>
    %cst_21 = arith.constant dense<0.000000e+00> : vector<16x8xf32>
    %84 = tpu.matmul %83, %74, %cst_21 {dimension_numbers = #tpu.dot_dimension_numbers<[1], [0], [0], [1], [0, 0, 1, 1], [], []>} : vector<16x16xbf16>, vector<16x8xbf16>, vector<16x8xf32> -> vector<16x8xf32>
    %85 = tpu.reciprocal %82 {approx = true} : vector<16x1xf32> -> vector<16x1xf32>
    %86 = vector.broadcast %85 : vector<16x1xf32> to vector<16x8xf32>
    %87 = arith.mulf %84, %86 : vector<16x8xf32>
    %88 = tpu.concatenate %30, %49, %68, %87 in 1 : vector<16x8xf32>, vector<16x8xf32>, vector<16x8xf32>, vector<16x8xf32> -> vector<16x32xf32>
    %c0_22 = arith.constant 0 : index
    %c0_23 = arith.constant 0 : index
    %89 = vector.load %arg4[%c0_22, %c0_23] : memref<32x32xbf16, #tpu.memory_space<vmem>>, vector<32x32xbf16>
    %90 = arith.truncf %88 : vector<16x32xf32> to vector<16x32xbf16>
    %cst_24 = arith.constant dense<0.000000e+00> : vector<16x32xf32>
    %91 = tpu.matmul %90, %89, %cst_24 {dimension_numbers = #tpu.dot_dimension_numbers<[1], [0], [0], [1], [0, 0, 1, 1], [], []>} : vector<16x32xbf16>, vector<32x32xbf16>, vector<16x32xf32> -> vector<16x32xf32>
    %c0_25 = arith.constant 0 : index
    %c0_26 = arith.constant 0 : index
    %92 = vector.load %arg5[%c0_25, %c0_26] : memref<1x32xf32, #tpu.memory_space<vmem>>, vector<1x32xf32>
    %93 = vector.broadcast %92 : vector<1x32xf32> to vector<16x32xf32>
    %94 = arith.addf %91, %93 : vector<16x32xf32>
    %95 = arith.addf %2, %94 : vector<16x32xf32>
    %c0_27 = arith.constant 0 : index
    %c0_28 = arith.constant 0 : index
    %96 = vector.load %arg6[%c0_27, %c0_28] : memref<1x32xf32, #tpu.memory_space<vmem>>, vector<1x32xf32>
    %c0_29 = arith.constant 0 : index
    %c0_30 = arith.constant 0 : index
    %97 = vector.load %arg7[%c0_29, %c0_30] : memref<1x32xf32, #tpu.memory_space<vmem>>, vector<1x32xf32>
    %cst_31 = arith.constant dense<0.000000e+00> : vector<16xf32>
    %98 = vector.multi_reduction <add>, %95, %cst_31 [1] : vector<16x32xf32> to vector<16xf32>
    %99 = vector.shape_cast %98 : vector<16xf32> to vector<16x1xf32>
    %cst_32 = arith.constant 3.200000e+01 : f32
    %100 = vector.broadcast %cst_32 : f32 to vector<16x1xf32>
    %101 = arith.divf %99, %100 : vector<16x1xf32>
    %102 = vector.broadcast %101 : vector<16x1xf32> to vector<16x32xf32>
    %103 = arith.subf %95, %102 : vector<16x32xf32>
    %104 = arith.mulf %103, %103 : vector<16x32xf32>
    %cst_33 = arith.constant dense<0.000000e+00> : vector<16xf32>
    %105 = vector.multi_reduction <add>, %104, %cst_33 [1] : vector<16x32xf32> to vector<16xf32>
    %106 = vector.shape_cast %105 : vector<16xf32> to vector<16x1xf32>
    %cst_34 = arith.constant 3.200000e+01 : f32
    %107 = vector.broadcast %cst_34 : f32 to vector<16x1xf32>
    %108 = arith.divf %106, %107 : vector<16x1xf32>
    %cst_35 = arith.constant 9.99999974E-6 : f32
    %109 = vector.broadcast %cst_35 : f32 to vector<16x1xf32>
    %110 = arith.addf %108, %109 : vector<16x1xf32>
    %111 = math.rsqrt %110 : vector<16x1xf32>
    %112 = vector.broadcast %111 : vector<16x1xf32> to vector<16x32xf32>
    %113 = arith.mulf %103, %112 : vector<16x32xf32>
    %114 = vector.broadcast %96 : vector<1x32xf32> to vector<16x32xf32>
    %115 = arith.mulf %113, %114 : vector<16x32xf32>
    %116 = vector.broadcast %97 : vector<1x32xf32> to vector<16x32xf32>
    %117 = arith.addf %115, %116 : vector<16x32xf32>
    %c0_36 = arith.constant 0 : index
    %c0_37 = arith.constant 0 : index
    %118 = vector.load %arg8[%c0_36, %c0_37] : memref<32x64xbf16, #tpu.memory_space<vmem>>, vector<32x64xbf16>
    %119 = arith.truncf %117 : vector<16x32xf32> to vector<16x32xbf16>
    %cst_38 = arith.constant dense<0.000000e+00> : vector<16x64xf32>
    %120 = tpu.matmul %119, %118, %cst_38 {dimension_numbers = #tpu.dot_dimension_numbers<[1], [0], [0], [1], [0, 0, 1, 1], [], []>} : vector<16x32xbf16>, vector<32x64xbf16>, vector<16x64xf32> -> vector<16x64xf32>
    %c0_39 = arith.constant 0 : index
    %c0_40 = arith.constant 0 : index
    %121 = vector.load %arg9[%c0_39, %c0_40] : memref<1x64xf32, #tpu.memory_space<vmem>>, vector<1x64xf32>
    %122 = vector.broadcast %121 : vector<1x64xf32> to vector<16x64xf32>
    %123 = arith.addf %120, %122 : vector<16x64xf32>
    %cst_41 = arith.constant 5.000000e-01 : f32
    %124 = vector.broadcast %cst_41 : f32 to vector<16x64xf32>
    %125 = arith.mulf %124, %123 : vector<16x64xf32>
    %cst_42 = arith.constant 0.707106769 : f32
    %126 = vector.broadcast %cst_42 : f32 to vector<16x64xf32>
    %127 = arith.mulf %123, %126 : vector<16x64xf32>
    %128 = math.erf %127 : vector<16x64xf32>
    %cst_43 = arith.constant 1.000000e+00 : f32
    %129 = vector.broadcast %cst_43 : f32 to vector<16x64xf32>
    %130 = arith.addf %129, %128 : vector<16x64xf32>
    %131 = arith.mulf %125, %130 : vector<16x64xf32>
    %c0_44 = arith.constant 0 : index
    %c0_45 = arith.constant 0 : index
    %132 = vector.load %arg10[%c0_44, %c0_45] : memref<64x32xbf16, #tpu.memory_space<vmem>>, vector<64x32xbf16>
    %133 = arith.truncf %131 : vector<16x64xf32> to vector<16x64xbf16>
    %cst_46 = arith.constant dense<0.000000e+00> : vector<16x32xf32>
    %134 = tpu.matmul %133, %132, %cst_46 {dimension_numbers = #tpu.dot_dimension_numbers<[1], [0], [0], [1], [0, 0, 1, 1], [], []>} : vector<16x64xbf16>, vector<64x32xbf16>, vector<16x32xf32> -> vector<16x32xf32>
    %c0_47 = arith.constant 0 : index
    %c0_48 = arith.constant 0 : index
    %135 = vector.load %arg11[%c0_47, %c0_48] : memref<1x32xf32, #tpu.memory_space<vmem>>, vector<1x32xf32>
    %136 = vector.broadcast %135 : vector<1x32xf32> to vector<16x32xf32>
    %137 = arith.addf %134, %136 : vector<16x32xf32>
    %138 = arith.addf %117, %137 : vector<16x32xf32>
    %c0_49 = arith.constant 0 : index
    %c0_50 = arith.constant 0 : index
    %139 = vector.load %arg12[%c0_49, %c0_50] : memref<1x32xf32, #tpu.memory_space<vmem>>, vector<1x32xf32>
    %c0_51 = arith.constant 0 : index
    %c0_52 = arith.constant 0 : index
    %140 = vector.load %arg13[%c0_51, %c0_52] : memref<1x32xf32, #tpu.memory_space<vmem>>, vector<1x32xf32>
    %cst_53 = arith.constant dense<0.000000e+00> : vector<16xf32>
    %141 = vector.multi_reduction <add>, %138, %cst_53 [1] : vector<16x32xf32> to vector<16xf32>
    %142 = vector.shape_cast %141 : vector<16xf32> to vector<16x1xf32>
    %cst_54 = arith.constant 3.200000e+01 : f32
    %143 = vector.broadcast %cst_54 : f32 to vector<16x1xf32>
    %144 = arith.divf %142, %143 : vector<16x1xf32>
    %145 = vector.broadcast %144 : vector<16x1xf32> to vector<16x32xf32>
    %146 = arith.subf %138, %145 : vector<16x32xf32>
    %147 = arith.mulf %146, %146 : vector<16x32xf32>
    %cst_55 = arith.constant dense<0.000000e+00> : vector<16xf32>
    %148 = vector.multi_reduction <add>, %147, %cst_55 [1] : vector<16x32xf32> to vector<16xf32>
    %149 = vector.shape_cast %148 : vector<16xf32> to vector<16x1xf32>
    %cst_56 = arith.constant 3.200000e+01 : f32
    %150 = vector.broadcast %cst_56 : f32 to vector<16x1xf32>
    %151 = arith.divf %149, %150 : vector<16x1xf32>
    %cst_57 = arith.constant 9.99999974E-6 : f32
    %152 = vector.broadcast %cst_57 : f32 to vector<16x1xf32>
    %153 = arith.addf %151, %152 : vector<16x1xf32>
    %154 = math.rsqrt %153 : vector<16x1xf32>
    %155 = vector.broadcast %154 : vector<16x1xf32> to vector<16x32xf32>
    %156 = arith.mulf %146, %155 : vector<16x32xf32>
    %157 = vector.broadcast %139 : vector<1x32xf32> to vector<16x32xf32>
    %158 = arith.mulf %156, %157 : vector<16x32xf32>
    %159 = vector.broadcast %140 : vector<1x32xf32> to vector<16x32xf32>
    %160 = arith.addf %158, %159 : vector<16x32xf32>
    %161 = arith.truncf %160 : vector<16x32xf32> to vector<16x32xbf16>
    %c0_58 = arith.constant 0 : index
    %c0_59 = arith.constant 0 : index
    %c0_60 = arith.constant 0 : index
    %162 = vector.load %arg14[%c0_58, %c0_59, %c0_60] : memref<1x16x32xbf16, #tpu.memory_space<vmem>>, vector<1x16x32xbf16>
    %163 = vector.shape_cast %162 : vector<1x16x32xbf16> to vector<16x32xbf16>
    %164 = vector.shape_cast %161 : vector<16x32xbf16> to vector<1x16x32xbf16>
    tpu.vector_store %arg14[%c0_58, %c0_59, %c0_60], %164 {strides = array<i32>} : memref<1x16x32xbf16, #tpu.memory_space<vmem>>, vector<1x16x32xbf16>,
    return
  }
  func.func @transform_0(%arg0: i32) -> (i32, i32, i32) {
    %c0_i32 = arith.constant 0 : i32
    %c0_i32_0 = arith.constant 0 : i32
    %c0_i32_1 = arith.constant 0 : i32
    return %arg0, %c0_i32, %c0_i32_0 : i32, i32, i32
  }
  func.func @transform_1(%arg0: i32) -> (i32, i32) {
    %c0_i32 = arith.constant 0 : i32
    %c0_i32_0 = arith.constant 0 : i32
    %c0_i32_1 = arith.constant 0 : i32
    return %c0_i32, %c0_i32_0 : i32, i32
  }
  func.func @transform_2(%arg0: i32) -> (i32, i32) {
    %c0_i32 = arith.constant 0 : i32
    %c0_i32_0 = arith.constant 0 : i32
    %c0_i32_1 = arith.constant 0 : i32
    return %c0_i32, %c0_i32_0 : i32, i32
  }
  func.func @transform_3(%arg0: i32) -> (i32, i32) {
    %c0_i32 = arith.constant 0 : i32
    %c0_i32_0 = arith.constant 0 : i32
    %c0_i32_1 = arith.constant 0 : i32
    return %c0_i32, %c0_i32_0 : i32, i32
  }
  func.func @transform_4(%arg0: i32) -> (i32, i32) {
    %c0_i32 = arith.constant 0 : i32
    %c0_i32_0 = arith.constant 0 : i32
    %c0_i32_1 = arith.constant 0 : i32
    return %c0_i32, %c0_i32_0 : i32, i32
  }
  func.func @transform_5(%arg0: i32) -> (i32, i32) {
    %c0_i32 = arith.constant 0 : i32
    %c0_i32_0 = arith.constant 0 : i32
    %c0_i32_1 = arith.constant 0 : i32
    return %c0_i32, %c0_i32_0 : i32, i32
  }
  func.func @transform_6(%arg0: i32) -> (i32, i32) {
    %c0_i32 = arith.constant 0 : i32
    %c0_i32_0 = arith.constant 0 : i32
    %c0_i32_1 = arith.constant 0 : i32
    return %c0_i32, %c0_i32_0 : i32, i32
  }
  func.func @transform_7(%arg0: i32) -> (i32, i32) {
    %c0_i32 = arith.constant 0 : i32
    %c0_i32_0 = arith.constant 0 : i32
    %c0_i32_1 = arith.constant 0 : i32
    return %c0_i32, %c0_i32_0 : i32, i32
  }
  func.func @transform_8(%arg0: i32) -> (i32, i32) {
    %c0_i32 = arith.constant 0 : i32
    %c0_i32_0 = arith.constant 0 : i32
    %c0_i32_1 = arith.constant 0 : i32
    return %c0_i32, %c0_i32_0 : i32, i32
  }
  func.func @transform_9(%arg0: i32) -> (i32, i32) {
    %c0_i32 = arith.constant 0 : i32
    %c0_i32_0 = arith.constant 0 : i32
    %c0_i32_1 = arith.constant 0 : i32
    return %c0_i32, %c0_i32_0 : i32, i32
  }
  func.func @transform_10(%arg0: i32) -> (i32, i32) {
    %c0_i32 = arith.constant 0 : i32
    %c0_i32_0 = arith.constant 0 : i32
    %c0_i32_1 = arith.constant 0 : i32
    return %c0_i32, %c0_i32_0 : i32, i32
  }
  func.func @transform_11(%arg0: i32) -> (i32, i32) {
    %c0_i32 = arith.constant 0 : i32
    %c0_i32_0 = arith.constant 0 : i32
    %c0_i32_1 = arith.constant 0 : i32
    return %c0_i32, %c0_i32_0 : i32, i32
  }
  func.func @transform_12(%arg0: i32) -> (i32, i32) {
    %c0_i32 = arith.constant 0 : i32
    %c0_i32_0 = arith.constant 0 : i32
    %c0_i32_1 = arith.constant 0 : i32
    return %c0_i32, %c0_i32_0 : i32, i32
  }
  func.func @transform_13(%arg0: i32) -> (i32, i32, i32) {
    %c0_i32 = arith.constant 0 : i32
    %c0_i32_0 = arith.constant 0 : i32
    %c0_i32_1 = arith.constant 0 : i32
    return %arg0, %c0_i32, %c0_i32_0 : i32, i32, i32
  }
}

module attributes {stable_mosaic.version = 11 : i64} {
  func.func @_encoder_layer_kernel(%arg0: i32, %arg1: memref<1x8x32xbf16, #tpu.memory_space<vmem>>, %arg2: memref<32x96xbf16, #tpu.memory_space<vmem>>, %arg3: memref<1x96xf32, #tpu.memory_space<vmem>>, %arg4: memref<32x32xbf16, #tpu.memory_space<vmem>>, %arg5: memref<1x32xf32, #tpu.memory_space<vmem>>, %arg6: memref<1x32xf32, #tpu.memory_space<vmem>>, %arg7: memref<1x32xf32, #tpu.memory_space<vmem>>, %arg8: memref<32x64xbf16, #tpu.memory_space<vmem>>, %arg9: memref<1x64xf32, #tpu.memory_space<vmem>>, %arg10: memref<64x32xbf16, #tpu.memory_space<vmem>>, %arg11: memref<1x32xf32, #tpu.memory_space<vmem>>, %arg12: memref<1x32xf32, #tpu.memory_space<vmem>>, %arg13: memref<1x32xf32, #tpu.memory_space<vmem>>, %arg14: memref<1x32xf32, #tpu.memory_space<vmem>>, %arg15: memref<1x32xf32, #tpu.memory_space<vmem>>, %arg16: memref<1x8x32xbf16, #tpu.memory_space<vmem>>) attributes {dimension_semantics = [#tpu.dimension_semantics<parallel>], iteration_bounds = array<i64: 2>, scalar_prefetch = 0 : i64, scratch_operands = 0 : i64, tpu.core_type = #tpu.core_type<tc>, window_params = [{transform_indices = @transform_0, window_bounds = array<i64: 1, 8, 32>}, {pipeline_mode = #tpu.pipeline_mode<synchronous>, transform_indices = @transform_1, window_bounds = array<i64: 32, 96>}, {pipeline_mode = #tpu.pipeline_mode<synchronous>, transform_indices = @transform_2, window_bounds = array<i64: 1, 96>}, {pipeline_mode = #tpu.pipeline_mode<synchronous>, transform_indices = @transform_3, window_bounds = array<i64: 32, 32>}, {pipeline_mode = #tpu.pipeline_mode<synchronous>, transform_indices = @transform_4, window_bounds = array<i64: 1, 32>}, {pipeline_mode = #tpu.pipeline_mode<synchronous>, transform_indices = @transform_5, window_bounds = array<i64: 1, 32>}, {pipeline_mode = #tpu.pipeline_mode<synchronous>, transform_indices = @transform_6, window_bounds = array<i64: 1, 32>}, {pipeline_mode = #tpu.pipeline_mode<synchronous>, transform_indices = @transform_7, window_bounds = array<i64: 32, 64>}, {pipeline_mode = #tpu.pipeline_mode<synchronous>, transform_indices = @transform_8, window_bounds = array<i64: 1, 64>}, {pipeline_mode = #tpu.pipeline_mode<synchronous>, transform_indices = @transform_9, window_bounds = array<i64: 64, 32>}, {pipeline_mode = #tpu.pipeline_mode<synchronous>, transform_indices = @transform_10, window_bounds = array<i64: 1, 32>}, {pipeline_mode = #tpu.pipeline_mode<synchronous>, transform_indices = @transform_11, window_bounds = array<i64: 1, 32>}, {pipeline_mode = #tpu.pipeline_mode<synchronous>, transform_indices = @transform_12, window_bounds = array<i64: 1, 32>}, {pipeline_mode = #tpu.pipeline_mode<synchronous>, transform_indices = @transform_13, window_bounds = array<i64: 1, 32>}, {pipeline_mode = #tpu.pipeline_mode<synchronous>, transform_indices = @transform_14, window_bounds = array<i64: 1, 32>}, {transform_indices = @transform_15, window_bounds = array<i64: 1, 8, 32>}]} {
    %c0 = arith.constant 0 : index
    %c0_0 = arith.constant 0 : index
    %c0_1 = arith.constant 0 : index
    %0 = vector.load %arg1[%c0, %c0_0, %c0_1] : memref<1x8x32xbf16, #tpu.memory_space<vmem>>, vector<1x8x32xbf16>
    %1 = vector.shape_cast %0 : vector<1x8x32xbf16> to vector<8x32xbf16>
    %2 = arith.extf %1 : vector<8x32xbf16> to vector<8x32xf32>
    %c0_2 = arith.constant 0 : index
    %c0_3 = arith.constant 0 : index
    %3 = vector.load %arg2[%c0_2, %c0_3] : memref<32x96xbf16, #tpu.memory_space<vmem>>, vector<32x96xbf16>
    %4 = arith.truncf %2 : vector<8x32xf32> to vector<8x32xbf16>
    %cst = arith.constant dense<0.000000e+00> : vector<8x96xf32>
    %5 = tpu.matmul %4, %3, %cst {dimension_numbers = #tpu.dot_dimension_numbers<[1], [0], [0], [1], [0, 0, 1, 1], [], []>} : vector<8x32xbf16>, vector<32x96xbf16>, vector<8x96xf32> -> vector<8x96xf32>
    %c0_4 = arith.constant 0 : index
    %c0_5 = arith.constant 0 : index
    %6 = vector.load %arg3[%c0_4, %c0_5] : memref<1x96xf32, #tpu.memory_space<vmem>>, vector<1x96xf32>
    %7 = vector.broadcast %6 : vector<1x96xf32> to vector<8x96xf32>
    %8 = arith.addf %5, %7 : vector<8x96xf32>
    %9 = vector.extract_strided_slice %8 {offsets = [0, 0], sizes = [8, 32], strides = [1, 1]} : vector<8x96xf32> to vector<8x32xf32>
    %10 = vector.extract_strided_slice %8 {offsets = [0, 32], sizes = [8, 32], strides = [1, 1]} : vector<8x96xf32> to vector<8x32xf32>
    %11 = vector.extract_strided_slice %8 {offsets = [0, 64], sizes = [8, 32], strides = [1, 1]} : vector<8x96xf32> to vector<8x32xf32>
    %12 = vector.extract_strided_slice %9 {offsets = [0, 0], sizes = [8, 8], strides = [1, 1]} : vector<8x32xf32> to vector<8x8xf32>
    %13 = arith.truncf %12 : vector<8x8xf32> to vector<8x8xbf16>
    %14 = vector.extract_strided_slice %10 {offsets = [0, 0], sizes = [8, 8], strides = [1, 1]} : vector<8x32xf32> to vector<8x8xf32>
    %15 = arith.truncf %14 : vector<8x8xf32> to vector<8x8xbf16>
    %16 = vector.extract_strided_slice %11 {offsets = [0, 0], sizes = [8, 8], strides = [1, 1]} : vector<8x32xf32> to vector<8x8xf32>
    %17 = arith.truncf %16 : vector<8x8xf32> to vector<8x8xbf16>
    %cst_6 = arith.constant dense<0.000000e+00> : vector<8x8xf32>
    %18 = tpu.matmul %13, %15, %cst_6 {dimension_numbers = #tpu.dot_dimension_numbers<[1], [1], [0], [0], [0, 0, 1, 0], [], []>} : vector<8x8xbf16>, vector<8x8xbf16>, vector<8x8xf32> -> vector<8x8xf32>
    %cst_7 = arith.constant dense<0xFF800000> : vector<8xf32>
    %19 = vector.multi_reduction <maximumf>, %18, %cst_7 [1] : vector<8x8xf32> to vector<8xf32>
    %20 = vector.shape_cast %19 : vector<8xf32> to vector<8x1xf32>
    %21 = vector.broadcast %20 : vector<8x1xf32> to vector<8x8xf32>
    %22 = arith.subf %18, %21 : vector<8x8xf32>
    %23 = math.exp %22 : vector<8x8xf32>
    %cst_8 = arith.constant dense<0.000000e+00> : vector<8xf32>
    %24 = vector.multi_reduction <add>, %23, %cst_8 [1] : vector<8x8xf32> to vector<8xf32>
    %25 = vector.shape_cast %24 : vector<8xf32> to vector<8x1xf32>
    %26 = arith.truncf %23 : vector<8x8xf32> to vector<8x8xbf16>
    %cst_9 = arith.constant dense<0.000000e+00> : vector<8x8xf32>
    %27 = tpu.matmul %26, %17, %cst_9 {dimension_numbers = #tpu.dot_dimension_numbers<[1], [0], [0], [1], [0, 0, 1, 1], [], []>} : vector<8x8xbf16>, vector<8x8xbf16>, vector<8x8xf32> -> vector<8x8xf32>
    %28 = tpu.reciprocal %25 {approx = true} : vector<8x1xf32> -> vector<8x1xf32>
    %29 = vector.broadcast %28 : vector<8x1xf32> to vector<8x8xf32>
    %30 = arith.mulf %27, %29 : vector<8x8xf32>
    %31 = vector.extract_strided_slice %9 {offsets = [0, 8], sizes = [8, 8], strides = [1, 1]} : vector<8x32xf32> to vector<8x8xf32>
    %32 = arith.truncf %31 : vector<8x8xf32> to vector<8x8xbf16>
    %33 = vector.extract_strided_slice %10 {offsets = [0, 8], sizes = [8, 8], strides = [1, 1]} : vector<8x32xf32> to vector<8x8xf32>
    %34 = arith.truncf %33 : vector<8x8xf32> to vector<8x8xbf16>
    %35 = vector.extract_strided_slice %11 {offsets = [0, 8], sizes = [8, 8], strides = [1, 1]} : vector<8x32xf32> to vector<8x8xf32>
    %36 = arith.truncf %35 : vector<8x8xf32> to vector<8x8xbf16>
    %cst_10 = arith.constant dense<0.000000e+00> : vector<8x8xf32>
    %37 = tpu.matmul %32, %34, %cst_10 {dimension_numbers = #tpu.dot_dimension_numbers<[1], [1], [0], [0], [0, 0, 1, 0], [], []>} : vector<8x8xbf16>, vector<8x8xbf16>, vector<8x8xf32> -> vector<8x8xf32>
    %cst_11 = arith.constant dense<0xFF800000> : vector<8xf32>
    %38 = vector.multi_reduction <maximumf>, %37, %cst_11 [1] : vector<8x8xf32> to vector<8xf32>
    %39 = vector.shape_cast %38 : vector<8xf32> to vector<8x1xf32>
    %40 = vector.broadcast %39 : vector<8x1xf32> to vector<8x8xf32>
    %41 = arith.subf %37, %40 : vector<8x8xf32>
    %42 = math.exp %41 : vector<8x8xf32>
    %cst_12 = arith.constant dense<0.000000e+00> : vector<8xf32>
    %43 = vector.multi_reduction <add>, %42, %cst_12 [1] : vector<8x8xf32> to vector<8xf32>
    %44 = vector.shape_cast %43 : vector<8xf32> to vector<8x1xf32>
    %45 = arith.truncf %42 : vector<8x8xf32> to vector<8x8xbf16>
    %cst_13 = arith.constant dense<0.000000e+00> : vector<8x8xf32>
    %46 = tpu.matmul %45, %36, %cst_13 {dimension_numbers = #tpu.dot_dimension_numbers<[1], [0], [0], [1], [0, 0, 1, 1], [], []>} : vector<8x8xbf16>, vector<8x8xbf16>, vector<8x8xf32> -> vector<8x8xf32>
    %47 = tpu.reciprocal %44 {approx = true} : vector<8x1xf32> -> vector<8x1xf32>
    %48 = vector.broadcast %47 : vector<8x1xf32> to vector<8x8xf32>
    %49 = arith.mulf %46, %48 : vector<8x8xf32>
    %50 = vector.extract_strided_slice %9 {offsets = [0, 16], sizes = [8, 8], strides = [1, 1]} : vector<8x32xf32> to vector<8x8xf32>
    %51 = arith.truncf %50 : vector<8x8xf32> to vector<8x8xbf16>
    %52 = vector.extract_strided_slice %10 {offsets = [0, 16], sizes = [8, 8], strides = [1, 1]} : vector<8x32xf32> to vector<8x8xf32>
    %53 = arith.truncf %52 : vector<8x8xf32> to vector<8x8xbf16>
    %54 = vector.extract_strided_slice %11 {offsets = [0, 16], sizes = [8, 8], strides = [1, 1]} : vector<8x32xf32> to vector<8x8xf32>
    %55 = arith.truncf %54 : vector<8x8xf32> to vector<8x8xbf16>
    %cst_14 = arith.constant dense<0.000000e+00> : vector<8x8xf32>
    %56 = tpu.matmul %51, %53, %cst_14 {dimension_numbers = #tpu.dot_dimension_numbers<[1], [1], [0], [0], [0, 0, 1, 0], [], []>} : vector<8x8xbf16>, vector<8x8xbf16>, vector<8x8xf32> -> vector<8x8xf32>
    %cst_15 = arith.constant dense<0xFF800000> : vector<8xf32>
    %57 = vector.multi_reduction <maximumf>, %56, %cst_15 [1] : vector<8x8xf32> to vector<8xf32>
    %58 = vector.shape_cast %57 : vector<8xf32> to vector<8x1xf32>
    %59 = vector.broadcast %58 : vector<8x1xf32> to vector<8x8xf32>
    %60 = arith.subf %56, %59 : vector<8x8xf32>
    %61 = math.exp %60 : vector<8x8xf32>
    %cst_16 = arith.constant dense<0.000000e+00> : vector<8xf32>
    %62 = vector.multi_reduction <add>, %61, %cst_16 [1] : vector<8x8xf32> to vector<8xf32>
    %63 = vector.shape_cast %62 : vector<8xf32> to vector<8x1xf32>
    %64 = arith.truncf %61 : vector<8x8xf32> to vector<8x8xbf16>
    %cst_17 = arith.constant dense<0.000000e+00> : vector<8x8xf32>
    %65 = tpu.matmul %64, %55, %cst_17 {dimension_numbers = #tpu.dot_dimension_numbers<[1], [0], [0], [1], [0, 0, 1, 1], [], []>} : vector<8x8xbf16>, vector<8x8xbf16>, vector<8x8xf32> -> vector<8x8xf32>
    %66 = tpu.reciprocal %63 {approx = true} : vector<8x1xf32> -> vector<8x1xf32>
    %67 = vector.broadcast %66 : vector<8x1xf32> to vector<8x8xf32>
    %68 = arith.mulf %65, %67 : vector<8x8xf32>
    %69 = vector.extract_strided_slice %9 {offsets = [0, 24], sizes = [8, 8], strides = [1, 1]} : vector<8x32xf32> to vector<8x8xf32>
    %70 = arith.truncf %69 : vector<8x8xf32> to vector<8x8xbf16>
    %71 = vector.extract_strided_slice %10 {offsets = [0, 24], sizes = [8, 8], strides = [1, 1]} : vector<8x32xf32> to vector<8x8xf32>
    %72 = arith.truncf %71 : vector<8x8xf32> to vector<8x8xbf16>
    %73 = vector.extract_strided_slice %11 {offsets = [0, 24], sizes = [8, 8], strides = [1, 1]} : vector<8x32xf32> to vector<8x8xf32>
    %74 = arith.truncf %73 : vector<8x8xf32> to vector<8x8xbf16>
    %cst_18 = arith.constant dense<0.000000e+00> : vector<8x8xf32>
    %75 = tpu.matmul %70, %72, %cst_18 {dimension_numbers = #tpu.dot_dimension_numbers<[1], [1], [0], [0], [0, 0, 1, 0], [], []>} : vector<8x8xbf16>, vector<8x8xbf16>, vector<8x8xf32> -> vector<8x8xf32>
    %cst_19 = arith.constant dense<0xFF800000> : vector<8xf32>
    %76 = vector.multi_reduction <maximumf>, %75, %cst_19 [1] : vector<8x8xf32> to vector<8xf32>
    %77 = vector.shape_cast %76 : vector<8xf32> to vector<8x1xf32>
    %78 = vector.broadcast %77 : vector<8x1xf32> to vector<8x8xf32>
    %79 = arith.subf %75, %78 : vector<8x8xf32>
    %80 = math.exp %79 : vector<8x8xf32>
    %cst_20 = arith.constant dense<0.000000e+00> : vector<8xf32>
    %81 = vector.multi_reduction <add>, %80, %cst_20 [1] : vector<8x8xf32> to vector<8xf32>
    %82 = vector.shape_cast %81 : vector<8xf32> to vector<8x1xf32>
    %83 = arith.truncf %80 : vector<8x8xf32> to vector<8x8xbf16>
    %cst_21 = arith.constant dense<0.000000e+00> : vector<8x8xf32>
    %84 = tpu.matmul %83, %74, %cst_21 {dimension_numbers = #tpu.dot_dimension_numbers<[1], [0], [0], [1], [0, 0, 1, 1], [], []>} : vector<8x8xbf16>, vector<8x8xbf16>, vector<8x8xf32> -> vector<8x8xf32>
    %85 = tpu.reciprocal %82 {approx = true} : vector<8x1xf32> -> vector<8x1xf32>
    %86 = vector.broadcast %85 : vector<8x1xf32> to vector<8x8xf32>
    %87 = arith.mulf %84, %86 : vector<8x8xf32>
    %88 = tpu.concatenate %30, %49, %68, %87 in 1 : vector<8x8xf32>, vector<8x8xf32>, vector<8x8xf32>, vector<8x8xf32> -> vector<8x32xf32>
    %c0_22 = arith.constant 0 : index
    %c0_23 = arith.constant 0 : index
    %89 = vector.load %arg4[%c0_22, %c0_23] : memref<32x32xbf16, #tpu.memory_space<vmem>>, vector<32x32xbf16>
    %90 = arith.truncf %88 : vector<8x32xf32> to vector<8x32xbf16>
    %cst_24 = arith.constant dense<0.000000e+00> : vector<8x32xf32>
    %91 = tpu.matmul %90, %89, %cst_24 {dimension_numbers = #tpu.dot_dimension_numbers<[1], [0], [0], [1], [0, 0, 1, 1], [], []>} : vector<8x32xbf16>, vector<32x32xbf16>, vector<8x32xf32> -> vector<8x32xf32>
    %c0_25 = arith.constant 0 : index
    %c0_26 = arith.constant 0 : index
    %92 = vector.load %arg5[%c0_25, %c0_26] : memref<1x32xf32, #tpu.memory_space<vmem>>, vector<1x32xf32>
    %93 = vector.broadcast %92 : vector<1x32xf32> to vector<8x32xf32>
    %94 = arith.addf %91, %93 : vector<8x32xf32>
    %95 = arith.addf %2, %94 : vector<8x32xf32>
    %c0_27 = arith.constant 0 : index
    %c0_28 = arith.constant 0 : index
    %96 = vector.load %arg6[%c0_27, %c0_28] : memref<1x32xf32, #tpu.memory_space<vmem>>, vector<1x32xf32>
    %c0_29 = arith.constant 0 : index
    %c0_30 = arith.constant 0 : index
    %97 = vector.load %arg7[%c0_29, %c0_30] : memref<1x32xf32, #tpu.memory_space<vmem>>, vector<1x32xf32>
    %cst_31 = arith.constant dense<0.000000e+00> : vector<8xf32>
    %98 = vector.multi_reduction <add>, %95, %cst_31 [1] : vector<8x32xf32> to vector<8xf32>
    %99 = vector.shape_cast %98 : vector<8xf32> to vector<8x1xf32>
    %cst_32 = arith.constant 3.200000e+01 : f32
    %100 = vector.broadcast %cst_32 : f32 to vector<8x1xf32>
    %101 = arith.divf %99, %100 : vector<8x1xf32>
    %102 = vector.broadcast %101 : vector<8x1xf32> to vector<8x32xf32>
    %103 = arith.subf %95, %102 : vector<8x32xf32>
    %104 = arith.mulf %103, %103 : vector<8x32xf32>
    %cst_33 = arith.constant dense<0.000000e+00> : vector<8xf32>
    %105 = vector.multi_reduction <add>, %104, %cst_33 [1] : vector<8x32xf32> to vector<8xf32>
    %106 = vector.shape_cast %105 : vector<8xf32> to vector<8x1xf32>
    %cst_34 = arith.constant 3.200000e+01 : f32
    %107 = vector.broadcast %cst_34 : f32 to vector<8x1xf32>
    %108 = arith.divf %106, %107 : vector<8x1xf32>
    %cst_35 = arith.constant 9.99999974E-6 : f32
    %109 = vector.broadcast %cst_35 : f32 to vector<8x1xf32>
    %110 = arith.addf %108, %109 : vector<8x1xf32>
    %111 = math.rsqrt %110 : vector<8x1xf32>
    %112 = vector.broadcast %111 : vector<8x1xf32> to vector<8x32xf32>
    %113 = arith.mulf %103, %112 : vector<8x32xf32>
    %114 = vector.broadcast %96 : vector<1x32xf32> to vector<8x32xf32>
    %115 = arith.mulf %113, %114 : vector<8x32xf32>
    %116 = vector.broadcast %97 : vector<1x32xf32> to vector<8x32xf32>
    %117 = arith.addf %115, %116 : vector<8x32xf32>
    %c0_36 = arith.constant 0 : index
    %c0_37 = arith.constant 0 : index
    %118 = vector.load %arg8[%c0_36, %c0_37] : memref<32x64xbf16, #tpu.memory_space<vmem>>, vector<32x64xbf16>
    %119 = arith.truncf %117 : vector<8x32xf32> to vector<8x32xbf16>
    %cst_38 = arith.constant dense<0.000000e+00> : vector<8x64xf32>
    %120 = tpu.matmul %119, %118, %cst_38 {dimension_numbers = #tpu.dot_dimension_numbers<[1], [0], [0], [1], [0, 0, 1, 1], [], []>} : vector<8x32xbf16>, vector<32x64xbf16>, vector<8x64xf32> -> vector<8x64xf32>
    %c0_39 = arith.constant 0 : index
    %c0_40 = arith.constant 0 : index
    %121 = vector.load %arg9[%c0_39, %c0_40] : memref<1x64xf32, #tpu.memory_space<vmem>>, vector<1x64xf32>
    %122 = vector.broadcast %121 : vector<1x64xf32> to vector<8x64xf32>
    %123 = arith.addf %120, %122 : vector<8x64xf32>
    %cst_41 = arith.constant 5.000000e-01 : f32
    %124 = vector.broadcast %cst_41 : f32 to vector<8x64xf32>
    %125 = arith.mulf %124, %123 : vector<8x64xf32>
    %cst_42 = arith.constant 0.707106769 : f32
    %126 = vector.broadcast %cst_42 : f32 to vector<8x64xf32>
    %127 = arith.mulf %123, %126 : vector<8x64xf32>
    %128 = math.erf %127 : vector<8x64xf32>
    %cst_43 = arith.constant 1.000000e+00 : f32
    %129 = vector.broadcast %cst_43 : f32 to vector<8x64xf32>
    %130 = arith.addf %129, %128 : vector<8x64xf32>
    %131 = arith.mulf %125, %130 : vector<8x64xf32>
    %c0_44 = arith.constant 0 : index
    %c0_45 = arith.constant 0 : index
    %132 = vector.load %arg10[%c0_44, %c0_45] : memref<64x32xbf16, #tpu.memory_space<vmem>>, vector<64x32xbf16>
    %133 = arith.truncf %131 : vector<8x64xf32> to vector<8x64xbf16>
    %cst_46 = arith.constant dense<0.000000e+00> : vector<8x32xf32>
    %134 = tpu.matmul %133, %132, %cst_46 {dimension_numbers = #tpu.dot_dimension_numbers<[1], [0], [0], [1], [0, 0, 1, 1], [], []>} : vector<8x64xbf16>, vector<64x32xbf16>, vector<8x32xf32> -> vector<8x32xf32>
    %c0_47 = arith.constant 0 : index
    %c0_48 = arith.constant 0 : index
    %135 = vector.load %arg11[%c0_47, %c0_48] : memref<1x32xf32, #tpu.memory_space<vmem>>, vector<1x32xf32>
    %136 = vector.broadcast %135 : vector<1x32xf32> to vector<8x32xf32>
    %137 = arith.addf %134, %136 : vector<8x32xf32>
    %138 = arith.addf %117, %137 : vector<8x32xf32>
    %c0_49 = arith.constant 0 : index
    %c0_50 = arith.constant 0 : index
    %139 = vector.load %arg12[%c0_49, %c0_50] : memref<1x32xf32, #tpu.memory_space<vmem>>, vector<1x32xf32>
    %c0_51 = arith.constant 0 : index
    %c0_52 = arith.constant 0 : index
    %140 = vector.load %arg13[%c0_51, %c0_52] : memref<1x32xf32, #tpu.memory_space<vmem>>, vector<1x32xf32>
    %cst_53 = arith.constant dense<0.000000e+00> : vector<8xf32>
    %141 = vector.multi_reduction <add>, %138, %cst_53 [1] : vector<8x32xf32> to vector<8xf32>
    %142 = vector.shape_cast %141 : vector<8xf32> to vector<8x1xf32>
    %cst_54 = arith.constant 3.200000e+01 : f32
    %143 = vector.broadcast %cst_54 : f32 to vector<8x1xf32>
    %144 = arith.divf %142, %143 : vector<8x1xf32>
    %145 = vector.broadcast %144 : vector<8x1xf32> to vector<8x32xf32>
    %146 = arith.subf %138, %145 : vector<8x32xf32>
    %147 = arith.mulf %146, %146 : vector<8x32xf32>
    %cst_55 = arith.constant dense<0.000000e+00> : vector<8xf32>
    %148 = vector.multi_reduction <add>, %147, %cst_55 [1] : vector<8x32xf32> to vector<8xf32>
    %149 = vector.shape_cast %148 : vector<8xf32> to vector<8x1xf32>
    %cst_56 = arith.constant 3.200000e+01 : f32
    %150 = vector.broadcast %cst_56 : f32 to vector<8x1xf32>
    %151 = arith.divf %149, %150 : vector<8x1xf32>
    %cst_57 = arith.constant 9.99999974E-6 : f32
    %152 = vector.broadcast %cst_57 : f32 to vector<8x1xf32>
    %153 = arith.addf %151, %152 : vector<8x1xf32>
    %154 = math.rsqrt %153 : vector<8x1xf32>
    %155 = vector.broadcast %154 : vector<8x1xf32> to vector<8x32xf32>
    %156 = arith.mulf %146, %155 : vector<8x32xf32>
    %157 = vector.broadcast %139 : vector<1x32xf32> to vector<8x32xf32>
    %158 = arith.mulf %156, %157 : vector<8x32xf32>
    %159 = vector.broadcast %140 : vector<1x32xf32> to vector<8x32xf32>
    %160 = arith.addf %158, %159 : vector<8x32xf32>
    %c0_58 = arith.constant 0 : index
    %c0_59 = arith.constant 0 : index
    %161 = vector.load %arg14[%c0_58, %c0_59] : memref<1x32xf32, #tpu.memory_space<vmem>>, vector<1x32xf32>
    %c0_60 = arith.constant 0 : index
    %c0_61 = arith.constant 0 : index
    %162 = vector.load %arg15[%c0_60, %c0_61] : memref<1x32xf32, #tpu.memory_space<vmem>>, vector<1x32xf32>
    %cst_62 = arith.constant dense<0.000000e+00> : vector<8xf32>
    %163 = vector.multi_reduction <add>, %160, %cst_62 [1] : vector<8x32xf32> to vector<8xf32>
    %164 = vector.shape_cast %163 : vector<8xf32> to vector<8x1xf32>
    %cst_63 = arith.constant 3.200000e+01 : f32
    %165 = vector.broadcast %cst_63 : f32 to vector<8x1xf32>
    %166 = arith.divf %164, %165 : vector<8x1xf32>
    %167 = vector.broadcast %166 : vector<8x1xf32> to vector<8x32xf32>
    %168 = arith.subf %160, %167 : vector<8x32xf32>
    %169 = arith.mulf %168, %168 : vector<8x32xf32>
    %cst_64 = arith.constant dense<0.000000e+00> : vector<8xf32>
    %170 = vector.multi_reduction <add>, %169, %cst_64 [1] : vector<8x32xf32> to vector<8xf32>
    %171 = vector.shape_cast %170 : vector<8xf32> to vector<8x1xf32>
    %cst_65 = arith.constant 3.200000e+01 : f32
    %172 = vector.broadcast %cst_65 : f32 to vector<8x1xf32>
    %173 = arith.divf %171, %172 : vector<8x1xf32>
    %cst_66 = arith.constant 9.99999974E-6 : f32
    %174 = vector.broadcast %cst_66 : f32 to vector<8x1xf32>
    %175 = arith.addf %173, %174 : vector<8x1xf32>
    %176 = math.rsqrt %175 : vector<8x1xf32>
    %177 = vector.broadcast %176 : vector<8x1xf32> to vector<8x32xf32>
    %178 = arith.mulf %168, %177 : vector<8x32xf32>
    %179 = vector.broadcast %161 : vector<1x32xf32> to vector<8x32xf32>
    %180 = arith.mulf %178, %179 : vector<8x32xf32>
    %181 = vector.broadcast %162 : vector<1x32xf32> to vector<8x32xf32>
    %182 = arith.addf %180, %181 : vector<8x32xf32>
    %183 = arith.truncf %182 : vector<8x32xf32> to vector<8x32xbf16>
    %c0_67 = arith.constant 0 : index
    %c0_68 = arith.constant 0 : index
    %c0_69 = arith.constant 0 : index
    %184 = vector.load %arg16[%c0_67, %c0_68, %c0_69] : memref<1x8x32xbf16, #tpu.memory_space<vmem>>, vector<1x8x32xbf16>
    %185 = vector.shape_cast %184 : vector<1x8x32xbf16> to vector<8x32xbf16>
    %186 = vector.shape_cast %183 : vector<8x32xbf16> to vector<1x8x32xbf16>
    tpu.vector_store %arg16[%c0_67, %c0_68, %c0_69], %186 {strides = array<i32>} : memref<1x8x32xbf16, #tpu.memory_space<vmem>>, vector<1x8x32xbf16>,
    return
  }
  func.func @transform_0(%arg0: i32) -> (i32, i32, i32) {
    %c0_i32 = arith.constant 0 : i32
    %c0_i32_0 = arith.constant 0 : i32
    %c0_i32_1 = arith.constant 0 : i32
    return %arg0, %c0_i32, %c0_i32_0 : i32, i32, i32
  }
  func.func @transform_1(%arg0: i32) -> (i32, i32) {
    %c0_i32 = arith.constant 0 : i32
    %c0_i32_0 = arith.constant 0 : i32
    %c0_i32_1 = arith.constant 0 : i32
    return %c0_i32, %c0_i32_0 : i32, i32
  }
  func.func @transform_2(%arg0: i32) -> (i32, i32) {
    %c0_i32 = arith.constant 0 : i32
    %c0_i32_0 = arith.constant 0 : i32
    %c0_i32_1 = arith.constant 0 : i32
    return %c0_i32, %c0_i32_0 : i32, i32
  }
  func.func @transform_3(%arg0: i32) -> (i32, i32) {
    %c0_i32 = arith.constant 0 : i32
    %c0_i32_0 = arith.constant 0 : i32
    %c0_i32_1 = arith.constant 0 : i32
    return %c0_i32, %c0_i32_0 : i32, i32
  }
  func.func @transform_4(%arg0: i32) -> (i32, i32) {
    %c0_i32 = arith.constant 0 : i32
    %c0_i32_0 = arith.constant 0 : i32
    %c0_i32_1 = arith.constant 0 : i32
    return %c0_i32, %c0_i32_0 : i32, i32
  }
  func.func @transform_5(%arg0: i32) -> (i32, i32) {
    %c0_i32 = arith.constant 0 : i32
    %c0_i32_0 = arith.constant 0 : i32
    %c0_i32_1 = arith.constant 0 : i32
    return %c0_i32, %c0_i32_0 : i32, i32
  }
  func.func @transform_6(%arg0: i32) -> (i32, i32) {
    %c0_i32 = arith.constant 0 : i32
    %c0_i32_0 = arith.constant 0 : i32
    %c0_i32_1 = arith.constant 0 : i32
    return %c0_i32, %c0_i32_0 : i32, i32
  }
  func.func @transform_7(%arg0: i32) -> (i32, i32) {
    %c0_i32 = arith.constant 0 : i32
    %c0_i32_0 = arith.constant 0 : i32
    %c0_i32_1 = arith.constant 0 : i32
    return %c0_i32, %c0_i32_0 : i32, i32
  }
  func.func @transform_8(%arg0: i32) -> (i32, i32) {
    %c0_i32 = arith.constant 0 : i32
    %c0_i32_0 = arith.constant 0 : i32
    %c0_i32_1 = arith.constant 0 : i32
    return %c0_i32, %c0_i32_0 : i32, i32
  }
  func.func @transform_9(%arg0: i32) -> (i32, i32) {
    %c0_i32 = arith.constant 0 : i32
    %c0_i32_0 = arith.constant 0 : i32
    %c0_i32_1 = arith.constant 0 : i32
    return %c0_i32, %c0_i32_0 : i32, i32
  }
  func.func @transform_10(%arg0: i32) -> (i32, i32) {
    %c0_i32 = arith.constant 0 : i32
    %c0_i32_0 = arith.constant 0 : i32
    %c0_i32_1 = arith.constant 0 : i32
    return %c0_i32, %c0_i32_0 : i32, i32
  }
  func.func @transform_11(%arg0: i32) -> (i32, i32) {
    %c0_i32 = arith.constant 0 : i32
    %c0_i32_0 = arith.constant 0 : i32
    %c0_i32_1 = arith.constant 0 : i32
    return %c0_i32, %c0_i32_0 : i32, i32
  }
  func.func @transform_12(%arg0: i32) -> (i32, i32) {
    %c0_i32 = arith.constant 0 : i32
    %c0_i32_0 = arith.constant 0 : i32
    %c0_i32_1 = arith.constant 0 : i32
    return %c0_i32, %c0_i32_0 : i32, i32
  }
  func.func @transform_13(%arg0: i32) -> (i32, i32) {
    %c0_i32 = arith.constant 0 : i32
    %c0_i32_0 = arith.constant 0 : i32
    %c0_i32_1 = arith.constant 0 : i32
    return %c0_i32, %c0_i32_0 : i32, i32
  }
  func.func @transform_14(%arg0: i32) -> (i32, i32) {
    %c0_i32 = arith.constant 0 : i32
    %c0_i32_0 = arith.constant 0 : i32
    %c0_i32_1 = arith.constant 0 : i32
    return %c0_i32, %c0_i32_0 : i32, i32
  }
  func.func @transform_15(%arg0: i32) -> (i32, i32, i32) {
    %c0_i32 = arith.constant 0 : i32
    %c0_i32_0 = arith.constant 0 : i32
    %c0_i32_1 = arith.constant 0 : i32
    return %arg0, %c0_i32, %c0_i32_0 : i32, i32, i32
  }
}

module attributes {stable_mosaic.version = 11 : i64} {
  func.func @_ln_proj_kernel(%arg0: i32, %arg1: memref<1x16x32xbf16, #tpu.memory_space<vmem>>, %arg2: memref<1x32xf32, #tpu.memory_space<vmem>>, %arg3: memref<1x32xf32, #tpu.memory_space<vmem>>, %arg4: memref<32x128xbf16, #tpu.memory_space<vmem>>, %arg5: memref<1x128xf32, #tpu.memory_space<vmem>>, %arg6: memref<1x16x128xf32, #tpu.memory_space<vmem>>) attributes {dimension_semantics = [#tpu.dimension_semantics<parallel>], iteration_bounds = array<i64: 2>, scalar_prefetch = 0 : i64, scratch_operands = 0 : i64, tpu.core_type = #tpu.core_type<tc>, window_params = [{transform_indices = @transform_0, window_bounds = array<i64: 1, 16, 32>}, {pipeline_mode = #tpu.pipeline_mode<synchronous>, transform_indices = @transform_1, window_bounds = array<i64: 1, 32>}, {pipeline_mode = #tpu.pipeline_mode<synchronous>, transform_indices = @transform_2, window_bounds = array<i64: 1, 32>}, {pipeline_mode = #tpu.pipeline_mode<synchronous>, transform_indices = @transform_3, window_bounds = array<i64: 32, 128>}, {pipeline_mode = #tpu.pipeline_mode<synchronous>, transform_indices = @transform_4, window_bounds = array<i64: 1, 128>}, {transform_indices = @transform_5, window_bounds = array<i64: 1, 16, 128>}]} {
    %c0 = arith.constant 0 : index
    %c0_0 = arith.constant 0 : index
    %c0_1 = arith.constant 0 : index
    %0 = vector.load %arg1[%c0, %c0_0, %c0_1] : memref<1x16x32xbf16, #tpu.memory_space<vmem>>, vector<1x16x32xbf16>
    %1 = vector.shape_cast %0 : vector<1x16x32xbf16> to vector<16x32xbf16>
    %2 = arith.extf %1 : vector<16x32xbf16> to vector<16x32xf32>
    %c0_2 = arith.constant 0 : index
    %c0_3 = arith.constant 0 : index
    %3 = vector.load %arg2[%c0_2, %c0_3] : memref<1x32xf32, #tpu.memory_space<vmem>>, vector<1x32xf32>
    %c0_4 = arith.constant 0 : index
    %c0_5 = arith.constant 0 : index
    %4 = vector.load %arg3[%c0_4, %c0_5] : memref<1x32xf32, #tpu.memory_space<vmem>>, vector<1x32xf32>
    %cst = arith.constant dense<0.000000e+00> : vector<16xf32>
    %5 = vector.multi_reduction <add>, %2, %cst [1] : vector<16x32xf32> to vector<16xf32>
    %6 = vector.shape_cast %5 : vector<16xf32> to vector<16x1xf32>
    %cst_6 = arith.constant 3.200000e+01 : f32
    %7 = vector.broadcast %cst_6 : f32 to vector<16x1xf32>
    %8 = arith.divf %6, %7 : vector<16x1xf32>
    %9 = vector.broadcast %8 : vector<16x1xf32> to vector<16x32xf32>
    %10 = arith.subf %2, %9 : vector<16x32xf32>
    %11 = arith.mulf %10, %10 : vector<16x32xf32>
    %cst_7 = arith.constant dense<0.000000e+00> : vector<16xf32>
    %12 = vector.multi_reduction <add>, %11, %cst_7 [1] : vector<16x32xf32> to vector<16xf32>
    %13 = vector.shape_cast %12 : vector<16xf32> to vector<16x1xf32>
    %cst_8 = arith.constant 3.200000e+01 : f32
    %14 = vector.broadcast %cst_8 : f32 to vector<16x1xf32>
    %15 = arith.divf %13, %14 : vector<16x1xf32>
    %cst_9 = arith.constant 9.99999974E-6 : f32
    %16 = vector.broadcast %cst_9 : f32 to vector<16x1xf32>
    %17 = arith.addf %15, %16 : vector<16x1xf32>
    %18 = math.rsqrt %17 : vector<16x1xf32>
    %19 = vector.broadcast %18 : vector<16x1xf32> to vector<16x32xf32>
    %20 = arith.mulf %10, %19 : vector<16x32xf32>
    %21 = vector.broadcast %3 : vector<1x32xf32> to vector<16x32xf32>
    %22 = arith.mulf %20, %21 : vector<16x32xf32>
    %23 = vector.broadcast %4 : vector<1x32xf32> to vector<16x32xf32>
    %24 = arith.addf %22, %23 : vector<16x32xf32>
    %c0_10 = arith.constant 0 : index
    %c0_11 = arith.constant 0 : index
    %25 = vector.load %arg4[%c0_10, %c0_11] : memref<32x128xbf16, #tpu.memory_space<vmem>>, vector<32x128xbf16>
    %26 = arith.truncf %24 : vector<16x32xf32> to vector<16x32xbf16>
    %cst_12 = arith.constant dense<0.000000e+00> : vector<16x128xf32>
    %27 = tpu.matmul %26, %25, %cst_12 {dimension_numbers = #tpu.dot_dimension_numbers<[1], [0], [0], [1], [0, 0, 1, 1], [], []>} : vector<16x32xbf16>, vector<32x128xbf16>, vector<16x128xf32> -> vector<16x128xf32>
    %c0_13 = arith.constant 0 : index
    %c0_14 = arith.constant 0 : index
    %28 = vector.load %arg5[%c0_13, %c0_14] : memref<1x128xf32, #tpu.memory_space<vmem>>, vector<1x128xf32>
    %29 = vector.broadcast %28 : vector<1x128xf32> to vector<16x128xf32>
    %30 = arith.addf %27, %29 : vector<16x128xf32>
    %c0_15 = arith.constant 0 : index
    %c0_16 = arith.constant 0 : index
    %c0_17 = arith.constant 0 : index
    %31 = vector.load %arg6[%c0_15, %c0_16, %c0_17] : memref<1x16x128xf32, #tpu.memory_space<vmem>>, vector<1x16x128xf32>
    %32 = vector.shape_cast %31 : vector<1x16x128xf32> to vector<16x128xf32>
    %33 = vector.shape_cast %30 : vector<16x128xf32> to vector<1x16x128xf32>
    tpu.vector_store %arg6[%c0_15, %c0_16, %c0_17], %33 {strides = array<i32>} : memref<1x16x128xf32, #tpu.memory_space<vmem>>, vector<1x16x128xf32>,
    return
  }
  func.func @transform_0(%arg0: i32) -> (i32, i32, i32) {
    %c0_i32 = arith.constant 0 : i32
    %c0_i32_0 = arith.constant 0 : i32
    %c0_i32_1 = arith.constant 0 : i32
    return %arg0, %c0_i32, %c0_i32_0 : i32, i32, i32
  }
  func.func @transform_1(%arg0: i32) -> (i32, i32) {
    %c0_i32 = arith.constant 0 : i32
    %c0_i32_0 = arith.constant 0 : i32
    %c0_i32_1 = arith.constant 0 : i32
    return %c0_i32, %c0_i32_0 : i32, i32
  }
  func.func @transform_2(%arg0: i32) -> (i32, i32) {
    %c0_i32 = arith.constant 0 : i32
    %c0_i32_0 = arith.constant 0 : i32
    %c0_i32_1 = arith.constant 0 : i32
    return %c0_i32, %c0_i32_0 : i32, i32
  }
  func.func @transform_3(%arg0: i32) -> (i32, i32) {
    %c0_i32 = arith.constant 0 : i32
    %c0_i32_0 = arith.constant 0 : i32
    %c0_i32_1 = arith.constant 0 : i32
    return %c0_i32, %c0_i32_0 : i32, i32
  }
  func.func @transform_4(%arg0: i32) -> (i32, i32) {
    %c0_i32 = arith.constant 0 : i32
    %c0_i32_0 = arith.constant 0 : i32
    %c0_i32_1 = arith.constant 0 : i32
    return %c0_i32, %c0_i32_0 : i32, i32
  }
  func.func @transform_5(%arg0: i32) -> (i32, i32, i32) {
    %c0_i32 = arith.constant 0 : i32
    %c0_i32_0 = arith.constant 0 : i32
    %c0_i32_1 = arith.constant 0 : i32
    return %arg0, %c0_i32, %c0_i32_0 : i32, i32, i32
  }
}

module attributes {stable_mosaic.version = 11 : i64} {
  func.func @_decoder_layer_kernel(%arg0: i32, %arg1: memref<1x16x32xbf16, #tpu.memory_space<vmem>>, %arg2: memref<1x8x32xbf16, #tpu.memory_space<vmem>>, %arg3: memref<32x96xbf16, #tpu.memory_space<vmem>>, %arg4: memref<1x96xf32, #tpu.memory_space<vmem>>, %arg5: memref<32x32xbf16, #tpu.memory_space<vmem>>, %arg6: memref<1x32xf32, #tpu.memory_space<vmem>>, %arg7: memref<1x32xf32, #tpu.memory_space<vmem>>, %arg8: memref<1x32xf32, #tpu.memory_space<vmem>>, %arg9: memref<32x32xbf16, #tpu.memory_space<vmem>>, %arg10: memref<1x32xf32, #tpu.memory_space<vmem>>, %arg11: memref<32x64xbf16, #tpu.memory_space<vmem>>, %arg12: memref<1x64xf32, #tpu.memory_space<vmem>>, %arg13: memref<32x32xbf16, #tpu.memory_space<vmem>>, %arg14: memref<1x32xf32, #tpu.memory_space<vmem>>, %arg15: memref<1x32xf32, #tpu.memory_space<vmem>>, %arg16: memref<1x32xf32, #tpu.memory_space<vmem>>, %arg17: memref<32x64xbf16, #tpu.memory_space<vmem>>, %arg18: memref<1x64xf32, #tpu.memory_space<vmem>>, %arg19: memref<64x32xbf16, #tpu.memory_space<vmem>>, %arg20: memref<1x32xf32, #tpu.memory_space<vmem>>, %arg21: memref<1x32xf32, #tpu.memory_space<vmem>>, %arg22: memref<1x32xf32, #tpu.memory_space<vmem>>, %arg23: memref<1x16x32xbf16, #tpu.memory_space<vmem>>) attributes {dimension_semantics = [#tpu.dimension_semantics<parallel>], iteration_bounds = array<i64: 2>, scalar_prefetch = 0 : i64, scratch_operands = 0 : i64, tpu.core_type = #tpu.core_type<tc>, window_params = [{transform_indices = @transform_0, window_bounds = array<i64: 1, 16, 32>}, {transform_indices = @transform_1, window_bounds = array<i64: 1, 8, 32>}, {pipeline_mode = #tpu.pipeline_mode<synchronous>, transform_indices = @transform_2, window_bounds = array<i64: 32, 96>}, {pipeline_mode = #tpu.pipeline_mode<synchronous>, transform_indices = @transform_3, window_bounds = array<i64: 1, 96>}, {pipeline_mode = #tpu.pipeline_mode<synchronous>, transform_indices = @transform_4, window_bounds = array<i64: 32, 32>}, {pipeline_mode = #tpu.pipeline_mode<synchronous>, transform_indices = @transform_5, window_bounds = array<i64: 1, 32>}, {pipeline_mode = #tpu.pipeline_mode<synchronous>, transform_indices = @transform_6, window_bounds = array<i64: 1, 32>}, {pipeline_mode = #tpu.pipeline_mode<synchronous>, transform_indices = @transform_7, window_bounds = array<i64: 1, 32>}, {pipeline_mode = #tpu.pipeline_mode<synchronous>, transform_indices = @transform_8, window_bounds = array<i64: 32, 32>}, {pipeline_mode = #tpu.pipeline_mode<synchronous>, transform_indices = @transform_9, window_bounds = array<i64: 1, 32>}, {pipeline_mode = #tpu.pipeline_mode<synchronous>, transform_indices = @transform_10, window_bounds = array<i64: 32, 64>}, {pipeline_mode = #tpu.pipeline_mode<synchronous>, transform_indices = @transform_11, window_bounds = array<i64: 1, 64>}, {pipeline_mode = #tpu.pipeline_mode<synchronous>, transform_indices = @transform_12, window_bounds = array<i64: 32, 32>}, {pipeline_mode = #tpu.pipeline_mode<synchronous>, transform_indices = @transform_13, window_bounds = array<i64: 1, 32>}, {pipeline_mode = #tpu.pipeline_mode<synchronous>, transform_indices = @transform_14, window_bounds = array<i64: 1, 32>}, {pipeline_mode = #tpu.pipeline_mode<synchronous>, transform_indices = @transform_15, window_bounds = array<i64: 1, 32>}, {pipeline_mode = #tpu.pipeline_mode<synchronous>, transform_indices = @transform_16, window_bounds = array<i64: 32, 64>}, {pipeline_mode = #tpu.pipeline_mode<synchronous>, transform_indices = @transform_17, window_bounds = array<i64: 1, 64>}, {pipeline_mode = #tpu.pipeline_mode<synchronous>, transform_indices = @transform_18, window_bounds = array<i64: 64, 32>}, {pipeline_mode = #tpu.pipeline_mode<synchronous>, transform_indices = @transform_19, window_bounds = array<i64: 1, 32>}, {pipeline_mode = #tpu.pipeline_mode<synchronous>, transform_indices = @transform_20, window_bounds = array<i64: 1, 32>}, {pipeline_mode = #tpu.pipeline_mode<synchronous>, transform_indices = @transform_21, window_bounds = array<i64: 1, 32>}, {transform_indices = @transform_22, window_bounds = array<i64: 1, 16, 32>}]} {
    %c0 = arith.constant 0 : index
    %c0_0 = arith.constant 0 : index
    %c0_1 = arith.constant 0 : index
    %0 = vector.load %arg1[%c0, %c0_0, %c0_1] : memref<1x16x32xbf16, #tpu.memory_space<vmem>>, vector<1x16x32xbf16>
    %1 = vector.shape_cast %0 : vector<1x16x32xbf16> to vector<16x32xbf16>
    %2 = arith.extf %1 : vector<16x32xbf16> to vector<16x32xf32>
    %c0_2 = arith.constant 0 : index
    %c0_3 = arith.constant 0 : index
    %c0_4 = arith.constant 0 : index
    %3 = vector.load %arg2[%c0_2, %c0_3, %c0_4] : memref<1x8x32xbf16, #tpu.memory_space<vmem>>, vector<1x8x32xbf16>
    %4 = vector.shape_cast %3 : vector<1x8x32xbf16> to vector<8x32xbf16>
    %5 = arith.extf %4 : vector<8x32xbf16> to vector<8x32xf32>
    %c0_5 = arith.constant 0 : index
    %c0_6 = arith.constant 0 : index
    %6 = vector.load %arg3[%c0_5, %c0_6] : memref<32x96xbf16, #tpu.memory_space<vmem>>, vector<32x96xbf16>
    %7 = arith.truncf %2 : vector<16x32xf32> to vector<16x32xbf16>
    %cst = arith.constant dense<0.000000e+00> : vector<16x96xf32>
    %8 = tpu.matmul %7, %6, %cst {dimension_numbers = #tpu.dot_dimension_numbers<[1], [0], [0], [1], [0, 0, 1, 1], [], []>} : vector<16x32xbf16>, vector<32x96xbf16>, vector<16x96xf32> -> vector<16x96xf32>
    %c0_7 = arith.constant 0 : index
    %c0_8 = arith.constant 0 : index
    %9 = vector.load %arg4[%c0_7, %c0_8] : memref<1x96xf32, #tpu.memory_space<vmem>>, vector<1x96xf32>
    %10 = vector.broadcast %9 : vector<1x96xf32> to vector<16x96xf32>
    %11 = arith.addf %8, %10 : vector<16x96xf32>
    %12 = vector.extract_strided_slice %11 {offsets = [0, 0], sizes = [16, 32], strides = [1, 1]} : vector<16x96xf32> to vector<16x32xf32>
    %13 = vector.extract_strided_slice %11 {offsets = [0, 32], sizes = [16, 32], strides = [1, 1]} : vector<16x96xf32> to vector<16x32xf32>
    %14 = vector.extract_strided_slice %11 {offsets = [0, 64], sizes = [16, 32], strides = [1, 1]} : vector<16x96xf32> to vector<16x32xf32>
    %15 = tpu.iota {dimensions = array<i32: 0>} : vector<16x16xi32>
    %16 = tpu.iota {dimensions = array<i32: 1>} : vector<16x16xi32>
    %17 = arith.cmpi sle, %16, %15 : vector<16x16xi32>
    %cst_9 = arith.constant 0.000000e+00 : f32
    %cst_10 = arith.constant -1.000000e+30 : f32
    %18 = vector.broadcast %cst_9 : f32 to vector<16x16xf32>
    %19 = vector.broadcast %cst_10 : f32 to vector<16x16xf32>
    %20 = arith.select %17, %18, %19 : vector<16x16xi1>, vector<16x16xf32>
    %21 = vector.extract_strided_slice %12 {offsets = [0, 0], sizes = [16, 8], strides = [1, 1]} : vector<16x32xf32> to vector<16x8xf32>
    %22 = arith.truncf %21 : vector<16x8xf32> to vector<16x8xbf16>
    %23 = vector.extract_strided_slice %13 {offsets = [0, 0], sizes = [16, 8], strides = [1, 1]} : vector<16x32xf32> to vector<16x8xf32>
    %24 = arith.truncf %23 : vector<16x8xf32> to vector<16x8xbf16>
    %25 = vector.extract_strided_slice %14 {offsets = [0, 0], sizes = [16, 8], strides = [1, 1]} : vector<16x32xf32> to vector<16x8xf32>
    %26 = arith.truncf %25 : vector<16x8xf32> to vector<16x8xbf16>
    %cst_11 = arith.constant dense<0.000000e+00> : vector<16x16xf32>
    %27 = tpu.matmul %22, %24, %cst_11 {dimension_numbers = #tpu.dot_dimension_numbers<[1], [1], [0], [0], [0, 0, 1, 0], [], []>} : vector<16x8xbf16>, vector<16x8xbf16>, vector<16x16xf32> -> vector<16x16xf32>
    %28 = arith.addf %27, %20 : vector<16x16xf32>
    %cst_12 = arith.constant dense<0xFF800000> : vector<16xf32>
    %29 = vector.multi_reduction <maximumf>, %28, %cst_12 [1] : vector<16x16xf32> to vector<16xf32>
    %30 = vector.shape_cast %29 : vector<16xf32> to vector<16x1xf32>
    %31 = vector.broadcast %30 : vector<16x1xf32> to vector<16x16xf32>
    %32 = arith.subf %28, %31 : vector<16x16xf32>
    %33 = math.exp %32 : vector<16x16xf32>
    %cst_13 = arith.constant dense<0.000000e+00> : vector<16xf32>
    %34 = vector.multi_reduction <add>, %33, %cst_13 [1] : vector<16x16xf32> to vector<16xf32>
    %35 = vector.shape_cast %34 : vector<16xf32> to vector<16x1xf32>
    %36 = arith.truncf %33 : vector<16x16xf32> to vector<16x16xbf16>
    %cst_14 = arith.constant dense<0.000000e+00> : vector<16x8xf32>
    %37 = tpu.matmul %36, %26, %cst_14 {dimension_numbers = #tpu.dot_dimension_numbers<[1], [0], [0], [1], [0, 0, 1, 1], [], []>} : vector<16x16xbf16>, vector<16x8xbf16>, vector<16x8xf32> -> vector<16x8xf32>
    %38 = tpu.reciprocal %35 {approx = true} : vector<16x1xf32> -> vector<16x1xf32>
    %39 = vector.broadcast %38 : vector<16x1xf32> to vector<16x8xf32>
    %40 = arith.mulf %37, %39 : vector<16x8xf32>
    %41 = vector.extract_strided_slice %12 {offsets = [0, 8], sizes = [16, 8], strides = [1, 1]} : vector<16x32xf32> to vector<16x8xf32>
    %42 = arith.truncf %41 : vector<16x8xf32> to vector<16x8xbf16>
    %43 = vector.extract_strided_slice %13 {offsets = [0, 8], sizes = [16, 8], strides = [1, 1]} : vector<16x32xf32> to vector<16x8xf32>
    %44 = arith.truncf %43 : vector<16x8xf32> to vector<16x8xbf16>
    %45 = vector.extract_strided_slice %14 {offsets = [0, 8], sizes = [16, 8], strides = [1, 1]} : vector<16x32xf32> to vector<16x8xf32>
    %46 = arith.truncf %45 : vector<16x8xf32> to vector<16x8xbf16>
    %cst_15 = arith.constant dense<0.000000e+00> : vector<16x16xf32>
    %47 = tpu.matmul %42, %44, %cst_15 {dimension_numbers = #tpu.dot_dimension_numbers<[1], [1], [0], [0], [0, 0, 1, 0], [], []>} : vector<16x8xbf16>, vector<16x8xbf16>, vector<16x16xf32> -> vector<16x16xf32>
    %48 = arith.addf %47, %20 : vector<16x16xf32>
    %cst_16 = arith.constant dense<0xFF800000> : vector<16xf32>
    %49 = vector.multi_reduction <maximumf>, %48, %cst_16 [1] : vector<16x16xf32> to vector<16xf32>
    %50 = vector.shape_cast %49 : vector<16xf32> to vector<16x1xf32>
    %51 = vector.broadcast %50 : vector<16x1xf32> to vector<16x16xf32>
    %52 = arith.subf %48, %51 : vector<16x16xf32>
    %53 = math.exp %52 : vector<16x16xf32>
    %cst_17 = arith.constant dense<0.000000e+00> : vector<16xf32>
    %54 = vector.multi_reduction <add>, %53, %cst_17 [1] : vector<16x16xf32> to vector<16xf32>
    %55 = vector.shape_cast %54 : vector<16xf32> to vector<16x1xf32>
    %56 = arith.truncf %53 : vector<16x16xf32> to vector<16x16xbf16>
    %cst_18 = arith.constant dense<0.000000e+00> : vector<16x8xf32>
    %57 = tpu.matmul %56, %46, %cst_18 {dimension_numbers = #tpu.dot_dimension_numbers<[1], [0], [0], [1], [0, 0, 1, 1], [], []>} : vector<16x16xbf16>, vector<16x8xbf16>, vector<16x8xf32> -> vector<16x8xf32>
    %58 = tpu.reciprocal %55 {approx = true} : vector<16x1xf32> -> vector<16x1xf32>
    %59 = vector.broadcast %58 : vector<16x1xf32> to vector<16x8xf32>
    %60 = arith.mulf %57, %59 : vector<16x8xf32>
    %61 = vector.extract_strided_slice %12 {offsets = [0, 16], sizes = [16, 8], strides = [1, 1]} : vector<16x32xf32> to vector<16x8xf32>
    %62 = arith.truncf %61 : vector<16x8xf32> to vector<16x8xbf16>
    %63 = vector.extract_strided_slice %13 {offsets = [0, 16], sizes = [16, 8], strides = [1, 1]} : vector<16x32xf32> to vector<16x8xf32>
    %64 = arith.truncf %63 : vector<16x8xf32> to vector<16x8xbf16>
    %65 = vector.extract_strided_slice %14 {offsets = [0, 16], sizes = [16, 8], strides = [1, 1]} : vector<16x32xf32> to vector<16x8xf32>
    %66 = arith.truncf %65 : vector<16x8xf32> to vector<16x8xbf16>
    %cst_19 = arith.constant dense<0.000000e+00> : vector<16x16xf32>
    %67 = tpu.matmul %62, %64, %cst_19 {dimension_numbers = #tpu.dot_dimension_numbers<[1], [1], [0], [0], [0, 0, 1, 0], [], []>} : vector<16x8xbf16>, vector<16x8xbf16>, vector<16x16xf32> -> vector<16x16xf32>
    %68 = arith.addf %67, %20 : vector<16x16xf32>
    %cst_20 = arith.constant dense<0xFF800000> : vector<16xf32>
    %69 = vector.multi_reduction <maximumf>, %68, %cst_20 [1] : vector<16x16xf32> to vector<16xf32>
    %70 = vector.shape_cast %69 : vector<16xf32> to vector<16x1xf32>
    %71 = vector.broadcast %70 : vector<16x1xf32> to vector<16x16xf32>
    %72 = arith.subf %68, %71 : vector<16x16xf32>
    %73 = math.exp %72 : vector<16x16xf32>
    %cst_21 = arith.constant dense<0.000000e+00> : vector<16xf32>
    %74 = vector.multi_reduction <add>, %73, %cst_21 [1] : vector<16x16xf32> to vector<16xf32>
    %75 = vector.shape_cast %74 : vector<16xf32> to vector<16x1xf32>
    %76 = arith.truncf %73 : vector<16x16xf32> to vector<16x16xbf16>
    %cst_22 = arith.constant dense<0.000000e+00> : vector<16x8xf32>
    %77 = tpu.matmul %76, %66, %cst_22 {dimension_numbers = #tpu.dot_dimension_numbers<[1], [0], [0], [1], [0, 0, 1, 1], [], []>} : vector<16x16xbf16>, vector<16x8xbf16>, vector<16x8xf32> -> vector<16x8xf32>
    %78 = tpu.reciprocal %75 {approx = true} : vector<16x1xf32> -> vector<16x1xf32>
    %79 = vector.broadcast %78 : vector<16x1xf32> to vector<16x8xf32>
    %80 = arith.mulf %77, %79 : vector<16x8xf32>
    %81 = vector.extract_strided_slice %12 {offsets = [0, 24], sizes = [16, 8], strides = [1, 1]} : vector<16x32xf32> to vector<16x8xf32>
    %82 = arith.truncf %81 : vector<16x8xf32> to vector<16x8xbf16>
    %83 = vector.extract_strided_slice %13 {offsets = [0, 24], sizes = [16, 8], strides = [1, 1]} : vector<16x32xf32> to vector<16x8xf32>
    %84 = arith.truncf %83 : vector<16x8xf32> to vector<16x8xbf16>
    %85 = vector.extract_strided_slice %14 {offsets = [0, 24], sizes = [16, 8], strides = [1, 1]} : vector<16x32xf32> to vector<16x8xf32>
    %86 = arith.truncf %85 : vector<16x8xf32> to vector<16x8xbf16>
    %cst_23 = arith.constant dense<0.000000e+00> : vector<16x16xf32>
    %87 = tpu.matmul %82, %84, %cst_23 {dimension_numbers = #tpu.dot_dimension_numbers<[1], [1], [0], [0], [0, 0, 1, 0], [], []>} : vector<16x8xbf16>, vector<16x8xbf16>, vector<16x16xf32> -> vector<16x16xf32>
    %88 = arith.addf %87, %20 : vector<16x16xf32>
    %cst_24 = arith.constant dense<0xFF800000> : vector<16xf32>
    %89 = vector.multi_reduction <maximumf>, %88, %cst_24 [1] : vector<16x16xf32> to vector<16xf32>
    %90 = vector.shape_cast %89 : vector<16xf32> to vector<16x1xf32>
    %91 = vector.broadcast %90 : vector<16x1xf32> to vector<16x16xf32>
    %92 = arith.subf %88, %91 : vector<16x16xf32>
    %93 = math.exp %92 : vector<16x16xf32>
    %cst_25 = arith.constant dense<0.000000e+00> : vector<16xf32>
    %94 = vector.multi_reduction <add>, %93, %cst_25 [1] : vector<16x16xf32> to vector<16xf32>
    %95 = vector.shape_cast %94 : vector<16xf32> to vector<16x1xf32>
    %96 = arith.truncf %93 : vector<16x16xf32> to vector<16x16xbf16>
    %cst_26 = arith.constant dense<0.000000e+00> : vector<16x8xf32>
    %97 = tpu.matmul %96, %86, %cst_26 {dimension_numbers = #tpu.dot_dimension_numbers<[1], [0], [0], [1], [0, 0, 1, 1], [], []>} : vector<16x16xbf16>, vector<16x8xbf16>, vector<16x8xf32> -> vector<16x8xf32>
    %98 = tpu.reciprocal %95 {approx = true} : vector<16x1xf32> -> vector<16x1xf32>
    %99 = vector.broadcast %98 : vector<16x1xf32> to vector<16x8xf32>
    %100 = arith.mulf %97, %99 : vector<16x8xf32>
    %101 = tpu.concatenate %40, %60, %80, %100 in 1 : vector<16x8xf32>, vector<16x8xf32>, vector<16x8xf32>, vector<16x8xf32> -> vector<16x32xf32>
    %c0_27 = arith.constant 0 : index
    %c0_28 = arith.constant 0 : index
    %102 = vector.load %arg5[%c0_27, %c0_28] : memref<32x32xbf16, #tpu.memory_space<vmem>>, vector<32x32xbf16>
    %103 = arith.truncf %101 : vector<16x32xf32> to vector<16x32xbf16>
    %cst_29 = arith.constant dense<0.000000e+00> : vector<16x32xf32>
    %104 = tpu.matmul %103, %102, %cst_29 {dimension_numbers = #tpu.dot_dimension_numbers<[1], [0], [0], [1], [0, 0, 1, 1], [], []>} : vector<16x32xbf16>, vector<32x32xbf16>, vector<16x32xf32> -> vector<16x32xf32>
    %c0_30 = arith.constant 0 : index
    %c0_31 = arith.constant 0 : index
    %105 = vector.load %arg6[%c0_30, %c0_31] : memref<1x32xf32, #tpu.memory_space<vmem>>, vector<1x32xf32>
    %106 = vector.broadcast %105 : vector<1x32xf32> to vector<16x32xf32>
    %107 = arith.addf %104, %106 : vector<16x32xf32>
    %108 = arith.addf %2, %107 : vector<16x32xf32>
    %c0_32 = arith.constant 0 : index
    %c0_33 = arith.constant 0 : index
    %109 = vector.load %arg7[%c0_32, %c0_33] : memref<1x32xf32, #tpu.memory_space<vmem>>, vector<1x32xf32>
    %c0_34 = arith.constant 0 : index
    %c0_35 = arith.constant 0 : index
    %110 = vector.load %arg8[%c0_34, %c0_35] : memref<1x32xf32, #tpu.memory_space<vmem>>, vector<1x32xf32>
    %cst_36 = arith.constant dense<0.000000e+00> : vector<16xf32>
    %111 = vector.multi_reduction <add>, %108, %cst_36 [1] : vector<16x32xf32> to vector<16xf32>
    %112 = vector.shape_cast %111 : vector<16xf32> to vector<16x1xf32>
    %cst_37 = arith.constant 3.200000e+01 : f32
    %113 = vector.broadcast %cst_37 : f32 to vector<16x1xf32>
    %114 = arith.divf %112, %113 : vector<16x1xf32>
    %115 = vector.broadcast %114 : vector<16x1xf32> to vector<16x32xf32>
    %116 = arith.subf %108, %115 : vector<16x32xf32>
    %117 = arith.mulf %116, %116 : vector<16x32xf32>
    %cst_38 = arith.constant dense<0.000000e+00> : vector<16xf32>
    %118 = vector.multi_reduction <add>, %117, %cst_38 [1] : vector<16x32xf32> to vector<16xf32>
    %119 = vector.shape_cast %118 : vector<16xf32> to vector<16x1xf32>
    %cst_39 = arith.constant 3.200000e+01 : f32
    %120 = vector.broadcast %cst_39 : f32 to vector<16x1xf32>
    %121 = arith.divf %119, %120 : vector<16x1xf32>
    %cst_40 = arith.constant 9.99999974E-6 : f32
    %122 = vector.broadcast %cst_40 : f32 to vector<16x1xf32>
    %123 = arith.addf %121, %122 : vector<16x1xf32>
    %124 = math.rsqrt %123 : vector<16x1xf32>
    %125 = vector.broadcast %124 : vector<16x1xf32> to vector<16x32xf32>
    %126 = arith.mulf %116, %125 : vector<16x32xf32>
    %127 = vector.broadcast %109 : vector<1x32xf32> to vector<16x32xf32>
    %128 = arith.mulf %126, %127 : vector<16x32xf32>
    %129 = vector.broadcast %110 : vector<1x32xf32> to vector<16x32xf32>
    %130 = arith.addf %128, %129 : vector<16x32xf32>
    %c0_41 = arith.constant 0 : index
    %c0_42 = arith.constant 0 : index
    %131 = vector.load %arg9[%c0_41, %c0_42] : memref<32x32xbf16, #tpu.memory_space<vmem>>, vector<32x32xbf16>
    %132 = arith.truncf %130 : vector<16x32xf32> to vector<16x32xbf16>
    %cst_43 = arith.constant dense<0.000000e+00> : vector<16x32xf32>
    %133 = tpu.matmul %132, %131, %cst_43 {dimension_numbers = #tpu.dot_dimension_numbers<[1], [0], [0], [1], [0, 0, 1, 1], [], []>} : vector<16x32xbf16>, vector<32x32xbf16>, vector<16x32xf32> -> vector<16x32xf32>
    %c0_44 = arith.constant 0 : index
    %c0_45 = arith.constant 0 : index
    %134 = vector.load %arg10[%c0_44, %c0_45] : memref<1x32xf32, #tpu.memory_space<vmem>>, vector<1x32xf32>
    %135 = vector.broadcast %134 : vector<1x32xf32> to vector<16x32xf32>
    %136 = arith.addf %133, %135 : vector<16x32xf32>
    %c0_46 = arith.constant 0 : index
    %c0_47 = arith.constant 0 : index
    %137 = vector.load %arg11[%c0_46, %c0_47] : memref<32x64xbf16, #tpu.memory_space<vmem>>, vector<32x64xbf16>
    %138 = arith.truncf %5 : vector<8x32xf32> to vector<8x32xbf16>
    %cst_48 = arith.constant dense<0.000000e+00> : vector<8x64xf32>
    %139 = tpu.matmul %138, %137, %cst_48 {dimension_numbers = #tpu.dot_dimension_numbers<[1], [0], [0], [1], [0, 0, 1, 1], [], []>} : vector<8x32xbf16>, vector<32x64xbf16>, vector<8x64xf32> -> vector<8x64xf32>
    %c0_49 = arith.constant 0 : index
    %c0_50 = arith.constant 0 : index
    %140 = vector.load %arg12[%c0_49, %c0_50] : memref<1x64xf32, #tpu.memory_space<vmem>>, vector<1x64xf32>
    %141 = vector.broadcast %140 : vector<1x64xf32> to vector<8x64xf32>
    %142 = arith.addf %139, %141 : vector<8x64xf32>
    %143 = vector.extract_strided_slice %142 {offsets = [0, 0], sizes = [8, 32], strides = [1, 1]} : vector<8x64xf32> to vector<8x32xf32>
    %144 = vector.extract_strided_slice %142 {offsets = [0, 32], sizes = [8, 32], strides = [1, 1]} : vector<8x64xf32> to vector<8x32xf32>
    %145 = vector.extract_strided_slice %136 {offsets = [0, 0], sizes = [16, 8], strides = [1, 1]} : vector<16x32xf32> to vector<16x8xf32>
    %146 = arith.truncf %145 : vector<16x8xf32> to vector<16x8xbf16>
    %147 = vector.extract_strided_slice %143 {offsets = [0, 0], sizes = [8, 8], strides = [1, 1]} : vector<8x32xf32> to vector<8x8xf32>
    %148 = arith.truncf %147 : vector<8x8xf32> to vector<8x8xbf16>
    %149 = vector.extract_strided_slice %144 {offsets = [0, 0], sizes = [8, 8], strides = [1, 1]} : vector<8x32xf32> to vector<8x8xf32>
    %150 = arith.truncf %149 : vector<8x8xf32> to vector<8x8xbf16>
    %cst_51 = arith.constant dense<0.000000e+00> : vector<16x8xf32>
    %151 = tpu.matmul %146, %148, %cst_51 {dimension_numbers = #tpu.dot_dimension_numbers<[1], [1], [0], [0], [0, 0, 1, 0], [], []>} : vector<16x8xbf16>, vector<8x8xbf16>, vector<16x8xf32> -> vector<16x8xf32>
    %cst_52 = arith.constant dense<0xFF800000> : vector<16xf32>
    %152 = vector.multi_reduction <maximumf>, %151, %cst_52 [1] : vector<16x8xf32> to vector<16xf32>
    %153 = vector.shape_cast %152 : vector<16xf32> to vector<16x1xf32>
    %154 = vector.broadcast %153 : vector<16x1xf32> to vector<16x8xf32>
    %155 = arith.subf %151, %154 : vector<16x8xf32>
    %156 = math.exp %155 : vector<16x8xf32>
    %cst_53 = arith.constant dense<0.000000e+00> : vector<16xf32>
    %157 = vector.multi_reduction <add>, %156, %cst_53 [1] : vector<16x8xf32> to vector<16xf32>
    %158 = vector.shape_cast %157 : vector<16xf32> to vector<16x1xf32>
    %159 = arith.truncf %156 : vector<16x8xf32> to vector<16x8xbf16>
    %cst_54 = arith.constant dense<0.000000e+00> : vector<16x8xf32>
    %160 = tpu.matmul %159, %150, %cst_54 {dimension_numbers = #tpu.dot_dimension_numbers<[1], [0], [0], [1], [0, 0, 1, 1], [], []>} : vector<16x8xbf16>, vector<8x8xbf16>, vector<16x8xf32> -> vector<16x8xf32>
    %161 = tpu.reciprocal %158 {approx = true} : vector<16x1xf32> -> vector<16x1xf32>
    %162 = vector.broadcast %161 : vector<16x1xf32> to vector<16x8xf32>
    %163 = arith.mulf %160, %162 : vector<16x8xf32>
    %164 = vector.extract_strided_slice %136 {offsets = [0, 8], sizes = [16, 8], strides = [1, 1]} : vector<16x32xf32> to vector<16x8xf32>
    %165 = arith.truncf %164 : vector<16x8xf32> to vector<16x8xbf16>
    %166 = vector.extract_strided_slice %143 {offsets = [0, 8], sizes = [8, 8], strides = [1, 1]} : vector<8x32xf32> to vector<8x8xf32>
    %167 = arith.truncf %166 : vector<8x8xf32> to vector<8x8xbf16>
    %168 = vector.extract_strided_slice %144 {offsets = [0, 8], sizes = [8, 8], strides = [1, 1]} : vector<8x32xf32> to vector<8x8xf32>
    %169 = arith.truncf %168 : vector<8x8xf32> to vector<8x8xbf16>
    %cst_55 = arith.constant dense<0.000000e+00> : vector<16x8xf32>
    %170 = tpu.matmul %165, %167, %cst_55 {dimension_numbers = #tpu.dot_dimension_numbers<[1], [1], [0], [0], [0, 0, 1, 0], [], []>} : vector<16x8xbf16>, vector<8x8xbf16>, vector<16x8xf32> -> vector<16x8xf32>
    %cst_56 = arith.constant dense<0xFF800000> : vector<16xf32>
    %171 = vector.multi_reduction <maximumf>, %170, %cst_56 [1] : vector<16x8xf32> to vector<16xf32>
    %172 = vector.shape_cast %171 : vector<16xf32> to vector<16x1xf32>
    %173 = vector.broadcast %172 : vector<16x1xf32> to vector<16x8xf32>
    %174 = arith.subf %170, %173 : vector<16x8xf32>
    %175 = math.exp %174 : vector<16x8xf32>
    %cst_57 = arith.constant dense<0.000000e+00> : vector<16xf32>
    %176 = vector.multi_reduction <add>, %175, %cst_57 [1] : vector<16x8xf32> to vector<16xf32>
    %177 = vector.shape_cast %176 : vector<16xf32> to vector<16x1xf32>
    %178 = arith.truncf %175 : vector<16x8xf32> to vector<16x8xbf16>
    %cst_58 = arith.constant dense<0.000000e+00> : vector<16x8xf32>
    %179 = tpu.matmul %178, %169, %cst_58 {dimension_numbers = #tpu.dot_dimension_numbers<[1], [0], [0], [1], [0, 0, 1, 1], [], []>} : vector<16x8xbf16>, vector<8x8xbf16>, vector<16x8xf32> -> vector<16x8xf32>
    %180 = tpu.reciprocal %177 {approx = true} : vector<16x1xf32> -> vector<16x1xf32>
    %181 = vector.broadcast %180 : vector<16x1xf32> to vector<16x8xf32>
    %182 = arith.mulf %179, %181 : vector<16x8xf32>
    %183 = vector.extract_strided_slice %136 {offsets = [0, 16], sizes = [16, 8], strides = [1, 1]} : vector<16x32xf32> to vector<16x8xf32>
    %184 = arith.truncf %183 : vector<16x8xf32> to vector<16x8xbf16>
    %185 = vector.extract_strided_slice %143 {offsets = [0, 16], sizes = [8, 8], strides = [1, 1]} : vector<8x32xf32> to vector<8x8xf32>
    %186 = arith.truncf %185 : vector<8x8xf32> to vector<8x8xbf16>
    %187 = vector.extract_strided_slice %144 {offsets = [0, 16], sizes = [8, 8], strides = [1, 1]} : vector<8x32xf32> to vector<8x8xf32>
    %188 = arith.truncf %187 : vector<8x8xf32> to vector<8x8xbf16>
    %cst_59 = arith.constant dense<0.000000e+00> : vector<16x8xf32>
    %189 = tpu.matmul %184, %186, %cst_59 {dimension_numbers = #tpu.dot_dimension_numbers<[1], [1], [0], [0], [0, 0, 1, 0], [], []>} : vector<16x8xbf16>, vector<8x8xbf16>, vector<16x8xf32> -> vector<16x8xf32>
    %cst_60 = arith.constant dense<0xFF800000> : vector<16xf32>
    %190 = vector.multi_reduction <maximumf>, %189, %cst_60 [1] : vector<16x8xf32> to vector<16xf32>
    %191 = vector.shape_cast %190 : vector<16xf32> to vector<16x1xf32>
    %192 = vector.broadcast %191 : vector<16x1xf32> to vector<16x8xf32>
    %193 = arith.subf %189, %192 : vector<16x8xf32>
    %194 = math.exp %193 : vector<16x8xf32>
    %cst_61 = arith.constant dense<0.000000e+00> : vector<16xf32>
    %195 = vector.multi_reduction <add>, %194, %cst_61 [1] : vector<16x8xf32> to vector<16xf32>
    %196 = vector.shape_cast %195 : vector<16xf32> to vector<16x1xf32>
    %197 = arith.truncf %194 : vector<16x8xf32> to vector<16x8xbf16>
    %cst_62 = arith.constant dense<0.000000e+00> : vector<16x8xf32>
    %198 = tpu.matmul %197, %188, %cst_62 {dimension_numbers = #tpu.dot_dimension_numbers<[1], [0], [0], [1], [0, 0, 1, 1], [], []>} : vector<16x8xbf16>, vector<8x8xbf16>, vector<16x8xf32> -> vector<16x8xf32>
    %199 = tpu.reciprocal %196 {approx = true} : vector<16x1xf32> -> vector<16x1xf32>
    %200 = vector.broadcast %199 : vector<16x1xf32> to vector<16x8xf32>
    %201 = arith.mulf %198, %200 : vector<16x8xf32>
    %202 = vector.extract_strided_slice %136 {offsets = [0, 24], sizes = [16, 8], strides = [1, 1]} : vector<16x32xf32> to vector<16x8xf32>
    %203 = arith.truncf %202 : vector<16x8xf32> to vector<16x8xbf16>
    %204 = vector.extract_strided_slice %143 {offsets = [0, 24], sizes = [8, 8], strides = [1, 1]} : vector<8x32xf32> to vector<8x8xf32>
    %205 = arith.truncf %204 : vector<8x8xf32> to vector<8x8xbf16>
    %206 = vector.extract_strided_slice %144 {offsets = [0, 24], sizes = [8, 8], strides = [1, 1]} : vector<8x32xf32> to vector<8x8xf32>
    %207 = arith.truncf %206 : vector<8x8xf32> to vector<8x8xbf16>
    %cst_63 = arith.constant dense<0.000000e+00> : vector<16x8xf32>
    %208 = tpu.matmul %203, %205, %cst_63 {dimension_numbers = #tpu.dot_dimension_numbers<[1], [1], [0], [0], [0, 0, 1, 0], [], []>} : vector<16x8xbf16>, vector<8x8xbf16>, vector<16x8xf32> -> vector<16x8xf32>
    %cst_64 = arith.constant dense<0xFF800000> : vector<16xf32>
    %209 = vector.multi_reduction <maximumf>, %208, %cst_64 [1] : vector<16x8xf32> to vector<16xf32>
    %210 = vector.shape_cast %209 : vector<16xf32> to vector<16x1xf32>
    %211 = vector.broadcast %210 : vector<16x1xf32> to vector<16x8xf32>
    %212 = arith.subf %208, %211 : vector<16x8xf32>
    %213 = math.exp %212 : vector<16x8xf32>
    %cst_65 = arith.constant dense<0.000000e+00> : vector<16xf32>
    %214 = vector.multi_reduction <add>, %213, %cst_65 [1] : vector<16x8xf32> to vector<16xf32>
    %215 = vector.shape_cast %214 : vector<16xf32> to vector<16x1xf32>
    %216 = arith.truncf %213 : vector<16x8xf32> to vector<16x8xbf16>
    %cst_66 = arith.constant dense<0.000000e+00> : vector<16x8xf32>
    %217 = tpu.matmul %216, %207, %cst_66 {dimension_numbers = #tpu.dot_dimension_numbers<[1], [0], [0], [1], [0, 0, 1, 1], [], []>} : vector<16x8xbf16>, vector<8x8xbf16>, vector<16x8xf32> -> vector<16x8xf32>
    %218 = tpu.reciprocal %215 {approx = true} : vector<16x1xf32> -> vector<16x1xf32>
    %219 = vector.broadcast %218 : vector<16x1xf32> to vector<16x8xf32>
    %220 = arith.mulf %217, %219 : vector<16x8xf32>
    %221 = tpu.concatenate %163, %182, %201, %220 in 1 : vector<16x8xf32>, vector<16x8xf32>, vector<16x8xf32>, vector<16x8xf32> -> vector<16x32xf32>
    %c0_67 = arith.constant 0 : index
    %c0_68 = arith.constant 0 : index
    %222 = vector.load %arg13[%c0_67, %c0_68] : memref<32x32xbf16, #tpu.memory_space<vmem>>, vector<32x32xbf16>
    %223 = arith.truncf %221 : vector<16x32xf32> to vector<16x32xbf16>
    %cst_69 = arith.constant dense<0.000000e+00> : vector<16x32xf32>
    %224 = tpu.matmul %223, %222, %cst_69 {dimension_numbers = #tpu.dot_dimension_numbers<[1], [0], [0], [1], [0, 0, 1, 1], [], []>} : vector<16x32xbf16>, vector<32x32xbf16>, vector<16x32xf32> -> vector<16x32xf32>
    %c0_70 = arith.constant 0 : index
    %c0_71 = arith.constant 0 : index
    %225 = vector.load %arg14[%c0_70, %c0_71] : memref<1x32xf32, #tpu.memory_space<vmem>>, vector<1x32xf32>
    %226 = vector.broadcast %225 : vector<1x32xf32> to vector<16x32xf32>
    %227 = arith.addf %224, %226 : vector<16x32xf32>
    %228 = arith.addf %130, %227 : vector<16x32xf32>
    %c0_72 = arith.constant 0 : index
    %c0_73 = arith.constant 0 : index
    %229 = vector.load %arg15[%c0_72, %c0_73] : memref<1x32xf32, #tpu.memory_space<vmem>>, vector<1x32xf32>
    %c0_74 = arith.constant 0 : index
    %c0_75 = arith.constant 0 : index
    %230 = vector.load %arg16[%c0_74, %c0_75] : memref<1x32xf32, #tpu.memory_space<vmem>>, vector<1x32xf32>
    %cst_76 = arith.constant dense<0.000000e+00> : vector<16xf32>
    %231 = vector.multi_reduction <add>, %228, %cst_76 [1] : vector<16x32xf32> to vector<16xf32>
    %232 = vector.shape_cast %231 : vector<16xf32> to vector<16x1xf32>
    %cst_77 = arith.constant 3.200000e+01 : f32
    %233 = vector.broadcast %cst_77 : f32 to vector<16x1xf32>
    %234 = arith.divf %232, %233 : vector<16x1xf32>
    %235 = vector.broadcast %234 : vector<16x1xf32> to vector<16x32xf32>
    %236 = arith.subf %228, %235 : vector<16x32xf32>
    %237 = arith.mulf %236, %236 : vector<16x32xf32>
    %cst_78 = arith.constant dense<0.000000e+00> : vector<16xf32>
    %238 = vector.multi_reduction <add>, %237, %cst_78 [1] : vector<16x32xf32> to vector<16xf32>
    %239 = vector.shape_cast %238 : vector<16xf32> to vector<16x1xf32>
    %cst_79 = arith.constant 3.200000e+01 : f32
    %240 = vector.broadcast %cst_79 : f32 to vector<16x1xf32>
    %241 = arith.divf %239, %240 : vector<16x1xf32>
    %cst_80 = arith.constant 9.99999974E-6 : f32
    %242 = vector.broadcast %cst_80 : f32 to vector<16x1xf32>
    %243 = arith.addf %241, %242 : vector<16x1xf32>
    %244 = math.rsqrt %243 : vector<16x1xf32>
    %245 = vector.broadcast %244 : vector<16x1xf32> to vector<16x32xf32>
    %246 = arith.mulf %236, %245 : vector<16x32xf32>
    %247 = vector.broadcast %229 : vector<1x32xf32> to vector<16x32xf32>
    %248 = arith.mulf %246, %247 : vector<16x32xf32>
    %249 = vector.broadcast %230 : vector<1x32xf32> to vector<16x32xf32>
    %250 = arith.addf %248, %249 : vector<16x32xf32>
    %c0_81 = arith.constant 0 : index
    %c0_82 = arith.constant 0 : index
    %251 = vector.load %arg17[%c0_81, %c0_82] : memref<32x64xbf16, #tpu.memory_space<vmem>>, vector<32x64xbf16>
    %252 = arith.truncf %250 : vector<16x32xf32> to vector<16x32xbf16>
    %cst_83 = arith.constant dense<0.000000e+00> : vector<16x64xf32>
    %253 = tpu.matmul %252, %251, %cst_83 {dimension_numbers = #tpu.dot_dimension_numbers<[1], [0], [0], [1], [0, 0, 1, 1], [], []>} : vector<16x32xbf16>, vector<32x64xbf16>, vector<16x64xf32> -> vector<16x64xf32>
    %c0_84 = arith.constant 0 : index
    %c0_85 = arith.constant 0 : index
    %254 = vector.load %arg18[%c0_84, %c0_85] : memref<1x64xf32, #tpu.memory_space<vmem>>, vector<1x64xf32>
    %255 = vector.broadcast %254 : vector<1x64xf32> to vector<16x64xf32>
    %256 = arith.addf %253, %255 : vector<16x64xf32>
    %cst_86 = arith.constant 5.000000e-01 : f32
    %257 = vector.broadcast %cst_86 : f32 to vector<16x64xf32>
    %258 = arith.mulf %257, %256 : vector<16x64xf32>
    %cst_87 = arith.constant 0.707106769 : f32
    %259 = vector.broadcast %cst_87 : f32 to vector<16x64xf32>
    %260 = arith.mulf %256, %259 : vector<16x64xf32>
    %261 = math.erf %260 : vector<16x64xf32>
    %cst_88 = arith.constant 1.000000e+00 : f32
    %262 = vector.broadcast %cst_88 : f32 to vector<16x64xf32>
    %263 = arith.addf %262, %261 : vector<16x64xf32>
    %264 = arith.mulf %258, %263 : vector<16x64xf32>
    %c0_89 = arith.constant 0 : index
    %c0_90 = arith.constant 0 : index
    %265 = vector.load %arg19[%c0_89, %c0_90] : memref<64x32xbf16, #tpu.memory_space<vmem>>, vector<64x32xbf16>
    %266 = arith.truncf %264 : vector<16x64xf32> to vector<16x64xbf16>
    %cst_91 = arith.constant dense<0.000000e+00> : vector<16x32xf32>
    %267 = tpu.matmul %266, %265, %cst_91 {dimension_numbers = #tpu.dot_dimension_numbers<[1], [0], [0], [1], [0, 0, 1, 1], [], []>} : vector<16x64xbf16>, vector<64x32xbf16>, vector<16x32xf32> -> vector<16x32xf32>
    %c0_92 = arith.constant 0 : index
    %c0_93 = arith.constant 0 : index
    %268 = vector.load %arg20[%c0_92, %c0_93] : memref<1x32xf32, #tpu.memory_space<vmem>>, vector<1x32xf32>
    %269 = vector.broadcast %268 : vector<1x32xf32> to vector<16x32xf32>
    %270 = arith.addf %267, %269 : vector<16x32xf32>
    %271 = arith.addf %250, %270 : vector<16x32xf32>
    %c0_94 = arith.constant 0 : index
    %c0_95 = arith.constant 0 : index
    %272 = vector.load %arg21[%c0_94, %c0_95] : memref<1x32xf32, #tpu.memory_space<vmem>>, vector<1x32xf32>
    %c0_96 = arith.constant 0 : index
    %c0_97 = arith.constant 0 : index
    %273 = vector.load %arg22[%c0_96, %c0_97] : memref<1x32xf32, #tpu.memory_space<vmem>>, vector<1x32xf32>
    %cst_98 = arith.constant dense<0.000000e+00> : vector<16xf32>
    %274 = vector.multi_reduction <add>, %271, %cst_98 [1] : vector<16x32xf32> to vector<16xf32>
    %275 = vector.shape_cast %274 : vector<16xf32> to vector<16x1xf32>
    %cst_99 = arith.constant 3.200000e+01 : f32
    %276 = vector.broadcast %cst_99 : f32 to vector<16x1xf32>
    %277 = arith.divf %275, %276 : vector<16x1xf32>
    %278 = vector.broadcast %277 : vector<16x1xf32> to vector<16x32xf32>
    %279 = arith.subf %271, %278 : vector<16x32xf32>
    %280 = arith.mulf %279, %279 : vector<16x32xf32>
    %cst_100 = arith.constant dense<0.000000e+00> : vector<16xf32>
    %281 = vector.multi_reduction <add>, %280, %cst_100 [1] : vector<16x32xf32> to vector<16xf32>
    %282 = vector.shape_cast %281 : vector<16xf32> to vector<16x1xf32>
    %cst_101 = arith.constant 3.200000e+01 : f32
    %283 = vector.broadcast %cst_101 : f32 to vector<16x1xf32>
    %284 = arith.divf %282, %283 : vector<16x1xf32>
    %cst_102 = arith.constant 9.99999974E-6 : f32
    %285 = vector.broadcast %cst_102 : f32 to vector<16x1xf32>
    %286 = arith.addf %284, %285 : vector<16x1xf32>
    %287 = math.rsqrt %286 : vector<16x1xf32>
    %288 = vector.broadcast %287 : vector<16x1xf32> to vector<16x32xf32>
    %289 = arith.mulf %279, %288 : vector<16x32xf32>
    %290 = vector.broadcast %272 : vector<1x32xf32> to vector<16x32xf32>
    %291 = arith.mulf %289, %290 : vector<16x32xf32>
    %292 = vector.broadcast %273 : vector<1x32xf32> to vector<16x32xf32>
    %293 = arith.addf %291, %292 : vector<16x32xf32>
    %294 = arith.truncf %293 : vector<16x32xf32> to vector<16x32xbf16>
    %c0_103 = arith.constant 0 : index
    %c0_104 = arith.constant 0 : index
    %c0_105 = arith.constant 0 : index
    %295 = vector.load %arg23[%c0_103, %c0_104, %c0_105] : memref<1x16x32xbf16, #tpu.memory_space<vmem>>, vector<1x16x32xbf16>
    %296 = vector.shape_cast %295 : vector<1x16x32xbf16> to vector<16x32xbf16>
    %297 = vector.shape_cast %294 : vector<16x32xbf16> to vector<1x16x32xbf16>
    tpu.vector_store %arg23[%c0_103, %c0_104, %c0_105], %297 {strides = array<i32>} : memref<1x16x32xbf16, #tpu.memory_space<vmem>>, vector<1x16x32xbf16>,
    return
  }
  func.func @transform_0(%arg0: i32) -> (i32, i32, i32) {
    %c0_i32 = arith.constant 0 : i32
    %c0_i32_0 = arith.constant 0 : i32
    %c0_i32_1 = arith.constant 0 : i32
    return %arg0, %c0_i32, %c0_i32_0 : i32, i32, i32
  }
  func.func @transform_1(%arg0: i32) -> (i32, i32, i32) {
    %c0_i32 = arith.constant 0 : i32
    %c0_i32_0 = arith.constant 0 : i32
    %c0_i32_1 = arith.constant 0 : i32
    return %arg0, %c0_i32, %c0_i32_0 : i32, i32, i32
  }
  func.func @transform_2(%arg0: i32) -> (i32, i32) {
    %c0_i32 = arith.constant 0 : i32
    %c0_i32_0 = arith.constant 0 : i32
    %c0_i32_1 = arith.constant 0 : i32
    return %c0_i32, %c0_i32_0 : i32, i32
  }
  func.func @transform_3(%arg0: i32) -> (i32, i32) {
    %c0_i32 = arith.constant 0 : i32
    %c0_i32_0 = arith.constant 0 : i32
    %c0_i32_1 = arith.constant 0 : i32
    return %c0_i32, %c0_i32_0 : i32, i32
  }
  func.func @transform_4(%arg0: i32) -> (i32, i32) {
    %c0_i32 = arith.constant 0 : i32
    %c0_i32_0 = arith.constant 0 : i32
    %c0_i32_1 = arith.constant 0 : i32
    return %c0_i32, %c0_i32_0 : i32, i32
  }
  func.func @transform_5(%arg0: i32) -> (i32, i32) {
    %c0_i32 = arith.constant 0 : i32
    %c0_i32_0 = arith.constant 0 : i32
    %c0_i32_1 = arith.constant 0 : i32
    return %c0_i32, %c0_i32_0 : i32, i32
  }
  func.func @transform_6(%arg0: i32) -> (i32, i32) {
    %c0_i32 = arith.constant 0 : i32
    %c0_i32_0 = arith.constant 0 : i32
    %c0_i32_1 = arith.constant 0 : i32
    return %c0_i32, %c0_i32_0 : i32, i32
  }
  func.func @transform_7(%arg0: i32) -> (i32, i32) {
    %c0_i32 = arith.constant 0 : i32
    %c0_i32_0 = arith.constant 0 : i32
    %c0_i32_1 = arith.constant 0 : i32
    return %c0_i32, %c0_i32_0 : i32, i32
  }
  func.func @transform_8(%arg0: i32) -> (i32, i32) {
    %c0_i32 = arith.constant 0 : i32
    %c0_i32_0 = arith.constant 0 : i32
    %c0_i32_1 = arith.constant 0 : i32
    return %c0_i32, %c0_i32_0 : i32, i32
  }
  func.func @transform_9(%arg0: i32) -> (i32, i32) {
    %c0_i32 = arith.constant 0 : i32
    %c0_i32_0 = arith.constant 0 : i32
    %c0_i32_1 = arith.constant 0 : i32
    return %c0_i32, %c0_i32_0 : i32, i32
  }
  func.func @transform_10(%arg0: i32) -> (i32, i32) {
    %c0_i32 = arith.constant 0 : i32
    %c0_i32_0 = arith.constant 0 : i32
    %c0_i32_1 = arith.constant 0 : i32
    return %c0_i32, %c0_i32_0 : i32, i32
  }
  func.func @transform_11(%arg0: i32) -> (i32, i32) {
    %c0_i32 = arith.constant 0 : i32
    %c0_i32_0 = arith.constant 0 : i32
    %c0_i32_1 = arith.constant 0 : i32
    return %c0_i32, %c0_i32_0 : i32, i32
  }
  func.func @transform_12(%arg0: i32) -> (i32, i32) {
    %c0_i32 = arith.constant 0 : i32
    %c0_i32_0 = arith.constant 0 : i32
    %c0_i32_1 = arith.constant 0 : i32
    return %c0_i32, %c0_i32_0 : i32, i32
  }
  func.func @transform_13(%arg0: i32) -> (i32, i32) {
    %c0_i32 = arith.constant 0 : i32
    %c0_i32_0 = arith.constant 0 : i32
    %c0_i32_1 = arith.constant 0 : i32
    return %c0_i32, %c0_i32_0 : i32, i32
  }
  func.func @transform_14(%arg0: i32) -> (i32, i32) {
    %c0_i32 = arith.constant 0 : i32
    %c0_i32_0 = arith.constant 0 : i32
    %c0_i32_1 = arith.constant 0 : i32
    return %c0_i32, %c0_i32_0 : i32, i32
  }
  func.func @transform_15(%arg0: i32) -> (i32, i32) {
    %c0_i32 = arith.constant 0 : i32
    %c0_i32_0 = arith.constant 0 : i32
    %c0_i32_1 = arith.constant 0 : i32
    return %c0_i32, %c0_i32_0 : i32, i32
  }
  func.func @transform_16(%arg0: i32) -> (i32, i32) {
    %c0_i32 = arith.constant 0 : i32
    %c0_i32_0 = arith.constant 0 : i32
    %c0_i32_1 = arith.constant 0 : i32
    return %c0_i32, %c0_i32_0 : i32, i32
  }
  func.func @transform_17(%arg0: i32) -> (i32, i32) {
    %c0_i32 = arith.constant 0 : i32
    %c0_i32_0 = arith.constant 0 : i32
    %c0_i32_1 = arith.constant 0 : i32
    return %c0_i32, %c0_i32_0 : i32, i32
  }
  func.func @transform_18(%arg0: i32) -> (i32, i32) {
    %c0_i32 = arith.constant 0 : i32
    %c0_i32_0 = arith.constant 0 : i32
    %c0_i32_1 = arith.constant 0 : i32
    return %c0_i32, %c0_i32_0 : i32, i32
  }
  func.func @transform_19(%arg0: i32) -> (i32, i32) {
    %c0_i32 = arith.constant 0 : i32
    %c0_i32_0 = arith.constant 0 : i32
    %c0_i32_1 = arith.constant 0 : i32
    return %c0_i32, %c0_i32_0 : i32, i32
  }
  func.func @transform_20(%arg0: i32) -> (i32, i32) {
    %c0_i32 = arith.constant 0 : i32
    %c0_i32_0 = arith.constant 0 : i32
    %c0_i32_1 = arith.constant 0 : i32
    return %c0_i32, %c0_i32_0 : i32, i32
  }
  func.func @transform_21(%arg0: i32) -> (i32, i32) {
    %c0_i32 = arith.constant 0 : i32
    %c0_i32_0 = arith.constant 0 : i32
    %c0_i32_1 = arith.constant 0 : i32
    return %c0_i32, %c0_i32_0 : i32, i32
  }
  func.func @transform_22(%arg0: i32) -> (i32, i32, i32) {
    %c0_i32 = arith.constant 0 : i32
    %c0_i32_0 = arith.constant 0 : i32
    %c0_i32_1 = arith.constant 0 : i32
    return %arg0, %c0_i32, %c0_i32_0 : i32, i32, i32
  }
}

</mosaic_0001>

<llo_original>
// kernel: _lambda_.7
$region0: #{_lambda_.7}
  #allocation0 [shape = 'u32[]', space=smem, size = 0x4, offset = 0x4, fixed_abs, tag = 'smem constant byte address 0x4 - core index']
  #allocation1 [shape = 'u32[144,128]{1,0:T(1,128)}', space=vmem, size = 0x12000, scoped, tag = 'internal scratch']
  %s0 = inlined_call_operand.vmem [shape: bf16[2,16,4], index: 0, kind: input, shape index: {}]
  %s1 = inlined_call_operand.vmem [shape: bf16[2,16,4], index: 1, kind: input, shape index: {}]
  %s2 = inlined_call_operand.vmem [shape: f32[16,32], index: 2, kind: input, shape index: {}]
  %s3 = inlined_call_operand.vmem [shape: bf16[4,32], index: 3, kind: input, shape index: {}]
  %s4 = inlined_call_operand.vmem [shape: bf16[4,32], index: 4, kind: input, shape index: {}]
  %s5 = inlined_call_operand.vmem [shape: bf16[4,32], index: 5, kind: input, shape index: {}]
  %s6 = inlined_call_operand.vmem [shape: bf16[4,32], index: 6, kind: input, shape index: {}]
  %s7 = inlined_call_operand.vmem [shape: bf16[2,16,32], index: 7, kind: output, shape index: {}]
  %s8 = sld [smem:[#allocation0]]
  $region61: #{_lambda_.7} parent=0
    _
  %s10 = ssub.s32 1, %s8
  %s11 = scalar_select 0, %s10, %s8
  loop: start=0, step=1, limit=4
  $region2: #{_lambda_.7} parent=0 // loop_pre_header
    _
  $region3: #{_lambda_.7} parent=0 // loop_header
    %s13 = sphi 0, %s17
    %p14 = scmp.ge.s32.totalorder %s13, 4
    %s23 = sphi 0, %s25
    %s26 = sphi 0, %s23
    %s27 = sphi 0, %s26
    %s43 = sphi 0, %s27
    %s49 = sphi 0, %s51
    %s52 = sphi 0, %s49
    %s53 = sphi 0, %s52
    %s69 = sphi 0, %s53
    %s73 = sphi 0, %s73
    %s75 = sphi 0, %s73
    %s76 = sphi 0, %s75
    %s90 = sphi 0, %s76
    %s94 = sphi 0, %s94
    %s96 = sphi 0, %s94
    %s97 = sphi 0, %s96
    %s111 = sphi 0, %s97
    %s115 = sphi 0, %s115
    %s117 = sphi 0, %s115
    %s118 = sphi 0, %s117
    %s132 = sphi 0, %s118
    %s136 = sphi 0, %s136
    %s138 = sphi 0, %s136
    %s139 = sphi 0, %s138
    %s153 = sphi 0, %s139
    %s157 = sphi 0, %s157
    %s159 = sphi 0, %s157
    %s160 = sphi 0, %s159
    %s174 = sphi 0, %s160
    %s180 = sphi 0, %s182
    %s183 = sphi 0, %s180
    %s184 = sphi 0, %s183
    %s200 = sphi 0, %s184
  $region4: #{_lambda_.7} parent=0 // loop_header_branch
    %16 = sbr.rel (%p14) target = $region8
  $region5: #{_lambda_.7} parent=0 // loop_body
    %s18 = ssub.s32 %s13, 1
    %s19 = ssub.s32 %s13, 2
    %s20 = sadd.s32 %s13, 1
    %s21 = ssub.s32 %s13, %s20
    %p22 = scmp.eq.s32.totalorder %s21, 0
    %s24 = sadd.s32 %s23, 1
    %s25 = scalar_select %p22, %s23, %s24
    %p28 = pneg %p22
    %p29 = scmp.eq.s32.totalorder %s13, 1
    %p30 = por %p28, %p29
    %p31 = scmp.ne.s32.totalorder %s23, %s26
    %p32 = scmp.eq.s32.totalorder %s13, 0
    %p33 = por %p31, %p32
    %p34 = scmp.ne.s32.totalorder %s23, %s26
    %p35 = scmp.eq.s32.totalorder %s18, 1
    %p36 = por %p34, %p35
    %p37 = scmp.ne.s32.totalorder %s26, %s27
    %p38 = scmp.eq.s32.totalorder %s18, 0
    %p39 = por %p37, %p38
    %p40 = scmp.ne.s32.totalorder %s26, %s27
    %p41 = scmp.eq.s32.totalorder %s19, 1
    %p42 = por %p40, %p41
    %p44 = scmp.ne.s32.totalorder %s27, %s43
    %p45 = scmp.eq.s32.totalorder %s19, 0
    %p46 = por %p44, %p45
    %s47 = ssub.s32 %s13, %s20
    %p48 = scmp.eq.s32.totalorder %s47, 0
    %s50 = sadd.s32 %s49, 1
    %s51 = scalar_select %p48, %s49, %s50
    %p54 = pneg %p48
    %p55 = scmp.eq.s32.totalorder %s13, 1
    %p56 = por %p54, %p55
    %p57 = scmp.ne.s32.totalorder %s49, %s52
    %p58 = scmp.eq.s32.totalorder %s13, 0
    %p59 = por %p57, %p58
    %p60 = scmp.ne.s32.totalorder %s49, %s52
    %p61 = scmp.eq.s32.totalorder %s18, 1
    %p62 = por %p60, %p61
    %p63 = scmp.ne.s32.totalorder %s52, %s53
    %p64 = scmp.eq.s32.totalorder %s18, 0
    %p65 = por %p63, %p64
    %p66 = scmp.ne.s32.totalorder %s52, %s53
    %p67 = scmp.eq.s32.totalorder %s19, 1
    %p68 = por %p66, %p67
    %p70 = scmp.ne.s32.totalorder %s53, %s69
    %p71 = scmp.eq.s32.totalorder %s19, 0
    %p72 = por %p70, %p71
    %s74 = sadd.s32 %s73, 1
    %p77 = scmp.eq.s32.totalorder %s13, 1
    %p78 = scmp.ne.s32.totalorder %s73, %s75
    %p79 = scmp.eq.s32.totalorder %s13, 0
    %p80 = por %p78, %p79
    %p81 = scmp.ne.s32.totalorder %s73, %s75
    %p82 = scmp.eq.s32.totalorder %s18, 1
    %p83 = por %p81, %p82
    %p84 = scmp.ne.s32.totalorder %s75, %s76
    %p85 = scmp.eq.s32.totalorder %s18, 0
    %p86 = por %p84, %p85
    %p87 = scmp.ne.s32.totalorder %s75, %s76
    %p88 = scmp.eq.s32.totalorder %s19, 1
    %p89 = por %p87, %p88
    %p91 = scmp.ne.s32.totalorder %s76, %s90
    %p92 = scmp.eq.s32.totalorder %s19, 0
    %p93 = por %p91, %p92
    %s95 = sadd.s32 %s94, 1
    %p98 = scmp.eq.s32.totalorder %s13, 1
    %p99 = scmp.ne.s32.totalorder %s94, %s96
    %p100 = scmp.eq.s32.totalorder %s13, 0
    %p101 = por %p99, %p100
    %p102 = scmp.ne.s32.totalorder %s94, %s96
    %p103 = scmp.eq.s32.totalorder %s18, 1
    %p104 = por %p102, %p103
    %p105 = scmp.ne.s32.totalorder %s96, %s97
    %p106 = scmp.eq.s32.totalorder %s18, 0
    %p107 = por %p105, %p106
    %p108 = scmp.ne.s32.totalorder %s96, %s97
    %p109 = scmp.eq.s32.totalorder %s19, 1
    %p110 = por %p108, %p109
    %p112 = scmp.ne.s32.totalorder %s97, %s111
    %p113 = scmp.eq.s32.totalorder %s19, 0
    %p114 = por %p112, %p113
    %s116 = sadd.s32 %s115, 1
    %p119 = scmp.eq.s32.totalorder %s13, 1
    %p120 = scmp.ne.s32.totalorder %s115, %s117
    %p121 = scmp.eq.s32.totalorder %s13, 0
    %p122 = por %p120, %p121
    %p123 = scmp.ne.s32.totalorder %s115, %s117
    %p124 = scmp.eq.s32.totalorder %s18, 1
    %p125 = por %p123, %p124
    %p126 = scmp.ne.s32.totalorder %s117, %s118
    %p127 = scmp.eq.s32.totalorder %s18, 0
    %p128 = por %p126, %p127
    %p129 = scmp.ne.s32.totalorder %s117, %s118
    %p130 = scmp.eq.s32.totalorder %s19, 1
    %p131 = por %p129, %p130
    %p133 = scmp.ne.s32.totalorder %s118, %s132
    %p134 = scmp.eq.s32.totalorder %s19, 0
    %p135 = por %p133, %p134
    %s137 = sadd.s32 %s136, 1
    %p140 = scmp.eq.s32.totalorder %s13, 1
    %p141 = scmp.ne.s32.totalorder %s136, %s138
    %p142 = scmp.eq.s32.totalorder %s13, 0
    %p143 = por %p141, %p142
    %p144 = scmp.ne.s32.totalorder %s136, %s138
    %p145 = scmp.eq.s32.totalorder %s18, 1
    %p146 = por %p144, %p145
    %p147 = scmp.ne.s32.totalorder %s138, %s139
    %p148 = scmp.eq.s32.totalorder %s18, 0
    %p149 = por %p147, %p148
    %p150 = scmp.ne.s32.totalorder %s138, %s139
    %p151 = scmp.eq.s32.totalorder %s19, 1
    %p152 = por %p150, %p151
    %p154 = scmp.ne.s32.totalorder %s139, %s153
    %p155 = scmp.eq.s32.totalorder %s19, 0
    %p156 = por %p154, %p155
    %s158 = sadd.s32 %s157, 1
    %p161 = scmp.eq.s32.totalorder %s13, 1
    %p162 = scmp.ne.s32.totalorder %s157, %s159
    %p163 = scmp.eq.s32.totalorder %s13, 0
    %p164 = por %p162, %p163
    %p165 = scmp.ne.s32.totalorder %s157, %s159
    %p166 = scmp.eq.s32.totalorder %s18, 1
    %p167 = por %p165, %p166
    %p168 = scmp.ne.s32.totalorder %s159, %s160
    %p169 = scmp.eq.s32.totalorder %s18, 0
    %p170 = por %p168, %p169
    %p171 = scmp.ne.s32.totalorder %s159, %s160
    %p172 = scmp.eq.s32.totalorder %s19, 1
    %p173 = por %p171, %p172
    %p175 = scmp.ne.s32.totalorder %s160, %s174
    %p176 = scmp.eq.s32.totalorder %s19, 0
    %p177 = por %p175, %p176
    %s178 = ssub.s32 %s13, %s20
    %p179 = scmp.eq.s32.totalorder %s178, 0
    %s181 = sadd.s32 %s180, 1
    %s182 = scalar_select %p179, %s180, %s181
    %p185 = pneg %p179
    %p186 = scmp.eq.s32.totalorder %s13, 1
    %p187 = por %p185, %p186
    %p188 = scmp.ne.s32.totalorder %s180, %s183
    %p189 = scmp.eq.s32.totalorder %s13, 0
    %p190 = por %p188, %p189
    %p191 = scmp.ne.s32.totalorder %s180, %s183
    %p192 = scmp.eq.s32.totalorder %s18, 1
    %p193 = por %p191, %p192
    %p194 = scmp.ne.s32.totalorder %s183, %s184
    %p195 = scmp.eq.s32.totalorder %s18, 0
    %p196 = por %p194, %p195
    %p197 = scmp.ne.s32.totalorder %s183, %s184
    %p198 = scmp.eq.s32.totalorder %s19, 1
    %p199 = por %p197, %p198
    %p201 = scmp.ne.s32.totalorder %s184, %s200
    %p202 = scmp.eq.s32.totalorder %s19, 0
    %p203 = por %p201, %p202
    %p204 = scmp.le.s32.totalorder 1, %s13
    %p205 = scmp.lt.s32.totalorder %s13, 3
    %p206 = pnand %p204, %p205
    %p207 = pneg %p206
    // Predicated region
    $region9: #{_lambda_.7} parent=5 // pred_check
      _
    $region10: #{_lambda_.7} parent=5 // pred_check_branch
      %209 = sbr.rel (%p206) target = $region12
    $region11: #{_lambda_.7} parent=5 // pred_region
      %s210 = ssub.s32 %s13, 1
      // Predicated region
      $region13: #{_lambda_.7} parent=11 // pred_check
        %p211 = pneg %p86
      $region14: #{_lambda_.7} parent=11 // pred_check_branch
        %213 = sbr.rel (%p211) target = $region16
      $region15: #{_lambda_.7} parent=11 // pred_region
        _
      $region16: #{_lambda_.7} parent=11 // pred_fallthru
        _
      // Predicated region
      $region17: #{_lambda_.7} parent=11 // pred_check
        %p214 = pneg %p107
      $region18: #{_lambda_.7} parent=11 // pred_check_branch
        %216 = sbr.rel (%p214) target = $region20
      $region19: #{_lambda_.7} parent=11 // pred_region
        _
      $region20: #{_lambda_.7} parent=11 // pred_fallthru
        _
      // Predicated region
      $region21: #{_lambda_.7} parent=11 // pred_check
        %p217 = pneg %p128
      $region22: #{_lambda_.7} parent=11 // pred_check_branch
        %219 = sbr.rel (%p217) target = $region24
      $region23: #{_lambda_.7} parent=11 // pred_region
        _
      $region24: #{_lambda_.7} parent=11 // pred_fallthru
        _
      // Predicated region
      $region25: #{_lambda_.7} parent=11 // pred_check
        %p220 = pneg %p149
      $region26: #{_lambda_.7} parent=11 // pred_check_branch
        %222 = sbr.rel (%p220) target = $region28
      $region27: #{_lambda_.7} parent=11 // pred_region
        _
      $region28: #{_lambda_.7} parent=11 // pred_fallthru
        _
      // Predicated region
      $region29: #{_lambda_.7} parent=11 // pred_check
        %p223 = pneg %p170
      $region30: #{_lambda_.7} parent=11 // pred_check_branch
        %225 = sbr.rel (%p223) target = $region32
      $region31: #{_lambda_.7} parent=11 // pred_region
        _
      $region32: #{_lambda_.7} parent=11 // pred_fallthru
        _
    $region12: #{_lambda_.7} parent=5 // pred_fallthru
      _
    %p226 = scmp.lt.s32.totalorder %s13, 2
    // Predicated region
    $region33: #{_lambda_.7} parent=5 // pred_check
      %p227 = pneg %p226
    $region34: #{_lambda_.7} parent=5 // pred_check_branch
      %229 = sbr.rel (%p227) target = $region36
    $region35: #{_lambda_.7} parent=5 // pred_region
      // Predicated region
      $region37: #{_lambda_.7} parent=35 // pred_check
        %p230 = pneg %p33
      $region38: #{_lambda_.7} parent=35 // pred_check_branch
        %232 = sbr.rel (%p230) target = $region40
      $region39: #{_lambda_.7} parent=35 // pred_region
        %p233 = scmp.lt.s32.totalorder %s13, 1
        %s234 = scalar_select %p233, %s13, 1
        %s235 = smul.addr %s234, 2
        %s236 = smul.addr %s235, 4
        %s237 = scalar_lea.vmem %s0, %s236
      $region40: #{_lambda_.7} parent=35 // pred_fallthru
        _
      // Predicated region
      $region41: #{_lambda_.7} parent=35 // pred_check
        %p238 = pneg %p59
      $region42: #{_lambda_.7} parent=35 // pred_check_branch
        %240 = sbr.rel (%p238) target = $region44
      $region43: #{_lambda_.7} parent=35 // pred_region
        %p241 = scmp.lt.s32.totalorder %s13, 1
        %s242 = scalar_select %p241, %s13, 1
        %s243 = smul.addr %s242, 2
        %s244 = smul.addr %s243, 4
        %s245 = scalar_lea.vmem %s1, %s244
      $region44: #{_lambda_.7} parent=35 // pred_fallthru
        _
    $region36: #{_lambda_.7} parent=5 // pred_fallthru
      _
    %p246 = scmp.le.s32.totalorder 1, %s13
    %p247 = scmp.lt.s32.totalorder %s13, 3
    %p248 = pnand %p246, %p247
    %p249 = pneg %p248
    // Predicated region
    $region45: #{_lambda_.7} parent=5 // pred_check
      _
    $region46: #{_lambda_.7} parent=5 // pred_check_branch
      %251 = sbr.rel (%p248) target = $region48
    $region47: #{_lambda_.7} parent=5 // pred_region
      %s252 = ssub.s32 %s13, 1
      %p253 = scmp.lt.s32.totalorder %s18, 1
      %s254 = scalar_select %p253, %s18, 1
      %s255 = smul.addr %s254, 2
      %s256 = smul.addr %s255, 4
      %s257 = scalar_lea.vmem %s0, %s256
      %p258 = pneg %p39
      %p259 = pneg %p36
      %p260 = scmp.lt.s32.totalorder %s18, 1
      %s261 = scalar_select %p260, %s18, 1
      %s262 = smul.addr %s261, 2
      %s263 = smul.addr %s262, 4
      %s264 = scalar_lea.vmem %s1, %s263
      %p265 = pneg %p65
      %p266 = pneg %p62
      %p267 = pneg %p86
      %p268 = pneg %p83
      %p269 = pneg %p107
      %p270 = pneg %p104
      %p271 = pneg %p128
      %p272 = pneg %p125
      %p273 = pneg %p149
      %p274 = pneg %p146
      %p275 = pneg %p170
      %p276 = pneg %p167
      %p277 = pneg %p196
      %p278 = pneg %p193
      %p279 = scmp.lt.s32.totalorder %s18, 1
      %s280 = scalar_select %p279, %s18, 1
      %s281 = smul.addr %s280, 2
      %s282 = smul.addr %s281, 4
      %s283 = scalar_lea.vmem %s7, %s282
      %p284 = scmp.lt.s32.totalorder %s18, 1
      %s285 = scalar_select %p284, %s18, 1
      %s286 = smul.addr %s285, 2
      %s287 = smul.addr %s286, 4
      %s288 = scalar_lea.vmem %s0, %s287
      %p289 = scmp.lt.s32.totalorder %s18, 1
      %s290 = scalar_select %p289, %s18, 1
      %s291 = smul.addr %s290, 2
      %s292 = smul.addr %s291, 4
      %s293 = scalar_lea.vmem %s1, %s292
      %p294 = scmp.lt.s32.totalorder %s18, 1
      %s295 = scalar_select %p294, %s18, 1
      %s296 = smul.addr %s295, 2
      %s297 = smul.addr %s296, 4
      %s298 = scalar_lea.vmem %s7, %s297
      %v300 = vld [vmem:[%s288] sm:$0xf]
      %v301 = vld [vmem:[%s288 + $0x4] sm:$0xf]
      %v302 = vunpack.c.l.bf16 %v300
      %v303 = vunpack.c.l.bf16 %v301
      %v304 = vld [vmem:[%s293] sm:$0xf]
      %v305 = vld [vmem:[%s293 + $0x4] sm:$0xf]
      %v307 = vrot.slane %v303, 7
      %vm310 = vcmask 1040384
      %v311 = vrot.slane %v302, 7
      %v312 = vsel %vm310, %v311, %v307
      %v315 = vsel %vm310, %v307, %v311
      %v316 = vld [vmem:[%s3] sm:$0x3]
      %v317 = vpack.c.bf16 %v312, %v315
      %v318 = vld [vmem:[%s4] sm:$0x3]
      %v321 = vunpack.c.l.b16 %v300
      %v322 = vunpack.c.l.b16 %v301
      %v323 = vpack.c.b16 %v322, %v321
      %vm324 = vcmask 31744
      %v326 = vsel %vm324, %v323, 0
      %vm328 = vcmask 1041408
      %v330 = vsel %vm328, %v318, 0
      %332 = vmatprep.subr.bf16.mxu0 0
      %333 = vmatpush1.bf16.msra.mxu0 %v330
      %334 = vmatprep.subr.bf16.mxu0 0
      %335 = vmatpush1.bf16.msra.mxu0 0
      %336 = vmatprep.subr.bf16.mxu0 0
      %337 = vmatpush1.bf16.msra.mxu0 0
      %338 = vmatprep.subr.bf16.mxu0 0
      %339 = vmatpush1.bf16.msra.mxu0 0
      %340 = vmatprep.subr.bf16.mxu0 0
      %341 = vmatpush1.bf16.msra.mxu0 0
      %342 = vmatprep.subr.bf16.mxu0 0
      %343 = vmatpush1.bf16.msra.mxu0 0
      %344 = vmatprep.subr.bf16.mxu0 0
      %345 = vmatpush1.bf16.msra.mxu0 0
      %346 = vmatprep.subr.bf16.mxu0 0
      %347 = vmatpush1.bf16.msra.mxu0 0
      %348 = vmatprep.subr.bf16.mxu0 0
      %349 = vmatpush1.bf16.msra.mxu0 0
      %350 = vmatprep.subr.bf16.mxu0 0
      %351 = vmatpush1.bf16.msra.mxu0 0
      %352 = vmatprep.subr.bf16.mxu0 0
      %353 = vmatpush1.bf16.msra.mxu0 0
      %354 = vmatprep.subr.bf16.mxu0 0
      %355 = vmatpush1.bf16.msra.mxu0 0
      %356 = vmatprep.subr.bf16.mxu0 0
      %357 = vmatpush1.bf16.msra.mxu0 0
      %358 = vmatprep.subr.bf16.mxu0 0
      %359 = vmatpush1.bf16.msra.mxu0 0
      %360 = vmatprep.subr.bf16.mxu0 0
      %361 = vmatpush1.bf16.msra.mxu0 0
      %362 = vmatprep.subr.bf16.mxu0 0
      %363 = vmatpush1.bf16.msra.mxu0 0
      %364 = vmatprep.mubr.bf16.mxu0 0
      %365 = vmatmul.mubr.bf16.gmra.mrb[0].mxu0 %v326
      %v366 = vpop.f32.mrb[0].mxu0
      %v367 = vadd.f32 0.0, %v366
      %v368 = vpop.f32.mrb[0].mxu0
      %v369 = vpop.f32.mrb[0].mxu0
      %v370 = vadd.f32 0.0, %v369
      %v371 = vpop.f32.mrb[0].mxu0
      %372 = vdwg.mxu0
      %v374 = vsel %vm324, %v317, 0
      %v377 = vsel %vm328, %v316, 0
      %379 = vmatprep.subr.bf16.mxu0 0
      %380 = vmatpush1.bf16.msra.mxu0 %v377
      %381 = vmatprep.subr.bf16.mxu0 0
      %382 = vmatpush1.bf16.msra.mxu0 0
      %383 = vmatprep.subr.bf16.mxu0 0
      %384 = vmatpush1.bf16.msra.mxu0 0
      %385 = vmatprep.subr.bf16.mxu0 0
      %386 = vmatpush1.bf16.msra.mxu0 0
      %387 = vmatprep.subr.bf16.mxu0 0
      %388 = vmatpush1.bf16.msra.mxu0 0
      %389 = vmatprep.subr.bf16.mxu0 0
      %390 = vmatpush1.bf16.msra.mxu0 0
      %391 = vmatprep.subr.bf16.mxu0 0
      %392 = vmatpush1.bf16.msra.mxu0 0
      %393 = vmatprep.subr.bf16.mxu0 0
      %394 = vmatpush1.bf16.msra.mxu0 0
      %395 = vmatprep.subr.bf16.mxu0 0
      %396 = vmatpush1.bf16.msra.mxu0 0
      %397 = vmatprep.subr.bf16.mxu0 0
      %398 = vmatpush1.bf16.msra.mxu0 0
      %399 = vmatprep.subr.bf16.mxu0 0
      %400 = vmatpush1.bf16.msra.mxu0 0
      %401 = vmatprep.subr.bf16.mxu0 0
      %402 = vmatpush1.bf16.msra.mxu0 0
      %403 = vmatprep.subr.bf16.mxu0 0
      %404 = vmatpush1.bf16.msra.mxu0 0
      %405 = vmatprep.subr.bf16.mxu0 0
      %406 = vmatpush1.bf16.msra.mxu0 0
      %407 = vmatprep.subr.bf16.mxu0 0
      %408 = vmatpush1.bf16.msra.mxu0 0
      %409 = vmatprep.subr.bf16.mxu0 0
      %410 = vmatpush1.bf16.msra.mxu0 0
      %411 = vmatprep.mubr.bf16.mxu0 0
      %412 = vmatmul.mubr.bf16.gmra.mrb[0].mxu0 %v374
      %v413 = vpop.f32.mrb[0].mxu0
      %v414 = vadd.f32 %v367, %v413
      %v415 = vpop.f32.mrb[0].mxu0
      %v416 = vpop.f32.mrb[0].mxu0
      %v417 = vadd.f32 %v370, %v416
      %v418 = vpop.f32.mrb[0].mxu0
      %419 = vdwg.mxu0
      %vm420 = vcmask 1046528
      %v421 = vrot.slane %v302, 1
      %v422 = vrot.slane %v303, 1
      %v423 = vsel %vm420, %v421, %v422
      %v427 = vsel %vm420, %v422, %v421
      %v428 = vld [vmem:[%s5] sm:$0x3]
      %v429 = vpack.c.bf16 %v427, %v423
      %v431 = vsel %vm324, %v429, 0
      %v434 = vsel %vm328, %v428, 0
      %436 = vmatprep.subr.bf16.mxu0 0
      %437 = vmatpush1.bf16.msra.mxu0 %v434
      %438 = vmatprep.subr.bf16.mxu0 0
      %439 = vmatpush1.bf16.msra.mxu0 0
      %440 = vmatprep.subr.bf16.mxu0 0
      %441 = vmatpush1.bf16.msra.mxu0 0
      %442 = vmatprep.subr.bf16.mxu0 0
      %443 = vmatpush1.bf16.msra.mxu0 0
      %444 = vmatprep.subr.bf16.mxu0 0
      %445 = vmatpush1.bf16.msra.mxu0 0
      %446 = vmatprep.subr.bf16.mxu0 0
      %447 = vmatpush1.bf16.msra.mxu0 0
      %448 = vmatprep.subr.bf16.mxu0 0
      %449 = vmatpush1.bf16.msra.mxu0 0
      %450 = vmatprep.subr.bf16.mxu0 0
      %451 = vmatpush1.bf16.msra.mxu0 0
      %452 = vmatprep.subr.bf16.mxu0 0
      %453 = vmatpush1.bf16.msra.mxu0 0
      %454 = vmatprep.subr.bf16.mxu0 0
      %455 = vmatpush1.bf16.msra.mxu0 0
      %456 = vmatprep.subr.bf16.mxu0 0
      %457 = vmatpush1.bf16.msra.mxu0 0
      %458 = vmatprep.subr.bf16.mxu0 0
      %459 = vmatpush1.bf16.msra.mxu0 0
      %460 = vmatprep.subr.bf16.mxu0 0
      %461 = vmatpush1.bf16.msra.mxu0 0
      %462 = vmatprep.subr.bf16.mxu0 0
      %463 = vmatpush1.bf16.msra.mxu0 0
      %464 = vmatprep.subr.bf16.mxu0 0
      %465 = vmatpush1.bf16.msra.mxu0 0
      %466 = vmatprep.subr.bf16.mxu0 0
      %467 = vmatpush1.bf16.msra.mxu0 0
      %468 = vmatprep.mubr.bf16.mxu0 0
      %469 = vmatmul.mubr.bf16.gmra.mrb[0].mxu0 %v431
      %v470 = vpop.f32.mrb[0].mxu0
      %v471 = vadd.f32 0.0, %v470
      %v472 = vpop.f32.mrb[0].mxu0
      %v473 = vpop.f32.mrb[0].mxu0
      %v474 = vadd.f32 0.0, %v473
      %v475 = vpop.f32.mrb[0].mxu0
      %476 = vdwg.mxu0
      %v477 = vadd.f32 %v414, %v471
      %v478 = vadd.f32 %v417, %v474
      %v479 = vld [vmem:[%s6] sm:$0x3]
      %v482 = vunpack.c.l.b16 %v304
      %v483 = vunpack.c.l.b16 %v305
      %v484 = vpack.c.b16 %v483, %v482
      %v486 = vsel %vm324, %v484, 0
      %v489 = vsel %vm328, %v479, 0
      %491 = vmatprep.subr.bf16.mxu0 0
      %492 = vmatpush1.bf16.msra.mxu0 %v489
      %493 = vmatprep.subr.bf16.mxu0 0
      %494 = vmatpush1.bf16.msra.mxu0 0
      %495 = vmatprep.subr.bf16.mxu0 0
      %496 = vmatpush1.bf16.msra.mxu0 0
      %497 = vmatprep.subr.bf16.mxu0 0
      %498 = vmatpush1.bf16.msra.mxu0 0
      %499 = vmatprep.subr.bf16.mxu0 0
      %500 = vmatpush1.bf16.msra.mxu0 0
      %501 = vmatprep.subr.bf16.mxu0 0
      %502 = vmatpush1.bf16.msra.mxu0 0
      %503 = vmatprep.subr.bf16.mxu0 0
      %504 = vmatpush1.bf16.msra.mxu0 0
      %505 = vmatprep.subr.bf16.mxu0 0
      %506 = vmatpush1.bf16.msra.mxu0 0
      %507 = vmatprep.subr.bf16.mxu0 0
      %508 = vmatpush1.bf16.msra.mxu0 0
      %509 = vmatprep.subr.bf16.mxu0 0
      %510 = vmatpush1.bf16.msra.mxu0 0
      %511 = vmatprep.subr.bf16.mxu0 0
      %512 = vmatpush1.bf16.msra.mxu0 0
      %513 = vmatprep.subr.bf16.mxu0 0
      %514 = vmatpush1.bf16.msra.mxu0 0
      %515 = vmatprep.subr.bf16.mxu0 0
      %516 = vmatpush1.bf16.msra.mxu0 0
      %517 = vmatprep.subr.bf16.mxu0 0
      %518 = vmatpush1.bf16.msra.mxu0 0
      %519 = vmatprep.subr.bf16.mxu0 0
      %520 = vmatpush1.bf16.msra.mxu0 0
      %521 = vmatprep.subr.bf16.mxu0 0
      %522 = vmatpush1.bf16.msra.mxu0 0
      %523 = vmatprep.mubr.bf16.mxu0 0
      %524 = vmatmul.mubr.bf16.gmra.mrb[0].mxu0 %v486
      %v525 = vpop.f32.mrb[0].mxu0
      %v526 = vadd.f32 0.0, %v525
      %v527 = vpop.f32.mrb[0].mxu0
      %v528 = vpop.f32.mrb[0].mxu0
      %v529 = vadd.f32 0.0, %v528
      %v530 = vpop.f32.mrb[0].mxu0
      %531 = vdwg.mxu0
      %v532 = vadd.f32 %v477, %v526
      %v533 = vadd.f32 %v478, %v529
      %v534 = vld [vmem:[%s2] sm:$0xff]
      %v535 = vld [vmem:[%s2 + $0x8] sm:$0xff]
      %v536 = vadd.f32 %v532, %v534
      %v537 = vadd.f32 %v533, %v535
      %v538 = vpack.c.bf16 %v537, %v536
      %v540 = vunpack.c.l.b16 %v538
      %v541 = vunpack.c.h.b16 %v538
      %v542 = vpack.c.b16 %v540, %v540
      %v543 = vpack.c.b16 %v541, %v541
      %vm546 = vcmask 257024
      %547 = vst.msk [vmem:[%s298] sm:$0xf] %vm546, %v542
      %548 = vst.msk [vmem:[%s298 + $0x4] sm:$0xf] %vm546, %v543
      %p549 = scmp.lt.s32.totalorder %s18, 1
      %s550 = scalar_select %p549, %s18, 1
      %s551 = smul.addr %s550, 2
      %s552 = smul.addr %s551, 4
      %s553 = scalar_lea.vmem %s7, %s552
      // Predicated region
      $region49: #{_lambda_.7} parent=47 // pred_check
        %p554 = pneg %p193
      $region50: #{_lambda_.7} parent=47 // pred_check_branch
        %556 = sbr.rel (%p554) target = $region52
      $region51: #{_lambda_.7} parent=47 // pred_region
        _
      $region52: #{_lambda_.7} parent=47 // pred_fallthru
        _
    $region48: #{_lambda_.7} parent=5 // pred_fallthru
      _
    %p557 = scmp.le.s32.totalorder 2, %s13
    // Predicated region
    $region53: #{_lambda_.7} parent=5 // pred_check
      %p558 = pneg %p557
    $region54: #{_lambda_.7} parent=5 // pred_check_branch
      %560 = sbr.rel (%p558) target = $region56
    $region55: #{_lambda_.7} parent=5 // pred_region
      %s561 = ssub.s32 %s13, 2
      // Predicated region
      $region57: #{_lambda_.7} parent=55 // pred_check
        %p562 = pneg %p199
      $region58: #{_lambda_.7} parent=55 // pred_check_branch
        %564 = sbr.rel (%p562) target = $region60
      $region59: #{_lambda_.7} parent=55 // pred_region
        %p565 = scmp.lt.s32.totalorder %s19, 1
        %s566 = scalar_select %p565, %s19, 1
        %s567 = smul.addr %s566, 2
        %s568 = smul.addr %s567, 4
        %s569 = scalar_lea.vmem %s7, %s568
      $region60: #{_lambda_.7} parent=55 // pred_fallthru
        _
    $region56: #{_lambda_.7} parent=5 // pred_fallthru
      _
  $region6: #{_lambda_.7} parent=0 // loop_footer
    %s17 = sadd.s32 1, %s13
  $region7: #{_lambda_.7} parent=0 // loop_footer_branch
    %12 = sbr.rel target = $region3
  $region8: #{_lambda_.7} parent=0 // loop_exit
    _

// kernel: _lambda_.10
$region0: #{_lambda_.10}
  #allocation0 [shape = 'u32[]', space=smem, size = 0x4, offset = 0x4, fixed_abs, tag = 'smem constant byte address 0x4 - core index']
  #allocation1 [shape = 'u32[144,128]{1,0:T(1,128)}', space=vmem, size = 0x12000, scoped, tag = 'internal scratch']
  %s0 = inlined_call_operand.vmem [shape: bf16[2,16,32], index: 0, kind: input, shape index: {}]
  %s1 = inlined_call_operand.vmem [shape: bf16[32,32], index: 1, kind: input, shape index: {}]
  %s2 = inlined_call_operand.vmem [shape: bf16[32,32], index: 2, kind: input, shape index: {}]
  %s3 = inlined_call_operand.vmem [shape: bf16[32,32], index: 3, kind: input, shape index: {}]
  %s4 = inlined_call_operand.vmem [shape: f32[1,32], index: 4, kind: input, shape index: {}]
  %s5 = inlined_call_operand.vmem [shape: bf16[2,16,32], index: 5, kind: output, shape index: {}]
  %s6 = sld [smem:[#allocation0]]
  $region53: #{_lambda_.10} parent=0
    _
  %s8 = ssub.s32 1, %s6
  %s9 = scalar_select 0, %s8, %s6
  loop: start=0, step=1, limit=4
  $region2: #{_lambda_.10} parent=0 // loop_pre_header
    _
  $region3: #{_lambda_.10} parent=0 // loop_header
    %s11 = sphi 0, %s15
    %p12 = scmp.ge.s32.totalorder %s11, 4
    %s21 = sphi 0, %s23
    %s24 = sphi 0, %s21
    %s25 = sphi 0, %s24
    %s41 = sphi 0, %s25
    %s45 = sphi 0, %s45
    %s47 = sphi 0, %s45
    %s48 = sphi 0, %s47
    %s62 = sphi 0, %s48
    %s66 = sphi 0, %s66
    %s68 = sphi 0, %s66
    %s69 = sphi 0, %s68
    %s83 = sphi 0, %s69
    %s87 = sphi 0, %s87
    %s89 = sphi 0, %s87
    %s90 = sphi 0, %s89
    %s104 = sphi 0, %s90
    %s108 = sphi 0, %s108
    %s110 = sphi 0, %s108
    %s111 = sphi 0, %s110
    %s125 = sphi 0, %s111
    %s131 = sphi 0, %s133
    %s134 = sphi 0, %s131
    %s135 = sphi 0, %s134
    %s151 = sphi 0, %s135
  $region4: #{_lambda_.10} parent=0 // loop_header_branch
    %14 = sbr.rel (%p12) target = $region8
  $region5: #{_lambda_.10} parent=0 // loop_body
    %s16 = ssub.s32 %s11, 1
    %s17 = ssub.s32 %s11, 2
    %s18 = sadd.s32 %s11, 1
    %s19 = ssub.s32 %s11, %s18
    %p20 = scmp.eq.s32.totalorder %s19, 0
    %s22 = sadd.s32 %s21, 1
    %s23 = scalar_select %p20, %s21, %s22
    %p26 = pneg %p20
    %p27 = scmp.eq.s32.totalorder %s11, 1
    %p28 = por %p26, %p27
    %p29 = scmp.ne.s32.totalorder %s21, %s24
    %p30 = scmp.eq.s32.totalorder %s11, 0
    %p31 = por %p29, %p30
    %p32 = scmp.ne.s32.totalorder %s21, %s24
    %p33 = scmp.eq.s32.totalorder %s16, 1
    %p34 = por %p32, %p33
    %p35 = scmp.ne.s32.totalorder %s24, %s25
    %p36 = scmp.eq.s32.totalorder %s16, 0
    %p37 = por %p35, %p36
    %p38 = scmp.ne.s32.totalorder %s24, %s25
    %p39 = scmp.eq.s32.totalorder %s17, 1
    %p40 = por %p38, %p39
    %p42 = scmp.ne.s32.totalorder %s25, %s41
    %p43 = scmp.eq.s32.totalorder %s17, 0
    %p44 = por %p42, %p43
    %s46 = sadd.s32 %s45, 1
    %p49 = scmp.eq.s32.totalorder %s11, 1
    %p50 = scmp.ne.s32.totalorder %s45, %s47
    %p51 = scmp.eq.s32.totalorder %s11, 0
    %p52 = por %p50, %p51
    %p53 = scmp.ne.s32.totalorder %s45, %s47
    %p54 = scmp.eq.s32.totalorder %s16, 1
    %p55 = por %p53, %p54
    %p56 = scmp.ne.s32.totalorder %s47, %s48
    %p57 = scmp.eq.s32.totalorder %s16, 0
    %p58 = por %p56, %p57
    %p59 = scmp.ne.s32.totalorder %s47, %s48
    %p60 = scmp.eq.s32.totalorder %s17, 1
    %p61 = por %p59, %p60
    %p63 = scmp.ne.s32.totalorder %s48, %s62
    %p64 = scmp.eq.s32.totalorder %s17, 0
    %p65 = por %p63, %p64
    %s67 = sadd.s32 %s66, 1
    %p70 = scmp.eq.s32.totalorder %s11, 1
    %p71 = scmp.ne.s32.totalorder %s66, %s68
    %p72 = scmp.eq.s32.totalorder %s11, 0
    %p73 = por %p71, %p72
    %p74 = scmp.ne.s32.totalorder %s66, %s68
    %p75 = scmp.eq.s32.totalorder %s16, 1
    %p76 = por %p74, %p75
    %p77 = scmp.ne.s32.totalorder %s68, %s69
    %p78 = scmp.eq.s32.totalorder %s16, 0
    %p79 = por %p77, %p78
    %p80 = scmp.ne.s32.totalorder %s68, %s69
    %p81 = scmp.eq.s32.totalorder %s17, 1
    %p82 = por %p80, %p81
    %p84 = scmp.ne.s32.totalorder %s69, %s83
    %p85 = scmp.eq.s32.totalorder %s17, 0
    %p86 = por %p84, %p85
    %s88 = sadd.s32 %s87, 1
    %p91 = scmp.eq.s32.totalorder %s11, 1
    %p92 = scmp.ne.s32.totalorder %s87, %s89
    %p93 = scmp.eq.s32.totalorder %s11, 0
    %p94 = por %p92, %p93
    %p95 = scmp.ne.s32.totalorder %s87, %s89
    %p96 = scmp.eq.s32.totalorder %s16, 1
    %p97 = por %p95, %p96
    %p98 = scmp.ne.s32.totalorder %s89, %s90
    %p99 = scmp.eq.s32.totalorder %s16, 0
    %p100 = por %p98, %p99
    %p101 = scmp.ne.s32.totalorder %s89, %s90
    %p102 = scmp.eq.s32.totalorder %s17, 1
    %p103 = por %p101, %p102
    %p105 = scmp.ne.s32.totalorder %s90, %s104
    %p106 = scmp.eq.s32.totalorder %s17, 0
    %p107 = por %p105, %p106
    %s109 = sadd.s32 %s108, 1
    %p112 = scmp.eq.s32.totalorder %s11, 1
    %p113 = scmp.ne.s32.totalorder %s108, %s110
    %p114 = scmp.eq.s32.totalorder %s11, 0
    %p115 = por %p113, %p114
    %p116 = scmp.ne.s32.totalorder %s108, %s110
    %p117 = scmp.eq.s32.totalorder %s16, 1
    %p118 = por %p116, %p117
    %p119 = scmp.ne.s32.totalorder %s110, %s111
    %p120 = scmp.eq.s32.totalorder %s16, 0
    %p121 = por %p119, %p120
    %p122 = scmp.ne.s32.totalorder %s110, %s111
    %p123 = scmp.eq.s32.totalorder %s17, 1
    %p124 = por %p122, %p123
    %p126 = scmp.ne.s32.totalorder %s111, %s125
    %p127 = scmp.eq.s32.totalorder %s17, 0
    %p128 = por %p126, %p127
    %s129 = ssub.s32 %s11, %s18
    %p130 = scmp.eq.s32.totalorder %s129, 0
    %s132 = sadd.s32 %s131, 1
    %s133 = scalar_select %p130, %s131, %s132
    %p136 = pneg %p130
    %p137 = scmp.eq.s32.totalorder %s11, 1
    %p138 = por %p136, %p137
    %p139 = scmp.ne.s32.totalorder %s131, %s134
    %p140 = scmp.eq.s32.totalorder %s11, 0
    %p141 = por %p139, %p140
    %p142 = scmp.ne.s32.totalorder %s131, %s134
    %p143 = scmp.eq.s32.totalorder %s16, 1
    %p144 = por %p142, %p143
    %p145 = scmp.ne.s32.totalorder %s134, %s135
    %p146 = scmp.eq.s32.totalorder %s16, 0
    %p147 = por %p145, %p146
    %p148 = scmp.ne.s32.totalorder %s134, %s135
    %p149 = scmp.eq.s32.totalorder %s17, 1
    %p150 = por %p148, %p149
    %p152 = scmp.ne.s32.totalorder %s135, %s151
    %p153 = scmp.eq.s32.totalorder %s17, 0
    %p154 = por %p152, %p153
    %p155 = scmp.le.s32.totalorder 1, %s11
    %p156 = scmp.lt.s32.totalorder %s11, 3
    %p157 = pnand %p155, %p156
    %p158 = pneg %p157
    // Predicated region
    $region9: #{_lambda_.10} parent=5 // pred_check
      _
    $region10: #{_lambda_.10} parent=5 // pred_check_branch
      %160 = sbr.rel (%p157) target = $region12
    $region11: #{_lambda_.10} parent=5 // pred_region
      %s161 = ssub.s32 %s11, 1
      // Predicated region
      $region13: #{_lambda_.10} parent=11 // pred_check
        %p162 = pneg %p58
      $region14: #{_lambda_.10} parent=11 // pred_check_branch
        %164 = sbr.rel (%p162) target = $region16
      $region15: #{_lambda_.10} parent=11 // pred_region
        _
      $region16: #{_lambda_.10} parent=11 // pred_fallthru
        _
      // Predicated region
      $region17: #{_lambda_.10} parent=11 // pred_check
        %p165 = pneg %p79
      $region18: #{_lambda_.10} parent=11 // pred_check_branch
        %167 = sbr.rel (%p165) target = $region20
      $region19: #{_lambda_.10} parent=11 // pred_region
        _
      $region20: #{_lambda_.10} parent=11 // pred_fallthru
        _
      // Predicated region
      $region21: #{_lambda_.10} parent=11 // pred_check
        %p168 = pneg %p100
      $region22: #{_lambda_.10} parent=11 // pred_check_branch
        %170 = sbr.rel (%p168) target = $region24
      $region23: #{_lambda_.10} parent=11 // pred_region
        _
      $region24: #{_lambda_.10} parent=11 // pred_fallthru
        _
      // Predicated region
      $region25: #{_lambda_.10} parent=11 // pred_check
        %p171 = pneg %p121
      $region26: #{_lambda_.10} parent=11 // pred_check_branch
        %173 = sbr.rel (%p171) target = $region28
      $region27: #{_lambda_.10} parent=11 // pred_region
        _
      $region28: #{_lambda_.10} parent=11 // pred_fallthru
        _
    $region12: #{_lambda_.10} parent=5 // pred_fallthru
      _
    %p174 = scmp.lt.s32.totalorder %s11, 2
    // Predicated region
    $region29: #{_lambda_.10} parent=5 // pred_check
      %p175 = pneg %p174
    $region30: #{_lambda_.10} parent=5 // pred_check_branch
      %177 = sbr.rel (%p175) target = $region32
    $region31: #{_lambda_.10} parent=5 // pred_region
      // Predicated region
      $region33: #{_lambda_.10} parent=31 // pred_check
        %p178 = pneg %p31
      $region34: #{_lambda_.10} parent=31 // pred_check_branch
        %180 = sbr.rel (%p178) target = $region36
      $region35: #{_lambda_.10} parent=31 // pred_region
        %p181 = scmp.lt.s32.totalorder %s11, 1
        %s182 = scalar_select %p181, %s11, 1
        %s183 = smul.addr %s182, 2
        %s184 = smul.addr %s183, 4
        %s185 = scalar_lea.vmem %s0, %s184
      $region36: #{_lambda_.10} parent=31 // pred_fallthru
        _
    $region32: #{_lambda_.10} parent=5 // pred_fallthru
      _
    %p186 = scmp.le.s32.totalorder 1, %s11
    %p187 = scmp.lt.s32.totalorder %s11, 3
    %p188 = pnand %p186, %p187
    %p189 = pneg %p188
    // Predicated region
    $region37: #{_lambda_.10} parent=5 // pred_check
      _
    $region38: #{_lambda_.10} parent=5 // pred_check_branch
      %191 = sbr.rel (%p188) target = $region40
    $region39: #{_lambda_.10} parent=5 // pred_region
      %s192 = ssub.s32 %s11, 1
      %p193 = scmp.lt.s32.totalorder %s16, 1
      %s194 = scalar_select %p193, %s16, 1
      %s195 = smul.addr %s194, 2
      %s196 = smul.addr %s195, 4
      %s197 = scalar_lea.vmem %s0, %s196
      %p198 = pneg %p37
      %p199 = pneg %p34
      %p200 = pneg %p58
      %p201 = pneg %p55
      %p202 = pneg %p79
      %p203 = pneg %p76
      %p204 = pneg %p100
      %p205 = pneg %p97
      %p206 = pneg %p121
      %p207 = pneg %p118
      %p208 = pneg %p147
      %p209 = pneg %p144
      %p210 = scmp.lt.s32.totalorder %s16, 1
      %s211 = scalar_select %p210, %s16, 1
      %s212 = smul.addr %s211, 2
      %s213 = smul.addr %s212, 4
      %s214 = scalar_lea.vmem %s5, %s213
      %p215 = scmp.lt.s32.totalorder %s16, 1
      %s216 = scalar_select %p215, %s16, 1
      %s217 = smul.addr %s216, 2
      %s218 = smul.addr %s217, 4
      %s219 = scalar_lea.vmem %s0, %s218
      %p220 = scmp.lt.s32.totalorder %s16, 1
      %s221 = scalar_select %p220, %s16, 1
      %s222 = smul.addr %s221, 2
      %s223 = smul.addr %s222, 4
      %s224 = scalar_lea.vmem %s5, %s223
      %v226 = vld [vmem:[%s219] sm:$0xf]
      %v227 = vld [vmem:[%s219 + $0x4] sm:$0xf]
      %v228 = vunpack.c.l.bf16 %v226
      %v229 = vunpack.c.l.bf16 %v227
      %v231 = vrot.slane %v229, 7
      %vm234 = vcmask 1040384
      %v235 = vrot.slane %v228, 7
      %v236 = vsel %vm234, %v235, %v231
      %v239 = vsel %vm234, %v231, %v235
      %v240 = vld [vmem:[%s1] sm:$0xf]
      %v241 = vld [vmem:[%s1 + $0x4] sm:$0xf]
      %v242 = vld [vmem:[%s1 + $0x8] sm:$0xf]
      %v243 = vld [vmem:[%s1 + $0xc] sm:$0xf]
      %v244 = vpack.c.bf16 %v236, %v239
      %v245 = vld [vmem:[%s2] sm:$0xf]
      %v246 = vld [vmem:[%s2 + $0x4] sm:$0xf]
      %v247 = vld [vmem:[%s2 + $0x8] sm:$0xf]
      %v248 = vld [vmem:[%s2 + $0xc] sm:$0xf]
      %v251 = vunpack.c.l.b16 %v226
      %v252 = vunpack.c.l.b16 %v227
      %v253 = vpack.c.b16 %v252, %v251
      %v258 = vunpack.c.l.b16 %v245
      %v259 = vunpack.c.l.b16 %v246
      %v260 = vunpack.c.l.b16 %v247
      %v261 = vunpack.c.l.b16 %v248
      %v262 = vpack.c.b16 %v259, %v258
      %v263 = vpack.c.b16 %v261, %v260
      %vm266 = vcmask 261120
      %v268 = vsel %vm266, %v253, 0
      %270 = vmatprep.subr.bf16.mxu0 0
      %271 = vmatpush1.bf16.msra.mxu0 %v262
      %272 = vmatprep.subr.bf16.mxu0 0
      %273 = vmatpush1.bf16.msra.mxu0 %v263
      %274 = vmatprep.subr.bf16.mxu0 0
      %275 = vmatpush1.bf16.msra.mxu0 0
      %276 = vmatprep.subr.bf16.mxu0 0
      %277 = vmatpush1.bf16.msra.mxu0 0
      %278 = vmatprep.subr.bf16.mxu0 0
      %279 = vmatpush1.bf16.msra.mxu0 0
      %280 = vmatprep.subr.bf16.mxu0 0
      %281 = vmatpush1.bf16.msra.mxu0 0
      %282 = vmatprep.subr.bf16.mxu0 0
      %283 = vmatpush1.bf16.msra.mxu0 0
      %284 = vmatprep.subr.bf16.mxu0 0
      %285 = vmatpush1.bf16.msra.mxu0 0
      %286 = vmatprep.subr.bf16.mxu0 0
      %287 = vmatpush1.bf16.msra.mxu0 0
      %288 = vmatprep.subr.bf16.mxu0 0
      %289 = vmatpush1.bf16.msra.mxu0 0
      %290 = vmatprep.subr.bf16.mxu0 0
      %291 = vmatpush1.bf16.msra.mxu0 0
      %292 = vmatprep.subr.bf16.mxu0 0
      %293 = vmatpush1.bf16.msra.mxu0 0
      %294 = vmatprep.subr.bf16.mxu0 0
      %295 = vmatpush1.bf16.msra.mxu0 0
      %296 = vmatprep.subr.bf16.mxu0 0
      %297 = vmatpush1.bf16.msra.mxu0 0
      %298 = vmatprep.subr.bf16.mxu0 0
      %299 = vmatpush1.bf16.msra.mxu0 0
      %300 = vmatprep.subr.bf16.mxu0 0
      %301 = vmatpush1.bf16.msra.mxu0 0
      %302 = vmatprep.mubr.bf16.mxu0 0
      %303 = vmatmul.mubr.bf16.gmra.mrb[0].mxu0 %v268
      %v304 = vpop.f32.mrb[0].mxu0
      %v305 = vadd.f32 0.0, %v304
      %v306 = vpop.f32.mrb[0].mxu0
      %v307 = vpop.f32.mrb[0].mxu0
      %v308 = vadd.f32 0.0, %v307
      %v309 = vpop.f32.mrb[0].mxu0
      %310 = vdwg.mxu0
      %v315 = vunpack.c.l.b16 %v240
      %v316 = vunpack.c.l.b16 %v241
      %v317 = vunpack.c.l.b16 %v242
      %v318 = vunpack.c.l.b16 %v243
      %v319 = vpack.c.b16 %v316, %v315
      %v320 = vpack.c.b16 %v318, %v317
      %v324 = vsel %vm266, %v244, 0
      %326 = vmatprep.subr.bf16.mxu0 0
      %327 = vmatpush1.bf16.msra.mxu0 %v319
      %328 = vmatprep.subr.bf16.mxu0 0
      %329 = vmatpush1.bf16.msra.mxu0 %v320
      %330 = vmatprep.subr.bf16.mxu0 0
      %331 = vmatpush1.bf16.msra.mxu0 0
      %332 = vmatprep.subr.bf16.mxu0 0
      %333 = vmatpush1.bf16.msra.mxu0 0
      %334 = vmatprep.subr.bf16.mxu0 0
      %335 = vmatpush1.bf16.msra.mxu0 0
      %336 = vmatprep.subr.bf16.mxu0 0
      %337 = vmatpush1.bf16.msra.mxu0 0
      %338 = vmatprep.subr.bf16.mxu0 0
      %339 = vmatpush1.bf16.msra.mxu0 0
      %340 = vmatprep.subr.bf16.mxu0 0
      %341 = vmatpush1.bf16.msra.mxu0 0
      %342 = vmatprep.subr.bf16.mxu0 0
      %343 = vmatpush1.bf16.msra.mxu0 0
      %344 = vmatprep.subr.bf16.mxu0 0
      %345 = vmatpush1.bf16.msra.mxu0 0
      %346 = vmatprep.subr.bf16.mxu0 0
      %347 = vmatpush1.bf16.msra.mxu0 0
      %348 = vmatprep.subr.bf16.mxu0 0
      %349 = vmatpush1.bf16.msra.mxu0 0
      %350 = vmatprep.subr.bf16.mxu0 0
      %351 = vmatpush1.bf16.msra.mxu0 0
      %352 = vmatprep.subr.bf16.mxu0 0
      %353 = vmatpush1.bf16.msra.mxu0 0
      %354 = vmatprep.subr.bf16.mxu0 0
      %355 = vmatpush1.bf16.msra.mxu0 0
      %356 = vmatprep.subr.bf16.mxu0 0
      %357 = vmatpush1.bf16.msra.mxu0 0
      %358 = vmatprep.mubr.bf16.mxu0 0
      %359 = vmatmul.mubr.bf16.gmra.mrb[0].mxu0 %v324
      %v360 = vpop.f32.mrb[0].mxu0
      %v361 = vadd.f32 %v305, %v360
      %v362 = vpop.f32.mrb[0].mxu0
      %v363 = vpop.f32.mrb[0].mxu0
      %v364 = vadd.f32 %v308, %v363
      %v365 = vpop.f32.mrb[0].mxu0
      %366 = vdwg.mxu0
      %vm367 = vcmask 1046528
      %v368 = vrot.slane %v228, 1
      %v369 = vrot.slane %v229, 1
      %v370 = vsel %vm367, %v368, %v369
      %v374 = vsel %vm367, %v369, %v368
      %v375 = vld [vmem:[%s3] sm:$0xf]
      %v376 = vld [vmem:[%s3 + $0x4] sm:$0xf]
      %v377 = vld [vmem:[%s3 + $0x8] sm:$0xf]
      %v378 = vld [vmem:[%s3 + $0xc] sm:$0xf]
      %v379 = vpack.c.bf16 %v374, %v370
      %v384 = vunpack.c.l.b16 %v375
      %v385 = vunpack.c.l.b16 %v376
      %v386 = vunpack.c.l.b16 %v377
      %v387 = vunpack.c.l.b16 %v378
      %v388 = vpack.c.b16 %v385, %v384
      %v389 = vpack.c.b16 %v387, %v386
      %v393 = vsel %vm266, %v379, 0
      %395 = vmatprep.subr.bf16.mxu0 0
      %396 = vmatpush1.bf16.msra.mxu0 %v388
      %397 = vmatprep.subr.bf16.mxu0 0
      %398 = vmatpush1.bf16.msra.mxu0 %v389
      %399 = vmatprep.subr.bf16.mxu0 0
      %400 = vmatpush1.bf16.msra.mxu0 0
      %401 = vmatprep.subr.bf16.mxu0 0
      %402 = vmatpush1.bf16.msra.mxu0 0
      %403 = vmatprep.subr.bf16.mxu0 0
      %404 = vmatpush1.bf16.msra.mxu0 0
      %405 = vmatprep.subr.bf16.mxu0 0
      %406 = vmatpush1.bf16.msra.mxu0 0
      %407 = vmatprep.subr.bf16.mxu0 0
      %408 = vmatpush1.bf16.msra.mxu0 0
      %409 = vmatprep.subr.bf16.mxu0 0
      %410 = vmatpush1.bf16.msra.mxu0 0
      %411 = vmatprep.subr.bf16.mxu0 0
      %412 = vmatpush1.bf16.msra.mxu0 0
      %413 = vmatprep.subr.bf16.mxu0 0
      %414 = vmatpush1.bf16.msra.mxu0 0
      %415 = vmatprep.subr.bf16.mxu0 0
      %416 = vmatpush1.bf16.msra.mxu0 0
      %417 = vmatprep.subr.bf16.mxu0 0
      %418 = vmatpush1.bf16.msra.mxu0 0
      %419 = vmatprep.subr.bf16.mxu0 0
      %420 = vmatpush1.bf16.msra.mxu0 0
      %421 = vmatprep.subr.bf16.mxu0 0
      %422 = vmatpush1.bf16.msra.mxu0 0
      %423 = vmatprep.subr.bf16.mxu0 0
      %424 = vmatpush1.bf16.msra.mxu0 0
      %425 = vmatprep.subr.bf16.mxu0 0
      %426 = vmatpush1.bf16.msra.mxu0 0
      %427 = vmatprep.mubr.bf16.mxu0 0
      %428 = vmatmul.mubr.bf16.gmra.mrb[0].mxu0 %v393
      %v429 = vpop.f32.mrb[0].mxu0
      %v430 = vadd.f32 0.0, %v429
      %v431 = vpop.f32.mrb[0].mxu0
      %v432 = vpop.f32.mrb[0].mxu0
      %v433 = vadd.f32 0.0, %v432
      %v434 = vpop.f32.mrb[0].mxu0
      %435 = vdwg.mxu0
      %v436 = vadd.f32 %v361, %v430
      %v437 = vadd.f32 %v364, %v433
      %v438 = vld [vmem:[%s4] sm:$0x1]
      %v440 = vlaneseq
      %v441 = vshrl.u32 %v440, 7
      %v442 = vsub.s32 0, %v441
      %v443 = vrot.slane %v438, %v442
      %v445 = vadd.f32 %v436, %v443
      %v446 = vadd.f32 %v437, %v443
      %vm447 = vcmp.gt.f32.partialorder %v445, 0.0
      %vm448 = vcmp.gt.f32.partialorder %v446, 0.0
      %v449 = vmin.f32 %v445, 0.0
      %v450 = vmin.f32 %v446, 0.0
      %v451 = vmul.f32 %v449, 1.442695
      %v452 = vpow.pop %v451
      %v453 = vmul.f32 %v450, 1.442695
      %v454 = vpow.pop %v453
      %v455 = vsub.f32 %v452, 1.0
      %v456 = vsub.f32 %v454, 1.0
      %v457 = vsel %vm447, %v445, %v455
      %v458 = vsel %vm448, %v446, %v456
      %v461 = vrot.slane %v457, 7
      %v462 = vrot.slane %v458, 7
      %v463 = vsel %vm234, %v461, %v462
      %v466 = vsel %vm234, -1e+30, %v461
      %v467 = vrot.slane %v457, 1
      %v468 = vrot.slane %v458, 1
      %v469 = vsel %vm367, %v467, %v468
      %v472 = vsel %vm367, %v468, -1e+30
      %v473 = vmax.f32 %v466, %v457
      %v474 = vmax.f32 %v463, %v458
      %v475 = vmax.f32 %v473, %v469
      %v476 = vmax.f32 %v474, %v472
      %v477 = vpack.c.bf16 %v476, %v475
      %v479 = vunpack.c.l.b16 %v477
      %v480 = vunpack.c.h.b16 %v477
      %v481 = vpack.c.b16 %v479, %v479
      %v482 = vpack.c.b16 %v480, %v480
      %vm485 = vcmask 257024
      %486 = vst.msk [vmem:[%s224] sm:$0xf] %vm485, %v481
      %487 = vst.msk [vmem:[%s224 + $0x4] sm:$0xf] %vm485, %v482
      %p488 = scmp.lt.s32.totalorder %s16, 1
      %s489 = scalar_select %p488, %s16, 1
      %s490 = smul.addr %s489, 2
      %s491 = smul.addr %s490, 4
      %s492 = scalar_lea.vmem %s5, %s491
      // Predicated region
      $region41: #{_lambda_.10} parent=39 // pred_check
        %p493 = pneg %p144
      $region42: #{_lambda_.10} parent=39 // pred_check_branch
        %495 = sbr.rel (%p493) target = $region44
      $region43: #{_lambda_.10} parent=39 // pred_region
        _
      $region44: #{_lambda_.10} parent=39 // pred_fallthru
        _
    $region40: #{_lambda_.10} parent=5 // pred_fallthru
      _
    %p496 = scmp.le.s32.totalorder 2, %s11
    // Predicated region
    $region45: #{_lambda_.10} parent=5 // pred_check
      %p497 = pneg %p496
    $region46: #{_lambda_.10} parent=5 // pred_check_branch
      %499 = sbr.rel (%p497) target = $region48
    $region47: #{_lambda_.10} parent=5 // pred_region
      %s500 = ssub.s32 %s11, 2
      // Predicated region
      $region49: #{_lambda_.10} parent=47 // pred_check
        %p501 = pneg %p150
      $region50: #{_lambda_.10} parent=47 // pred_check_branch
        %503 = sbr.rel (%p501) target = $region52
      $region51: #{_lambda_.10} parent=47 // pred_region
        %p504 = scmp.lt.s32.totalorder %s17, 1
        %s505 = scalar_select %p504, %s17, 1
        %s506 = smul.addr %s505, 2
        %s507 = smul.addr %s506, 4
        %s508 = scalar_lea.vmem %s5, %s507
      $region52: #{_lambda_.10} parent=47 // pred_fallthru
        _
    $region48: #{_lambda_.10} parent=5 // pred_fallthru
      _
  $region6: #{_lambda_.10} parent=0 // loop_footer
    %s15 = sadd.s32 1, %s11
  $region7: #{_lambda_.10} parent=0 // loop_footer_branch
    %10 = sbr.rel target = $region3
  $region8: #{_lambda_.10} parent=0 // loop_exit
    _

// kernel: _lambda_.9
$region0: #{_lambda_.9}
  #allocation0 [shape = 'u32[]', space=smem, size = 0x4, offset = 0x4, fixed_abs, tag = 'smem constant byte address 0x4 - core index']
  #allocation1 [shape = 'u32[144,128]{1,0:T(1,128)}', space=vmem, size = 0x12000, scoped, tag = 'internal scratch']
  %s0 = inlined_call_operand.vmem [shape: bf16[2,16,32], index: 0, kind: input, shape index: {}]
  %s1 = inlined_call_operand.vmem [shape: bf16[32,96], index: 1, kind: input, shape index: {}]
  %s2 = inlined_call_operand.vmem [shape: f32[1,96], index: 2, kind: input, shape index: {}]
  %s3 = inlined_call_operand.vmem [shape: bf16[32,32], index: 3, kind: input, shape index: {}]
  %s4 = inlined_call_operand.vmem [shape: f32[1,32], index: 4, kind: input, shape index: {}]
  %s5 = inlined_call_operand.vmem [shape: f32[1,32], index: 5, kind: input, shape index: {}]
  %s6 = inlined_call_operand.vmem [shape: f32[1,32], index: 6, kind: input, shape index: {}]
  %s7 = inlined_call_operand.vmem [shape: bf16[32,64], index: 7, kind: input, shape index: {}]
  %s8 = inlined_call_operand.vmem [shape: f32[1,64], index: 8, kind: input, shape index: {}]
  %s9 = inlined_call_operand.vmem [shape: bf16[64,32], index: 9, kind: input, shape index: {}]
  %s10 = inlined_call_operand.vmem [shape: f32[1,32], index: 10, kind: input, shape index: {}]
  %s11 = inlined_call_operand.vmem [shape: f32[1,32], index: 11, kind: input, shape index: {}]
  %s12 = inlined_call_operand.vmem [shape: f32[1,32], index: 12, kind: input, shape index: {}]
  %s13 = inlined_call_operand.vmem [shape: bf16[2,16,32], index: 13, kind: output, shape index: {}]
  %s14 = sld [smem:[#allocation0]]
  $region85: #{_lambda_.9} parent=0
    _
  %s16 = ssub.s32 1, %s14
  %s17 = scalar_select 0, %s16, %s14
  loop: start=0, step=1, limit=4
  $region2: #{_lambda_.9} parent=0 // loop_pre_header
    _
  $region3: #{_lambda_.9} parent=0 // loop_header
    %s19 = sphi 0, %s23
    %p20 = scmp.ge.s32.totalorder %s19, 4
    %s29 = sphi 0, %s31
    %s32 = sphi 0, %s29
    %s33 = sphi 0, %s32
    %s49 = sphi 0, %s33
    %s53 = sphi 0, %s53
    %s55 = sphi 0, %s53
    %s56 = sphi 0, %s55
    %s70 = sphi 0, %s56
    %s74 = sphi 0, %s74
    %s76 = sphi 0, %s74
    %s77 = sphi 0, %s76
    %s91 = sphi 0, %s77
    %s95 = sphi 0, %s95
    %s97 = sphi 0, %s95
    %s98 = sphi 0, %s97
    %s112 = sphi 0, %s98
    %s116 = sphi 0, %s116
    %s118 = sphi 0, %s116
    %s119 = sphi 0, %s118
    %s133 = sphi 0, %s119
    %s137 = sphi 0, %s137
    %s139 = sphi 0, %s137
    %s140 = sphi 0, %s139
    %s154 = sphi 0, %s140
    %s158 = sphi 0, %s158
    %s160 = sphi 0, %s158
    %s161 = sphi 0, %s160
    %s175 = sphi 0, %s161
    %s179 = sphi 0, %s179
    %s181 = sphi 0, %s179
    %s182 = sphi 0, %s181
    %s196 = sphi 0, %s182
    %s200 = sphi 0, %s200
    %s202 = sphi 0, %s200
    %s203 = sphi 0, %s202
    %s217 = sphi 0, %s203
    %s221 = sphi 0, %s221
    %s223 = sphi 0, %s221
    %s224 = sphi 0, %s223
    %s238 = sphi 0, %s224
    %s242 = sphi 0, %s242
    %s244 = sphi 0, %s242
    %s245 = sphi 0, %s244
    %s259 = sphi 0, %s245
    %s263 = sphi 0, %s263
    %s265 = sphi 0, %s263
    %s266 = sphi 0, %s265
    %s280 = sphi 0, %s266
    %s284 = sphi 0, %s284
    %s286 = sphi 0, %s284
    %s287 = sphi 0, %s286
    %s301 = sphi 0, %s287
    %s307 = sphi 0, %s309
    %s310 = sphi 0, %s307
    %s311 = sphi 0, %s310
    %s327 = sphi 0, %s311
  $region4: #{_lambda_.9} parent=0 // loop_header_branch
    %22 = sbr.rel (%p20) target = $region8
  $region5: #{_lambda_.9} parent=0 // loop_body
    %s24 = ssub.s32 %s19, 1
    %s25 = ssub.s32 %s19, 2
    %s26 = sadd.s32 %s19, 1
    %s27 = ssub.s32 %s19, %s26
    %p28 = scmp.eq.s32.totalorder %s27, 0
    %s30 = sadd.s32 %s29, 1
    %s31 = scalar_select %p28, %s29, %s30
    %p34 = pneg %p28
    %p35 = scmp.eq.s32.totalorder %s19, 1
    %p36 = por %p34, %p35
    %p37 = scmp.ne.s32.totalorder %s29, %s32
    %p38 = scmp.eq.s32.totalorder %s19, 0
    %p39 = por %p37, %p38
    %p40 = scmp.ne.s32.totalorder %s29, %s32
    %p41 = scmp.eq.s32.totalorder %s24, 1
    %p42 = por %p40, %p41
    %p43 = scmp.ne.s32.totalorder %s32, %s33
    %p44 = scmp.eq.s32.totalorder %s24, 0
    %p45 = por %p43, %p44
    %p46 = scmp.ne.s32.totalorder %s32, %s33
    %p47 = scmp.eq.s32.totalorder %s25, 1
    %p48 = por %p46, %p47
    %p50 = scmp.ne.s32.totalorder %s33, %s49
    %p51 = scmp.eq.s32.totalorder %s25, 0
    %p52 = por %p50, %p51
    %s54 = sadd.s32 %s53, 1
    %p57 = scmp.eq.s32.totalorder %s19, 1
    %p58 = scmp.ne.s32.totalorder %s53, %s55
    %p59 = scmp.eq.s32.totalorder %s19, 0
    %p60 = por %p58, %p59
    %p61 = scmp.ne.s32.totalorder %s53, %s55
    %p62 = scmp.eq.s32.totalorder %s24, 1
    %p63 = por %p61, %p62
    %p64 = scmp.ne.s32.totalorder %s55, %s56
    %p65 = scmp.eq.s32.totalorder %s24, 0
    %p66 = por %p64, %p65
    %p67 = scmp.ne.s32.totalorder %s55, %s56
    %p68 = scmp.eq.s32.totalorder %s25, 1
    %p69 = por %p67, %p68
    %p71 = scmp.ne.s32.totalorder %s56, %s70
    %p72 = scmp.eq.s32.totalorder %s25, 0
    %p73 = por %p71, %p72
    %s75 = sadd.s32 %s74, 1
    %p78 = scmp.eq.s32.totalorder %s19, 1
    %p79 = scmp.ne.s32.totalorder %s74, %s76
    %p80 = scmp.eq.s32.totalorder %s19, 0
    %p81 = por %p79, %p80
    %p82 = scmp.ne.s32.totalorder %s74, %s76
    %p83 = scmp.eq.s32.totalorder %s24, 1
    %p84 = por %p82, %p83
    %p85 = scmp.ne.s32.totalorder %s76, %s77
    %p86 = scmp.eq.s32.totalorder %s24, 0
    %p87 = por %p85, %p86
    %p88 = scmp.ne.s32.totalorder %s76, %s77
    %p89 = scmp.eq.s32.totalorder %s25, 1
    %p90 = por %p88, %p89
    %p92 = scmp.ne.s32.totalorder %s77, %s91
    %p93 = scmp.eq.s32.totalorder %s25, 0
    %p94 = por %p92, %p93
    %s96 = sadd.s32 %s95, 1
    %p99 = scmp.eq.s32.totalorder %s19, 1
    %p100 = scmp.ne.s32.totalorder %s95, %s97
    %p101 = scmp.eq.s32.totalorder %s19, 0
    %p102 = por %p100, %p101
    %p103 = scmp.ne.s32.totalorder %s95, %s97
    %p104 = scmp.eq.s32.totalorder %s24, 1
    %p105 = por %p103, %p104
    %p106 = scmp.ne.s32.totalorder %s97, %s98
    %p107 = scmp.eq.s32.totalorder %s24, 0
    %p108 = por %p106, %p107
    %p109 = scmp.ne.s32.totalorder %s97, %s98
    %p110 = scmp.eq.s32.totalorder %s25, 1
    %p111 = por %p109, %p110
    %p113 = scmp.ne.s32.totalorder %s98, %s112
    %p114 = scmp.eq.s32.totalorder %s25, 0
    %p115 = por %p113, %p114
    %s117 = sadd.s32 %s116, 1
    %p120 = scmp.eq.s32.totalorder %s19, 1
    %p121 = scmp.ne.s32.totalorder %s116, %s118
    %p122 = scmp.eq.s32.totalorder %s19, 0
    %p123 = por %p121, %p122
    %p124 = scmp.ne.s32.totalorder %s116, %s118
    %p125 = scmp.eq.s32.totalorder %s24, 1
    %p126 = por %p124, %p125
    %p127 = scmp.ne.s32.totalorder %s118, %s119
    %p128 = scmp.eq.s32.totalorder %s24, 0
    %p129 = por %p127, %p128
    %p130 = scmp.ne.s32.totalorder %s118, %s119
    %p131 = scmp.eq.s32.totalorder %s25, 1
    %p132 = por %p130, %p131
    %p134 = scmp.ne.s32.totalorder %s119, %s133
    %p135 = scmp.eq.s32.totalorder %s25, 0
    %p136 = por %p134, %p135
    %s138 = sadd.s32 %s137, 1
    %p141 = scmp.eq.s32.totalorder %s19, 1
    %p142 = scmp.ne.s32.totalorder %s137, %s139
    %p143 = scmp.eq.s32.totalorder %s19, 0
    %p144 = por %p142, %p143
    %p145 = scmp.ne.s32.totalorder %s137, %s139
    %p146 = scmp.eq.s32.totalorder %s24, 1
    %p147 = por %p145, %p146
    %p148 = scmp.ne.s32.totalorder %s139, %s140
    %p149 = scmp.eq.s32.totalorder %s24, 0
    %p150 = por %p148, %p149
    %p151 = scmp.ne.s32.totalorder %s139, %s140
    %p152 = scmp.eq.s32.totalorder %s25, 1
    %p153 = por %p151, %p152
    %p155 = scmp.ne.s32.totalorder %s140, %s154
    %p156 = scmp.eq.s32.totalorder %s25, 0
    %p157 = por %p155, %p156
    %s159 = sadd.s32 %s158, 1
    %p162 = scmp.eq.s32.totalorder %s19, 1
    %p163 = scmp.ne.s32.totalorder %s158, %s160
    %p164 = scmp.eq.s32.totalorder %s19, 0
    %p165 = por %p163, %p164
    %p166 = scmp.ne.s32.totalorder %s158, %s160
    %p167 = scmp.eq.s32.totalorder %s24, 1
    %p168 = por %p166, %p167
    %p169 = scmp.ne.s32.totalorder %s160, %s161
    %p170 = scmp.eq.s32.totalorder %s24, 0
    %p171 = por %p169, %p170
    %p172 = scmp.ne.s32.totalorder %s160, %s161
    %p173 = scmp.eq.s32.totalorder %s25, 1
    %p174 = por %p172, %p173
    %p176 = scmp.ne.s32.totalorder %s161, %s175
    %p177 = scmp.eq.s32.totalorder %s25, 0
    %p178 = por %p176, %p177
    %s180 = sadd.s32 %s179, 1
    %p183 = scmp.eq.s32.totalorder %s19, 1
    %p184 = scmp.ne.s32.totalorder %s179, %s181
    %p185 = scmp.eq.s32.totalorder %s19, 0
    %p186 = por %p184, %p185
    %p187 = scmp.ne.s32.totalorder %s179, %s181
    %p188 = scmp.eq.s32.totalorder %s24, 1
    %p189 = por %p187, %p188
    %p190 = scmp.ne.s32.totalorder %s181, %s182
    %p191 = scmp.eq.s32.totalorder %s24, 0
    %p192 = por %p190, %p191
    %p193 = scmp.ne.s32.totalorder %s181, %s182
    %p194 = scmp.eq.s32.totalorder %s25, 1
    %p195 = por %p193, %p194
    %p197 = scmp.ne.s32.totalorder %s182, %s196
    %p198 = scmp.eq.s32.totalorder %s25, 0
    %p199 = por %p197, %p198
    %s201 = sadd.s32 %s200, 1
    %p204 = scmp.eq.s32.totalorder %s19, 1
    %p205 = scmp.ne.s32.totalorder %s200, %s202
    %p206 = scmp.eq.s32.totalorder %s19, 0
    %p207 = por %p205, %p206
    %p208 = scmp.ne.s32.totalorder %s200, %s202
    %p209 = scmp.eq.s32.totalorder %s24, 1
    %p210 = por %p208, %p209
    %p211 = scmp.ne.s32.totalorder %s202, %s203
    %p212 = scmp.eq.s32.totalorder %s24, 0
    %p213 = por %p211, %p212
    %p214 = scmp.ne.s32.totalorder %s202, %s203
    %p215 = scmp.eq.s32.totalorder %s25, 1
    %p216 = por %p214, %p215
    %p218 = scmp.ne.s32.totalorder %s203, %s217
    %p219 = scmp.eq.s32.totalorder %s25, 0
    %p220 = por %p218, %p219
    %s222 = sadd.s32 %s221, 1
    %p225 = scmp.eq.s32.totalorder %s19, 1
    %p226 = scmp.ne.s32.totalorder %s221, %s223
    %p227 = scmp.eq.s32.totalorder %s19, 0
    %p228 = por %p226, %p227
    %p229 = scmp.ne.s32.totalorder %s221, %s223
    %p230 = scmp.eq.s32.totalorder %s24, 1
    %p231 = por %p229, %p230
    %p232 = scmp.ne.s32.totalorder %s223, %s224
    %p233 = scmp.eq.s32.totalorder %s24, 0
    %p234 = por %p232, %p233
    %p235 = scmp.ne.s32.totalorder %s223, %s224
    %p236 = scmp.eq.s32.totalorder %s25, 1
    %p237 = por %p235, %p236
    %p239 = scmp.ne.s32.totalorder %s224, %s238
    %p240 = scmp.eq.s32.totalorder %s25, 0
    %p241 = por %p239, %p240
    %s243 = sadd.s32 %s242, 1
    %p246 = scmp.eq.s32.totalorder %s19, 1
    %p247 = scmp.ne.s32.totalorder %s242, %s244
    %p248 = scmp.eq.s32.totalorder %s19, 0
    %p249 = por %p247, %p248
    %p250 = scmp.ne.s32.totalorder %s242, %s244
    %p251 = scmp.eq.s32.totalorder %s24, 1
    %p252 = por %p250, %p251
    %p253 = scmp.ne.s32.totalorder %s244, %s245
    %p254 = scmp.eq.s32.totalorder %s24, 0
    %p255 = por %p253, %p254
    %p256 = scmp.ne.s32.totalorder %s244, %s245
    %p257 = scmp.eq.s32.totalorder %s25, 1
    %p258 = por %p256, %p257
    %p260 = scmp.ne.s32.totalorder %s245, %s259
    %p261 = scmp.eq.s32.totalorder %s25, 0
    %p262 = por %p260, %p261
    %s264 = sadd.s32 %s263, 1
    %p267 = scmp.eq.s32.totalorder %s19, 1
    %p268 = scmp.ne.s32.totalorder %s263, %s265
    %p269 = scmp.eq.s32.totalorder %s19, 0
    %p270 = por %p268, %p269
    %p271 = scmp.ne.s32.totalorder %s263, %s265
    %p272 = scmp.eq.s32.totalorder %s24, 1
    %p273 = por %p271, %p272
    %p274 = scmp.ne.s32.totalorder %s265, %s266
    %p275 = scmp.eq.s32.totalorder %s24, 0
    %p276 = por %p274, %p275
    %p277 = scmp.ne.s32.totalorder %s265, %s266
    %p278 = scmp.eq.s32.totalorder %s25, 1
    %p279 = por %p277, %p278
    %p281 = scmp.ne.s32.totalorder %s266, %s280
    %p282 = scmp.eq.s32.totalorder %s25, 0
    %p283 = por %p281, %p282
    %s285 = sadd.s32 %s284, 1
    %p288 = scmp.eq.s32.totalorder %s19, 1
    %p289 = scmp.ne.s32.totalorder %s284, %s286
    %p290 = scmp.eq.s32.totalorder %s19, 0
    %p291 = por %p289, %p290
    %p292 = scmp.ne.s32.totalorder %s284, %s286
    %p293 = scmp.eq.s32.totalorder %s24, 1
    %p294 = por %p292, %p293
    %p295 = scmp.ne.s32.totalorder %s286, %s287
    %p296 = scmp.eq.s32.totalorder %s24, 0
    %p297 = por %p295, %p296
    %p298 = scmp.ne.s32.totalorder %s286, %s287
    %p299 = scmp.eq.s32.totalorder %s25, 1
    %p300 = por %p298, %p299
    %p302 = scmp.ne.s32.totalorder %s287, %s301
    %p303 = scmp.eq.s32.totalorder %s25, 0
    %p304 = por %p302, %p303
    %s305 = ssub.s32 %s19, %s26
    %p306 = scmp.eq.s32.totalorder %s305, 0
    %s308 = sadd.s32 %s307, 1
    %s309 = scalar_select %p306, %s307, %s308
    %p312 = pneg %p306
    %p313 = scmp.eq.s32.totalorder %s19, 1
    %p314 = por %p312, %p313
    %p315 = scmp.ne.s32.totalorder %s307, %s310
    %p316 = scmp.eq.s32.totalorder %s19, 0
    %p317 = por %p315, %p316
    %p318 = scmp.ne.s32.totalorder %s307, %s310
    %p319 = scmp.eq.s32.totalorder %s24, 1
    %p320 = por %p318, %p319
    %p321 = scmp.ne.s32.totalorder %s310, %s311
    %p322 = scmp.eq.s32.totalorder %s24, 0
    %p323 = por %p321, %p322
    %p324 = scmp.ne.s32.totalorder %s310, %s311
    %p325 = scmp.eq.s32.totalorder %s25, 1
    %p326 = por %p324, %p325
    %p328 = scmp.ne.s32.totalorder %s311, %s327
    %p329 = scmp.eq.s32.totalorder %s25, 0
    %p330 = por %p328, %p329
    %p331 = scmp.le.s32.totalorder 1, %s19
    %p332 = scmp.lt.s32.totalorder %s19, 3
    %p333 = pnand %p331, %p332
    %p334 = pneg %p333
    // Predicated region
    $region9: #{_lambda_.9} parent=5 // pred_check
      _
    $region10: #{_lambda_.9} parent=5 // pred_check_branch
      %336 = sbr.rel (%p333) target = $region12
    $region11: #{_lambda_.9} parent=5 // pred_region
      %s337 = ssub.s32 %s19, 1
      // Predicated region
      $region13: #{_lambda_.9} parent=11 // pred_check
        %p338 = pneg %p66
      $region14: #{_lambda_.9} parent=11 // pred_check_branch
        %340 = sbr.rel (%p338) target = $region16
      $region15: #{_lambda_.9} parent=11 // pred_region
        _
      $region16: #{_lambda_.9} parent=11 // pred_fallthru
        _
      // Predicated region
      $region17: #{_lambda_.9} parent=11 // pred_check
        %p341 = pneg %p87
      $region18: #{_lambda_.9} parent=11 // pred_check_branch
        %343 = sbr.rel (%p341) target = $region20
      $region19: #{_lambda_.9} parent=11 // pred_region
        _
      $region20: #{_lambda_.9} parent=11 // pred_fallthru
        _
      // Predicated region
      $region21: #{_lambda_.9} parent=11 // pred_check
        %p344 = pneg %p108
      $region22: #{_lambda_.9} parent=11 // pred_check_branch
        %346 = sbr.rel (%p344) target = $region24
      $region23: #{_lambda_.9} parent=11 // pred_region
        _
      $region24: #{_lambda_.9} parent=11 // pred_fallthru
        _
      // Predicated region
      $region25: #{_lambda_.9} parent=11 // pred_check
        %p347 = pneg %p129
      $region26: #{_lambda_.9} parent=11 // pred_check_branch
        %349 = sbr.rel (%p347) target = $region28
      $region27: #{_lambda_.9} parent=11 // pred_region
        _
      $region28: #{_lambda_.9} parent=11 // pred_fallthru
        _
      // Predicated region
      $region29: #{_lambda_.9} parent=11 // pred_check
        %p350 = pneg %p150
      $region30: #{_lambda_.9} parent=11 // pred_check_branch
        %352 = sbr.rel (%p350) target = $region32
      $region31: #{_lambda_.9} parent=11 // pred_region
        _
      $region32: #{_lambda_.9} parent=11 // pred_fallthru
        _
      // Predicated region
      $region33: #{_lambda_.9} parent=11 // pred_check
        %p353 = pneg %p171
      $region34: #{_lambda_.9} parent=11 // pred_check_branch
        %355 = sbr.rel (%p353) target = $region36
      $region35: #{_lambda_.9} parent=11 // pred_region
        _
      $region36: #{_lambda_.9} parent=11 // pred_fallthru
        _
      // Predicated region
      $region37: #{_lambda_.9} parent=11 // pred_check
        %p356 = pneg %p192
      $region38: #{_lambda_.9} parent=11 // pred_check_branch
        %358 = sbr.rel (%p356) target = $region40
      $region39: #{_lambda_.9} parent=11 // pred_region
        _
      $region40: #{_lambda_.9} parent=11 // pred_fallthru
        _
      // Predicated region
      $region41: #{_lambda_.9} parent=11 // pred_check
        %p359 = pneg %p213
      $region42: #{_lambda_.9} parent=11 // pred_check_branch
        %361 = sbr.rel (%p359) target = $region44
      $region43: #{_lambda_.9} parent=11 // pred_region
        _
      $region44: #{_lambda_.9} parent=11 // pred_fallthru
        _
      // Predicated region
      $region45: #{_lambda_.9} parent=11 // pred_check
        %p362 = pneg %p234
      $region46: #{_lambda_.9} parent=11 // pred_check_branch
        %364 = sbr.rel (%p362) target = $region48
      $region47: #{_lambda_.9} parent=11 // pred_region
        _
      $region48: #{_lambda_.9} parent=11 // pred_fallthru
        _
      // Predicated region
      $region49: #{_lambda_.9} parent=11 // pred_check
        %p365 = pneg %p255
      $region50: #{_lambda_.9} parent=11 // pred_check_branch
        %367 = sbr.rel (%p365) target = $region52
      $region51: #{_lambda_.9} parent=11 // pred_region
        _
      $region52: #{_lambda_.9} parent=11 // pred_fallthru
        _
      // Predicated region
      $region53: #{_lambda_.9} parent=11 // pred_check
        %p368 = pneg %p276
      $region54: #{_lambda_.9} parent=11 // pred_check_branch
        %370 = sbr.rel (%p368) target = $region56
      $region55: #{_lambda_.9} parent=11 // pred_region
        _
      $region56: #{_lambda_.9} parent=11 // pred_fallthru
        _
      // Predicated region
      $region57: #{_lambda_.9} parent=11 // pred_check
        %p371 = pneg %p297
      $region58: #{_lambda_.9} parent=11 // pred_check_branch
        %373 = sbr.rel (%p371) target = $region60
      $region59: #{_lambda_.9} parent=11 // pred_region
        _
      $region60: #{_lambda_.9} parent=11 // pred_fallthru
        _
    $region12: #{_lambda_.9} parent=5 // pred_fallthru
      _
    %p374 = scmp.lt.s32.totalorder %s19, 2
    // Predicated region
    $region61: #{_lambda_.9} parent=5 // pred_check
      %p375 = pneg %p374
    $region62: #{_lambda_.9} parent=5 // pred_check_branch
      %377 = sbr.rel (%p375) target = $region64
    $region63: #{_lambda_.9} parent=5 // pred_region
      // Predicated region
      $region65: #{_lambda_.9} parent=63 // pred_check
        %p378 = pneg %p39
      $region66: #{_lambda_.9} parent=63 // pred_check_branch
        %380 = sbr.rel (%p378) target = $region68
      $region67: #{_lambda_.9} parent=63 // pred_region
        %p381 = scmp.lt.s32.totalorder %s19, 1
        %s382 = scalar_select %p381, %s19, 1
        %s383 = smul.addr %s382, 2
        %s384 = smul.addr %s383, 4
        %s385 = scalar_lea.vmem %s0, %s384
      $region68: #{_lambda_.9} parent=63 // pred_fallthru
        _
    $region64: #{_lambda_.9} parent=5 // pred_fallthru
      _
    %p386 = scmp.le.s32.totalorder 1, %s19
    %p387 = scmp.lt.s32.totalorder %s19, 3
    %p388 = pnand %p386, %p387
    %p389 = pneg %p388
    // Predicated region
    $region69: #{_lambda_.9} parent=5 // pred_check
      _
    $region70: #{_lambda_.9} parent=5 // pred_check_branch
      %391 = sbr.rel (%p388) target = $region72
    $region71: #{_lambda_.9} parent=5 // pred_region
      %s392 = ssub.s32 %s19, 1
      %p393 = scmp.lt.s32.totalorder %s24, 1
      %s394 = scalar_select %p393, %s24, 1
      %s395 = smul.addr %s394, 2
      %s396 = smul.addr %s395, 4
      %s397 = scalar_lea.vmem %s0, %s396
      %p398 = pneg %p45
      %p399 = pneg %p42
      %p400 = pneg %p66
      %p401 = pneg %p63
      %p402 = pneg %p87
      %p403 = pneg %p84
      %p404 = pneg %p108
      %p405 = pneg %p105
      %p406 = pneg %p129
      %p407 = pneg %p126
      %p408 = pneg %p150
      %p409 = pneg %p147
      %p410 = pneg %p171
      %p411 = pneg %p168
      %p412 = pneg %p192
      %p413 = pneg %p189
      %p414 = pneg %p213
      %p415 = pneg %p210
      %p416 = pneg %p234
      %p417 = pneg %p231
      %p418 = pneg %p255
      %p419 = pneg %p252
      %p420 = pneg %p276
      %p421 = pneg %p273
      %p422 = pneg %p297
      %p423 = pneg %p294
      %p424 = pneg %p323
      %p425 = pneg %p320
      %p426 = scmp.lt.s32.totalorder %s24, 1
      %s427 = scalar_select %p426, %s24, 1
      %s428 = smul.addr %s427, 2
      %s429 = smul.addr %s428, 4
      %s430 = scalar_lea.vmem %s13, %s429
      %p431 = scmp.lt.s32.totalorder %s24, 1
      %s432 = scalar_select %p431, %s24, 1
      %s433 = smul.addr %s432, 2
      %s434 = smul.addr %s433, 4
      %s435 = scalar_lea.vmem %s0, %s434
      %p436 = scmp.lt.s32.totalorder %s24, 1
      %s437 = scalar_select %p436, %s24, 1
      %s438 = smul.addr %s437, 2
      %s439 = smul.addr %s438, 4
      %s440 = scalar_lea.vmem %s13, %s439
      %v442 = vld [vmem:[%s435] sm:$0xf]
      %v443 = vld [vmem:[%s435 + $0x4] sm:$0xf]
      %v444 = vunpack.c.l.bf16 %v442
      %v445 = vunpack.c.l.bf16 %v443
      %v446 = vld [vmem:[%s1] sm:$0xf]
      %v447 = vld [vmem:[%s1 + $0x4] sm:$0xf]
      %v448 = vld [vmem:[%s1 + $0x8] sm:$0xf]
      %v449 = vld [vmem:[%s1 + $0xc] sm:$0xf]
      %v450 = vld [vmem:[%s2] sm:$0x1]
      %v452 = vlaneseq
      %v453 = vshrl.u32 %v452, 7
      %v454 = vsub.s32 0, %v453
      %v455 = vrot.slane %v450, %v454
      %v459 = vunpack.c.l.b16 %v442
      %v460 = vunpack.c.l.b16 %v443
      %v461 = vpack.c.b16 %v460, %v459
      %v466 = vunpack.c.l.b16 %v446
      %v467 = vunpack.c.l.b16 %v447
      %v468 = vunpack.c.l.b16 %v448
      %v469 = vunpack.c.l.b16 %v449
      %v470 = vpack.c.b16 %v467, %v466
      %v471 = vpack.c.b16 %v469, %v468
      %vm474 = vcmask 261120
      %v476 = vsel %vm474, %v461, 0
      %478 = vmatprep.subr.bf16.mxu0 0
      %479 = vmatpush1.bf16.msra.mxu0 %v470
      %480 = vmatprep.subr.bf16.mxu0 0
      %481 = vmatpush1.bf16.msra.mxu0 %v471
      %482 = vmatprep.subr.bf16.mxu0 0
      %483 = vmatpush1.bf16.msra.mxu0 0
      %484 = vmatprep.subr.bf16.mxu0 0
      %485 = vmatpush1.bf16.msra.mxu0 0
      %486 = vmatprep.subr.bf16.mxu0 0
      %487 = vmatpush1.bf16.msra.mxu0 0
      %488 = vmatprep.subr.bf16.mxu0 0
      %489 = vmatpush1.bf16.msra.mxu0 0
      %490 = vmatprep.subr.bf16.mxu0 0
      %491 = vmatpush1.bf16.msra.mxu0 0
      %492 = vmatprep.subr.bf16.mxu0 0
      %493 = vmatpush1.bf16.msra.mxu0 0
      %494 = vmatprep.subr.bf16.mxu0 0
      %495 = vmatpush1.bf16.msra.mxu0 0
      %496 = vmatprep.subr.bf16.mxu0 0
      %497 = vmatpush1.bf16.msra.mxu0 0
      %498 = vmatprep.subr.bf16.mxu0 0
      %499 = vmatpush1.bf16.msra.mxu0 0
      %500 = vmatprep.subr.bf16.mxu0 0
      %501 = vmatpush1.bf16.msra.mxu0 0
      %502 = vmatprep.subr.bf16.mxu0 0
      %503 = vmatpush1.bf16.msra.mxu0 0
      %504 = vmatprep.subr.bf16.mxu0 0
      %505 = vmatpush1.bf16.msra.mxu0 0
      %506 = vmatprep.subr.bf16.mxu0 0
      %507 = vmatpush1.bf16.msra.mxu0 0
      %508 = vmatprep.subr.bf16.mxu0 0
      %509 = vmatpush1.bf16.msra.mxu0 0
      %510 = vmatprep.mubr.bf16.mxu0 0
      %511 = vmatmul.mubr.bf16.gmra.mrb[0].mxu0 %v476
      %v512 = vpop.f32.mrb[0].mxu0
      %v513 = vadd.f32 %v455, %v512
      %v514 = vpop.f32.mrb[0].mxu0
      %v515 = vpop.f32.mrb[0].mxu0
      %v516 = vadd.f32 %v455, %v515
      %v517 = vpop.f32.mrb[0].mxu0
      %518 = vdwg.mxu0
      %v519 = vpack.c.bf16 %v516, %v513
      %521 = vrot.lane.b32.xlu0 %v519, 96
      %v522 = vpop.permute.xlu0 %521
      %vm523 = vcmask 64512
      %v525 = vsel %vm523, %v519, 0
      %v528 = vsel %vm523, %v522, 0
      %530 = vmatprep.subr.bf16.mxu0 0
      %531 = vmatpush1.bf16.xpose.msra.mxu0 %v528
      %532 = vmatprep.subr.bf16.mxu0 0
      %533 = vmatpush1.bf16.xpose.msra.mxu0 0
      %534 = vmatprep.subr.bf16.mxu0 0
      %535 = vmatpush1.bf16.xpose.msra.mxu0 0
      %536 = vmatprep.subr.bf16.mxu0 0
      %537 = vmatpush1.bf16.xpose.msra.mxu0 0
      %538 = vmatprep.subr.bf16.mxu0 0
      %539 = vmatpush1.bf16.xpose.msra.mxu0 0
      %540 = vmatprep.subr.bf16.mxu0 0
      %541 = vmatpush1.bf16.xpose.msra.mxu0 0
      %542 = vmatprep.subr.bf16.mxu0 0
      %543 = vmatpush1.bf16.xpose.msra.mxu0 0
      %544 = vmatprep.subr.bf16.mxu0 0
      %545 = vmatpush1.bf16.xpose.msra.mxu0 0
      %546 = vmatprep.subr.bf16.mxu0 0
      %547 = vmatpush1.bf16.xpose.msra.mxu0 0
      %548 = vmatprep.subr.bf16.mxu0 0
      %549 = vmatpush1.bf16.xpose.msra.mxu0 0
      %550 = vmatprep.subr.bf16.mxu0 0
      %551 = vmatpush1.bf16.xpose.msra.mxu0 0
      %552 = vmatprep.subr.bf16.mxu0 0
      %553 = vmatpush1.bf16.xpose.msra.mxu0 0
      %554 = vmatprep.subr.bf16.mxu0 0
      %555 = vmatpush1.bf16.xpose.msra.mxu0 0
      %556 = vmatprep.subr.bf16.mxu0 0
      %557 = vmatpush1.bf16.xpose.msra.mxu0 0
      %558 = vmatprep.subr.bf16.mxu0 0
      %559 = vmatpush1.bf16.xpose.msra.mxu0 0
      %560 = vmatprep.subr.bf16.mxu0 0
      %561 = vmatpush1.bf16.xpose.msra.mxu0 0
      %562 = vmatprep.mubr.bf16.mxu0 0
      %563 = vmatmul.mubr.bf16.gmra.mrb[0].mxu0 %v525
      %v564 = vpop.f32.mrb[0].mxu0
      %v565 = vadd.f32 0.0, %v564
      %v566 = vpop.f32.mrb[0].mxu0
      %v567 = vpop.f32.mrb[0].mxu0
      %v568 = vadd.f32 0.0, %v567
      %v569 = vpop.f32.mrb[0].mxu0
      %570 = vdwg.mxu0
      %vm571 = vcmask 130048
      %v572 = vsel %vm571, %v565, -inf
      %573 = vmax.xlane.f32.xlu0 %v572
      %v574 = vpop.xlane.xlu0 %573
      %v575 = vsel %vm571, %v568, -inf
      %576 = vmax.xlane.f32.xlu0 %v575
      %v577 = vpop.xlane.xlu0 %576
      %v578 = vsub.f32 %v565, %v574
      %v579 = vsub.f32 %v568, %v577
      %v580 = vmul.f32 %v578, 1.442695
      %v581 = vpow.pop %v580
      %v582 = vmul.f32 %v579, 1.442695
      %v583 = vpow.pop %v582
      %v584 = vsel %vm571, %v581, 0.0
      %585 = vadd.xlane.f32.xlu0 %v584
      %v586 = vpop.xlane.xlu0 %585
      %v587 = vsel %vm571, %v583, 0.0
      %588 = vadd.xlane.f32.xlu0 %v587
      %v589 = vpop.xlane.xlu0 %588
      %v590 = vpack.c.bf16 %v583, %v581
      %591 = vrot.lane.b32.xlu0 %v519, 64
      %v592 = vpop.permute.xlu0 %591
      %v595 = vsel %vm571, %v590, 0
      %597 = vmatprep.subr.bf16.mxu0 0
      %598 = vmatpush1.bf16.msra.mxu0 %v592
      %599 = vmatprep.subr.bf16.mxu0 0
      %600 = vmatpush1.bf16.msra.mxu0 0
      %601 = vmatprep.subr.bf16.mxu0 0
      %602 = vmatpush1.bf16.msra.mxu0 0
      %603 = vmatprep.subr.bf16.mxu0 0
      %604 = vmatpush1.bf16.msra.mxu0 0
      %605 = vmatprep.subr.bf16.mxu0 0
      %606 = vmatpush1.bf16.msra.mxu0 0
      %607 = vmatprep.subr.bf16.mxu0 0
      %608 = vmatpush1.bf16.msra.mxu0 0
      %609 = vmatprep.subr.bf16.mxu0 0
      %610 = vmatpush1.bf16.msra.mxu0 0
      %611 = vmatprep.subr.bf16.mxu0 0
      %612 = vmatpush1.bf16.msra.mxu0 0
      %613 = vmatprep.subr.bf16.mxu0 0
      %614 = vmatpush1.bf16.msra.mxu0 0
      %615 = vmatprep.subr.bf16.mxu0 0
      %616 = vmatpush1.bf16.msra.mxu0 0
      %617 = vmatprep.subr.bf16.mxu0 0
      %618 = vmatpush1.bf16.msra.mxu0 0
      %619 = vmatprep.subr.bf16.mxu0 0
      %620 = vmatpush1.bf16.msra.mxu0 0
      %621 = vmatprep.subr.bf16.mxu0 0
      %622 = vmatpush1.bf16.msra.mxu0 0
      %623 = vmatprep.subr.bf16.mxu0 0
      %624 = vmatpush1.bf16.msra.mxu0 0
      %625 = vmatprep.subr.bf16.mxu0 0
      %626 = vmatpush1.bf16.msra.mxu0 0
      %627 = vmatprep.subr.bf16.mxu0 0
      %628 = vmatpush1.bf16.msra.mxu0 0
      %629 = vmatprep.mubr.bf16.mxu0 0
      %630 = vmatmul.mubr.bf16.gmra.mrb[0].mxu0 %v595
      %v631 = vpop.f32.mrb[0].mxu0
      %v632 = vadd.f32 0.0, %v631
      %v633 = vpop.f32.mrb[0].mxu0
      %v634 = vpop.f32.mrb[0].mxu0
      %v635 = vadd.f32 0.0, %v634
      %v636 = vpop.f32.mrb[0].mxu0
      %637 = vdwg.mxu0
      %v638 = vrcp.pop %v586
      %v639 = vrcp.pop %v589
      %v640 = vmul.f32 %v632, %v638
      %v641 = vmul.f32 %v635, %v639
      %642 = vrot.lane.b32.xlu0 %v519, 120
      %v643 = vpop.permute.xlu0 %642
      %644 = vrot.lane.b32.xlu0 %v519, 88
      %v645 = vpop.permute.xlu0 %644
      %v647 = vsel %vm523, %v643, 0
      %v650 = vsel %vm523, %v645, 0
      %652 = vmatprep.subr.bf16.mxu0 0
      %653 = vmatpush1.bf16.xpose.msra.mxu0 %v650
      %654 = vmatprep.subr.bf16.mxu0 0
      %655 = vmatpush1.bf16.xpose.msra.mxu0 0
      %656 = vmatprep.subr.bf16.mxu0 0
      %657 = vmatpush1.bf16.xpose.msra.mxu0 0
      %658 = vmatprep.subr.bf16.mxu0 0
      %659 = vmatpush1.bf16.xpose.msra.mxu0 0
      %660 = vmatprep.subr.bf16.mxu0 0
      %661 = vmatpush1.bf16.xpose.msra.mxu0 0
      %662 = vmatprep.subr.bf16.mxu0 0
      %663 = vmatpush1.bf16.xpose.msra.mxu0 0
      %664 = vmatprep.subr.bf16.mxu0 0
      %665 = vmatpush1.bf16.xpose.msra.mxu0 0
      %666 = vmatprep.subr.bf16.mxu0 0
      %667 = vmatpush1.bf16.xpose.msra.mxu0 0
      %668 = vmatprep.subr.bf16.mxu0 0
      %669 = vmatpush1.bf16.xpose.msra.mxu0 0
      %670 = vmatprep.subr.bf16.mxu0 0
      %671 = vmatpush1.bf16.xpose.msra.mxu0 0
      %672 = vmatprep.subr.bf16.mxu0 0
      %673 = vmatpush1.bf16.xpose.msra.mxu0 0
      %674 = vmatprep.subr.bf16.mxu0 0
      %675 = vmatpush1.bf16.xpose.msra.mxu0 0
      %676 = vmatprep.subr.bf16.mxu0 0
      %677 = vmatpush1.bf16.xpose.msra.mxu0 0
      %678 = vmatprep.subr.bf16.mxu0 0
      %679 = vmatpush1.bf16.xpose.msra.mxu0 0
      %680 = vmatprep.subr.bf16.mxu0 0
      %681 = vmatpush1.bf16.xpose.msra.mxu0 0
      %682 = vmatprep.subr.bf16.mxu0 0
      %683 = vmatpush1.bf16.xpose.msra.mxu0 0
      %684 = vmatprep.mubr.bf16.mxu0 0
      %685 = vmatmul.mubr.bf16.gmra.mrb[0].mxu0 %v647
      %v686 = vpop.f32.mrb[0].mxu0
      %v687 = vadd.f32 0.0, %v686
      %v688 = vpop.f32.mrb[0].mxu0
      %v689 = vpop.f32.mrb[0].mxu0
      %v690 = vadd.f32 0.0, %v689
      %v691 = vpop.f32.mrb[0].mxu0
      %692 = vdwg.mxu0
      %v693 = vsel %vm571, %v687, -inf
      %694 = vmax.xlane.f32.xlu0 %v693
      %v695 = vpop.xlane.xlu0 %694
      %v696 = vsel %vm571, %v690, -inf
      %697 = vmax.xlane.f32.xlu0 %v696
      %v698 = vpop.xlane.xlu0 %697
      %v699 = vsub.f32 %v687, %v695
      %v700 = vsub.f32 %v690, %v698
      %v701 = vmul.f32 %v699, 1.442695
      %v702 = vpow.pop %v701
      %v703 = vmul.f32 %v700, 1.442695
      %v704 = vpow.pop %v703
      %v705 = vsel %vm571, %v702, 0.0
      %706 = vadd.xlane.f32.xlu0 %v705
      %v707 = vpop.xlane.xlu0 %706
      %v708 = vsel %vm571, %v704, 0.0
      %709 = vadd.xlane.f32.xlu0 %v708
      %v710 = vpop.xlane.xlu0 %709
      %v711 = vpack.c.bf16 %v704, %v702
      %712 = vrot.lane.b32.xlu0 %v519, 56
      %v713 = vpop.permute.xlu0 %712
      %v716 = vsel %vm571, %v711, 0
      %718 = vmatprep.subr.bf16.mxu0 0
      %719 = vmatpush1.bf16.msra.mxu0 %v713
      %720 = vmatprep.subr.bf16.mxu0 0
      %721 = vmatpush1.bf16.msra.mxu0 0
      %722 = vmatprep.subr.bf16.mxu0 0
      %723 = vmatpush1.bf16.msra.mxu0 0
      %724 = vmatprep.subr.bf16.mxu0 0
      %725 = vmatpush1.bf16.msra.mxu0 0
      %726 = vmatprep.subr.bf16.mxu0 0
      %727 = vmatpush1.bf16.msra.mxu0 0
      %728 = vmatprep.subr.bf16.mxu0 0
      %729 = vmatpush1.bf16.msra.mxu0 0
      %730 = vmatprep.subr.bf16.mxu0 0
      %731 = vmatpush1.bf16.msra.mxu0 0
      %732 = vmatprep.subr.bf16.mxu0 0
      %733 = vmatpush1.bf16.msra.mxu0 0
      %734 = vmatprep.subr.bf16.mxu0 0
      %735 = vmatpush1.bf16.msra.mxu0 0
      %736 = vmatprep.subr.bf16.mxu0 0
      %737 = vmatpush1.bf16.msra.mxu0 0
      %738 = vmatprep.subr.bf16.mxu0 0
      %739 = vmatpush1.bf16.msra.mxu0 0
      %740 = vmatprep.subr.bf16.mxu0 0
      %741 = vmatpush1.bf16.msra.mxu0 0
      %742 = vmatprep.subr.bf16.mxu0 0
      %743 = vmatpush1.bf16.msra.mxu0 0
      %744 = vmatprep.subr.bf16.mxu0 0
      %745 = vmatpush1.bf16.msra.mxu0 0
      %746 = vmatprep.subr.bf16.mxu0 0
      %747 = vmatpush1.bf16.msra.mxu0 0
      %748 = vmatprep.subr.bf16.mxu0 0
      %749 = vmatpush1.bf16.msra.mxu0 0
      %750 = vmatprep.mubr.bf16.mxu0 0
      %751 = vmatmul.mubr.bf16.gmra.mrb[0].mxu0 %v716
      %v752 = vpop.f32.mrb[0].mxu0
      %v753 = vadd.f32 0.0, %v752
      %v754 = vpop.f32.mrb[0].mxu0
      %v755 = vpop.f32.mrb[0].mxu0
      %v756 = vadd.f32 0.0, %v755
      %v757 = vpop.f32.mrb[0].mxu0
      %758 = vdwg.mxu0
      %v759 = vrcp.pop %v707
      %v760 = vrcp.pop %v710
      %v761 = vmul.f32 %v753, %v759
      %v762 = vmul.f32 %v756, %v760
      %763 = vrot.lane.b32.xlu0 %v519, 112
      %v764 = vpop.permute.xlu0 %763
      %765 = vrot.lane.b32.xlu0 %v519, 80
      %v766 = vpop.permute.xlu0 %765
      %v768 = vsel %vm523, %v764, 0
      %v771 = vsel %vm523, %v766, 0
      %773 = vmatprep.subr.bf16.mxu0 0
      %774 = vmatpush1.bf16.xpose.msra.mxu0 %v771
      %775 = vmatprep.subr.bf16.mxu0 0
      %776 = vmatpush1.bf16.xpose.msra.mxu0 0
      %777 = vmatprep.subr.bf16.mxu0 0
      %778 = vmatpush1.bf16.xpose.msra.mxu0 0
      %779 = vmatprep.subr.bf16.mxu0 0
      %780 = vmatpush1.bf16.xpose.msra.mxu0 0
      %781 = vmatprep.subr.bf16.mxu0 0
      %782 = vmatpush1.bf16.xpose.msra.mxu0 0
      %783 = vmatprep.subr.bf16.mxu0 0
      %784 = vmatpush1.bf16.xpose.msra.mxu0 0
      %785 = vmatprep.subr.bf16.mxu0 0
      %786 = vmatpush1.bf16.xpose.msra.mxu0 0
      %787 = vmatprep.subr.bf16.mxu0 0
      %788 = vmatpush1.bf16.xpose.msra.mxu0 0
      %789 = vmatprep.subr.bf16.mxu0 0
      %790 = vmatpush1.bf16.xpose.msra.mxu0 0
      %791 = vmatprep.subr.bf16.mxu0 0
      %792 = vmatpush1.bf16.xpose.msra.mxu0 0
      %793 = vmatprep.subr.bf16.mxu0 0
      %794 = vmatpush1.bf16.xpose.msra.mxu0 0
      %795 = vmatprep.subr.bf16.mxu0 0
      %796 = vmatpush1.bf16.xpose.msra.mxu0 0
      %797 = vmatprep.subr.bf16.mxu0 0
      %798 = vmatpush1.bf16.xpose.msra.mxu0 0
      %799 = vmatprep.subr.bf16.mxu0 0
      %800 = vmatpush1.bf16.xpose.msra.mxu0 0
      %801 = vmatprep.subr.bf16.mxu0 0
      %802 = vmatpush1.bf16.xpose.msra.mxu0 0
      %803 = vmatprep.subr.bf16.mxu0 0
      %804 = vmatpush1.bf16.xpose.msra.mxu0 0
      %805 = vmatprep.mubr.bf16.mxu0 0
      %806 = vmatmul.mubr.bf16.gmra.mrb[0].mxu0 %v768
      %v807 = vpop.f32.mrb[0].mxu0
      %v808 = vadd.f32 0.0, %v807
      %v809 = vpop.f32.mrb[0].mxu0
      %v810 = vpop.f32.mrb[0].mxu0
      %v811 = vadd.f32 0.0, %v810
      %v812 = vpop.f32.mrb[0].mxu0
      %813 = vdwg.mxu0
      %v814 = vsel %vm571, %v808, -inf
      %815 = vmax.xlane.f32.xlu0 %v814
      %v816 = vpop.xlane.xlu0 %815
      %v817 = vsel %vm571, %v811, -inf
      %818 = vmax.xlane.f32.xlu0 %v817
      %v819 = vpop.xlane.xlu0 %818
      %v820 = vsub.f32 %v808, %v816
      %v821 = vsub.f32 %v811, %v819
      %v822 = vmul.f32 %v820, 1.442695
      %v823 = vpow.pop %v822
      %v824 = vmul.f32 %v821, 1.442695
      %v825 = vpow.pop %v824
      %v826 = vsel %vm571, %v823, 0.0
      %827 = vadd.xlane.f32.xlu0 %v826
      %v828 = vpop.xlane.xlu0 %827
      %v829 = vsel %vm571, %v825, 0.0
      %830 = vadd.xlane.f32.xlu0 %v829
      %v831 = vpop.xlane.xlu0 %830
      %v832 = vpack.c.bf16 %v825, %v823
      %833 = vrot.lane.b32.xlu0 %v519, 48
      %v834 = vpop.permute.xlu0 %833
      %v837 = vsel %vm571, %v832, 0
      %839 = vmatprep.subr.bf16.mxu0 0
      %840 = vmatpush1.bf16.msra.mxu0 %v834
      %841 = vmatprep.subr.bf16.mxu0 0
      %842 = vmatpush1.bf16.msra.mxu0 0
      %843 = vmatprep.subr.bf16.mxu0 0
      %844 = vmatpush1.bf16.msra.mxu0 0
      %845 = vmatprep.subr.bf16.mxu0 0
      %846 = vmatpush1.bf16.msra.mxu0 0
      %847 = vmatprep.subr.bf16.mxu0 0
      %848 = vmatpush1.bf16.msra.mxu0 0
      %849 = vmatprep.subr.bf16.mxu0 0
      %850 = vmatpush1.bf16.msra.mxu0 0
      %851 = vmatprep.subr.bf16.mxu0 0
      %852 = vmatpush1.bf16.msra.mxu0 0
      %853 = vmatprep.subr.bf16.mxu0 0
      %854 = vmatpush1.bf16.msra.mxu0 0
      %855 = vmatprep.subr.bf16.mxu0 0
      %856 = vmatpush1.bf16.msra.mxu0 0
      %857 = vmatprep.subr.bf16.mxu0 0
      %858 = vmatpush1.bf16.msra.mxu0 0
      %859 = vmatprep.subr.bf16.mxu0 0
      %860 = vmatpush1.bf16.msra.mxu0 0
      %861 = vmatprep.subr.bf16.mxu0 0
      %862 = vmatpush1.bf16.msra.mxu0 0
      %863 = vmatprep.subr.bf16.mxu0 0
      %864 = vmatpush1.bf16.msra.mxu0 0
      %865 = vmatprep.subr.bf16.mxu0 0
      %866 = vmatpush1.bf16.msra.mxu0 0
      %867 = vmatprep.subr.bf16.mxu0 0
      %868 = vmatpush1.bf16.msra.mxu0 0
      %869 = vmatprep.subr.bf16.mxu0 0
      %870 = vmatpush1.bf16.msra.mxu0 0
      %871 = vmatprep.mubr.bf16.mxu0 0
      %872 = vmatmul.mubr.bf16.gmra.mrb[0].mxu0 %v837
      %v873 = vpop.f32.mrb[0].mxu0
      %v874 = vadd.f32 0.0, %v873
      %v875 = vpop.f32.mrb[0].mxu0
      %v876 = vpop.f32.mrb[0].mxu0
      %v877 = vadd.f32 0.0, %v876
      %v878 = vpop.f32.mrb[0].mxu0
      %879 = vdwg.mxu0
      %v880 = vrcp.pop %v828
      %v881 = vrcp.pop %v831
      %v882 = vmul.f32 %v874, %v880
      %v883 = vmul.f32 %v877, %v881
      %884 = vrot.lane.b32.xlu0 %v519, 104
      %v885 = vpop.permute.xlu0 %884
      %886 = vrot.lane.b32.xlu0 %v519, 72
      %v887 = vpop.permute.xlu0 %886
      %v889 = vsel %vm523, %v885, 0
      %v892 = vsel %vm523, %v887, 0
      %894 = vmatprep.subr.bf16.mxu0 0
      %895 = vmatpush1.bf16.xpose.msra.mxu0 %v892
      %896 = vmatprep.subr.bf16.mxu0 0
      %897 = vmatpush1.bf16.xpose.msra.mxu0 0
      %898 = vmatprep.subr.bf16.mxu0 0
      %899 = vmatpush1.bf16.xpose.msra.mxu0 0
      %900 = vmatprep.subr.bf16.mxu0 0
      %901 = vmatpush1.bf16.xpose.msra.mxu0 0
      %902 = vmatprep.subr.bf16.mxu0 0
      %903 = vmatpush1.bf16.xpose.msra.mxu0 0
      %904 = vmatprep.subr.bf16.mxu0 0
      %905 = vmatpush1.bf16.xpose.msra.mxu0 0
      %906 = vmatprep.subr.bf16.mxu0 0
      %907 = vmatpush1.bf16.xpose.msra.mxu0 0
      %908 = vmatprep.subr.bf16.mxu0 0
      %909 = vmatpush1.bf16.xpose.msra.mxu0 0
      %910 = vmatprep.subr.bf16.mxu0 0
      %911 = vmatpush1.bf16.xpose.msra.mxu0 0
      %912 = vmatprep.subr.bf16.mxu0 0
      %913 = vmatpush1.bf16.xpose.msra.mxu0 0
      %914 = vmatprep.subr.bf16.mxu0 0
      %915 = vmatpush1.bf16.xpose.msra.mxu0 0
      %916 = vmatprep.subr.bf16.mxu0 0
      %917 = vmatpush1.bf16.xpose.msra.mxu0 0
      %918 = vmatprep.subr.bf16.mxu0 0
      %919 = vmatpush1.bf16.xpose.msra.mxu0 0
      %920 = vmatprep.subr.bf16.mxu0 0
      %921 = vmatpush1.bf16.xpose.msra.mxu0 0
      %922 = vmatprep.subr.bf16.mxu0 0
      %923 = vmatpush1.bf16.xpose.msra.mxu0 0
      %924 = vmatprep.subr.bf16.mxu0 0
      %925 = vmatpush1.bf16.xpose.msra.mxu0 0
      %926 = vmatprep.mubr.bf16.mxu0 0
      %927 = vmatmul.mubr.bf16.gmra.mrb[0].mxu0 %v889
      %v928 = vpop.f32.mrb[0].mxu0
      %v929 = vadd.f32 0.0, %v928
      %v930 = vpop.f32.mrb[0].mxu0
      %v931 = vpop.f32.mrb[0].mxu0
      %v932 = vadd.f32 0.0, %v931
      %v933 = vpop.f32.mrb[0].mxu0
      %934 = vdwg.mxu0
      %v935 = vsel %vm571, %v929, -inf
      %936 = vmax.xlane.f32.xlu0 %v935
      %v937 = vpop.xlane.xlu0 %936
      %v938 = vsel %vm571, %v932, -inf
      %939 = vmax.xlane.f32.xlu0 %v938
      %v940 = vpop.xlane.xlu0 %939
      %v941 = vsub.f32 %v929, %v937
      %v942 = vsub.f32 %v932, %v940
      %v943 = vmul.f32 %v941, 1.442695
      %v944 = vpow.pop %v943
      %v945 = vmul.f32 %v942, 1.442695
      %v946 = vpow.pop %v945
      %v947 = vsel %vm571, %v944, 0.0
      %948 = vadd.xlane.f32.xlu0 %v947
      %v949 = vpop.xlane.xlu0 %948
      %v950 = vsel %vm571, %v946, 0.0
      %951 = vadd.xlane.f32.xlu0 %v950
      %v952 = vpop.xlane.xlu0 %951
      %v953 = vpack.c.bf16 %v946, %v944
      %954 = vrot.lane.b32.xlu0 %v519, 40
      %v955 = vpop.permute.xlu0 %954
      %v958 = vsel %vm571, %v953, 0
      %960 = vmatprep.subr.bf16.mxu0 0
      %961 = vmatpush1.bf16.msra.mxu0 %v955
      %962 = vmatprep.subr.bf16.mxu0 0
      %963 = vmatpush1.bf16.msra.mxu0 0
      %964 = vmatprep.subr.bf16.mxu0 0
      %965 = vmatpush1.bf16.msra.mxu0 0
      %966 = vmatprep.subr.bf16.mxu0 0
      %967 = vmatpush1.bf16.msra.mxu0 0
      %968 = vmatprep.subr.bf16.mxu0 0
      %969 = vmatpush1.bf16.msra.mxu0 0
      %970 = vmatprep.subr.bf16.mxu0 0
      %971 = vmatpush1.bf16.msra.mxu0 0
      %972 = vmatprep.subr.bf16.mxu0 0
      %973 = vmatpush1.bf16.msra.mxu0 0
      %974 = vmatprep.subr.bf16.mxu0 0
      %975 = vmatpush1.bf16.msra.mxu0 0
      %976 = vmatprep.subr.bf16.mxu0 0
      %977 = vmatpush1.bf16.msra.mxu0 0
      %978 = vmatprep.subr.bf16.mxu0 0
      %979 = vmatpush1.bf16.msra.mxu0 0
      %980 = vmatprep.subr.bf16.mxu0 0
      %981 = vmatpush1.bf16.msra.mxu0 0
      %982 = vmatprep.subr.bf16.mxu0 0
      %983 = vmatpush1.bf16.msra.mxu0 0
      %984 = vmatprep.subr.bf16.mxu0 0
      %985 = vmatpush1.bf16.msra.mxu0 0
      %986 = vmatprep.subr.bf16.mxu0 0
      %987 = vmatpush1.bf16.msra.mxu0 0
      %988 = vmatprep.subr.bf16.mxu0 0
      %989 = vmatpush1.bf16.msra.mxu0 0
      %990 = vmatprep.subr.bf16.mxu0 0
      %991 = vmatpush1.bf16.msra.mxu0 0
      %992 = vmatprep.mubr.bf16.mxu0 0
      %993 = vmatmul.mubr.bf16.gmra.mrb[0].mxu0 %v958
      %v994 = vpop.f32.mrb[0].mxu0
      %v995 = vadd.f32 0.0, %v994
      %v996 = vpop.f32.mrb[0].mxu0
      %v997 = vpop.f32.mrb[0].mxu0
      %v998 = vadd.f32 0.0, %v997
      %v999 = vpop.f32.mrb[0].mxu0
      %1000 = vdwg.mxu0
      %v1001 = vrcp.pop %v949
      %v1002 = vrcp.pop %v952
      %v1003 = vmul.f32 %v995, %v1001
      %v1004 = vmul.f32 %v998, %v1002
      %1007 = vrot.lane.b32.xlu0 %v761, 8
      %v1008 = vpop.permute.xlu0 %1007
      %1009 = vrot.lane.b32.xlu0 %v762, 8
      %v1010 = vpop.permute.xlu0 %1009
      %1015 = vrot.lane.b32.xlu0 %v882, 16
      %v1016 = vpop.permute.xlu0 %1015
      %1017 = vrot.lane.b32.xlu0 %v883, 16
      %v1018 = vpop.permute.xlu0 %1017
      %1023 = vrot.lane.b32.xlu0 %v1003, 24
      %v1024 = vpop.permute.xlu0 %1023
      %1025 = vrot.lane.b32.xlu0 %v1004, 24
      %v1026 = vpop.permute.xlu0 %1025
      %v1029 = vsel %vm523, %v640, %v1008
      %v1030 = vsel %vm523, %v641, %v1010
      %v1031 = vsel %vm571, %v1029, %v1016
      %v1032 = vsel %vm571, %v1030, %v1018
      %vm1033 = vcmask 195584
      %v1034 = vsel %vm1033, %v1031, %v1024
      %v1035 = vsel %vm1033, %v1032, %v1026
      %v1036 = vld [vmem:[%s3] sm:$0xf]
      %v1037 = vld [vmem:[%s3 + $0x4] sm:$0xf]
      %v1038 = vld [vmem:[%s3 + $0x8] sm:$0xf]
      %v1039 = vld [vmem:[%s3 + $0xc] sm:$0xf]
      %v1040 = vpack.c.bf16 %v1035, %v1034
      %v1041 = vld [vmem:[%s4] sm:$0x1]
      %v1043 = vlaneseq
      %v1044 = vshrl.u32 %v1043, 7
      %v1045 = vsub.s32 0, %v1044
      %v1046 = vrot.slane %v1041, %v1045
      %v1052 = vunpack.c.l.b16 %v1036
      %v1053 = vunpack.c.l.b16 %v1037
      %v1054 = vunpack.c.l.b16 %v1038
      %v1055 = vunpack.c.l.b16 %v1039
      %v1056 = vpack.c.b16 %v1053, %v1052
      %v1057 = vpack.c.b16 %v1055, %v1054
      %v1061 = vsel %vm474, %v1040, 0
      %1063 = vmatprep.subr.bf16.mxu0 0
      %1064 = vmatpush1.bf16.msra.mxu0 %v1056
      %1065 = vmatprep.subr.bf16.mxu0 0
      %1066 = vmatpush1.bf16.msra.mxu0 %v1057
      %1067 = vmatprep.subr.bf16.mxu0 0
      %1068 = vmatpush1.bf16.msra.mxu0 0
      %1069 = vmatprep.subr.bf16.mxu0 0
      %1070 = vmatpush1.bf16.msra.mxu0 0
      %1071 = vmatprep.subr.bf16.mxu0 0
      %1072 = vmatpush1.bf16.msra.mxu0 0
      %1073 = vmatprep.subr.bf16.mxu0 0
      %1074 = vmatpush1.bf16.msra.mxu0 0
      %1075 = vmatprep.subr.bf16.mxu0 0
      %1076 = vmatpush1.bf16.msra.mxu0 0
      %1077 = vmatprep.subr.bf16.mxu0 0
      %1078 = vmatpush1.bf16.msra.mxu0 0
      %1079 = vmatprep.subr.bf16.mxu0 0
      %1080 = vmatpush1.bf16.msra.mxu0 0
      %1081 = vmatprep.subr.bf16.mxu0 0
      %1082 = vmatpush1.bf16.msra.mxu0 0
      %1083 = vmatprep.subr.bf16.mxu0 0
      %1084 = vmatpush1.bf16.msra.mxu0 0
      %1085 = vmatprep.subr.bf16.mxu0 0
      %1086 = vmatpush1.bf16.msra.mxu0 0
      %1087 = vmatprep.subr.bf16.mxu0 0
      %1088 = vmatpush1.bf16.msra.mxu0 0
      %1089 = vmatprep.subr.bf16.mxu0 0
      %1090 = vmatpush1.bf16.msra.mxu0 0
      %1091 = vmatprep.subr.bf16.mxu0 0
      %1092 = vmatpush1.bf16.msra.mxu0 0
      %1093 = vmatprep.subr.bf16.mxu0 0
      %1094 = vmatpush1.bf16.msra.mxu0 0
      %1095 = vmatprep.mubr.bf16.mxu0 0
      %1096 = vmatmul.mubr.bf16.gmra.mrb[0].mxu0 %v1061
      %v1097 = vpop.f32.mrb[0].mxu0
      %v1098 = vadd.f32 %v1046, %v1097
      %v1099 = vpop.f32.mrb[0].mxu0
      %v1100 = vpop.f32.mrb[0].mxu0
      %v1101 = vadd.f32 %v1046, %v1100
      %v1102 = vpop.f32.mrb[0].mxu0
      %1103 = vdwg.mxu0
      %v1104 = vadd.f32 %v444, %v1098
      %v1105 = vadd.f32 %v445, %v1101
      %v1106 = vld [vmem:[%s5] sm:$0x1]
      %v1107 = vld [vmem:[%s6] sm:$0x1]
      %v1108 = vsel %vm474, %v1104, 0.0
      %1109 = vadd.xlane.f32.xlu0 %v1108
      %v1110 = vpop.xlane.xlu0 %1109
      %v1111 = vsel %vm474, %v1105, 0.0
      %1112 = vadd.xlane.f32.xlu0 %v1111
      %v1113 = vpop.xlane.xlu0 %1112
      %v1114 = vrcp.pop 32.0
      %v1115 = vmul.f32 %v1110, %v1114
      %v1116 = vmul.f32 %v1113, %v1114
      %v1117 = vsub.f32 %v1104, %v1115
      %v1118 = vsub.f32 %v1105, %v1116
      %v1119 = vmul.f32 %v1117, %v1117
      %v1120 = vmul.f32 %v1118, %v1118
      %v1121 = vsel %vm474, %v1119, 0.0
      %1122 = vadd.xlane.f32.xlu0 %v1121
      %v1123 = vpop.xlane.xlu0 %1122
      %v1124 = vsel %vm474, %v1120, 0.0
      %1125 = vadd.xlane.f32.xlu0 %v1124
      %v1126 = vpop.xlane.xlu0 %1125
      %v1127 = vmul.f32 %v1123, %v1114
      %v1128 = vmul.f32 %v1126, %v1114
      %v1129 = vadd.f32 %v1127, 1e-05
      %v1130 = vadd.f32 %v1128, 1e-05
      %v1131 = vrsqrt.pop %v1129
      %v1132 = vrsqrt.pop %v1130
      %v1133 = vmul.f32 %v1117, %v1131
      %v1134 = vmul.f32 %v1118, %v1132
      %v1136 = vlaneseq
      %v1137 = vshrl.u32 %v1136, 7
      %v1138 = vsub.s32 0, %v1137
      %v1139 = vrot.slane %v1106, %v1138
      %v1141 = vmul.f32 %v1133, %v1139
      %v1142 = vmul.f32 %v1134, %v1139
      %v1144 = vlaneseq
      %v1145 = vshrl.u32 %v1144, 7
      %v1146 = vsub.s32 0, %v1145
      %v1147 = vrot.slane %v1107, %v1146
      %v1149 = vadd.f32 %v1141, %v1147
      %v1150 = vadd.f32 %v1142, %v1147
      %v1151 = vld [vmem:[%s7] sm:$0xf]
      %v1152 = vld [vmem:[%s7 + $0x4] sm:$0xf]
      %v1153 = vld [vmem:[%s7 + $0x8] sm:$0xf]
      %v1154 = vld [vmem:[%s7 + $0xc] sm:$0xf]
      %v1155 = vpack.c.bf16 %v1150, %v1149
      %v1156 = vld [vmem:[%s8] sm:$0x1]
      %v1158 = vlaneseq
      %v1159 = vshrl.u32 %v1158, 7
      %v1160 = vsub.s32 0, %v1159
      %v1161 = vrot.slane %v1156, %v1160
      %v1167 = vunpack.c.l.b16 %v1151
      %v1168 = vunpack.c.l.b16 %v1152
      %v1169 = vunpack.c.l.b16 %v1153
      %v1170 = vunpack.c.l.b16 %v1154
      %v1171 = vpack.c.b16 %v1168, %v1167
      %v1172 = vpack.c.b16 %v1170, %v1169
      %v1176 = vsel %vm474, %v1155, 0
      %1178 = vmatprep.subr.bf16.mxu0 0
      %1179 = vmatpush1.bf16.msra.mxu0 %v1171
      %1180 = vmatprep.subr.bf16.mxu0 0
      %1181 = vmatpush1.bf16.msra.mxu0 %v1172
      %1182 = vmatprep.subr.bf16.mxu0 0
      %1183 = vmatpush1.bf16.msra.mxu0 0
      %1184 = vmatprep.subr.bf16.mxu0 0
      %1185 = vmatpush1.bf16.msra.mxu0 0
      %1186 = vmatprep.subr.bf16.mxu0 0
      %1187 = vmatpush1.bf16.msra.mxu0 0
      %1188 = vmatprep.subr.bf16.mxu0 0
      %1189 = vmatpush1.bf16.msra.mxu0 0
      %1190 = vmatprep.subr.bf16.mxu0 0
      %1191 = vmatpush1.bf16.msra.mxu0 0
      %1192 = vmatprep.subr.bf16.mxu0 0
      %1193 = vmatpush1.bf16.msra.mxu0 0
      %1194 = vmatprep.subr.bf16.mxu0 0
      %1195 = vmatpush1.bf16.msra.mxu0 0
      %1196 = vmatprep.subr.bf16.mxu0 0
      %1197 = vmatpush1.bf16.msra.mxu0 0
      %1198 = vmatprep.subr.bf16.mxu0 0
      %1199 = vmatpush1.bf16.msra.mxu0 0
      %1200 = vmatprep.subr.bf16.mxu0 0
      %1201 = vmatpush1.bf16.msra.mxu0 0
      %1202 = vmatprep.subr.bf16.mxu0 0
      %1203 = vmatpush1.bf16.msra.mxu0 0
      %1204 = vmatprep.subr.bf16.mxu0 0
      %1205 = vmatpush1.bf16.msra.mxu0 0
      %1206 = vmatprep.subr.bf16.mxu0 0
      %1207 = vmatpush1.bf16.msra.mxu0 0
      %1208 = vmatprep.subr.bf16.mxu0 0
      %1209 = vmatpush1.bf16.msra.mxu0 0
      %1210 = vmatprep.mubr.bf16.mxu0 0
      %1211 = vmatmul.mubr.bf16.gmra.mrb[0].mxu0 %v1176
      %v1212 = vpop.f32.mrb[0].mxu0
      %v1213 = vadd.f32 %v1161, %v1212
      %v1214 = vpop.f32.mrb[0].mxu0
      %v1215 = vpop.f32.mrb[0].mxu0
      %v1216 = vadd.f32 %v1161, %v1215
      %v1217 = vpop.f32.mrb[0].mxu0
      %1218 = vdwg.mxu0
      %v1219 = vmul.f32 %v1213, 0.5
      %v1220 = vmul.f32 %v1216, 0.5
      %v1221 = vmul.f32 %v1213, 0.70710677
      %v1222 = vmul.f32 %v1216, 0.70710677
      %v1223 = verf.f32.pop %v1221
      %v1224 = verf.f32.pop %v1222
      %v1225 = vadd.f32 %v1223, 1.0
      %v1226 = vadd.f32 %v1224, 1.0
      %v1227 = vmul.f32 %v1219, %v1225
      %v1228 = vmul.f32 %v1220, %v1226
      %v1229 = vld [vmem:[%s9] sm:$0xf]
      %v1230 = vld [vmem:[%s9 + $0x4] sm:$0xf]
      %v1231 = vld [vmem:[%s9 + $0x8] sm:$0xf]
      %v1232 = vld [vmem:[%s9 + $0xc] sm:$0xf]
      %v1233 = vld [vmem:[%s9 + $0x10] sm:$0xf]
      %v1234 = vld [vmem:[%s9 + $0x14] sm:$0xf]
      %v1235 = vld [vmem:[%s9 + $0x18] sm:$0xf]
      %v1236 = vld [vmem:[%s9 + $0x1c] sm:$0xf]
      %v1237 = vpack.c.bf16 %v1228, %v1227
      %v1238 = vld [vmem:[%s10] sm:$0x1]
      %v1240 = vlaneseq
      %v1241 = vshrl.u32 %v1240, 7
      %v1242 = vsub.s32 0, %v1241
      %v1243 = vrot.slane %v1238, %v1242
      %v1253 = vunpack.c.l.b16 %v1229
      %v1254 = vunpack.c.l.b16 %v1230
      %v1255 = vunpack.c.l.b16 %v1231
      %v1256 = vunpack.c.l.b16 %v1232
      %v1257 = vunpack.c.l.b16 %v1233
      %v1258 = vunpack.c.l.b16 %v1234
      %v1259 = vunpack.c.l.b16 %v1235
      %v1260 = vunpack.c.l.b16 %v1236
      %v1261 = vpack.c.b16 %v1254, %v1253
      %v1262 = vpack.c.b16 %v1256, %v1255
      %v1263 = vpack.c.b16 %v1258, %v1257
      %v1264 = vpack.c.b16 %v1260, %v1259
      %vm1269 = vcmask 523264
      %v1271 = vsel %vm1269, %v1237, 0
      %1273 = vmatprep.subr.bf16.mxu0 0
      %1274 = vmatpush1.bf16.msra.mxu0 %v1261
      %1275 = vmatprep.subr.bf16.mxu0 0
      %1276 = vmatpush1.bf16.msra.mxu0 %v1262
      %1277 = vmatprep.subr.bf16.mxu0 0
      %1278 = vmatpush1.bf16.msra.mxu0 %v1263
      %1279 = vmatprep.subr.bf16.mxu0 0
      %1280 = vmatpush1.bf16.msra.mxu0 %v1264
      %1281 = vmatprep.subr.bf16.mxu0 0
      %1282 = vmatpush1.bf16.msra.mxu0 0
      %1283 = vmatprep.subr.bf16.mxu0 0
      %1284 = vmatpush1.bf16.msra.mxu0 0
      %1285 = vmatprep.subr.bf16.mxu0 0
      %1286 = vmatpush1.bf16.msra.mxu0 0
      %1287 = vmatprep.subr.bf16.mxu0 0
      %1288 = vmatpush1.bf16.msra.mxu0 0
      %1289 = vmatprep.subr.bf16.mxu0 0
      %1290 = vmatpush1.bf16.msra.mxu0 0
      %1291 = vmatprep.subr.bf16.mxu0 0
      %1292 = vmatpush1.bf16.msra.mxu0 0
      %1293 = vmatprep.subr.bf16.mxu0 0
      %1294 = vmatpush1.bf16.msra.mxu0 0
      %1295 = vmatprep.subr.bf16.mxu0 0
      %1296 = vmatpush1.bf16.msra.mxu0 0
      %1297 = vmatprep.subr.bf16.mxu0 0
      %1298 = vmatpush1.bf16.msra.mxu0 0
      %1299 = vmatprep.subr.bf16.mxu0 0
      %1300 = vmatpush1.bf16.msra.mxu0 0
      %1301 = vmatprep.subr.bf16.mxu0 0
      %1302 = vmatpush1.bf16.msra.mxu0 0
      %1303 = vmatprep.subr.bf16.mxu0 0
      %1304 = vmatpush1.bf16.msra.mxu0 0
      %1305 = vmatprep.mubr.bf16.mxu0 0
      %1306 = vmatmul.mubr.bf16.gmra.mrb[0].mxu0 %v1271
      %v1307 = vpop.f32.mrb[0].mxu0
      %v1308 = vadd.f32 %v1243, %v1307
      %v1309 = vpop.f32.mrb[0].mxu0
      %v1310 = vpop.f32.mrb[0].mxu0
      %v1311 = vadd.f32 %v1243, %v1310
      %v1312 = vpop.f32.mrb[0].mxu0
      %1313 = vdwg.mxu0
      %v1314 = vadd.f32 %v1149, %v1308
      %v1315 = vadd.f32 %v1150, %v1311
      %v1316 = vld [vmem:[%s11] sm:$0x1]
      %v1317 = vld [vmem:[%s12] sm:$0x1]
      %v1318 = vsel %vm474, %v1314, 0.0
      %1319 = vadd.xlane.f32.xlu0 %v1318
      %v1320 = vpop.xlane.xlu0 %1319
      %v1321 = vsel %vm474, %v1315, 0.0
      %1322 = vadd.xlane.f32.xlu0 %v1321
      %v1323 = vpop.xlane.xlu0 %1322
      %v1324 = vmul.f32 %v1320, %v1114
      %v1325 = vmul.f32 %v1323, %v1114
      %v1326 = vsub.f32 %v1314, %v1324
      %v1327 = vsub.f32 %v1315, %v1325
      %v1328 = vmul.f32 %v1326, %v1326
      %v1329 = vmul.f32 %v1327, %v1327
      %v1330 = vsel %vm474, %v1328, 0.0
      %1331 = vadd.xlane.f32.xlu0 %v1330
      %v1332 = vpop.xlane.xlu0 %1331
      %v1333 = vsel %vm474, %v1329, 0.0
      %1334 = vadd.xlane.f32.xlu0 %v1333
      %v1335 = vpop.xlane.xlu0 %1334
      %v1336 = vmul.f32 %v1332, %v1114
      %v1337 = vmul.f32 %v1335, %v1114
      %v1338 = vadd.f32 %v1336, 1e-05
      %v1339 = vadd.f32 %v1337, 1e-05
      %v1340 = vrsqrt.pop %v1338
      %v1341 = vrsqrt.pop %v1339
      %v1342 = vmul.f32 %v1326, %v1340
      %v1343 = vmul.f32 %v1327, %v1341
      %v1345 = vlaneseq
      %v1346 = vshrl.u32 %v1345, 7
      %v1347 = vsub.s32 0, %v1346
      %v1348 = vrot.slane %v1316, %v1347
      %v1350 = vmul.f32 %v1342, %v1348
      %v1351 = vmul.f32 %v1343, %v1348
      %v1353 = vlaneseq
      %v1354 = vshrl.u32 %v1353, 7
      %v1355 = vsub.s32 0, %v1354
      %v1356 = vrot.slane %v1317, %v1355
      %v1358 = vadd.f32 %v1350, %v1356
      %v1359 = vadd.f32 %v1351, %v1356
      %v1360 = vpack.c.bf16 %v1359, %v1358
      %v1362 = vunpack.c.l.b16 %v1360
      %v1363 = vunpack.c.h.b16 %v1360
      %v1364 = vpack.c.b16 %v1362, %v1362
      %v1365 = vpack.c.b16 %v1363, %v1363
      %vm1368 = vcmask 257024
      %1369 = vst.msk [vmem:[%s440] sm:$0xf] %vm1368, %v1364
      %1370 = vst.msk [vmem:[%s440 + $0x4] sm:$0xf] %vm1368, %v1365
      %p1371 = scmp.lt.s32.totalorder %s24, 1
      %s1372 = scalar_select %p1371, %s24, 1
      %s1373 = smul.addr %s1372, 2
      %s1374 = smul.addr %s1373, 4
      %s1375 = scalar_lea.vmem %s13, %s1374
      // Predicated region
      $region73: #{_lambda_.9} parent=71 // pred_check
        %p1376 = pneg %p320
      $region74: #{_lambda_.9} parent=71 // pred_check_branch
        %1378 = sbr.rel (%p1376) target = $region76
      $region75: #{_lambda_.9} parent=71 // pred_region
        _
      $region76: #{_lambda_.9} parent=71 // pred_fallthru
        _
    $region72: #{_lambda_.9} parent=5 // pred_fallthru
      _
    %p1379 = scmp.le.s32.totalorder 2, %s19
    // Predicated region
    $region77: #{_lambda_.9} parent=5 // pred_check
      %p1380 = pneg %p1379
    $region78: #{_lambda_.9} parent=5 // pred_check_branch
      %1382 = sbr.rel (%p1380) target = $region80
    $region79: #{_lambda_.9} parent=5 // pred_region
      %s1383 = ssub.s32 %s19, 2
      // Predicated region
      $region81: #{_lambda_.9} parent=79 // pred_check
        %p1384 = pneg %p326
      $region82: #{_lambda_.9} parent=79 // pred_check_branch
        %1386 = sbr.rel (%p1384) target = $region84
      $region83: #{_lambda_.9} parent=79 // pred_region
        %p1387 = scmp.lt.s32.totalorder %s25, 1
        %s1388 = scalar_select %p1387, %s25, 1
        %s1389 = smul.addr %s1388, 2
        %s1390 = smul.addr %s1389, 4
        %s1391 = scalar_lea.vmem %s13, %s1390
      $region84: #{_lambda_.9} parent=79 // pred_fallthru
        _
    $region80: #{_lambda_.9} parent=5 // pred_fallthru
      _
  $region6: #{_lambda_.9} parent=0 // loop_footer
    %s23 = sadd.s32 1, %s19
  $region7: #{_lambda_.9} parent=0 // loop_footer_branch
    %18 = sbr.rel target = $region3
  $region8: #{_lambda_.9} parent=0 // loop_exit
    _

// kernel: _lambda_.11
$region0: #{_lambda_.11}
  #allocation0 [shape = 'u32[]', space=smem, size = 0x4, offset = 0x4, fixed_abs, tag = 'smem constant byte address 0x4 - core index']
  #allocation1 [shape = 'u32[144,128]{1,0:T(1,128)}', space=vmem, size = 0x12000, scoped, tag = 'internal scratch']
  %s0 = inlined_call_operand.vmem [shape: bf16[2,8,32], index: 0, kind: input, shape index: {}]
  %s1 = inlined_call_operand.vmem [shape: bf16[32,96], index: 1, kind: input, shape index: {}]
  %s2 = inlined_call_operand.vmem [shape: f32[1,96], index: 2, kind: input, shape index: {}]
  %s3 = inlined_call_operand.vmem [shape: bf16[32,32], index: 3, kind: input, shape index: {}]
  %s4 = inlined_call_operand.vmem [shape: f32[1,32], index: 4, kind: input, shape index: {}]
  %s5 = inlined_call_operand.vmem [shape: f32[1,32], index: 5, kind: input, shape index: {}]
  %s6 = inlined_call_operand.vmem [shape: f32[1,32], index: 6, kind: input, shape index: {}]
  %s7 = inlined_call_operand.vmem [shape: bf16[32,64], index: 7, kind: input, shape index: {}]
  %s8 = inlined_call_operand.vmem [shape: f32[1,64], index: 8, kind: input, shape index: {}]
  %s9 = inlined_call_operand.vmem [shape: bf16[64,32], index: 9, kind: input, shape index: {}]
  %s10 = inlined_call_operand.vmem [shape: f32[1,32], index: 10, kind: input, shape index: {}]
  %s11 = inlined_call_operand.vmem [shape: f32[1,32], index: 11, kind: input, shape index: {}]
  %s12 = inlined_call_operand.vmem [shape: f32[1,32], index: 12, kind: input, shape index: {}]
  %s13 = inlined_call_operand.vmem [shape: f32[1,32], index: 13, kind: input, shape index: {}]
  %s14 = inlined_call_operand.vmem [shape: f32[1,32], index: 14, kind: input, shape index: {}]
  %s15 = inlined_call_operand.vmem [shape: bf16[2,8,32], index: 15, kind: output, shape index: {}]
  %s16 = sld [smem:[#allocation0]]
  $region93: #{_lambda_.11} parent=0
    _
  %s18 = ssub.s32 1, %s16
  %s19 = scalar_select 0, %s18, %s16
  loop: start=0, step=1, limit=4
  $region2: #{_lambda_.11} parent=0 // loop_pre_header
    _
  $region3: #{_lambda_.11} parent=0 // loop_header
    %s21 = sphi 0, %s25
    %p22 = scmp.ge.s32.totalorder %s21, 4
    %s31 = sphi 0, %s33
    %s34 = sphi 0, %s31
    %s35 = sphi 0, %s34
    %s51 = sphi 0, %s35
    %s55 = sphi 0, %s55
    %s57 = sphi 0, %s55
    %s58 = sphi 0, %s57
    %s72 = sphi 0, %s58
    %s76 = sphi 0, %s76
    %s78 = sphi 0, %s76
    %s79 = sphi 0, %s78
    %s93 = sphi 0, %s79
    %s97 = sphi 0, %s97
    %s99 = sphi 0, %s97
    %s100 = sphi 0, %s99
    %s114 = sphi 0, %s100
    %s118 = sphi 0, %s118
    %s120 = sphi 0, %s118
    %s121 = sphi 0, %s120
    %s135 = sphi 0, %s121
    %s139 = sphi 0, %s139
    %s141 = sphi 0, %s139
    %s142 = sphi 0, %s141
    %s156 = sphi 0, %s142
    %s160 = sphi 0, %s160
    %s162 = sphi 0, %s160
    %s163 = sphi 0, %s162
    %s177 = sphi 0, %s163
    %s181 = sphi 0, %s181
    %s183 = sphi 0, %s181
    %s184 = sphi 0, %s183
    %s198 = sphi 0, %s184
    %s202 = sphi 0, %s202
    %s204 = sphi 0, %s202
    %s205 = sphi 0, %s204
    %s219 = sphi 0, %s205
    %s223 = sphi 0, %s223
    %s225 = sphi 0, %s223
    %s226 = sphi 0, %s225
    %s240 = sphi 0, %s226
    %s244 = sphi 0, %s244
    %s246 = sphi 0, %s244
    %s247 = sphi 0, %s246
    %s261 = sphi 0, %s247
    %s265 = sphi 0, %s265
    %s267 = sphi 0, %s265
    %s268 = sphi 0, %s267
    %s282 = sphi 0, %s268
    %s286 = sphi 0, %s286
    %s288 = sphi 0, %s286
    %s289 = sphi 0, %s288
    %s303 = sphi 0, %s289
    %s307 = sphi 0, %s307
    %s309 = sphi 0, %s307
    %s310 = sphi 0, %s309
    %s324 = sphi 0, %s310
    %s328 = sphi 0, %s328
    %s330 = sphi 0, %s328
    %s331 = sphi 0, %s330
    %s345 = sphi 0, %s331
    %s351 = sphi 0, %s353
    %s354 = sphi 0, %s351
    %s355 = sphi 0, %s354
    %s371 = sphi 0, %s355
  $region4: #{_lambda_.11} parent=0 // loop_header_branch
    %24 = sbr.rel (%p22) target = $region8
  $region5: #{_lambda_.11} parent=0 // loop_body
    %s26 = ssub.s32 %s21, 1
    %s27 = ssub.s32 %s21, 2
    %s28 = sadd.s32 %s21, 1
    %s29 = ssub.s32 %s21, %s28
    %p30 = scmp.eq.s32.totalorder %s29, 0
    %s32 = sadd.s32 %s31, 1
    %s33 = scalar_select %p30, %s31, %s32
    %p36 = pneg %p30
    %p37 = scmp.eq.s32.totalorder %s21, 1
    %p38 = por %p36, %p37
    %p39 = scmp.ne.s32.totalorder %s31, %s34
    %p40 = scmp.eq.s32.totalorder %s21, 0
    %p41 = por %p39, %p40
    %p42 = scmp.ne.s32.totalorder %s31, %s34
    %p43 = scmp.eq.s32.totalorder %s26, 1
    %p44 = por %p42, %p43
    %p45 = scmp.ne.s32.totalorder %s34, %s35
    %p46 = scmp.eq.s32.totalorder %s26, 0
    %p47 = por %p45, %p46
    %p48 = scmp.ne.s32.totalorder %s34, %s35
    %p49 = scmp.eq.s32.totalorder %s27, 1
    %p50 = por %p48, %p49
    %p52 = scmp.ne.s32.totalorder %s35, %s51
    %p53 = scmp.eq.s32.totalorder %s27, 0
    %p54 = por %p52, %p53
    %s56 = sadd.s32 %s55, 1
    %p59 = scmp.eq.s32.totalorder %s21, 1
    %p60 = scmp.ne.s32.totalorder %s55, %s57
    %p61 = scmp.eq.s32.totalorder %s21, 0
    %p62 = por %p60, %p61
    %p63 = scmp.ne.s32.totalorder %s55, %s57
    %p64 = scmp.eq.s32.totalorder %s26, 1
    %p65 = por %p63, %p64
    %p66 = scmp.ne.s32.totalorder %s57, %s58
    %p67 = scmp.eq.s32.totalorder %s26, 0
    %p68 = por %p66, %p67
    %p69 = scmp.ne.s32.totalorder %s57, %s58
    %p70 = scmp.eq.s32.totalorder %s27, 1
    %p71 = por %p69, %p70
    %p73 = scmp.ne.s32.totalorder %s58, %s72
    %p74 = scmp.eq.s32.totalorder %s27, 0
    %p75 = por %p73, %p74
    %s77 = sadd.s32 %s76, 1
    %p80 = scmp.eq.s32.totalorder %s21, 1
    %p81 = scmp.ne.s32.totalorder %s76, %s78
    %p82 = scmp.eq.s32.totalorder %s21, 0
    %p83 = por %p81, %p82
    %p84 = scmp.ne.s32.totalorder %s76, %s78
    %p85 = scmp.eq.s32.totalorder %s26, 1
    %p86 = por %p84, %p85
    %p87 = scmp.ne.s32.totalorder %s78, %s79
    %p88 = scmp.eq.s32.totalorder %s26, 0
    %p89 = por %p87, %p88
    %p90 = scmp.ne.s32.totalorder %s78, %s79
    %p91 = scmp.eq.s32.totalorder %s27, 1
    %p92 = por %p90, %p91
    %p94 = scmp.ne.s32.totalorder %s79, %s93
    %p95 = scmp.eq.s32.totalorder %s27, 0
    %p96 = por %p94, %p95
    %s98 = sadd.s32 %s97, 1
    %p101 = scmp.eq.s32.totalorder %s21, 1
    %p102 = scmp.ne.s32.totalorder %s97, %s99
    %p103 = scmp.eq.s32.totalorder %s21, 0
    %p104 = por %p102, %p103
    %p105 = scmp.ne.s32.totalorder %s97, %s99
    %p106 = scmp.eq.s32.totalorder %s26, 1
    %p107 = por %p105, %p106
    %p108 = scmp.ne.s32.totalorder %s99, %s100
    %p109 = scmp.eq.s32.totalorder %s26, 0
    %p110 = por %p108, %p109
    %p111 = scmp.ne.s32.totalorder %s99, %s100
    %p112 = scmp.eq.s32.totalorder %s27, 1
    %p113 = por %p111, %p112
    %p115 = scmp.ne.s32.totalorder %s100, %s114
    %p116 = scmp.eq.s32.totalorder %s27, 0
    %p117 = por %p115, %p116
    %s119 = sadd.s32 %s118, 1
    %p122 = scmp.eq.s32.totalorder %s21, 1
    %p123 = scmp.ne.s32.totalorder %s118, %s120
    %p124 = scmp.eq.s32.totalorder %s21, 0
    %p125 = por %p123, %p124
    %p126 = scmp.ne.s32.totalorder %s118, %s120
    %p127 = scmp.eq.s32.totalorder %s26, 1
    %p128 = por %p126, %p127
    %p129 = scmp.ne.s32.totalorder %s120, %s121
    %p130 = scmp.eq.s32.totalorder %s26, 0
    %p131 = por %p129, %p130
    %p132 = scmp.ne.s32.totalorder %s120, %s121
    %p133 = scmp.eq.s32.totalorder %s27, 1
    %p134 = por %p132, %p133
    %p136 = scmp.ne.s32.totalorder %s121, %s135
    %p137 = scmp.eq.s32.totalorder %s27, 0
    %p138 = por %p136, %p137
    %s140 = sadd.s32 %s139, 1
    %p143 = scmp.eq.s32.totalorder %s21, 1
    %p144 = scmp.ne.s32.totalorder %s139, %s141
    %p145 = scmp.eq.s32.totalorder %s21, 0
    %p146 = por %p144, %p145
    %p147 = scmp.ne.s32.totalorder %s139, %s141
    %p148 = scmp.eq.s32.totalorder %s26, 1
    %p149 = por %p147, %p148
    %p150 = scmp.ne.s32.totalorder %s141, %s142
    %p151 = scmp.eq.s32.totalorder %s26, 0
    %p152 = por %p150, %p151
    %p153 = scmp.ne.s32.totalorder %s141, %s142
    %p154 = scmp.eq.s32.totalorder %s27, 1
    %p155 = por %p153, %p154
    %p157 = scmp.ne.s32.totalorder %s142, %s156
    %p158 = scmp.eq.s32.totalorder %s27, 0
    %p159 = por %p157, %p158
    %s161 = sadd.s32 %s160, 1
    %p164 = scmp.eq.s32.totalorder %s21, 1
    %p165 = scmp.ne.s32.totalorder %s160, %s162
    %p166 = scmp.eq.s32.totalorder %s21, 0
    %p167 = por %p165, %p166
    %p168 = scmp.ne.s32.totalorder %s160, %s162
    %p169 = scmp.eq.s32.totalorder %s26, 1
    %p170 = por %p168, %p169
    %p171 = scmp.ne.s32.totalorder %s162, %s163
    %p172 = scmp.eq.s32.totalorder %s26, 0
    %p173 = por %p171, %p172
    %p174 = scmp.ne.s32.totalorder %s162, %s163
    %p175 = scmp.eq.s32.totalorder %s27, 1
    %p176 = por %p174, %p175
    %p178 = scmp.ne.s32.totalorder %s163, %s177
    %p179 = scmp.eq.s32.totalorder %s27, 0
    %p180 = por %p178, %p179
    %s182 = sadd.s32 %s181, 1
    %p185 = scmp.eq.s32.totalorder %s21, 1
    %p186 = scmp.ne.s32.totalorder %s181, %s183
    %p187 = scmp.eq.s32.totalorder %s21, 0
    %p188 = por %p186, %p187
    %p189 = scmp.ne.s32.totalorder %s181, %s183
    %p190 = scmp.eq.s32.totalorder %s26, 1
    %p191 = por %p189, %p190
    %p192 = scmp.ne.s32.totalorder %s183, %s184
    %p193 = scmp.eq.s32.totalorder %s26, 0
    %p194 = por %p192, %p193
    %p195 = scmp.ne.s32.totalorder %s183, %s184
    %p196 = scmp.eq.s32.totalorder %s27, 1
    %p197 = por %p195, %p196
    %p199 = scmp.ne.s32.totalorder %s184, %s198
    %p200 = scmp.eq.s32.totalorder %s27, 0
    %p201 = por %p199, %p200
    %s203 = sadd.s32 %s202, 1
    %p206 = scmp.eq.s32.totalorder %s21, 1
    %p207 = scmp.ne.s32.totalorder %s202, %s204
    %p208 = scmp.eq.s32.totalorder %s21, 0
    %p209 = por %p207, %p208
    %p210 = scmp.ne.s32.totalorder %s202, %s204
    %p211 = scmp.eq.s32.totalorder %s26, 1
    %p212 = por %p210, %p211
    %p213 = scmp.ne.s32.totalorder %s204, %s205
    %p214 = scmp.eq.s32.totalorder %s26, 0
    %p215 = por %p213, %p214
    %p216 = scmp.ne.s32.totalorder %s204, %s205
    %p217 = scmp.eq.s32.totalorder %s27, 1
    %p218 = por %p216, %p217
    %p220 = scmp.ne.s32.totalorder %s205, %s219
    %p221 = scmp.eq.s32.totalorder %s27, 0
    %p222 = por %p220, %p221
    %s224 = sadd.s32 %s223, 1
    %p227 = scmp.eq.s32.totalorder %s21, 1
    %p228 = scmp.ne.s32.totalorder %s223, %s225
    %p229 = scmp.eq.s32.totalorder %s21, 0
    %p230 = por %p228, %p229
    %p231 = scmp.ne.s32.totalorder %s223, %s225
    %p232 = scmp.eq.s32.totalorder %s26, 1
    %p233 = por %p231, %p232
    %p234 = scmp.ne.s32.totalorder %s225, %s226
    %p235 = scmp.eq.s32.totalorder %s26, 0
    %p236 = por %p234, %p235
    %p237 = scmp.ne.s32.totalorder %s225, %s226
    %p238 = scmp.eq.s32.totalorder %s27, 1
    %p239 = por %p237, %p238
    %p241 = scmp.ne.s32.totalorder %s226, %s240
    %p242 = scmp.eq.s32.totalorder %s27, 0
    %p243 = por %p241, %p242
    %s245 = sadd.s32 %s244, 1
    %p248 = scmp.eq.s32.totalorder %s21, 1
    %p249 = scmp.ne.s32.totalorder %s244, %s246
    %p250 = scmp.eq.s32.totalorder %s21, 0
    %p251 = por %p249, %p250
    %p252 = scmp.ne.s32.totalorder %s244, %s246
    %p253 = scmp.eq.s32.totalorder %s26, 1
    %p254 = por %p252, %p253
    %p255 = scmp.ne.s32.totalorder %s246, %s247
    %p256 = scmp.eq.s32.totalorder %s26, 0
    %p257 = por %p255, %p256
    %p258 = scmp.ne.s32.totalorder %s246, %s247
    %p259 = scmp.eq.s32.totalorder %s27, 1
    %p260 = por %p258, %p259
    %p262 = scmp.ne.s32.totalorder %s247, %s261
    %p263 = scmp.eq.s32.totalorder %s27, 0
    %p264 = por %p262, %p263
    %s266 = sadd.s32 %s265, 1
    %p269 = scmp.eq.s32.totalorder %s21, 1
    %p270 = scmp.ne.s32.totalorder %s265, %s267
    %p271 = scmp.eq.s32.totalorder %s21, 0
    %p272 = por %p270, %p271
    %p273 = scmp.ne.s32.totalorder %s265, %s267
    %p274 = scmp.eq.s32.totalorder %s26, 1
    %p275 = por %p273, %p274
    %p276 = scmp.ne.s32.totalorder %s267, %s268
    %p277 = scmp.eq.s32.totalorder %s26, 0
    %p278 = por %p276, %p277
    %p279 = scmp.ne.s32.totalorder %s267, %s268
    %p280 = scmp.eq.s32.totalorder %s27, 1
    %p281 = por %p279, %p280
    %p283 = scmp.ne.s32.totalorder %s268, %s282
    %p284 = scmp.eq.s32.totalorder %s27, 0
    %p285 = por %p283, %p284
    %s287 = sadd.s32 %s286, 1
    %p290 = scmp.eq.s32.totalorder %s21, 1
    %p291 = scmp.ne.s32.totalorder %s286, %s288
    %p292 = scmp.eq.s32.totalorder %s21, 0
    %p293 = por %p291, %p292
    %p294 = scmp.ne.s32.totalorder %s286, %s288
    %p295 = scmp.eq.s32.totalorder %s26, 1
    %p296 = por %p294, %p295
    %p297 = scmp.ne.s32.totalorder %s288, %s289
    %p298 = scmp.eq.s32.totalorder %s26, 0
    %p299 = por %p297, %p298
    %p300 = scmp.ne.s32.totalorder %s288, %s289
    %p301 = scmp.eq.s32.totalorder %s27, 1
    %p302 = por %p300, %p301
    %p304 = scmp.ne.s32.totalorder %s289, %s303
    %p305 = scmp.eq.s32.totalorder %s27, 0
    %p306 = por %p304, %p305
    %s308 = sadd.s32 %s307, 1
    %p311 = scmp.eq.s32.totalorder %s21, 1
    %p312 = scmp.ne.s32.totalorder %s307, %s309
    %p313 = scmp.eq.s32.totalorder %s21, 0
    %p314 = por %p312, %p313
    %p315 = scmp.ne.s32.totalorder %s307, %s309
    %p316 = scmp.eq.s32.totalorder %s26, 1
    %p317 = por %p315, %p316
    %p318 = scmp.ne.s32.totalorder %s309, %s310
    %p319 = scmp.eq.s32.totalorder %s26, 0
    %p320 = por %p318, %p319
    %p321 = scmp.ne.s32.totalorder %s309, %s310
    %p322 = scmp.eq.s32.totalorder %s27, 1
    %p323 = por %p321, %p322
    %p325 = scmp.ne.s32.totalorder %s310, %s324
    %p326 = scmp.eq.s32.totalorder %s27, 0
    %p327 = por %p325, %p326
    %s329 = sadd.s32 %s328, 1
    %p332 = scmp.eq.s32.totalorder %s21, 1
    %p333 = scmp.ne.s32.totalorder %s328, %s330
    %p334 = scmp.eq.s32.totalorder %s21, 0
    %p335 = por %p333, %p334
    %p336 = scmp.ne.s32.totalorder %s328, %s330
    %p337 = scmp.eq.s32.totalorder %s26, 1
    %p338 = por %p336, %p337
    %p339 = scmp.ne.s32.totalorder %s330, %s331
    %p340 = scmp.eq.s32.totalorder %s26, 0
    %p341 = por %p339, %p340
    %p342 = scmp.ne.s32.totalorder %s330, %s331
    %p343 = scmp.eq.s32.totalorder %s27, 1
    %p344 = por %p342, %p343
    %p346 = scmp.ne.s32.totalorder %s331, %s345
    %p347 = scmp.eq.s32.totalorder %s27, 0
    %p348 = por %p346, %p347
    %s349 = ssub.s32 %s21, %s28
    %p350 = scmp.eq.s32.totalorder %s349, 0
    %s352 = sadd.s32 %s351, 1
    %s353 = scalar_select %p350, %s351, %s352
    %p356 = pneg %p350
    %p357 = scmp.eq.s32.totalorder %s21, 1
    %p358 = por %p356, %p357
    %p359 = scmp.ne.s32.totalorder %s351, %s354
    %p360 = scmp.eq.s32.totalorder %s21, 0
    %p361 = por %p359, %p360
    %p362 = scmp.ne.s32.totalorder %s351, %s354
    %p363 = scmp.eq.s32.totalorder %s26, 1
    %p364 = por %p362, %p363
    %p365 = scmp.ne.s32.totalorder %s354, %s355
    %p366 = scmp.eq.s32.totalorder %s26, 0
    %p367 = por %p365, %p366
    %p368 = scmp.ne.s32.totalorder %s354, %s355
    %p369 = scmp.eq.s32.totalorder %s27, 1
    %p370 = por %p368, %p369
    %p372 = scmp.ne.s32.totalorder %s355, %s371
    %p373 = scmp.eq.s32.totalorder %s27, 0
    %p374 = por %p372, %p373
    %p375 = scmp.le.s32.totalorder 1, %s21
    %p376 = scmp.lt.s32.totalorder %s21, 3
    %p377 = pnand %p375, %p376
    %p378 = pneg %p377
    // Predicated region
    $region9: #{_lambda_.11} parent=5 // pred_check
      _
    $region10: #{_lambda_.11} parent=5 // pred_check_branch
      %380 = sbr.rel (%p377) target = $region12
    $region11: #{_lambda_.11} parent=5 // pred_region
      %s381 = ssub.s32 %s21, 1
      // Predicated region
      $region13: #{_lambda_.11} parent=11 // pred_check
        %p382 = pneg %p68
      $region14: #{_lambda_.11} parent=11 // pred_check_branch
        %384 = sbr.rel (%p382) target = $region16
      $region15: #{_lambda_.11} parent=11 // pred_region
        _
      $region16: #{_lambda_.11} parent=11 // pred_fallthru
        _
      // Predicated region
      $region17: #{_lambda_.11} parent=11 // pred_check
        %p385 = pneg %p89
      $region18: #{_lambda_.11} parent=11 // pred_check_branch
        %387 = sbr.rel (%p385) target = $region20
      $region19: #{_lambda_.11} parent=11 // pred_region
        _
      $region20: #{_lambda_.11} parent=11 // pred_fallthru
        _
      // Predicated region
      $region21: #{_lambda_.11} parent=11 // pred_check
        %p388 = pneg %p110
      $region22: #{_lambda_.11} parent=11 // pred_check_branch
        %390 = sbr.rel (%p388) target = $region24
      $region23: #{_lambda_.11} parent=11 // pred_region
        _
      $region24: #{_lambda_.11} parent=11 // pred_fallthru
        _
      // Predicated region
      $region25: #{_lambda_.11} parent=11 // pred_check
        %p391 = pneg %p131
      $region26: #{_lambda_.11} parent=11 // pred_check_branch
        %393 = sbr.rel (%p391) target = $region28
      $region27: #{_lambda_.11} parent=11 // pred_region
        _
      $region28: #{_lambda_.11} parent=11 // pred_fallthru
        _
      // Predicated region
      $region29: #{_lambda_.11} parent=11 // pred_check
        %p394 = pneg %p152
      $region30: #{_lambda_.11} parent=11 // pred_check_branch
        %396 = sbr.rel (%p394) target = $region32
      $region31: #{_lambda_.11} parent=11 // pred_region
        _
      $region32: #{_lambda_.11} parent=11 // pred_fallthru
        _
      // Predicated region
      $region33: #{_lambda_.11} parent=11 // pred_check
        %p397 = pneg %p173
      $region34: #{_lambda_.11} parent=11 // pred_check_branch
        %399 = sbr.rel (%p397) target = $region36
      $region35: #{_lambda_.11} parent=11 // pred_region
        _
      $region36: #{_lambda_.11} parent=11 // pred_fallthru
        _
      // Predicated region
      $region37: #{_lambda_.11} parent=11 // pred_check
        %p400 = pneg %p194
      $region38: #{_lambda_.11} parent=11 // pred_check_branch
        %402 = sbr.rel (%p400) target = $region40
      $region39: #{_lambda_.11} parent=11 // pred_region
        _
      $region40: #{_lambda_.11} parent=11 // pred_fallthru
        _
      // Predicated region
      $region41: #{_lambda_.11} parent=11 // pred_check
        %p403 = pneg %p215
      $region42: #{_lambda_.11} parent=11 // pred_check_branch
        %405 = sbr.rel (%p403) target = $region44
      $region43: #{_lambda_.11} parent=11 // pred_region
        _
      $region44: #{_lambda_.11} parent=11 // pred_fallthru
        _
      // Predicated region
      $region45: #{_lambda_.11} parent=11 // pred_check
        %p406 = pneg %p236
      $region46: #{_lambda_.11} parent=11 // pred_check_branch
        %408 = sbr.rel (%p406) target = $region48
      $region47: #{_lambda_.11} parent=11 // pred_region
        _
      $region48: #{_lambda_.11} parent=11 // pred_fallthru
        _
      // Predicated region
      $region49: #{_lambda_.11} parent=11 // pred_check
        %p409 = pneg %p257
      $region50: #{_lambda_.11} parent=11 // pred_check_branch
        %411 = sbr.rel (%p409) target = $region52
      $region51: #{_lambda_.11} parent=11 // pred_region
        _
      $region52: #{_lambda_.11} parent=11 // pred_fallthru
        _
      // Predicated region
      $region53: #{_lambda_.11} parent=11 // pred_check
        %p412 = pneg %p278
      $region54: #{_lambda_.11} parent=11 // pred_check_branch
        %414 = sbr.rel (%p412) target = $region56
      $region55: #{_lambda_.11} parent=11 // pred_region
        _
      $region56: #{_lambda_.11} parent=11 // pred_fallthru
        _
      // Predicated region
      $region57: #{_lambda_.11} parent=11 // pred_check
        %p415 = pneg %p299
      $region58: #{_lambda_.11} parent=11 // pred_check_branch
        %417 = sbr.rel (%p415) target = $region60
      $region59: #{_lambda_.11} parent=11 // pred_region
        _
      $region60: #{_lambda_.11} parent=11 // pred_fallthru
        _
      // Predicated region
      $region61: #{_lambda_.11} parent=11 // pred_check
        %p418 = pneg %p320
      $region62: #{_lambda_.11} parent=11 // pred_check_branch
        %420 = sbr.rel (%p418) target = $region64
      $region63: #{_lambda_.11} parent=11 // pred_region
        _
      $region64: #{_lambda_.11} parent=11 // pred_fallthru
        _
      // Predicated region
      $region65: #{_lambda_.11} parent=11 // pred_check
        %p421 = pneg %p341
      $region66: #{_lambda_.11} parent=11 // pred_check_branch
        %423 = sbr.rel (%p421) target = $region68
      $region67: #{_lambda_.11} parent=11 // pred_region
        _
      $region68: #{_lambda_.11} parent=11 // pred_fallthru
        _
    $region12: #{_lambda_.11} parent=5 // pred_fallthru
      _
    %p424 = scmp.lt.s32.totalorder %s21, 2
    // Predicated region
    $region69: #{_lambda_.11} parent=5 // pred_check
      %p425 = pneg %p424
    $region70: #{_lambda_.11} parent=5 // pred_check_branch
      %427 = sbr.rel (%p425) target = $region72
    $region71: #{_lambda_.11} parent=5 // pred_region
      // Predicated region
      $region73: #{_lambda_.11} parent=71 // pred_check
        %p428 = pneg %p41
      $region74: #{_lambda_.11} parent=71 // pred_check_branch
        %430 = sbr.rel (%p428) target = $region76
      $region75: #{_lambda_.11} parent=71 // pred_region
        %p431 = scmp.lt.s32.totalorder %s21, 1
        %s432 = scalar_select %p431, %s21, 1
        %s433 = smul.addr %s432, 4
        %s434 = scalar_lea.vmem %s0, %s433
      $region76: #{_lambda_.11} parent=71 // pred_fallthru
        _
    $region72: #{_lambda_.11} parent=5 // pred_fallthru
      _
    %p435 = scmp.le.s32.totalorder 1, %s21
    %p436 = scmp.lt.s32.totalorder %s21, 3
    %p437 = pnand %p435, %p436
    %p438 = pneg %p437
    // Predicated region
    $region77: #{_lambda_.11} parent=5 // pred_check
      _
    $region78: #{_lambda_.11} parent=5 // pred_check_branch
      %440 = sbr.rel (%p437) target = $region80
    $region79: #{_lambda_.11} parent=5 // pred_region
      %s441 = ssub.s32 %s21, 1
      %p442 = scmp.lt.s32.totalorder %s26, 1
      %s443 = scalar_select %p442, %s26, 1
      %s444 = smul.addr %s443, 4
      %s445 = scalar_lea.vmem %s0, %s444
      %p446 = pneg %p47
      %p447 = pneg %p44
      %p448 = pneg %p68
      %p449 = pneg %p65
      %p450 = pneg %p89
      %p451 = pneg %p86
      %p452 = pneg %p110
      %p453 = pneg %p107
      %p454 = pneg %p131
      %p455 = pneg %p128
      %p456 = pneg %p152
      %p457 = pneg %p149
      %p458 = pneg %p173
      %p459 = pneg %p170
      %p460 = pneg %p194
      %p461 = pneg %p191
      %p462 = pneg %p215
      %p463 = pneg %p212
      %p464 = pneg %p236
      %p465 = pneg %p233
      %p466 = pneg %p257
      %p467 = pneg %p254
      %p468 = pneg %p278
      %p469 = pneg %p275
      %p470 = pneg %p299
      %p471 = pneg %p296
      %p472 = pneg %p320
      %p473 = pneg %p317
      %p474 = pneg %p341
      %p475 = pneg %p338
      %p476 = pneg %p367
      %p477 = pneg %p364
      %p478 = scmp.lt.s32.totalorder %s26, 1
      %s479 = scalar_select %p478, %s26, 1
      %s480 = smul.addr %s479, 4
      %s481 = scalar_lea.vmem %s15, %s480
      %p482 = scmp.lt.s32.totalorder %s26, 1
      %s483 = scalar_select %p482, %s26, 1
      %s484 = smul.addr %s483, 4
      %s485 = scalar_lea.vmem %s0, %s484
      %p486 = scmp.lt.s32.totalorder %s26, 1
      %s487 = scalar_select %p486, %s26, 1
      %s488 = smul.addr %s487, 4
      %s489 = scalar_lea.vmem %s15, %s488
      %v491 = vld [vmem:[%s485] sm:$0xf]
      %v492 = vunpack.c.l.bf16 %v491
      %v493 = vld [vmem:[%s1] sm:$0xf]
      %v494 = vld [vmem:[%s1 + $0x4] sm:$0xf]
      %v495 = vld [vmem:[%s1 + $0x8] sm:$0xf]
      %v496 = vld [vmem:[%s1 + $0xc] sm:$0xf]
      %v497 = vld [vmem:[%s2] sm:$0x1]
      %v499 = vlaneseq
      %v500 = vshrl.u32 %v499, 7
      %v501 = vsub.s32 0, %v500
      %v502 = vrot.slane %v497, %v501
      %v508 = vunpack.c.l.b16 %v493
      %v509 = vunpack.c.l.b16 %v494
      %v510 = vunpack.c.l.b16 %v495
      %v511 = vunpack.c.l.b16 %v496
      %v512 = vpack.c.b16 %v509, %v508
      %v513 = vpack.c.b16 %v511, %v510
      %vm516 = vcmask 261120
      %v518 = vsel %vm516, %v491, 0
      %520 = vmatprep.subr.bf16.mxu0 0
      %521 = vmatpush1.bf16.msra.mxu0 %v512
      %522 = vmatprep.subr.bf16.mxu0 0
      %523 = vmatpush1.bf16.msra.mxu0 %v513
      %524 = vmatprep.subr.bf16.mxu0 0
      %525 = vmatpush1.bf16.msra.mxu0 0
      %526 = vmatprep.subr.bf16.mxu0 0
      %527 = vmatpush1.bf16.msra.mxu0 0
      %528 = vmatprep.subr.bf16.mxu0 0
      %529 = vmatpush1.bf16.msra.mxu0 0
      %530 = vmatprep.subr.bf16.mxu0 0
      %531 = vmatpush1.bf16.msra.mxu0 0
      %532 = vmatprep.subr.bf16.mxu0 0
      %533 = vmatpush1.bf16.msra.mxu0 0
      %534 = vmatprep.subr.bf16.mxu0 0
      %535 = vmatpush1.bf16.msra.mxu0 0
      %536 = vmatprep.subr.bf16.mxu0 0
      %537 = vmatpush1.bf16.msra.mxu0 0
      %538 = vmatprep.subr.bf16.mxu0 0
      %539 = vmatpush1.bf16.msra.mxu0 0
      %540 = vmatprep.subr.bf16.mxu0 0
      %541 = vmatpush1.bf16.msra.mxu0 0
      %542 = vmatprep.subr.bf16.mxu0 0
      %543 = vmatpush1.bf16.msra.mxu0 0
      %544 = vmatprep.subr.bf16.mxu0 0
      %545 = vmatpush1.bf16.msra.mxu0 0
      %546 = vmatprep.subr.bf16.mxu0 0
      %547 = vmatpush1.bf16.msra.mxu0 0
      %548 = vmatprep.subr.bf16.mxu0 0
      %549 = vmatpush1.bf16.msra.mxu0 0
      %550 = vmatprep.subr.bf16.mxu0 0
      %551 = vmatpush1.bf16.msra.mxu0 0
      %552 = vmatprep.mubr.bf16.mxu0 0
      %553 = vmatmul.mubr.bf16.gmra.mrb[0].mxu0 %v518
      %v554 = vpop.f32.mrb[0].mxu0
      %v555 = vadd.f32 %v502, %v554
      %v556 = vpop.f32.mrb[0].mxu0
      %v557 = vpop.f32.mrb[0].mxu0
      %v558 = vpop.f32.mrb[0].mxu0
      %559 = vdwg.mxu0
      %v560 = vpack.c.bf16 %v555, %v555
      %562 = vrot.lane.b32.xlu0 %v560, 96
      %v563 = vpop.permute.xlu0 %562
      %vm564 = vcmask 64512
      %v566 = vsel %vm564, %v560, 0
      %v569 = vsel %vm564, %v563, 0
      %571 = vmatprep.subr.bf16.mxu0 0
      %572 = vmatpush1.bf16.xpose.msra.mxu0 %v569
      %573 = vmatprep.subr.bf16.mxu0 0
      %574 = vmatpush1.bf16.xpose.msra.mxu0 0
      %575 = vmatprep.subr.bf16.mxu0 0
      %576 = vmatpush1.bf16.xpose.msra.mxu0 0
      %577 = vmatprep.subr.bf16.mxu0 0
      %578 = vmatpush1.bf16.xpose.msra.mxu0 0
      %579 = vmatprep.subr.bf16.mxu0 0
      %580 = vmatpush1.bf16.xpose.msra.mxu0 0
      %581 = vmatprep.subr.bf16.mxu0 0
      %582 = vmatpush1.bf16.xpose.msra.mxu0 0
      %583 = vmatprep.subr.bf16.mxu0 0
      %584 = vmatpush1.bf16.xpose.msra.mxu0 0
      %585 = vmatprep.subr.bf16.mxu0 0
      %586 = vmatpush1.bf16.xpose.msra.mxu0 0
      %587 = vmatprep.subr.bf16.mxu0 0
      %588 = vmatpush1.bf16.xpose.msra.mxu0 0
      %589 = vmatprep.subr.bf16.mxu0 0
      %590 = vmatpush1.bf16.xpose.msra.mxu0 0
      %591 = vmatprep.subr.bf16.mxu0 0
      %592 = vmatpush1.bf16.xpose.msra.mxu0 0
      %593 = vmatprep.subr.bf16.mxu0 0
      %594 = vmatpush1.bf16.xpose.msra.mxu0 0
      %595 = vmatprep.subr.bf16.mxu0 0
      %596 = vmatpush1.bf16.xpose.msra.mxu0 0
      %597 = vmatprep.subr.bf16.mxu0 0
      %598 = vmatpush1.bf16.xpose.msra.mxu0 0
      %599 = vmatprep.subr.bf16.mxu0 0
      %600 = vmatpush1.bf16.xpose.msra.mxu0 0
      %601 = vmatprep.subr.bf16.mxu0 0
      %602 = vmatpush1.bf16.xpose.msra.mxu0 0
      %603 = vmatprep.mubr.bf16.mxu0 0
      %604 = vmatmul.mubr.bf16.gmra.mrb[0].mxu0 %v566
      %v605 = vpop.f32.mrb[0].mxu0
      %v606 = vadd.f32 0.0, %v605
      %v607 = vpop.f32.mrb[0].mxu0
      %v608 = vpop.f32.mrb[0].mxu0
      %v609 = vpop.f32.mrb[0].mxu0
      %610 = vdwg.mxu0
      %v611 = vsel %vm564, %v606, -inf
      %612 = vmax.xlane.f32.xlu0 %v611
      %v613 = vpop.xlane.xlu0 %612
      %v614 = vsub.f32 %v606, %v613
      %v615 = vmul.f32 %v614, 1.442695
      %v616 = vpow.pop %v615
      %v617 = vsel %vm564, %v616, 0.0
      %618 = vadd.xlane.f32.xlu0 %v617
      %v619 = vpop.xlane.xlu0 %618
      %v620 = vpack.c.bf16 %v616, %v616
      %621 = vrot.lane.b32.xlu0 %v560, 64
      %v622 = vpop.permute.xlu0 %621
      %v624 = vsel %vm564, %v620, 0
      %vm626 = vcmask 1043456
      %v628 = vsel %vm626, %v622, 0
      %630 = vmatprep.subr.bf16.mxu0 0
      %631 = vmatpush1.bf16.msra.mxu0 %v628
      %632 = vmatprep.subr.bf16.mxu0 0
      %633 = vmatpush1.bf16.msra.mxu0 0
      %634 = vmatprep.subr.bf16.mxu0 0
      %635 = vmatpush1.bf16.msra.mxu0 0
      %636 = vmatprep.subr.bf16.mxu0 0
      %637 = vmatpush1.bf16.msra.mxu0 0
      %638 = vmatprep.subr.bf16.mxu0 0
      %639 = vmatpush1.bf16.msra.mxu0 0
      %640 = vmatprep.subr.bf16.mxu0 0
      %641 = vmatpush1.bf16.msra.mxu0 0
      %642 = vmatprep.subr.bf16.mxu0 0
      %643 = vmatpush1.bf16.msra.mxu0 0
      %644 = vmatprep.subr.bf16.mxu0 0
      %645 = vmatpush1.bf16.msra.mxu0 0
      %646 = vmatprep.subr.bf16.mxu0 0
      %647 = vmatpush1.bf16.msra.mxu0 0
      %648 = vmatprep.subr.bf16.mxu0 0
      %649 = vmatpush1.bf16.msra.mxu0 0
      %650 = vmatprep.subr.bf16.mxu0 0
      %651 = vmatpush1.bf16.msra.mxu0 0
      %652 = vmatprep.subr.bf16.mxu0 0
      %653 = vmatpush1.bf16.msra.mxu0 0
      %654 = vmatprep.subr.bf16.mxu0 0
      %655 = vmatpush1.bf16.msra.mxu0 0
      %656 = vmatprep.subr.bf16.mxu0 0
      %657 = vmatpush1.bf16.msra.mxu0 0
      %658 = vmatprep.subr.bf16.mxu0 0
      %659 = vmatpush1.bf16.msra.mxu0 0
      %660 = vmatprep.subr.bf16.mxu0 0
      %661 = vmatpush1.bf16.msra.mxu0 0
      %662 = vmatprep.mubr.bf16.mxu0 0
      %663 = vmatmul.mubr.bf16.gmra.mrb[0].mxu0 %v624
      %v664 = vpop.f32.mrb[0].mxu0
      %v665 = vadd.f32 0.0, %v664
      %v666 = vpop.f32.mrb[0].mxu0
      %v667 = vpop.f32.mrb[0].mxu0
      %v668 = vpop.f32.mrb[0].mxu0
      %669 = vdwg.mxu0
      %v670 = vrcp.pop %v619
      %v671 = vmul.f32 %v665, %v670
      %672 = vrot.lane.b32.xlu0 %v560, 120
      %v673 = vpop.permute.xlu0 %672
      %674 = vrot.lane.b32.xlu0 %v560, 88
      %v675 = vpop.permute.xlu0 %674
      %v677 = vsel %vm564, %v673, 0
      %v680 = vsel %vm564, %v675, 0
      %682 = vmatprep.subr.bf16.mxu0 0
      %683 = vmatpush1.bf16.xpose.msra.mxu0 %v680
      %684 = vmatprep.subr.bf16.mxu0 0
      %685 = vmatpush1.bf16.xpose.msra.mxu0 0
      %686 = vmatprep.subr.bf16.mxu0 0
      %687 = vmatpush1.bf16.xpose.msra.mxu0 0
      %688 = vmatprep.subr.bf16.mxu0 0
      %689 = vmatpush1.bf16.xpose.msra.mxu0 0
      %690 = vmatprep.subr.bf16.mxu0 0
      %691 = vmatpush1.bf16.xpose.msra.mxu0 0
      %692 = vmatprep.subr.bf16.mxu0 0
      %693 = vmatpush1.bf16.xpose.msra.mxu0 0
      %694 = vmatprep.subr.bf16.mxu0 0
      %695 = vmatpush1.bf16.xpose.msra.mxu0 0
      %696 = vmatprep.subr.bf16.mxu0 0
      %697 = vmatpush1.bf16.xpose.msra.mxu0 0
      %698 = vmatprep.subr.bf16.mxu0 0
      %699 = vmatpush1.bf16.xpose.msra.mxu0 0
      %700 = vmatprep.subr.bf16.mxu0 0
      %701 = vmatpush1.bf16.xpose.msra.mxu0 0
      %702 = vmatprep.subr.bf16.mxu0 0
      %703 = vmatpush1.bf16.xpose.msra.mxu0 0
      %704 = vmatprep.subr.bf16.mxu0 0
      %705 = vmatpush1.bf16.xpose.msra.mxu0 0
      %706 = vmatprep.subr.bf16.mxu0 0
      %707 = vmatpush1.bf16.xpose.msra.mxu0 0
      %708 = vmatprep.subr.bf16.mxu0 0
      %709 = vmatpush1.bf16.xpose.msra.mxu0 0
      %710 = vmatprep.subr.bf16.mxu0 0
      %711 = vmatpush1.bf16.xpose.msra.mxu0 0
      %712 = vmatprep.subr.bf16.mxu0 0
      %713 = vmatpush1.bf16.xpose.msra.mxu0 0
      %714 = vmatprep.mubr.bf16.mxu0 0
      %715 = vmatmul.mubr.bf16.gmra.mrb[0].mxu0 %v677
      %v716 = vpop.f32.mrb[0].mxu0
      %v717 = vadd.f32 0.0, %v716
      %v718 = vpop.f32.mrb[0].mxu0
      %v719 = vpop.f32.mrb[0].mxu0
      %v720 = vpop.f32.mrb[0].mxu0
      %721 = vdwg.mxu0
      %v722 = vsel %vm564, %v717, -inf
      %723 = vmax.xlane.f32.xlu0 %v722
      %v724 = vpop.xlane.xlu0 %723
      %v725 = vsub.f32 %v717, %v724
      %v726 = vmul.f32 %v725, 1.442695
      %v727 = vpow.pop %v726
      %v728 = vsel %vm564, %v727, 0.0
      %729 = vadd.xlane.f32.xlu0 %v728
      %v730 = vpop.xlane.xlu0 %729
      %v731 = vpack.c.bf16 %v727, %v727
      %732 = vrot.lane.b32.xlu0 %v560, 56
      %v733 = vpop.permute.xlu0 %732
      %v735 = vsel %vm564, %v731, 0
      %v738 = vsel %vm626, %v733, 0
      %740 = vmatprep.subr.bf16.mxu0 0
      %741 = vmatpush1.bf16.msra.mxu0 %v738
      %742 = vmatprep.subr.bf16.mxu0 0
      %743 = vmatpush1.bf16.msra.mxu0 0
      %744 = vmatprep.subr.bf16.mxu0 0
      %745 = vmatpush1.bf16.msra.mxu0 0
      %746 = vmatprep.subr.bf16.mxu0 0
      %747 = vmatpush1.bf16.msra.mxu0 0
      %748 = vmatprep.subr.bf16.mxu0 0
      %749 = vmatpush1.bf16.msra.mxu0 0
      %750 = vmatprep.subr.bf16.mxu0 0
      %751 = vmatpush1.bf16.msra.mxu0 0
      %752 = vmatprep.subr.bf16.mxu0 0
      %753 = vmatpush1.bf16.msra.mxu0 0
      %754 = vmatprep.subr.bf16.mxu0 0
      %755 = vmatpush1.bf16.msra.mxu0 0
      %756 = vmatprep.subr.bf16.mxu0 0
      %757 = vmatpush1.bf16.msra.mxu0 0
      %758 = vmatprep.subr.bf16.mxu0 0
      %759 = vmatpush1.bf16.msra.mxu0 0
      %760 = vmatprep.subr.bf16.mxu0 0
      %761 = vmatpush1.bf16.msra.mxu0 0
      %762 = vmatprep.subr.bf16.mxu0 0
      %763 = vmatpush1.bf16.msra.mxu0 0
      %764 = vmatprep.subr.bf16.mxu0 0
      %765 = vmatpush1.bf16.msra.mxu0 0
      %766 = vmatprep.subr.bf16.mxu0 0
      %767 = vmatpush1.bf16.msra.mxu0 0
      %768 = vmatprep.subr.bf16.mxu0 0
      %769 = vmatpush1.bf16.msra.mxu0 0
      %770 = vmatprep.subr.bf16.mxu0 0
      %771 = vmatpush1.bf16.msra.mxu0 0
      %772 = vmatprep.mubr.bf16.mxu0 0
      %773 = vmatmul.mubr.bf16.gmra.mrb[0].mxu0 %v735
      %v774 = vpop.f32.mrb[0].mxu0
      %v775 = vadd.f32 0.0, %v774
      %v776 = vpop.f32.mrb[0].mxu0
      %v777 = vpop.f32.mrb[0].mxu0
      %v778 = vpop.f32.mrb[0].mxu0
      %779 = vdwg.mxu0
      %v780 = vrcp.pop %v730
      %v781 = vmul.f32 %v775, %v780
      %782 = vrot.lane.b32.xlu0 %v560, 112
      %v783 = vpop.permute.xlu0 %782
      %784 = vrot.lane.b32.xlu0 %v560, 80
      %v785 = vpop.permute.xlu0 %784
      %v787 = vsel %vm564, %v783, 0
      %v790 = vsel %vm564, %v785, 0
      %792 = vmatprep.subr.bf16.mxu0 0
      %793 = vmatpush1.bf16.xpose.msra.mxu0 %v790
      %794 = vmatprep.subr.bf16.mxu0 0
      %795 = vmatpush1.bf16.xpose.msra.mxu0 0
      %796 = vmatprep.subr.bf16.mxu0 0
      %797 = vmatpush1.bf16.xpose.msra.mxu0 0
      %798 = vmatprep.subr.bf16.mxu0 0
      %799 = vmatpush1.bf16.xpose.msra.mxu0 0
      %800 = vmatprep.subr.bf16.mxu0 0
      %801 = vmatpush1.bf16.xpose.msra.mxu0 0
      %802 = vmatprep.subr.bf16.mxu0 0
      %803 = vmatpush1.bf16.xpose.msra.mxu0 0
      %804 = vmatprep.subr.bf16.mxu0 0
      %805 = vmatpush1.bf16.xpose.msra.mxu0 0
      %806 = vmatprep.subr.bf16.mxu0 0
      %807 = vmatpush1.bf16.xpose.msra.mxu0 0
      %808 = vmatprep.subr.bf16.mxu0 0
      %809 = vmatpush1.bf16.xpose.msra.mxu0 0
      %810 = vmatprep.subr.bf16.mxu0 0
      %811 = vmatpush1.bf16.xpose.msra.mxu0 0
      %812 = vmatprep.subr.bf16.mxu0 0
      %813 = vmatpush1.bf16.xpose.msra.mxu0 0
      %814 = vmatprep.subr.bf16.mxu0 0
      %815 = vmatpush1.bf16.xpose.msra.mxu0 0
      %816 = vmatprep.subr.bf16.mxu0 0
      %817 = vmatpush1.bf16.xpose.msra.mxu0 0
      %818 = vmatprep.subr.bf16.mxu0 0
      %819 = vmatpush1.bf16.xpose.msra.mxu0 0
      %820 = vmatprep.subr.bf16.mxu0 0
      %821 = vmatpush1.bf16.xpose.msra.mxu0 0
      %822 = vmatprep.subr.bf16.mxu0 0
      %823 = vmatpush1.bf16.xpose.msra.mxu0 0
      %824 = vmatprep.mubr.bf16.mxu0 0
      %825 = vmatmul.mubr.bf16.gmra.mrb[0].mxu0 %v787
      %v826 = vpop.f32.mrb[0].mxu0
      %v827 = vadd.f32 0.0, %v826
      %v828 = vpop.f32.mrb[0].mxu0
      %v829 = vpop.f32.mrb[0].mxu0
      %v830 = vpop.f32.mrb[0].mxu0
      %831 = vdwg.mxu0
      %v832 = vsel %vm564, %v827, -inf
      %833 = vmax.xlane.f32.xlu0 %v832
      %v834 = vpop.xlane.xlu0 %833
      %v835 = vsub.f32 %v827, %v834
      %v836 = vmul.f32 %v835, 1.442695
      %v837 = vpow.pop %v836
      %v838 = vsel %vm564, %v837, 0.0
      %839 = vadd.xlane.f32.xlu0 %v838
      %v840 = vpop.xlane.xlu0 %839
      %v841 = vpack.c.bf16 %v837, %v837
      %842 = vrot.lane.b32.xlu0 %v560, 48
      %v843 = vpop.permute.xlu0 %842
      %v845 = vsel %vm564, %v841, 0
      %v848 = vsel %vm626, %v843, 0
      %850 = vmatprep.subr.bf16.mxu0 0
      %851 = vmatpush1.bf16.msra.mxu0 %v848
      %852 = vmatprep.subr.bf16.mxu0 0
      %853 = vmatpush1.bf16.msra.mxu0 0
      %854 = vmatprep.subr.bf16.mxu0 0
      %855 = vmatpush1.bf16.msra.mxu0 0
      %856 = vmatprep.subr.bf16.mxu0 0
      %857 = vmatpush1.bf16.msra.mxu0 0
      %858 = vmatprep.subr.bf16.mxu0 0
      %859 = vmatpush1.bf16.msra.mxu0 0
      %860 = vmatprep.subr.bf16.mxu0 0
      %861 = vmatpush1.bf16.msra.mxu0 0
      %862 = vmatprep.subr.bf16.mxu0 0
      %863 = vmatpush1.bf16.msra.mxu0 0
      %864 = vmatprep.subr.bf16.mxu0 0
      %865 = vmatpush1.bf16.msra.mxu0 0
      %866 = vmatprep.subr.bf16.mxu0 0
      %867 = vmatpush1.bf16.msra.mxu0 0
      %868 = vmatprep.subr.bf16.mxu0 0
      %869 = vmatpush1.bf16.msra.mxu0 0
      %870 = vmatprep.subr.bf16.mxu0 0
      %871 = vmatpush1.bf16.msra.mxu0 0
      %872 = vmatprep.subr.bf16.mxu0 0
      %873 = vmatpush1.bf16.msra.mxu0 0
      %874 = vmatprep.subr.bf16.mxu0 0
      %875 = vmatpush1.bf16.msra.mxu0 0
      %876 = vmatprep.subr.bf16.mxu0 0
      %877 = vmatpush1.bf16.msra.mxu0 0
      %878 = vmatprep.subr.bf16.mxu0 0
      %879 = vmatpush1.bf16.msra.mxu0 0
      %880 = vmatprep.subr.bf16.mxu0 0
      %881 = vmatpush1.bf16.msra.mxu0 0
      %882 = vmatprep.mubr.bf16.mxu0 0
      %883 = vmatmul.mubr.bf16.gmra.mrb[0].mxu0 %v845
      %v884 = vpop.f32.mrb[0].mxu0
      %v885 = vadd.f32 0.0, %v884
      %v886 = vpop.f32.mrb[0].mxu0
      %v887 = vpop.f32.mrb[0].mxu0
      %v888 = vpop.f32.mrb[0].mxu0
      %889 = vdwg.mxu0
      %v890 = vrcp.pop %v840
      %v891 = vmul.f32 %v885, %v890
      %892 = vrot.lane.b32.xlu0 %v560, 104
      %v893 = vpop.permute.xlu0 %892
      %894 = vrot.lane.b32.xlu0 %v560, 72
      %v895 = vpop.permute.xlu0 %894
      %v897 = vsel %vm564, %v893, 0
      %v900 = vsel %vm564, %v895, 0
      %902 = vmatprep.subr.bf16.mxu0 0
      %903 = vmatpush1.bf16.xpose.msra.mxu0 %v900
      %904 = vmatprep.subr.bf16.mxu0 0
      %905 = vmatpush1.bf16.xpose.msra.mxu0 0
      %906 = vmatprep.subr.bf16.mxu0 0
      %907 = vmatpush1.bf16.xpose.msra.mxu0 0
      %908 = vmatprep.subr.bf16.mxu0 0
      %909 = vmatpush1.bf16.xpose.msra.mxu0 0
      %910 = vmatprep.subr.bf16.mxu0 0
      %911 = vmatpush1.bf16.xpose.msra.mxu0 0
      %912 = vmatprep.subr.bf16.mxu0 0
      %913 = vmatpush1.bf16.xpose.msra.mxu0 0
      %914 = vmatprep.subr.bf16.mxu0 0
      %915 = vmatpush1.bf16.xpose.msra.mxu0 0
      %916 = vmatprep.subr.bf16.mxu0 0
      %917 = vmatpush1.bf16.xpose.msra.mxu0 0
      %918 = vmatprep.subr.bf16.mxu0 0
      %919 = vmatpush1.bf16.xpose.msra.mxu0 0
      %920 = vmatprep.subr.bf16.mxu0 0
      %921 = vmatpush1.bf16.xpose.msra.mxu0 0
      %922 = vmatprep.subr.bf16.mxu0 0
      %923 = vmatpush1.bf16.xpose.msra.mxu0 0
      %924 = vmatprep.subr.bf16.mxu0 0
      %925 = vmatpush1.bf16.xpose.msra.mxu0 0
      %926 = vmatprep.subr.bf16.mxu0 0
      %927 = vmatpush1.bf16.xpose.msra.mxu0 0
      %928 = vmatprep.subr.bf16.mxu0 0
      %929 = vmatpush1.bf16.xpose.msra.mxu0 0
      %930 = vmatprep.subr.bf16.mxu0 0
      %931 = vmatpush1.bf16.xpose.msra.mxu0 0
      %932 = vmatprep.subr.bf16.mxu0 0
      %933 = vmatpush1.bf16.xpose.msra.mxu0 0
      %934 = vmatprep.mubr.bf16.mxu0 0
      %935 = vmatmul.mubr.bf16.gmra.mrb[0].mxu0 %v897
      %v936 = vpop.f32.mrb[0].mxu0
      %v937 = vadd.f32 0.0, %v936
      %v938 = vpop.f32.mrb[0].mxu0
      %v939 = vpop.f32.mrb[0].mxu0
      %v940 = vpop.f32.mrb[0].mxu0
      %941 = vdwg.mxu0
      %v942 = vsel %vm564, %v937, -inf
      %943 = vmax.xlane.f32.xlu0 %v942
      %v944 = vpop.xlane.xlu0 %943
      %v945 = vsub.f32 %v937, %v944
      %v946 = vmul.f32 %v945, 1.442695
      %v947 = vpow.pop %v946
      %v948 = vsel %vm564, %v947, 0.0
      %949 = vadd.xlane.f32.xlu0 %v948
      %v950 = vpop.xlane.xlu0 %949
      %v951 = vpack.c.bf16 %v947, %v947
      %952 = vrot.lane.b32.xlu0 %v560, 40
      %v953 = vpop.permute.xlu0 %952
      %v955 = vsel %vm564, %v951, 0
      %v958 = vsel %vm626, %v953, 0
      %960 = vmatprep.subr.bf16.mxu0 0
      %961 = vmatpush1.bf16.msra.mxu0 %v958
      %962 = vmatprep.subr.bf16.mxu0 0
      %963 = vmatpush1.bf16.msra.mxu0 0
      %964 = vmatprep.subr.bf16.mxu0 0
      %965 = vmatpush1.bf16.msra.mxu0 0
      %966 = vmatprep.subr.bf16.mxu0 0
      %967 = vmatpush1.bf16.msra.mxu0 0
      %968 = vmatprep.subr.bf16.mxu0 0
      %969 = vmatpush1.bf16.msra.mxu0 0
      %970 = vmatprep.subr.bf16.mxu0 0
      %971 = vmatpush1.bf16.msra.mxu0 0
      %972 = vmatprep.subr.bf16.mxu0 0
      %973 = vmatpush1.bf16.msra.mxu0 0
      %974 = vmatprep.subr.bf16.mxu0 0
      %975 = vmatpush1.bf16.msra.mxu0 0
      %976 = vmatprep.subr.bf16.mxu0 0
      %977 = vmatpush1.bf16.msra.mxu0 0
      %978 = vmatprep.subr.bf16.mxu0 0
      %979 = vmatpush1.bf16.msra.mxu0 0
      %980 = vmatprep.subr.bf16.mxu0 0
      %981 = vmatpush1.bf16.msra.mxu0 0
      %982 = vmatprep.subr.bf16.mxu0 0
      %983 = vmatpush1.bf16.msra.mxu0 0
      %984 = vmatprep.subr.bf16.mxu0 0
      %985 = vmatpush1.bf16.msra.mxu0 0
      %986 = vmatprep.subr.bf16.mxu0 0
      %987 = vmatpush1.bf16.msra.mxu0 0
      %988 = vmatprep.subr.bf16.mxu0 0
      %989 = vmatpush1.bf16.msra.mxu0 0
      %990 = vmatprep.subr.bf16.mxu0 0
      %991 = vmatpush1.bf16.msra.mxu0 0
      %992 = vmatprep.mubr.bf16.mxu0 0
      %993 = vmatmul.mubr.bf16.gmra.mrb[0].mxu0 %v955
      %v994 = vpop.f32.mrb[0].mxu0
      %v995 = vadd.f32 0.0, %v994
      %v996 = vpop.f32.mrb[0].mxu0
      %v997 = vpop.f32.mrb[0].mxu0
      %v998 = vpop.f32.mrb[0].mxu0
      %999 = vdwg.mxu0
      %v1000 = vrcp.pop %v950
      %v1001 = vmul.f32 %v995, %v1000
      %1003 = vrot.lane.b32.xlu0 %v781, 8
      %v1004 = vpop.permute.xlu0 %1003
      %1007 = vrot.lane.b32.xlu0 %v891, 16
      %v1008 = vpop.permute.xlu0 %1007
      %1011 = vrot.lane.b32.xlu0 %v1001, 24
      %v1012 = vpop.permute.xlu0 %1011
      %v1014 = vsel %vm564, %v671, %v1004
      %vm1015 = vcmask 130048
      %v1016 = vsel %vm1015, %v1014, %v1008
      %vm1017 = vcmask 195584
      %v1018 = vsel %vm1017, %v1016, %v1012
      %v1019 = vld [vmem:[%s3] sm:$0xf]
      %v1020 = vld [vmem:[%s3 + $0x4] sm:$0xf]
      %v1021 = vld [vmem:[%s3 + $0x8] sm:$0xf]
      %v1022 = vld [vmem:[%s3 + $0xc] sm:$0xf]
      %v1023 = vpack.c.bf16 %v1018, %v1018
      %v1024 = vld [vmem:[%s4] sm:$0x1]
      %v1026 = vlaneseq
      %v1027 = vshrl.u32 %v1026, 7
      %v1028 = vsub.s32 0, %v1027
      %v1029 = vrot.slane %v1024, %v1028
      %v1035 = vunpack.c.l.b16 %v1019
      %v1036 = vunpack.c.l.b16 %v1020
      %v1037 = vunpack.c.l.b16 %v1021
      %v1038 = vunpack.c.l.b16 %v1022
      %v1039 = vpack.c.b16 %v1036, %v1035
      %v1040 = vpack.c.b16 %v1038, %v1037
      %v1044 = vsel %vm516, %v1023, 0
      %1046 = vmatprep.subr.bf16.mxu0 0
      %1047 = vmatpush1.bf16.msra.mxu0 %v1039
      %1048 = vmatprep.subr.bf16.mxu0 0
      %1049 = vmatpush1.bf16.msra.mxu0 %v1040
      %1050 = vmatprep.subr.bf16.mxu0 0
      %1051 = vmatpush1.bf16.msra.mxu0 0
      %1052 = vmatprep.subr.bf16.mxu0 0
      %1053 = vmatpush1.bf16.msra.mxu0 0
      %1054 = vmatprep.subr.bf16.mxu0 0
      %1055 = vmatpush1.bf16.msra.mxu0 0
      %1056 = vmatprep.subr.bf16.mxu0 0
      %1057 = vmatpush1.bf16.msra.mxu0 0
      %1058 = vmatprep.subr.bf16.mxu0 0
      %1059 = vmatpush1.bf16.msra.mxu0 0
      %1060 = vmatprep.subr.bf16.mxu0 0
      %1061 = vmatpush1.bf16.msra.mxu0 0
      %1062 = vmatprep.subr.bf16.mxu0 0
      %1063 = vmatpush1.bf16.msra.mxu0 0
      %1064 = vmatprep.subr.bf16.mxu0 0
      %1065 = vmatpush1.bf16.msra.mxu0 0
      %1066 = vmatprep.subr.bf16.mxu0 0
      %1067 = vmatpush1.bf16.msra.mxu0 0
      %1068 = vmatprep.subr.bf16.mxu0 0
      %1069 = vmatpush1.bf16.msra.mxu0 0
      %1070 = vmatprep.subr.bf16.mxu0 0
      %1071 = vmatpush1.bf16.msra.mxu0 0
      %1072 = vmatprep.subr.bf16.mxu0 0
      %1073 = vmatpush1.bf16.msra.mxu0 0
      %1074 = vmatprep.subr.bf16.mxu0 0
      %1075 = vmatpush1.bf16.msra.mxu0 0
      %1076 = vmatprep.subr.bf16.mxu0 0
      %1077 = vmatpush1.bf16.msra.mxu0 0
      %1078 = vmatprep.mubr.bf16.mxu0 0
      %1079 = vmatmul.mubr.bf16.gmra.mrb[0].mxu0 %v1044
      %v1080 = vpop.f32.mrb[0].mxu0
      %v1081 = vadd.f32 %v1029, %v1080
      %v1082 = vpop.f32.mrb[0].mxu0
      %v1083 = vpop.f32.mrb[0].mxu0
      %v1084 = vpop.f32.mrb[0].mxu0
      %1085 = vdwg.mxu0
      %v1086 = vadd.f32 %v492, %v1081
      %v1087 = vld [vmem:[%s5] sm:$0x1]
      %v1088 = vld [vmem:[%s6] sm:$0x1]
      %v1089 = vsel %vm516, %v1086, 0.0
      %1090 = vadd.xlane.f32.xlu0 %v1089
      %v1091 = vpop.xlane.xlu0 %1090
      %v1092 = vrcp.pop 32.0
      %v1093 = vmul.f32 %v1091, %v1092
      %v1094 = vsub.f32 %v1086, %v1093
      %v1095 = vmul.f32 %v1094, %v1094
      %v1096 = vsel %vm516, %v1095, 0.0
      %1097 = vadd.xlane.f32.xlu0 %v1096
      %v1098 = vpop.xlane.xlu0 %1097
      %v1099 = vmul.f32 %v1098, %v1092
      %v1100 = vadd.f32 %v1099, 1e-05
      %v1101 = vrsqrt.pop %v1100
      %v1102 = vmul.f32 %v1094, %v1101
      %v1104 = vlaneseq
      %v1105 = vshrl.u32 %v1104, 7
      %v1106 = vsub.s32 0, %v1105
      %v1107 = vrot.slane %v1087, %v1106
      %v1109 = vmul.f32 %v1102, %v1107
      %v1111 = vlaneseq
      %v1112 = vshrl.u32 %v1111, 7
      %v1113 = vsub.s32 0, %v1112
      %v1114 = vrot.slane %v1088, %v1113
      %v1116 = vadd.f32 %v1109, %v1114
      %v1117 = vld [vmem:[%s7] sm:$0xf]
      %v1118 = vld [vmem:[%s7 + $0x4] sm:$0xf]
      %v1119 = vld [vmem:[%s7 + $0x8] sm:$0xf]
      %v1120 = vld [vmem:[%s7 + $0xc] sm:$0xf]
      %v1121 = vpack.c.bf16 %v1116, %v1116
      %v1122 = vld [vmem:[%s8] sm:$0x1]
      %v1124 = vlaneseq
      %v1125 = vshrl.u32 %v1124, 7
      %v1126 = vsub.s32 0, %v1125
      %v1127 = vrot.slane %v1122, %v1126
      %v1133 = vunpack.c.l.b16 %v1117
      %v1134 = vunpack.c.l.b16 %v1118
      %v1135 = vunpack.c.l.b16 %v1119
      %v1136 = vunpack.c.l.b16 %v1120
      %v1137 = vpack.c.b16 %v1134, %v1133
      %v1138 = vpack.c.b16 %v1136, %v1135
      %v1142 = vsel %vm516, %v1121, 0
      %1144 = vmatprep.subr.bf16.mxu0 0
      %1145 = vmatpush1.bf16.msra.mxu0 %v1137
      %1146 = vmatprep.subr.bf16.mxu0 0
      %1147 = vmatpush1.bf16.msra.mxu0 %v1138
      %1148 = vmatprep.subr.bf16.mxu0 0
      %1149 = vmatpush1.bf16.msra.mxu0 0
      %1150 = vmatprep.subr.bf16.mxu0 0
      %1151 = vmatpush1.bf16.msra.mxu0 0
      %1152 = vmatprep.subr.bf16.mxu0 0
      %1153 = vmatpush1.bf16.msra.mxu0 0
      %1154 = vmatprep.subr.bf16.mxu0 0
      %1155 = vmatpush1.bf16.msra.mxu0 0
      %1156 = vmatprep.subr.bf16.mxu0 0
      %1157 = vmatpush1.bf16.msra.mxu0 0
      %1158 = vmatprep.subr.bf16.mxu0 0
      %1159 = vmatpush1.bf16.msra.mxu0 0
      %1160 = vmatprep.subr.bf16.mxu0 0
      %1161 = vmatpush1.bf16.msra.mxu0 0
      %1162 = vmatprep.subr.bf16.mxu0 0
      %1163 = vmatpush1.bf16.msra.mxu0 0
      %1164 = vmatprep.subr.bf16.mxu0 0
      %1165 = vmatpush1.bf16.msra.mxu0 0
      %1166 = vmatprep.subr.bf16.mxu0 0
      %1167 = vmatpush1.bf16.msra.mxu0 0
      %1168 = vmatprep.subr.bf16.mxu0 0
      %1169 = vmatpush1.bf16.msra.mxu0 0
      %1170 = vmatprep.subr.bf16.mxu0 0
      %1171 = vmatpush1.bf16.msra.mxu0 0
      %1172 = vmatprep.subr.bf16.mxu0 0
      %1173 = vmatpush1.bf16.msra.mxu0 0
      %1174 = vmatprep.subr.bf16.mxu0 0
      %1175 = vmatpush1.bf16.msra.mxu0 0
      %1176 = vmatprep.mubr.bf16.mxu0 0
      %1177 = vmatmul.mubr.bf16.gmra.mrb[0].mxu0 %v1142
      %v1178 = vpop.f32.mrb[0].mxu0
      %v1179 = vadd.f32 %v1127, %v1178
      %v1180 = vpop.f32.mrb[0].mxu0
      %v1181 = vpop.f32.mrb[0].mxu0
      %v1182 = vpop.f32.mrb[0].mxu0
      %1183 = vdwg.mxu0
      %v1184 = vmul.f32 %v1179, 0.5
      %v1185 = vmul.f32 %v1179, 0.70710677
      %v1186 = verf.f32.pop %v1185
      %v1187 = vadd.f32 %v1186, 1.0
      %v1188 = vmul.f32 %v1184, %v1187
      %v1189 = vld [vmem:[%s9] sm:$0xf]
      %v1190 = vld [vmem:[%s9 + $0x4] sm:$0xf]
      %v1191 = vld [vmem:[%s9 + $0x8] sm:$0xf]
      %v1192 = vld [vmem:[%s9 + $0xc] sm:$0xf]
      %v1193 = vld [vmem:[%s9 + $0x10] sm:$0xf]
      %v1194 = vld [vmem:[%s9 + $0x14] sm:$0xf]
      %v1195 = vld [vmem:[%s9 + $0x18] sm:$0xf]
      %v1196 = vld [vmem:[%s9 + $0x1c] sm:$0xf]
      %v1197 = vpack.c.bf16 %v1188, %v1188
      %v1198 = vld [vmem:[%s10] sm:$0x1]
      %v1200 = vlaneseq
      %v1201 = vshrl.u32 %v1200, 7
      %v1202 = vsub.s32 0, %v1201
      %v1203 = vrot.slane %v1198, %v1202
      %v1213 = vunpack.c.l.b16 %v1189
      %v1214 = vunpack.c.l.b16 %v1190
      %v1215 = vunpack.c.l.b16 %v1191
      %v1216 = vunpack.c.l.b16 %v1192
      %v1217 = vunpack.c.l.b16 %v1193
      %v1218 = vunpack.c.l.b16 %v1194
      %v1219 = vunpack.c.l.b16 %v1195
      %v1220 = vunpack.c.l.b16 %v1196
      %v1221 = vpack.c.b16 %v1214, %v1213
      %v1222 = vpack.c.b16 %v1216, %v1215
      %v1223 = vpack.c.b16 %v1218, %v1217
      %v1224 = vpack.c.b16 %v1220, %v1219
      %vm1229 = vcmask 523264
      %v1231 = vsel %vm1229, %v1197, 0
      %1233 = vmatprep.subr.bf16.mxu0 0
      %1234 = vmatpush1.bf16.msra.mxu0 %v1221
      %1235 = vmatprep.subr.bf16.mxu0 0
      %1236 = vmatpush1.bf16.msra.mxu0 %v1222
      %1237 = vmatprep.subr.bf16.mxu0 0
      %1238 = vmatpush1.bf16.msra.mxu0 %v1223
      %1239 = vmatprep.subr.bf16.mxu0 0
      %1240 = vmatpush1.bf16.msra.mxu0 %v1224
      %1241 = vmatprep.subr.bf16.mxu0 0
      %1242 = vmatpush1.bf16.msra.mxu0 0
      %1243 = vmatprep.subr.bf16.mxu0 0
      %1244 = vmatpush1.bf16.msra.mxu0 0
      %1245 = vmatprep.subr.bf16.mxu0 0
      %1246 = vmatpush1.bf16.msra.mxu0 0
      %1247 = vmatprep.subr.bf16.mxu0 0
      %1248 = vmatpush1.bf16.msra.mxu0 0
      %1249 = vmatprep.subr.bf16.mxu0 0
      %1250 = vmatpush1.bf16.msra.mxu0 0
      %1251 = vmatprep.subr.bf16.mxu0 0
      %1252 = vmatpush1.bf16.msra.mxu0 0
      %1253 = vmatprep.subr.bf16.mxu0 0
      %1254 = vmatpush1.bf16.msra.mxu0 0
      %1255 = vmatprep.subr.bf16.mxu0 0
      %1256 = vmatpush1.bf16.msra.mxu0 0
      %1257 = vmatprep.subr.bf16.mxu0 0
      %1258 = vmatpush1.bf16.msra.mxu0 0
      %1259 = vmatprep.subr.bf16.mxu0 0
      %1260 = vmatpush1.bf16.msra.mxu0 0
      %1261 = vmatprep.subr.bf16.mxu0 0
      %1262 = vmatpush1.bf16.msra.mxu0 0
      %1263 = vmatprep.subr.bf16.mxu0 0
      %1264 = vmatpush1.bf16.msra.mxu0 0
      %1265 = vmatprep.mubr.bf16.mxu0 0
      %1266 = vmatmul.mubr.bf16.gmra.mrb[0].mxu0 %v1231
      %v1267 = vpop.f32.mrb[0].mxu0
      %v1268 = vadd.f32 %v1203, %v1267
      %v1269 = vpop.f32.mrb[0].mxu0
      %v1270 = vpop.f32.mrb[0].mxu0
      %v1271 = vpop.f32.mrb[0].mxu0
      %1272 = vdwg.mxu0
      %v1273 = vadd.f32 %v1116, %v1268
      %v1274 = vld [vmem:[%s11] sm:$0x1]
      %v1275 = vld [vmem:[%s12] sm:$0x1]
      %v1276 = vsel %vm516, %v1273, 0.0
      %1277 = vadd.xlane.f32.xlu0 %v1276
      %v1278 = vpop.xlane.xlu0 %1277
      %v1279 = vmul.f32 %v1278, %v1092
      %v1280 = vsub.f32 %v1273, %v1279
      %v1281 = vmul.f32 %v1280, %v1280
      %v1282 = vsel %vm516, %v1281, 0.0
      %1283 = vadd.xlane.f32.xlu0 %v1282
      %v1284 = vpop.xlane.xlu0 %1283
      %v1285 = vmul.f32 %v1284, %v1092
      %v1286 = vadd.f32 %v1285, 1e-05
      %v1287 = vrsqrt.pop %v1286
      %v1288 = vmul.f32 %v1280, %v1287
      %v1290 = vlaneseq
      %v1291 = vshrl.u32 %v1290, 7
      %v1292 = vsub.s32 0, %v1291
      %v1293 = vrot.slane %v1274, %v1292
      %v1295 = vmul.f32 %v1288, %v1293
      %v1297 = vlaneseq
      %v1298 = vshrl.u32 %v1297, 7
      %v1299 = vsub.s32 0, %v1298
      %v1300 = vrot.slane %v1275, %v1299
      %v1302 = vadd.f32 %v1295, %v1300
      %v1303 = vld [vmem:[%s13] sm:$0x1]
      %v1304 = vld [vmem:[%s14] sm:$0x1]
      %v1305 = vsel %vm516, %v1302, 0.0
      %1306 = vadd.xlane.f32.xlu0 %v1305
      %v1307 = vpop.xlane.xlu0 %1306
      %v1308 = vmul.f32 %v1307, %v1092
      %v1309 = vsub.f32 %v1302, %v1308
      %v1310 = vmul.f32 %v1309, %v1309
      %v1311 = vsel %vm516, %v1310, 0.0
      %1312 = vadd.xlane.f32.xlu0 %v1311
      %v1313 = vpop.xlane.xlu0 %1312
      %v1314 = vmul.f32 %v1313, %v1092
      %v1315 = vadd.f32 %v1314, 1e-05
      %v1316 = vrsqrt.pop %v1315
      %v1317 = vmul.f32 %v1309, %v1316
      %v1319 = vlaneseq
      %v1320 = vshrl.u32 %v1319, 7
      %v1321 = vsub.s32 0, %v1320
      %v1322 = vrot.slane %v1303, %v1321
      %v1324 = vmul.f32 %v1317, %v1322
      %v1326 = vlaneseq
      %v1327 = vshrl.u32 %v1326, 7
      %v1328 = vsub.s32 0, %v1327
      %v1329 = vrot.slane %v1304, %v1328
      %v1331 = vadd.f32 %v1324, %v1329
      %v1332 = vpack.c.bf16 %v1331, %v1331
      %vm1333 = vcmask 257024
      %1334 = vst.msk [vmem:[%s489] sm:$0xf] %vm1333, %v1332
      %p1335 = scmp.lt.s32.totalorder %s26, 1
      %s1336 = scalar_select %p1335, %s26, 1
      %s1337 = smul.addr %s1336, 4
      %s1338 = scalar_lea.vmem %s15, %s1337
      // Predicated region
      $region81: #{_lambda_.11} parent=79 // pred_check
        %p1339 = pneg %p364
      $region82: #{_lambda_.11} parent=79 // pred_check_branch
        %1341 = sbr.rel (%p1339) target = $region84
      $region83: #{_lambda_.11} parent=79 // pred_region
        _
      $region84: #{_lambda_.11} parent=79 // pred_fallthru
        _
    $region80: #{_lambda_.11} parent=5 // pred_fallthru
      _
    %p1342 = scmp.le.s32.totalorder 2, %s21
    // Predicated region
    $region85: #{_lambda_.11} parent=5 // pred_check
      %p1343 = pneg %p1342
    $region86: #{_lambda_.11} parent=5 // pred_check_branch
      %1345 = sbr.rel (%p1343) target = $region88
    $region87: #{_lambda_.11} parent=5 // pred_region
      %s1346 = ssub.s32 %s21, 2
      // Predicated region
      $region89: #{_lambda_.11} parent=87 // pred_check
        %p1347 = pneg %p370
      $region90: #{_lambda_.11} parent=87 // pred_check_branch
        %1349 = sbr.rel (%p1347) target = $region92
      $region91: #{_lambda_.11} parent=87 // pred_region
        %p1350 = scmp.lt.s32.totalorder %s27, 1
        %s1351 = scalar_select %p1350, %s27, 1
        %s1352 = smul.addr %s1351, 4
        %s1353 = scalar_lea.vmem %s15, %s1352
      $region92: #{_lambda_.11} parent=87 // pred_fallthru
        _
    $region88: #{_lambda_.11} parent=5 // pred_fallthru
      _
  $region6: #{_lambda_.11} parent=0 // loop_footer
    %s25 = sadd.s32 1, %s21
  $region7: #{_lambda_.11} parent=0 // loop_footer_branch
    %20 = sbr.rel target = $region3
  $region8: #{_lambda_.11} parent=0 // loop_exit
    _

// kernel: _lambda_.13
$region0: #{_lambda_.13}
  #allocation0 [shape = 'u32[]', space=smem, size = 0x4, offset = 0x4, fixed_abs, tag = 'smem constant byte address 0x4 - core index']
  #allocation1 [shape = 'u32[144,128]{1,0:T(1,128)}', space=vmem, size = 0x12000, scoped, tag = 'internal scratch']
  %s0 = inlined_call_operand.vmem [shape: bf16[2,16,32], index: 0, kind: input, shape index: {}]
  %s1 = inlined_call_operand.vmem [shape: f32[1,32], index: 1, kind: input, shape index: {}]
  %s2 = inlined_call_operand.vmem [shape: f32[1,32], index: 2, kind: input, shape index: {}]
  %s3 = inlined_call_operand.vmem [shape: bf16[32,128], index: 3, kind: input, shape index: {}]
  %s4 = inlined_call_operand.vmem [shape: f32[1,128], index: 4, kind: input, shape index: {}]
  %s5 = inlined_call_operand.vmem [shape: f32[2,16,128], index: 5, kind: output, shape index: {}]
  %s6 = sld [smem:[#allocation0]]
  $region53: #{_lambda_.13} parent=0
    _
  %s8 = ssub.s32 1, %s6
  %s9 = scalar_select 0, %s8, %s6
  loop: start=0, step=1, limit=4
  $region2: #{_lambda_.13} parent=0 // loop_pre_header
    _
  $region3: #{_lambda_.13} parent=0 // loop_header
    %s11 = sphi 0, %s15
    %p12 = scmp.ge.s32.totalorder %s11, 4
    %s21 = sphi 0, %s23
    %s24 = sphi 0, %s21
    %s25 = sphi 0, %s24
    %s41 = sphi 0, %s25
    %s45 = sphi 0, %s45
    %s47 = sphi 0, %s45
    %s48 = sphi 0, %s47
    %s62 = sphi 0, %s48
    %s66 = sphi 0, %s66
    %s68 = sphi 0, %s66
    %s69 = sphi 0, %s68
    %s83 = sphi 0, %s69
    %s87 = sphi 0, %s87
    %s89 = sphi 0, %s87
    %s90 = sphi 0, %s89
    %s104 = sphi 0, %s90
    %s108 = sphi 0, %s108
    %s110 = sphi 0, %s108
    %s111 = sphi 0, %s110
    %s125 = sphi 0, %s111
    %s131 = sphi 0, %s133
    %s134 = sphi 0, %s131
    %s135 = sphi 0, %s134
    %s151 = sphi 0, %s135
  $region4: #{_lambda_.13} parent=0 // loop_header_branch
    %14 = sbr.rel (%p12) target = $region8
  $region5: #{_lambda_.13} parent=0 // loop_body
    %s16 = ssub.s32 %s11, 1
    %s17 = ssub.s32 %s11, 2
    %s18 = sadd.s32 %s11, 1
    %s19 = ssub.s32 %s11, %s18
    %p20 = scmp.eq.s32.totalorder %s19, 0
    %s22 = sadd.s32 %s21, 1
    %s23 = scalar_select %p20, %s21, %s22
    %p26 = pneg %p20
    %p27 = scmp.eq.s32.totalorder %s11, 1
    %p28 = por %p26, %p27
    %p29 = scmp.ne.s32.totalorder %s21, %s24
    %p30 = scmp.eq.s32.totalorder %s11, 0
    %p31 = por %p29, %p30
    %p32 = scmp.ne.s32.totalorder %s21, %s24
    %p33 = scmp.eq.s32.totalorder %s16, 1
    %p34 = por %p32, %p33
    %p35 = scmp.ne.s32.totalorder %s24, %s25
    %p36 = scmp.eq.s32.totalorder %s16, 0
    %p37 = por %p35, %p36
    %p38 = scmp.ne.s32.totalorder %s24, %s25
    %p39 = scmp.eq.s32.totalorder %s17, 1
    %p40 = por %p38, %p39
    %p42 = scmp.ne.s32.totalorder %s25, %s41
    %p43 = scmp.eq.s32.totalorder %s17, 0
    %p44 = por %p42, %p43
    %s46 = sadd.s32 %s45, 1
    %p49 = scmp.eq.s32.totalorder %s11, 1
    %p50 = scmp.ne.s32.totalorder %s45, %s47
    %p51 = scmp.eq.s32.totalorder %s11, 0
    %p52 = por %p50, %p51
    %p53 = scmp.ne.s32.totalorder %s45, %s47
    %p54 = scmp.eq.s32.totalorder %s16, 1
    %p55 = por %p53, %p54
    %p56 = scmp.ne.s32.totalorder %s47, %s48
    %p57 = scmp.eq.s32.totalorder %s16, 0
    %p58 = por %p56, %p57
    %p59 = scmp.ne.s32.totalorder %s47, %s48
    %p60 = scmp.eq.s32.totalorder %s17, 1
    %p61 = por %p59, %p60
    %p63 = scmp.ne.s32.totalorder %s48, %s62
    %p64 = scmp.eq.s32.totalorder %s17, 0
    %p65 = por %p63, %p64
    %s67 = sadd.s32 %s66, 1
    %p70 = scmp.eq.s32.totalorder %s11, 1
    %p71 = scmp.ne.s32.totalorder %s66, %s68
    %p72 = scmp.eq.s32.totalorder %s11, 0
    %p73 = por %p71, %p72
    %p74 = scmp.ne.s32.totalorder %s66, %s68
    %p75 = scmp.eq.s32.totalorder %s16, 1
    %p76 = por %p74, %p75
    %p77 = scmp.ne.s32.totalorder %s68, %s69
    %p78 = scmp.eq.s32.totalorder %s16, 0
    %p79 = por %p77, %p78
    %p80 = scmp.ne.s32.totalorder %s68, %s69
    %p81 = scmp.eq.s32.totalorder %s17, 1
    %p82 = por %p80, %p81
    %p84 = scmp.ne.s32.totalorder %s69, %s83
    %p85 = scmp.eq.s32.totalorder %s17, 0
    %p86 = por %p84, %p85
    %s88 = sadd.s32 %s87, 1
    %p91 = scmp.eq.s32.totalorder %s11, 1
    %p92 = scmp.ne.s32.totalorder %s87, %s89
    %p93 = scmp.eq.s32.totalorder %s11, 0
    %p94 = por %p92, %p93
    %p95 = scmp.ne.s32.totalorder %s87, %s89
    %p96 = scmp.eq.s32.totalorder %s16, 1
    %p97 = por %p95, %p96
    %p98 = scmp.ne.s32.totalorder %s89, %s90
    %p99 = scmp.eq.s32.totalorder %s16, 0
    %p100 = por %p98, %p99
    %p101 = scmp.ne.s32.totalorder %s89, %s90
    %p102 = scmp.eq.s32.totalorder %s17, 1
    %p103 = por %p101, %p102
    %p105 = scmp.ne.s32.totalorder %s90, %s104
    %p106 = scmp.eq.s32.totalorder %s17, 0
    %p107 = por %p105, %p106
    %s109 = sadd.s32 %s108, 1
    %p112 = scmp.eq.s32.totalorder %s11, 1
    %p113 = scmp.ne.s32.totalorder %s108, %s110
    %p114 = scmp.eq.s32.totalorder %s11, 0
    %p115 = por %p113, %p114
    %p116 = scmp.ne.s32.totalorder %s108, %s110
    %p117 = scmp.eq.s32.totalorder %s16, 1
    %p118 = por %p116, %p117
    %p119 = scmp.ne.s32.totalorder %s110, %s111
    %p120 = scmp.eq.s32.totalorder %s16, 0
    %p121 = por %p119, %p120
    %p122 = scmp.ne.s32.totalorder %s110, %s111
    %p123 = scmp.eq.s32.totalorder %s17, 1
    %p124 = por %p122, %p123
    %p126 = scmp.ne.s32.totalorder %s111, %s125
    %p127 = scmp.eq.s32.totalorder %s17, 0
    %p128 = por %p126, %p127
    %s129 = ssub.s32 %s11, %s18
    %p130 = scmp.eq.s32.totalorder %s129, 0
    %s132 = sadd.s32 %s131, 1
    %s133 = scalar_select %p130, %s131, %s132
    %p136 = pneg %p130
    %p137 = scmp.eq.s32.totalorder %s11, 1
    %p138 = por %p136, %p137
    %p139 = scmp.ne.s32.totalorder %s131, %s134
    %p140 = scmp.eq.s32.totalorder %s11, 0
    %p141 = por %p139, %p140
    %p142 = scmp.ne.s32.totalorder %s131, %s134
    %p143 = scmp.eq.s32.totalorder %s16, 1
    %p144 = por %p142, %p143
    %p145 = scmp.ne.s32.totalorder %s134, %s135
    %p146 = scmp.eq.s32.totalorder %s16, 0
    %p147 = por %p145, %p146
    %p148 = scmp.ne.s32.totalorder %s134, %s135
    %p149 = scmp.eq.s32.totalorder %s17, 1
    %p150 = por %p148, %p149
    %p152 = scmp.ne.s32.totalorder %s135, %s151
    %p153 = scmp.eq.s32.totalorder %s17, 0
    %p154 = por %p152, %p153
    %p155 = scmp.le.s32.totalorder 1, %s11
    %p156 = scmp.lt.s32.totalorder %s11, 3
    %p157 = pnand %p155, %p156
    %p158 = pneg %p157
    // Predicated region
    $region9: #{_lambda_.13} parent=5 // pred_check
      _
    $region10: #{_lambda_.13} parent=5 // pred_check_branch
      %160 = sbr.rel (%p157) target = $region12
    $region11: #{_lambda_.13} parent=5 // pred_region
      %s161 = ssub.s32 %s11, 1
      // Predicated region
      $region13: #{_lambda_.13} parent=11 // pred_check
        %p162 = pneg %p58
      $region14: #{_lambda_.13} parent=11 // pred_check_branch
        %164 = sbr.rel (%p162) target = $region16
      $region15: #{_lambda_.13} parent=11 // pred_region
        _
      $region16: #{_lambda_.13} parent=11 // pred_fallthru
        _
      // Predicated region
      $region17: #{_lambda_.13} parent=11 // pred_check
        %p165 = pneg %p79
      $region18: #{_lambda_.13} parent=11 // pred_check_branch
        %167 = sbr.rel (%p165) target = $region20
      $region19: #{_lambda_.13} parent=11 // pred_region
        _
      $region20: #{_lambda_.13} parent=11 // pred_fallthru
        _
      // Predicated region
      $region21: #{_lambda_.13} parent=11 // pred_check
        %p168 = pneg %p100
      $region22: #{_lambda_.13} parent=11 // pred_check_branch
        %170 = sbr.rel (%p168) target = $region24
      $region23: #{_lambda_.13} parent=11 // pred_region
        _
      $region24: #{_lambda_.13} parent=11 // pred_fallthru
        _
      // Predicated region
      $region25: #{_lambda_.13} parent=11 // pred_check
        %p171 = pneg %p121
      $region26: #{_lambda_.13} parent=11 // pred_check_branch
        %173 = sbr.rel (%p171) target = $region28
      $region27: #{_lambda_.13} parent=11 // pred_region
        _
      $region28: #{_lambda_.13} parent=11 // pred_fallthru
        _
    $region12: #{_lambda_.13} parent=5 // pred_fallthru
      _
    %p174 = scmp.lt.s32.totalorder %s11, 2
    // Predicated region
    $region29: #{_lambda_.13} parent=5 // pred_check
      %p175 = pneg %p174
    $region30: #{_lambda_.13} parent=5 // pred_check_branch
      %177 = sbr.rel (%p175) target = $region32
    $region31: #{_lambda_.13} parent=5 // pred_region
      // Predicated region
      $region33: #{_lambda_.13} parent=31 // pred_check
        %p178 = pneg %p31
      $region34: #{_lambda_.13} parent=31 // pred_check_branch
        %180 = sbr.rel (%p178) target = $region36
      $region35: #{_lambda_.13} parent=31 // pred_region
        %p181 = scmp.lt.s32.totalorder %s11, 1
        %s182 = scalar_select %p181, %s11, 1
        %s183 = smul.addr %s182, 2
        %s184 = smul.addr %s183, 4
        %s185 = scalar_lea.vmem %s0, %s184
      $region36: #{_lambda_.13} parent=31 // pred_fallthru
        _
    $region32: #{_lambda_.13} parent=5 // pred_fallthru
      _
    %p186 = scmp.le.s32.totalorder 1, %s11
    %p187 = scmp.lt.s32.totalorder %s11, 3
    %p188 = pnand %p186, %p187
    %p189 = pneg %p188
    // Predicated region
    $region37: #{_lambda_.13} parent=5 // pred_check
      _
    $region38: #{_lambda_.13} parent=5 // pred_check_branch
      %191 = sbr.rel (%p188) target = $region40
    $region39: #{_lambda_.13} parent=5 // pred_region
      %s192 = ssub.s32 %s11, 1
      %p193 = scmp.lt.s32.totalorder %s16, 1
      %s194 = scalar_select %p193, %s16, 1
      %s195 = smul.addr %s194, 2
      %s196 = smul.addr %s195, 4
      %s197 = scalar_lea.vmem %s0, %s196
      %p198 = pneg %p37
      %p199 = pneg %p34
      %p200 = pneg %p58
      %p201 = pneg %p55
      %p202 = pneg %p79
      %p203 = pneg %p76
      %p204 = pneg %p100
      %p205 = pneg %p97
      %p206 = pneg %p121
      %p207 = pneg %p118
      %p208 = pneg %p147
      %p209 = pneg %p144
      %p210 = scmp.lt.s32.totalorder %s16, 1
      %s211 = scalar_select %p210, %s16, 1
      %s212 = smul.addr %s211, 2
      %s213 = smul.addr %s212, 8
      %s214 = scalar_lea.vmem %s5, %s213
      %p215 = scmp.lt.s32.totalorder %s16, 1
      %s216 = scalar_select %p215, %s16, 1
      %s217 = smul.addr %s216, 2
      %s218 = smul.addr %s217, 4
      %s219 = scalar_lea.vmem %s0, %s218
      %p220 = scmp.lt.s32.totalorder %s16, 1
      %s221 = scalar_select %p220, %s16, 1
      %s222 = smul.addr %s221, 2
      %s223 = smul.addr %s222, 8
      %s224 = scalar_lea.vmem %s5, %s223
      %v226 = vld [vmem:[%s219] sm:$0xf]
      %v227 = vld [vmem:[%s219 + $0x4] sm:$0xf]
      %v228 = vunpack.c.l.bf16 %v226
      %v229 = vunpack.c.l.bf16 %v227
      %v230 = vld [vmem:[%s1] sm:$0x1]
      %v231 = vld [vmem:[%s2] sm:$0x1]
      %vm232 = vcmask 261120
      %v233 = vsel %vm232, %v228, 0.0
      %234 = vadd.xlane.f32.xlu0 %v233
      %v235 = vpop.xlane.xlu0 %234
      %v236 = vsel %vm232, %v229, 0.0
      %237 = vadd.xlane.f32.xlu0 %v236
      %v238 = vpop.xlane.xlu0 %237
      %v239 = vrcp.pop 32.0
      %v240 = vmul.f32 %v235, %v239
      %v241 = vmul.f32 %v238, %v239
      %v242 = vsub.f32 %v228, %v240
      %v243 = vsub.f32 %v229, %v241
      %v244 = vmul.f32 %v242, %v242
      %v245 = vmul.f32 %v243, %v243
      %v246 = vsel %vm232, %v244, 0.0
      %247 = vadd.xlane.f32.xlu0 %v246
      %v248 = vpop.xlane.xlu0 %247
      %v249 = vsel %vm232, %v245, 0.0
      %250 = vadd.xlane.f32.xlu0 %v249
      %v251 = vpop.xlane.xlu0 %250
      %v252 = vmul.f32 %v248, %v239
      %v253 = vmul.f32 %v251, %v239
      %v254 = vadd.f32 %v252, 1e-05
      %v255 = vadd.f32 %v253, 1e-05
      %v256 = vrsqrt.pop %v254
      %v257 = vrsqrt.pop %v255
      %v258 = vmul.f32 %v242, %v256
      %v259 = vmul.f32 %v243, %v257
      %v261 = vlaneseq
      %v262 = vshrl.u32 %v261, 7
      %v263 = vsub.s32 0, %v262
      %v264 = vrot.slane %v230, %v263
      %v266 = vmul.f32 %v258, %v264
      %v267 = vmul.f32 %v259, %v264
      %v269 = vlaneseq
      %v270 = vshrl.u32 %v269, 7
      %v271 = vsub.s32 0, %v270
      %v272 = vrot.slane %v231, %v271
      %v274 = vadd.f32 %v266, %v272
      %v275 = vadd.f32 %v267, %v272
      %v276 = vld [vmem:[%s3] sm:$0xf]
      %v277 = vld [vmem:[%s3 + $0x4] sm:$0xf]
      %v278 = vld [vmem:[%s3 + $0x8] sm:$0xf]
      %v279 = vld [vmem:[%s3 + $0xc] sm:$0xf]
      %v280 = vpack.c.bf16 %v275, %v274
      %v281 = vld [vmem:[%s4] sm:$0x1]
      %v283 = vlaneseq
      %v284 = vshrl.u32 %v283, 7
      %v285 = vsub.s32 0, %v284
      %v286 = vrot.slane %v281, %v285
      %v292 = vunpack.c.l.b16 %v276
      %v293 = vunpack.c.l.b16 %v277
      %v294 = vunpack.c.l.b16 %v278
      %v295 = vunpack.c.l.b16 %v279
      %v296 = vpack.c.b16 %v293, %v292
      %v297 = vpack.c.b16 %v295, %v294
      %v301 = vsel %vm232, %v280, 0
      %303 = vmatprep.subr.bf16.mxu0 0
      %304 = vmatpush1.bf16.msra.mxu0 %v296
      %305 = vmatprep.subr.bf16.mxu0 0
      %306 = vmatpush1.bf16.msra.mxu0 %v297
      %307 = vmatprep.subr.bf16.mxu0 0
      %308 = vmatpush1.bf16.msra.mxu0 0
      %309 = vmatprep.subr.bf16.mxu0 0
      %310 = vmatpush1.bf16.msra.mxu0 0
      %311 = vmatprep.subr.bf16.mxu0 0
      %312 = vmatpush1.bf16.msra.mxu0 0
      %313 = vmatprep.subr.bf16.mxu0 0
      %314 = vmatpush1.bf16.msra.mxu0 0
      %315 = vmatprep.subr.bf16.mxu0 0
      %316 = vmatpush1.bf16.msra.mxu0 0
      %317 = vmatprep.subr.bf16.mxu0 0
      %318 = vmatpush1.bf16.msra.mxu0 0
      %319 = vmatprep.subr.bf16.mxu0 0
      %320 = vmatpush1.bf16.msra.mxu0 0
      %321 = vmatprep.subr.bf16.mxu0 0
      %322 = vmatpush1.bf16.msra.mxu0 0
      %323 = vmatprep.subr.bf16.mxu0 0
      %324 = vmatpush1.bf16.msra.mxu0 0
      %325 = vmatprep.subr.bf16.mxu0 0
      %326 = vmatpush1.bf16.msra.mxu0 0
      %327 = vmatprep.subr.bf16.mxu0 0
      %328 = vmatpush1.bf16.msra.mxu0 0
      %329 = vmatprep.subr.bf16.mxu0 0
      %330 = vmatpush1.bf16.msra.mxu0 0
      %331 = vmatprep.subr.bf16.mxu0 0
      %332 = vmatpush1.bf16.msra.mxu0 0
      %333 = vmatprep.subr.bf16.mxu0 0
      %334 = vmatpush1.bf16.msra.mxu0 0
      %335 = vmatprep.mubr.bf16.mxu0 0
      %336 = vmatmul.mubr.bf16.gmra.mrb[0].mxu0 %v301
      %v337 = vpop.f32.mrb[0].mxu0
      %v338 = vadd.f32 %v286, %v337
      %v339 = vpop.f32.mrb[0].mxu0
      %v340 = vpop.f32.mrb[0].mxu0
      %v341 = vadd.f32 %v286, %v340
      %v342 = vpop.f32.mrb[0].mxu0
      %343 = vdwg.mxu0
      %344 = vst [vmem:[%s224] sm:$0xff] %v338
      %345 = vst [vmem:[%s224 + $0x8] sm:$0xff] %v341
      %p346 = scmp.lt.s32.totalorder %s16, 1
      %s347 = scalar_select %p346, %s16, 1
      %s348 = smul.addr %s347, 2
      %s349 = smul.addr %s348, 8
      %s350 = scalar_lea.vmem %s5, %s349
      // Predicated region
      $region41: #{_lambda_.13} parent=39 // pred_check
        %p351 = pneg %p144
      $region42: #{_lambda_.13} parent=39 // pred_check_branch
        %353 = sbr.rel (%p351) target = $region44
      $region43: #{_lambda_.13} parent=39 // pred_region
        _
      $region44: #{_lambda_.13} parent=39 // pred_fallthru
        _
    $region40: #{_lambda_.13} parent=5 // pred_fallthru
      _
    %p354 = scmp.le.s32.totalorder 2, %s11
    // Predicated region
    $region45: #{_lambda_.13} parent=5 // pred_check
      %p355 = pneg %p354
    $region46: #{_lambda_.13} parent=5 // pred_check_branch
      %357 = sbr.rel (%p355) target = $region48
    $region47: #{_lambda_.13} parent=5 // pred_region
      %s358 = ssub.s32 %s11, 2
      // Predicated region
      $region49: #{_lambda_.13} parent=47 // pred_check
        %p359 = pneg %p150
      $region50: #{_lambda_.13} parent=47 // pred_check_branch
        %361 = sbr.rel (%p359) target = $region52
      $region51: #{_lambda_.13} parent=47 // pred_region
        %p362 = scmp.lt.s32.totalorder %s17, 1
        %s363 = scalar_select %p362, %s17, 1
        %s364 = smul.addr %s363, 2
        %s365 = smul.addr %s364, 8
        %s366 = scalar_lea.vmem %s5, %s365
      $region52: #{_lambda_.13} parent=47 // pred_fallthru
        _
    $region48: #{_lambda_.13} parent=5 // pred_fallthru
      _
  $region6: #{_lambda_.13} parent=0 // loop_footer
    %s15 = sadd.s32 1, %s11
  $region7: #{_lambda_.13} parent=0 // loop_footer_branch
    %10 = sbr.rel target = $region3
  $region8: #{_lambda_.13} parent=0 // loop_exit
    _

// kernel: _lambda_.12
$region0: #{_lambda_.12}
  #allocation0 [shape = 'u32[]', space=smem, size = 0x4, offset = 0x4, fixed_abs, tag = 'smem constant byte address 0x4 - core index']
  #allocation1 [shape = 'u32[144,128]{1,0:T(1,128)}', space=vmem, size = 0x12000, scoped, tag = 'internal scratch']
  %s0 = inlined_call_operand.vmem [shape: bf16[2,16,32], index: 0, kind: input, shape index: {}]
  %s1 = inlined_call_operand.vmem [shape: bf16[2,8,32], index: 1, kind: input, shape index: {}]
  %s2 = inlined_call_operand.vmem [shape: bf16[32,96], index: 2, kind: input, shape index: {}]
  %s3 = inlined_call_operand.vmem [shape: f32[1,96], index: 3, kind: input, shape index: {}]
  %s4 = inlined_call_operand.vmem [shape: bf16[32,32], index: 4, kind: input, shape index: {}]
  %s5 = inlined_call_operand.vmem [shape: f32[1,32], index: 5, kind: input, shape index: {}]
  %s6 = inlined_call_operand.vmem [shape: f32[1,32], index: 6, kind: input, shape index: {}]
  %s7 = inlined_call_operand.vmem [shape: f32[1,32], index: 7, kind: input, shape index: {}]
  %s8 = inlined_call_operand.vmem [shape: bf16[32,32], index: 8, kind: input, shape index: {}]
  %s9 = inlined_call_operand.vmem [shape: f32[1,32], index: 9, kind: input, shape index: {}]
  %s10 = inlined_call_operand.vmem [shape: bf16[32,64], index: 10, kind: input, shape index: {}]
  %s11 = inlined_call_operand.vmem [shape: f32[1,64], index: 11, kind: input, shape index: {}]
  %s12 = inlined_call_operand.vmem [shape: bf16[32,32], index: 12, kind: input, shape index: {}]
  %s13 = inlined_call_operand.vmem [shape: f32[1,32], index: 13, kind: input, shape index: {}]
  %s14 = inlined_call_operand.vmem [shape: f32[1,32], index: 14, kind: input, shape index: {}]
  %s15 = inlined_call_operand.vmem [shape: f32[1,32], index: 15, kind: input, shape index: {}]
  %s16 = inlined_call_operand.vmem [shape: bf16[32,64], index: 16, kind: input, shape index: {}]
  %s17 = inlined_call_operand.vmem [shape: f32[1,64], index: 17, kind: input, shape index: {}]
  %s18 = inlined_call_operand.vmem [shape: bf16[64,32], index: 18, kind: input, shape index: {}]
  %s19 = inlined_call_operand.vmem [shape: f32[1,32], index: 19, kind: input, shape index: {}]
  %s20 = inlined_call_operand.vmem [shape: f32[1,32], index: 20, kind: input, shape index: {}]
  %s21 = inlined_call_operand.vmem [shape: f32[1,32], index: 21, kind: input, shape index: {}]
  %s22 = inlined_call_operand.vmem [shape: bf16[2,16,32], index: 22, kind: output, shape index: {}]
  %s23 = sld [smem:[#allocation0]]
  $region121: #{_lambda_.12} parent=0
    _
  %s25 = ssub.s32 1, %s23
  %s26 = scalar_select 0, %s25, %s23
  loop: start=0, step=1, limit=4
  $region2: #{_lambda_.12} parent=0 // loop_pre_header
    _
  $region3: #{_lambda_.12} parent=0 // loop_header
    %s28 = sphi 0, %s32
    %p29 = scmp.ge.s32.totalorder %s28, 4
    %s38 = sphi 0, %s40
    %s41 = sphi 0, %s38
    %s42 = sphi 0, %s41
    %s58 = sphi 0, %s42
    %s64 = sphi 0, %s66
    %s67 = sphi 0, %s64
    %s68 = sphi 0, %s67
    %s84 = sphi 0, %s68
    %s88 = sphi 0, %s88
    %s90 = sphi 0, %s88
    %s91 = sphi 0, %s90
    %s105 = sphi 0, %s91
    %s109 = sphi 0, %s109
    %s111 = sphi 0, %s109
    %s112 = sphi 0, %s111
    %s126 = sphi 0, %s112
    %s130 = sphi 0, %s130
    %s132 = sphi 0, %s130
    %s133 = sphi 0, %s132
    %s147 = sphi 0, %s133
    %s151 = sphi 0, %s151
    %s153 = sphi 0, %s151
    %s154 = sphi 0, %s153
    %s168 = sphi 0, %s154
    %s172 = sphi 0, %s172
    %s174 = sphi 0, %s172
    %s175 = sphi 0, %s174
    %s189 = sphi 0, %s175
    %s193 = sphi 0, %s193
    %s195 = sphi 0, %s193
    %s196 = sphi 0, %s195
    %s210 = sphi 0, %s196
    %s214 = sphi 0, %s214
    %s216 = sphi 0, %s214
    %s217 = sphi 0, %s216
    %s231 = sphi 0, %s217
    %s235 = sphi 0, %s235
    %s237 = sphi 0, %s235
    %s238 = sphi 0, %s237
    %s252 = sphi 0, %s238
    %s256 = sphi 0, %s256
    %s258 = sphi 0, %s256
    %s259 = sphi 0, %s258
    %s273 = sphi 0, %s259
    %s277 = sphi 0, %s277
    %s279 = sphi 0, %s277
    %s280 = sphi 0, %s279
    %s294 = sphi 0, %s280
    %s298 = sphi 0, %s298
    %s300 = sphi 0, %s298
    %s301 = sphi 0, %s300
    %s315 = sphi 0, %s301
    %s319 = sphi 0, %s319
    %s321 = sphi 0, %s319
    %s322 = sphi 0, %s321
    %s336 = sphi 0, %s322
    %s340 = sphi 0, %s340
    %s342 = sphi 0, %s340
    %s343 = sphi 0, %s342
    %s357 = sphi 0, %s343
    %s361 = sphi 0, %s361
    %s363 = sphi 0, %s361
    %s364 = sphi 0, %s363
    %s378 = sphi 0, %s364
    %s382 = sphi 0, %s382
    %s384 = sphi 0, %s382
    %s385 = sphi 0, %s384
    %s399 = sphi 0, %s385
    %s403 = sphi 0, %s403
    %s405 = sphi 0, %s403
    %s406 = sphi 0, %s405
    %s420 = sphi 0, %s406
    %s424 = sphi 0, %s424
    %s426 = sphi 0, %s424
    %s427 = sphi 0, %s426
    %s441 = sphi 0, %s427
    %s445 = sphi 0, %s445
    %s447 = sphi 0, %s445
    %s448 = sphi 0, %s447
    %s462 = sphi 0, %s448
    %s466 = sphi 0, %s466
    %s468 = sphi 0, %s466
    %s469 = sphi 0, %s468
    %s483 = sphi 0, %s469
    %s487 = sphi 0, %s487
    %s489 = sphi 0, %s487
    %s490 = sphi 0, %s489
    %s504 = sphi 0, %s490
    %s510 = sphi 0, %s512
    %s513 = sphi 0, %s510
    %s514 = sphi 0, %s513
    %s530 = sphi 0, %s514
  $region4: #{_lambda_.12} parent=0 // loop_header_branch
    %31 = sbr.rel (%p29) target = $region8
  $region5: #{_lambda_.12} parent=0 // loop_body
    %s33 = ssub.s32 %s28, 1
    %s34 = ssub.s32 %s28, 2
    %s35 = sadd.s32 %s28, 1
    %s36 = ssub.s32 %s28, %s35
    %p37 = scmp.eq.s32.totalorder %s36, 0
    %s39 = sadd.s32 %s38, 1
    %s40 = scalar_select %p37, %s38, %s39
    %p43 = pneg %p37
    %p44 = scmp.eq.s32.totalorder %s28, 1
    %p45 = por %p43, %p44
    %p46 = scmp.ne.s32.totalorder %s38, %s41
    %p47 = scmp.eq.s32.totalorder %s28, 0
    %p48 = por %p46, %p47
    %p49 = scmp.ne.s32.totalorder %s38, %s41
    %p50 = scmp.eq.s32.totalorder %s33, 1
    %p51 = por %p49, %p50
    %p52 = scmp.ne.s32.totalorder %s41, %s42
    %p53 = scmp.eq.s32.totalorder %s33, 0
    %p54 = por %p52, %p53
    %p55 = scmp.ne.s32.totalorder %s41, %s42
    %p56 = scmp.eq.s32.totalorder %s34, 1
    %p57 = por %p55, %p56
    %p59 = scmp.ne.s32.totalorder %s42, %s58
    %p60 = scmp.eq.s32.totalorder %s34, 0
    %p61 = por %p59, %p60
    %s62 = ssub.s32 %s28, %s35
    %p63 = scmp.eq.s32.totalorder %s62, 0
    %s65 = sadd.s32 %s64, 1
    %s66 = scalar_select %p63, %s64, %s65
    %p69 = pneg %p63
    %p70 = scmp.eq.s32.totalorder %s28, 1
    %p71 = por %p69, %p70
    %p72 = scmp.ne.s32.totalorder %s64, %s67
    %p73 = scmp.eq.s32.totalorder %s28, 0
    %p74 = por %p72, %p73
    %p75 = scmp.ne.s32.totalorder %s64, %s67
    %p76 = scmp.eq.s32.totalorder %s33, 1
    %p77 = por %p75, %p76
    %p78 = scmp.ne.s32.totalorder %s67, %s68
    %p79 = scmp.eq.s32.totalorder %s33, 0
    %p80 = por %p78, %p79
    %p81 = scmp.ne.s32.totalorder %s67, %s68
    %p82 = scmp.eq.s32.totalorder %s34, 1
    %p83 = por %p81, %p82
    %p85 = scmp.ne.s32.totalorder %s68, %s84
    %p86 = scmp.eq.s32.totalorder %s34, 0
    %p87 = por %p85, %p86
    %s89 = sadd.s32 %s88, 1
    %p92 = scmp.eq.s32.totalorder %s28, 1
    %p93 = scmp.ne.s32.totalorder %s88, %s90
    %p94 = scmp.eq.s32.totalorder %s28, 0
    %p95 = por %p93, %p94
    %p96 = scmp.ne.s32.totalorder %s88, %s90
    %p97 = scmp.eq.s32.totalorder %s33, 1
    %p98 = por %p96, %p97
    %p99 = scmp.ne.s32.totalorder %s90, %s91
    %p100 = scmp.eq.s32.totalorder %s33, 0
    %p101 = por %p99, %p100
    %p102 = scmp.ne.s32.totalorder %s90, %s91
    %p103 = scmp.eq.s32.totalorder %s34, 1
    %p104 = por %p102, %p103
    %p106 = scmp.ne.s32.totalorder %s91, %s105
    %p107 = scmp.eq.s32.totalorder %s34, 0
    %p108 = por %p106, %p107
    %s110 = sadd.s32 %s109, 1
    %p113 = scmp.eq.s32.totalorder %s28, 1
    %p114 = scmp.ne.s32.totalorder %s109, %s111
    %p115 = scmp.eq.s32.totalorder %s28, 0
    %p116 = por %p114, %p115
    %p117 = scmp.ne.s32.totalorder %s109, %s111
    %p118 = scmp.eq.s32.totalorder %s33, 1
    %p119 = por %p117, %p118
    %p120 = scmp.ne.s32.totalorder %s111, %s112
    %p121 = scmp.eq.s32.totalorder %s33, 0
    %p122 = por %p120, %p121
    %p123 = scmp.ne.s32.totalorder %s111, %s112
    %p124 = scmp.eq.s32.totalorder %s34, 1
    %p125 = por %p123, %p124
    %p127 = scmp.ne.s32.totalorder %s112, %s126
    %p128 = scmp.eq.s32.totalorder %s34, 0
    %p129 = por %p127, %p128
    %s131 = sadd.s32 %s130, 1
    %p134 = scmp.eq.s32.totalorder %s28, 1
    %p135 = scmp.ne.s32.totalorder %s130, %s132
    %p136 = scmp.eq.s32.totalorder %s28, 0
    %p137 = por %p135, %p136
    %p138 = scmp.ne.s32.totalorder %s130, %s132
    %p139 = scmp.eq.s32.totalorder %s33, 1
    %p140 = por %p138, %p139
    %p141 = scmp.ne.s32.totalorder %s132, %s133
    %p142 = scmp.eq.s32.totalorder %s33, 0
    %p143 = por %p141, %p142
    %p144 = scmp.ne.s32.totalorder %s132, %s133
    %p145 = scmp.eq.s32.totalorder %s34, 1
    %p146 = por %p144, %p145
    %p148 = scmp.ne.s32.totalorder %s133, %s147
    %p149 = scmp.eq.s32.totalorder %s34, 0
    %p150 = por %p148, %p149
    %s152 = sadd.s32 %s151, 1
    %p155 = scmp.eq.s32.totalorder %s28, 1
    %p156 = scmp.ne.s32.totalorder %s151, %s153
    %p157 = scmp.eq.s32.totalorder %s28, 0
    %p158 = por %p156, %p157
    %p159 = scmp.ne.s32.totalorder %s151, %s153
    %p160 = scmp.eq.s32.totalorder %s33, 1
    %p161 = por %p159, %p160
    %p162 = scmp.ne.s32.totalorder %s153, %s154
    %p163 = scmp.eq.s32.totalorder %s33, 0
    %p164 = por %p162, %p163
    %p165 = scmp.ne.s32.totalorder %s153, %s154
    %p166 = scmp.eq.s32.totalorder %s34, 1
    %p167 = por %p165, %p166
    %p169 = scmp.ne.s32.totalorder %s154, %s168
    %p170 = scmp.eq.s32.totalorder %s34, 0
    %p171 = por %p169, %p170
    %s173 = sadd.s32 %s172, 1
    %p176 = scmp.eq.s32.totalorder %s28, 1
    %p177 = scmp.ne.s32.totalorder %s172, %s174
    %p178 = scmp.eq.s32.totalorder %s28, 0
    %p179 = por %p177, %p178
    %p180 = scmp.ne.s32.totalorder %s172, %s174
    %p181 = scmp.eq.s32.totalorder %s33, 1
    %p182 = por %p180, %p181
    %p183 = scmp.ne.s32.totalorder %s174, %s175
    %p184 = scmp.eq.s32.totalorder %s33, 0
    %p185 = por %p183, %p184
    %p186 = scmp.ne.s32.totalorder %s174, %s175
    %p187 = scmp.eq.s32.totalorder %s34, 1
    %p188 = por %p186, %p187
    %p190 = scmp.ne.s32.totalorder %s175, %s189
    %p191 = scmp.eq.s32.totalorder %s34, 0
    %p192 = por %p190, %p191
    %s194 = sadd.s32 %s193, 1
    %p197 = scmp.eq.s32.totalorder %s28, 1
    %p198 = scmp.ne.s32.totalorder %s193, %s195
    %p199 = scmp.eq.s32.totalorder %s28, 0
    %p200 = por %p198, %p199
    %p201 = scmp.ne.s32.totalorder %s193, %s195
    %p202 = scmp.eq.s32.totalorder %s33, 1
    %p203 = por %p201, %p202
    %p204 = scmp.ne.s32.totalorder %s195, %s196
    %p205 = scmp.eq.s32.totalorder %s33, 0
    %p206 = por %p204, %p205
    %p207 = scmp.ne.s32.totalorder %s195, %s196
    %p208 = scmp.eq.s32.totalorder %s34, 1
    %p209 = por %p207, %p208
    %p211 = scmp.ne.s32.totalorder %s196, %s210
    %p212 = scmp.eq.s32.totalorder %s34, 0
    %p213 = por %p211, %p212
    %s215 = sadd.s32 %s214, 1
    %p218 = scmp.eq.s32.totalorder %s28, 1
    %p219 = scmp.ne.s32.totalorder %s214, %s216
    %p220 = scmp.eq.s32.totalorder %s28, 0
    %p221 = por %p219, %p220
    %p222 = scmp.ne.s32.totalorder %s214, %s216
    %p223 = scmp.eq.s32.totalorder %s33, 1
    %p224 = por %p222, %p223
    %p225 = scmp.ne.s32.totalorder %s216, %s217
    %p226 = scmp.eq.s32.totalorder %s33, 0
    %p227 = por %p225, %p226
    %p228 = scmp.ne.s32.totalorder %s216, %s217
    %p229 = scmp.eq.s32.totalorder %s34, 1
    %p230 = por %p228, %p229
    %p232 = scmp.ne.s32.totalorder %s217, %s231
    %p233 = scmp.eq.s32.totalorder %s34, 0
    %p234 = por %p232, %p233
    %s236 = sadd.s32 %s235, 1
    %p239 = scmp.eq.s32.totalorder %s28, 1
    %p240 = scmp.ne.s32.totalorder %s235, %s237
    %p241 = scmp.eq.s32.totalorder %s28, 0
    %p242 = por %p240, %p241
    %p243 = scmp.ne.s32.totalorder %s235, %s237
    %p244 = scmp.eq.s32.totalorder %s33, 1
    %p245 = por %p243, %p244
    %p246 = scmp.ne.s32.totalorder %s237, %s238
    %p247 = scmp.eq.s32.totalorder %s33, 0
    %p248 = por %p246, %p247
    %p249 = scmp.ne.s32.totalorder %s237, %s238
    %p250 = scmp.eq.s32.totalorder %s34, 1
    %p251 = por %p249, %p250
    %p253 = scmp.ne.s32.totalorder %s238, %s252
    %p254 = scmp.eq.s32.totalorder %s34, 0
    %p255 = por %p253, %p254
    %s257 = sadd.s32 %s256, 1
    %p260 = scmp.eq.s32.totalorder %s28, 1
    %p261 = scmp.ne.s32.totalorder %s256, %s258
    %p262 = scmp.eq.s32.totalorder %s28, 0
    %p263 = por %p261, %p262
    %p264 = scmp.ne.s32.totalorder %s256, %s258
    %p265 = scmp.eq.s32.totalorder %s33, 1
    %p266 = por %p264, %p265
    %p267 = scmp.ne.s32.totalorder %s258, %s259
    %p268 = scmp.eq.s32.totalorder %s33, 0
    %p269 = por %p267, %p268
    %p270 = scmp.ne.s32.totalorder %s258, %s259
    %p271 = scmp.eq.s32.totalorder %s34, 1
    %p272 = por %p270, %p271
    %p274 = scmp.ne.s32.totalorder %s259, %s273
    %p275 = scmp.eq.s32.totalorder %s34, 0
    %p276 = por %p274, %p275
    %s278 = sadd.s32 %s277, 1
    %p281 = scmp.eq.s32.totalorder %s28, 1
    %p282 = scmp.ne.s32.totalorder %s277, %s279
    %p283 = scmp.eq.s32.totalorder %s28, 0
    %p284 = por %p282, %p283
    %p285 = scmp.ne.s32.totalorder %s277, %s279
    %p286 = scmp.eq.s32.totalorder %s33, 1
    %p287 = por %p285, %p286
    %p288 = scmp.ne.s32.totalorder %s279, %s280
    %p289 = scmp.eq.s32.totalorder %s33, 0
    %p290 = por %p288, %p289
    %p291 = scmp.ne.s32.totalorder %s279, %s280
    %p292 = scmp.eq.s32.totalorder %s34, 1
    %p293 = por %p291, %p292
    %p295 = scmp.ne.s32.totalorder %s280, %s294
    %p296 = scmp.eq.s32.totalorder %s34, 0
    %p297 = por %p295, %p296
    %s299 = sadd.s32 %s298, 1
    %p302 = scmp.eq.s32.totalorder %s28, 1
    %p303 = scmp.ne.s32.totalorder %s298, %s300
    %p304 = scmp.eq.s32.totalorder %s28, 0
    %p305 = por %p303, %p304
    %p306 = scmp.ne.s32.totalorder %s298, %s300
    %p307 = scmp.eq.s32.totalorder %s33, 1
    %p308 = por %p306, %p307
    %p309 = scmp.ne.s32.totalorder %s300, %s301
    %p310 = scmp.eq.s32.totalorder %s33, 0
    %p311 = por %p309, %p310
    %p312 = scmp.ne.s32.totalorder %s300, %s301
    %p313 = scmp.eq.s32.totalorder %s34, 1
    %p314 = por %p312, %p313
    %p316 = scmp.ne.s32.totalorder %s301, %s315
    %p317 = scmp.eq.s32.totalorder %s34, 0
    %p318 = por %p316, %p317
    %s320 = sadd.s32 %s319, 1
    %p323 = scmp.eq.s32.totalorder %s28, 1
    %p324 = scmp.ne.s32.totalorder %s319, %s321
    %p325 = scmp.eq.s32.totalorder %s28, 0
    %p326 = por %p324, %p325
    %p327 = scmp.ne.s32.totalorder %s319, %s321
    %p328 = scmp.eq.s32.totalorder %s33, 1
    %p329 = por %p327, %p328
    %p330 = scmp.ne.s32.totalorder %s321, %s322
    %p331 = scmp.eq.s32.totalorder %s33, 0
    %p332 = por %p330, %p331
    %p333 = scmp.ne.s32.totalorder %s321, %s322
    %p334 = scmp.eq.s32.totalorder %s34, 1
    %p335 = por %p333, %p334
    %p337 = scmp.ne.s32.totalorder %s322, %s336
    %p338 = scmp.eq.s32.totalorder %s34, 0
    %p339 = por %p337, %p338
    %s341 = sadd.s32 %s340, 1
    %p344 = scmp.eq.s32.totalorder %s28, 1
    %p345 = scmp.ne.s32.totalorder %s340, %s342
    %p346 = scmp.eq.s32.totalorder %s28, 0
    %p347 = por %p345, %p346
    %p348 = scmp.ne.s32.totalorder %s340, %s342
    %p349 = scmp.eq.s32.totalorder %s33, 1
    %p350 = por %p348, %p349
    %p351 = scmp.ne.s32.totalorder %s342, %s343
    %p352 = scmp.eq.s32.totalorder %s33, 0
    %p353 = por %p351, %p352
    %p354 = scmp.ne.s32.totalorder %s342, %s343
    %p355 = scmp.eq.s32.totalorder %s34, 1
    %p356 = por %p354, %p355
    %p358 = scmp.ne.s32.totalorder %s343, %s357
    %p359 = scmp.eq.s32.totalorder %s34, 0
    %p360 = por %p358, %p359
    %s362 = sadd.s32 %s361, 1
    %p365 = scmp.eq.s32.totalorder %s28, 1
    %p366 = scmp.ne.s32.totalorder %s361, %s363
    %p367 = scmp.eq.s32.totalorder %s28, 0
    %p368 = por %p366, %p367
    %p369 = scmp.ne.s32.totalorder %s361, %s363
    %p370 = scmp.eq.s32.totalorder %s33, 1
    %p371 = por %p369, %p370
    %p372 = scmp.ne.s32.totalorder %s363, %s364
    %p373 = scmp.eq.s32.totalorder %s33, 0
    %p374 = por %p372, %p373
    %p375 = scmp.ne.s32.totalorder %s363, %s364
    %p376 = scmp.eq.s32.totalorder %s34, 1
    %p377 = por %p375, %p376
    %p379 = scmp.ne.s32.totalorder %s364, %s378
    %p380 = scmp.eq.s32.totalorder %s34, 0
    %p381 = por %p379, %p380
    %s383 = sadd.s32 %s382, 1
    %p386 = scmp.eq.s32.totalorder %s28, 1
    %p387 = scmp.ne.s32.totalorder %s382, %s384
    %p388 = scmp.eq.s32.totalorder %s28, 0
    %p389 = por %p387, %p388
    %p390 = scmp.ne.s32.totalorder %s382, %s384
    %p391 = scmp.eq.s32.totalorder %s33, 1
    %p392 = por %p390, %p391
    %p393 = scmp.ne.s32.totalorder %s384, %s385
    %p394 = scmp.eq.s32.totalorder %s33, 0
    %p395 = por %p393, %p394
    %p396 = scmp.ne.s32.totalorder %s384, %s385
    %p397 = scmp.eq.s32.totalorder %s34, 1
    %p398 = por %p396, %p397
    %p400 = scmp.ne.s32.totalorder %s385, %s399
    %p401 = scmp.eq.s32.totalorder %s34, 0
    %p402 = por %p400, %p401
    %s404 = sadd.s32 %s403, 1
    %p407 = scmp.eq.s32.totalorder %s28, 1
    %p408 = scmp.ne.s32.totalorder %s403, %s405
    %p409 = scmp.eq.s32.totalorder %s28, 0
    %p410 = por %p408, %p409
    %p411 = scmp.ne.s32.totalorder %s403, %s405
    %p412 = scmp.eq.s32.totalorder %s33, 1
    %p413 = por %p411, %p412
    %p414 = scmp.ne.s32.totalorder %s405, %s406
    %p415 = scmp.eq.s32.totalorder %s33, 0
    %p416 = por %p414, %p415
    %p417 = scmp.ne.s32.totalorder %s405, %s406
    %p418 = scmp.eq.s32.totalorder %s34, 1
    %p419 = por %p417, %p418
    %p421 = scmp.ne.s32.totalorder %s406, %s420
    %p422 = scmp.eq.s32.totalorder %s34, 0
    %p423 = por %p421, %p422
    %s425 = sadd.s32 %s424, 1
    %p428 = scmp.eq.s32.totalorder %s28, 1
    %p429 = scmp.ne.s32.totalorder %s424, %s426
    %p430 = scmp.eq.s32.totalorder %s28, 0
    %p431 = por %p429, %p430
    %p432 = scmp.ne.s32.totalorder %s424, %s426
    %p433 = scmp.eq.s32.totalorder %s33, 1
    %p434 = por %p432, %p433
    %p435 = scmp.ne.s32.totalorder %s426, %s427
    %p436 = scmp.eq.s32.totalorder %s33, 0
    %p437 = por %p435, %p436
    %p438 = scmp.ne.s32.totalorder %s426, %s427
    %p439 = scmp.eq.s32.totalorder %s34, 1
    %p440 = por %p438, %p439
    %p442 = scmp.ne.s32.totalorder %s427, %s441
    %p443 = scmp.eq.s32.totalorder %s34, 0
    %p444 = por %p442, %p443
    %s446 = sadd.s32 %s445, 1
    %p449 = scmp.eq.s32.totalorder %s28, 1
    %p450 = scmp.ne.s32.totalorder %s445, %s447
    %p451 = scmp.eq.s32.totalorder %s28, 0
    %p452 = por %p450, %p451
    %p453 = scmp.ne.s32.totalorder %s445, %s447
    %p454 = scmp.eq.s32.totalorder %s33, 1
    %p455 = por %p453, %p454
    %p456 = scmp.ne.s32.totalorder %s447, %s448
    %p457 = scmp.eq.s32.totalorder %s33, 0
    %p458 = por %p456, %p457
    %p459 = scmp.ne.s32.totalorder %s447, %s448
    %p460 = scmp.eq.s32.totalorder %s34, 1
    %p461 = por %p459, %p460
    %p463 = scmp.ne.s32.totalorder %s448, %s462
    %p464 = scmp.eq.s32.totalorder %s34, 0
    %p465 = por %p463, %p464
    %s467 = sadd.s32 %s466, 1
    %p470 = scmp.eq.s32.totalorder %s28, 1
    %p471 = scmp.ne.s32.totalorder %s466, %s468
    %p472 = scmp.eq.s32.totalorder %s28, 0
    %p473 = por %p471, %p472
    %p474 = scmp.ne.s32.totalorder %s466, %s468
    %p475 = scmp.eq.s32.totalorder %s33, 1
    %p476 = por %p474, %p475
    %p477 = scmp.ne.s32.totalorder %s468, %s469
    %p478 = scmp.eq.s32.totalorder %s33, 0
    %p479 = por %p477, %p478
    %p480 = scmp.ne.s32.totalorder %s468, %s469
    %p481 = scmp.eq.s32.totalorder %s34, 1
    %p482 = por %p480, %p481
    %p484 = scmp.ne.s32.totalorder %s469, %s483
    %p485 = scmp.eq.s32.totalorder %s34, 0
    %p486 = por %p484, %p485
    %s488 = sadd.s32 %s487, 1
    %p491 = scmp.eq.s32.totalorder %s28, 1
    %p492 = scmp.ne.s32.totalorder %s487, %s489
    %p493 = scmp.eq.s32.totalorder %s28, 0
    %p494 = por %p492, %p493
    %p495 = scmp.ne.s32.totalorder %s487, %s489
    %p496 = scmp.eq.s32.totalorder %s33, 1
    %p497 = por %p495, %p496
    %p498 = scmp.ne.s32.totalorder %s489, %s490
    %p499 = scmp.eq.s32.totalorder %s33, 0
    %p500 = por %p498, %p499
    %p501 = scmp.ne.s32.totalorder %s489, %s490
    %p502 = scmp.eq.s32.totalorder %s34, 1
    %p503 = por %p501, %p502
    %p505 = scmp.ne.s32.totalorder %s490, %s504
    %p506 = scmp.eq.s32.totalorder %s34, 0
    %p507 = por %p505, %p506
    %s508 = ssub.s32 %s28, %s35
    %p509 = scmp.eq.s32.totalorder %s508, 0
    %s511 = sadd.s32 %s510, 1
    %s512 = scalar_select %p509, %s510, %s511
    %p515 = pneg %p509
    %p516 = scmp.eq.s32.totalorder %s28, 1
    %p517 = por %p515, %p516
    %p518 = scmp.ne.s32.totalorder %s510, %s513
    %p519 = scmp.eq.s32.totalorder %s28, 0
    %p520 = por %p518, %p519
    %p521 = scmp.ne.s32.totalorder %s510, %s513
    %p522 = scmp.eq.s32.totalorder %s33, 1
    %p523 = por %p521, %p522
    %p524 = scmp.ne.s32.totalorder %s513, %s514
    %p525 = scmp.eq.s32.totalorder %s33, 0
    %p526 = por %p524, %p525
    %p527 = scmp.ne.s32.totalorder %s513, %s514
    %p528 = scmp.eq.s32.totalorder %s34, 1
    %p529 = por %p527, %p528
    %p531 = scmp.ne.s32.totalorder %s514, %s530
    %p532 = scmp.eq.s32.totalorder %s34, 0
    %p533 = por %p531, %p532
    %p534 = scmp.le.s32.totalorder 1, %s28
    %p535 = scmp.lt.s32.totalorder %s28, 3
    %p536 = pnand %p534, %p535
    %p537 = pneg %p536
    // Predicated region
    $region9: #{_lambda_.12} parent=5 // pred_check
      _
    $region10: #{_lambda_.12} parent=5 // pred_check_branch
      %539 = sbr.rel (%p536) target = $region12
    $region11: #{_lambda_.12} parent=5 // pred_region
      %s540 = ssub.s32 %s28, 1
      // Predicated region
      $region13: #{_lambda_.12} parent=11 // pred_check
        %p541 = pneg %p101
      $region14: #{_lambda_.12} parent=11 // pred_check_branch
        %543 = sbr.rel (%p541) target = $region16
      $region15: #{_lambda_.12} parent=11 // pred_region
        _
      $region16: #{_lambda_.12} parent=11 // pred_fallthru
        _
      // Predicated region
      $region17: #{_lambda_.12} parent=11 // pred_check
        %p544 = pneg %p122
      $region18: #{_lambda_.12} parent=11 // pred_check_branch
        %546 = sbr.rel (%p544) target = $region20
      $region19: #{_lambda_.12} parent=11 // pred_region
        _
      $region20: #{_lambda_.12} parent=11 // pred_fallthru
        _
      // Predicated region
      $region21: #{_lambda_.12} parent=11 // pred_check
        %p547 = pneg %p143
      $region22: #{_lambda_.12} parent=11 // pred_check_branch
        %549 = sbr.rel (%p547) target = $region24
      $region23: #{_lambda_.12} parent=11 // pred_region
        _
      $region24: #{_lambda_.12} parent=11 // pred_fallthru
        _
      // Predicated region
      $region25: #{_lambda_.12} parent=11 // pred_check
        %p550 = pneg %p164
      $region26: #{_lambda_.12} parent=11 // pred_check_branch
        %552 = sbr.rel (%p550) target = $region28
      $region27: #{_lambda_.12} parent=11 // pred_region
        _
      $region28: #{_lambda_.12} parent=11 // pred_fallthru
        _
      // Predicated region
      $region29: #{_lambda_.12} parent=11 // pred_check
        %p553 = pneg %p185
      $region30: #{_lambda_.12} parent=11 // pred_check_branch
        %555 = sbr.rel (%p553) target = $region32
      $region31: #{_lambda_.12} parent=11 // pred_region
        _
      $region32: #{_lambda_.12} parent=11 // pred_fallthru
        _
      // Predicated region
      $region33: #{_lambda_.12} parent=11 // pred_check
        %p556 = pneg %p206
      $region34: #{_lambda_.12} parent=11 // pred_check_branch
        %558 = sbr.rel (%p556) target = $region36
      $region35: #{_lambda_.12} parent=11 // pred_region
        _
      $region36: #{_lambda_.12} parent=11 // pred_fallthru
        _
      // Predicated region
      $region37: #{_lambda_.12} parent=11 // pred_check
        %p559 = pneg %p227
      $region38: #{_lambda_.12} parent=11 // pred_check_branch
        %561 = sbr.rel (%p559) target = $region40
      $region39: #{_lambda_.12} parent=11 // pred_region
        _
      $region40: #{_lambda_.12} parent=11 // pred_fallthru
        _
      // Predicated region
      $region41: #{_lambda_.12} parent=11 // pred_check
        %p562 = pneg %p248
      $region42: #{_lambda_.12} parent=11 // pred_check_branch
        %564 = sbr.rel (%p562) target = $region44
      $region43: #{_lambda_.12} parent=11 // pred_region
        _
      $region44: #{_lambda_.12} parent=11 // pred_fallthru
        _
      // Predicated region
      $region45: #{_lambda_.12} parent=11 // pred_check
        %p565 = pneg %p269
      $region46: #{_lambda_.12} parent=11 // pred_check_branch
        %567 = sbr.rel (%p565) target = $region48
      $region47: #{_lambda_.12} parent=11 // pred_region
        _
      $region48: #{_lambda_.12} parent=11 // pred_fallthru
        _
      // Predicated region
      $region49: #{_lambda_.12} parent=11 // pred_check
        %p568 = pneg %p290
      $region50: #{_lambda_.12} parent=11 // pred_check_branch
        %570 = sbr.rel (%p568) target = $region52
      $region51: #{_lambda_.12} parent=11 // pred_region
        _
      $region52: #{_lambda_.12} parent=11 // pred_fallthru
        _
      // Predicated region
      $region53: #{_lambda_.12} parent=11 // pred_check
        %p571 = pneg %p311
      $region54: #{_lambda_.12} parent=11 // pred_check_branch
        %573 = sbr.rel (%p571) target = $region56
      $region55: #{_lambda_.12} parent=11 // pred_region
        _
      $region56: #{_lambda_.12} parent=11 // pred_fallthru
        _
      // Predicated region
      $region57: #{_lambda_.12} parent=11 // pred_check
        %p574 = pneg %p332
      $region58: #{_lambda_.12} parent=11 // pred_check_branch
        %576 = sbr.rel (%p574) target = $region60
      $region59: #{_lambda_.12} parent=11 // pred_region
        _
      $region60: #{_lambda_.12} parent=11 // pred_fallthru
        _
      // Predicated region
      $region61: #{_lambda_.12} parent=11 // pred_check
        %p577 = pneg %p353
      $region62: #{_lambda_.12} parent=11 // pred_check_branch
        %579 = sbr.rel (%p577) target = $region64
      $region63: #{_lambda_.12} parent=11 // pred_region
        _
      $region64: #{_lambda_.12} parent=11 // pred_fallthru
        _
      // Predicated region
      $region65: #{_lambda_.12} parent=11 // pred_check
        %p580 = pneg %p374
      $region66: #{_lambda_.12} parent=11 // pred_check_branch
        %582 = sbr.rel (%p580) target = $region68
      $region67: #{_lambda_.12} parent=11 // pred_region
        _
      $region68: #{_lambda_.12} parent=11 // pred_fallthru
        _
      // Predicated region
      $region69: #{_lambda_.12} parent=11 // pred_check
        %p583 = pneg %p395
      $region70: #{_lambda_.12} parent=11 // pred_check_branch
        %585 = sbr.rel (%p583) target = $region72
      $region71: #{_lambda_.12} parent=11 // pred_region
        _
      $region72: #{_lambda_.12} parent=11 // pred_fallthru
        _
      // Predicated region
      $region73: #{_lambda_.12} parent=11 // pred_check
        %p586 = pneg %p416
      $region74: #{_lambda_.12} parent=11 // pred_check_branch
        %588 = sbr.rel (%p586) target = $region76
      $region75: #{_lambda_.12} parent=11 // pred_region
        _
      $region76: #{_lambda_.12} parent=11 // pred_fallthru
        _
      // Predicated region
      $region77: #{_lambda_.12} parent=11 // pred_check
        %p589 = pneg %p437
      $region78: #{_lambda_.12} parent=11 // pred_check_branch
        %591 = sbr.rel (%p589) target = $region80
      $region79: #{_lambda_.12} parent=11 // pred_region
        _
      $region80: #{_lambda_.12} parent=11 // pred_fallthru
        _
      // Predicated region
      $region81: #{_lambda_.12} parent=11 // pred_check
        %p592 = pneg %p458
      $region82: #{_lambda_.12} parent=11 // pred_check_branch
        %594 = sbr.rel (%p592) target = $region84
      $region83: #{_lambda_.12} parent=11 // pred_region
        _
      $region84: #{_lambda_.12} parent=11 // pred_fallthru
        _
      // Predicated region
      $region85: #{_lambda_.12} parent=11 // pred_check
        %p595 = pneg %p479
      $region86: #{_lambda_.12} parent=11 // pred_check_branch
        %597 = sbr.rel (%p595) target = $region88
      $region87: #{_lambda_.12} parent=11 // pred_region
        _
      $region88: #{_lambda_.12} parent=11 // pred_fallthru
        _
      // Predicated region
      $region89: #{_lambda_.12} parent=11 // pred_check
        %p598 = pneg %p500
      $region90: #{_lambda_.12} parent=11 // pred_check_branch
        %600 = sbr.rel (%p598) target = $region92
      $region91: #{_lambda_.12} parent=11 // pred_region
        _
      $region92: #{_lambda_.12} parent=11 // pred_fallthru
        _
    $region12: #{_lambda_.12} parent=5 // pred_fallthru
      _
    %p601 = scmp.lt.s32.totalorder %s28, 2
    // Predicated region
    $region93: #{_lambda_.12} parent=5 // pred_check
      %p602 = pneg %p601
    $region94: #{_lambda_.12} parent=5 // pred_check_branch
      %604 = sbr.rel (%p602) target = $region96
    $region95: #{_lambda_.12} parent=5 // pred_region
      // Predicated region
      $region97: #{_lambda_.12} parent=95 // pred_check
        %p605 = pneg %p48
      $region98: #{_lambda_.12} parent=95 // pred_check_branch
        %607 = sbr.rel (%p605) target = $region100
      $region99: #{_lambda_.12} parent=95 // pred_region
        %p608 = scmp.lt.s32.totalorder %s28, 1
        %s609 = scalar_select %p608, %s28, 1
        %s610 = smul.addr %s609, 2
        %s611 = smul.addr %s610, 4
        %s612 = scalar_lea.vmem %s0, %s611
      $region100: #{_lambda_.12} parent=95 // pred_fallthru
        _
      // Predicated region
      $region101: #{_lambda_.12} parent=95 // pred_check
        %p613 = pneg %p74
      $region102: #{_lambda_.12} parent=95 // pred_check_branch
        %615 = sbr.rel (%p613) target = $region104
      $region103: #{_lambda_.12} parent=95 // pred_region
        %p616 = scmp.lt.s32.totalorder %s28, 1
        %s617 = scalar_select %p616, %s28, 1
        %s618 = smul.addr %s617, 4
        %s619 = scalar_lea.vmem %s1, %s618
      $region104: #{_lambda_.12} parent=95 // pred_fallthru
        _
    $region96: #{_lambda_.12} parent=5 // pred_fallthru
      _
    %p620 = scmp.le.s32.totalorder 1, %s28
    %p621 = scmp.lt.s32.totalorder %s28, 3
    %p622 = pnand %p620, %p621
    %p623 = pneg %p622
    // Predicated region
    $region105: #{_lambda_.12} parent=5 // pred_check
      _
    $region106: #{_lambda_.12} parent=5 // pred_check_branch
      %625 = sbr.rel (%p622) target = $region108
    $region107: #{_lambda_.12} parent=5 // pred_region
      %s626 = ssub.s32 %s28, 1
      %p627 = scmp.lt.s32.totalorder %s33, 1
      %s628 = scalar_select %p627, %s33, 1
      %s629 = smul.addr %s628, 2
      %s630 = smul.addr %s629, 4
      %s631 = scalar_lea.vmem %s0, %s630
      %p632 = pneg %p54
      %p633 = pneg %p51
      %p634 = scmp.lt.s32.totalorder %s33, 1
      %s635 = scalar_select %p634, %s33, 1
      %s636 = smul.addr %s635, 4
      %s637 = scalar_lea.vmem %s1, %s636
      %p638 = pneg %p80
      %p639 = pneg %p77
      %p640 = pneg %p101
      %p641 = pneg %p98
      %p642 = pneg %p122
      %p643 = pneg %p119
      %p644 = pneg %p143
      %p645 = pneg %p140
      %p646 = pneg %p164
      %p647 = pneg %p161
      %p648 = pneg %p185
      %p649 = pneg %p182
      %p650 = pneg %p206
      %p651 = pneg %p203
      %p652 = pneg %p227
      %p653 = pneg %p224
      %p654 = pneg %p248
      %p655 = pneg %p245
      %p656 = pneg %p269
      %p657 = pneg %p266
      %p658 = pneg %p290
      %p659 = pneg %p287
      %p660 = pneg %p311
      %p661 = pneg %p308
      %p662 = pneg %p332
      %p663 = pneg %p329
      %p664 = pneg %p353
      %p665 = pneg %p350
      %p666 = pneg %p374
      %p667 = pneg %p371
      %p668 = pneg %p395
      %p669 = pneg %p392
      %p670 = pneg %p416
      %p671 = pneg %p413
      %p672 = pneg %p437
      %p673 = pneg %p434
      %p674 = pneg %p458
      %p675 = pneg %p455
      %p676 = pneg %p479
      %p677 = pneg %p476
      %p678 = pneg %p500
      %p679 = pneg %p497
      %p680 = pneg %p526
      %p681 = pneg %p523
      %p682 = scmp.lt.s32.totalorder %s33, 1
      %s683 = scalar_select %p682, %s33, 1
      %s684 = smul.addr %s683, 2
      %s685 = smul.addr %s684, 4
      %s686 = scalar_lea.vmem %s22, %s685
      %p687 = scmp.lt.s32.totalorder %s33, 1
      %s688 = scalar_select %p687, %s33, 1
      %s689 = smul.addr %s688, 2
      %s690 = smul.addr %s689, 4
      %s691 = scalar_lea.vmem %s0, %s690
      %p692 = scmp.lt.s32.totalorder %s33, 1
      %s693 = scalar_select %p692, %s33, 1
      %s694 = smul.addr %s693, 4
      %s695 = scalar_lea.vmem %s1, %s694
      %p696 = scmp.lt.s32.totalorder %s33, 1
      %s697 = scalar_select %p696, %s33, 1
      %s698 = smul.addr %s697, 2
      %s699 = smul.addr %s698, 4
      %s700 = scalar_lea.vmem %s22, %s699
      %v702 = vld [vmem:[%s691] sm:$0xf]
      %v703 = vld [vmem:[%s691 + $0x4] sm:$0xf]
      %v704 = vunpack.c.l.bf16 %v702
      %v705 = vunpack.c.l.bf16 %v703
      %v706 = vld [vmem:[%s695] sm:$0xf]
      %v707 = vld [vmem:[%s2] sm:$0xf]
      %v708 = vld [vmem:[%s2 + $0x4] sm:$0xf]
      %v709 = vld [vmem:[%s2 + $0x8] sm:$0xf]
      %v710 = vld [vmem:[%s2 + $0xc] sm:$0xf]
      %v711 = vld [vmem:[%s3] sm:$0x1]
      %v713 = vlaneseq
      %v714 = vshrl.u32 %v713, 7
      %v715 = vsub.s32 0, %v714
      %v716 = vrot.slane %v711, %v715
      %v720 = vunpack.c.l.b16 %v702
      %v721 = vunpack.c.l.b16 %v703
      %v722 = vpack.c.b16 %v721, %v720
      %v727 = vunpack.c.l.b16 %v707
      %v728 = vunpack.c.l.b16 %v708
      %v729 = vunpack.c.l.b16 %v709
      %v730 = vunpack.c.l.b16 %v710
      %v731 = vpack.c.b16 %v728, %v727
      %v732 = vpack.c.b16 %v730, %v729
      %vm735 = vcmask 261120
      %v737 = vsel %vm735, %v722, 0
      %739 = vmatprep.subr.bf16.mxu0 0
      %740 = vmatpush1.bf16.msra.mxu0 %v731
      %741 = vmatprep.subr.bf16.mxu0 0
      %742 = vmatpush1.bf16.msra.mxu0 %v732
      %743 = vmatprep.subr.bf16.mxu0 0
      %744 = vmatpush1.bf16.msra.mxu0 0
      %745 = vmatprep.subr.bf16.mxu0 0
      %746 = vmatpush1.bf16.msra.mxu0 0
      %747 = vmatprep.subr.bf16.mxu0 0
      %748 = vmatpush1.bf16.msra.mxu0 0
      %749 = vmatprep.subr.bf16.mxu0 0
      %750 = vmatpush1.bf16.msra.mxu0 0
      %751 = vmatprep.subr.bf16.mxu0 0
      %752 = vmatpush1.bf16.msra.mxu0 0
      %753 = vmatprep.subr.bf16.mxu0 0
      %754 = vmatpush1.bf16.msra.mxu0 0
      %755 = vmatprep.subr.bf16.mxu0 0
      %756 = vmatpush1.bf16.msra.mxu0 0
      %757 = vmatprep.subr.bf16.mxu0 0
      %758 = vmatpush1.bf16.msra.mxu0 0
      %759 = vmatprep.subr.bf16.mxu0 0
      %760 = vmatpush1.bf16.msra.mxu0 0
      %761 = vmatprep.subr.bf16.mxu0 0
      %762 = vmatpush1.bf16.msra.mxu0 0
      %763 = vmatprep.subr.bf16.mxu0 0
      %764 = vmatpush1.bf16.msra.mxu0 0
      %765 = vmatprep.subr.bf16.mxu0 0
      %766 = vmatpush1.bf16.msra.mxu0 0
      %767 = vmatprep.subr.bf16.mxu0 0
      %768 = vmatpush1.bf16.msra.mxu0 0
      %769 = vmatprep.subr.bf16.mxu0 0
      %770 = vmatpush1.bf16.msra.mxu0 0
      %771 = vmatprep.mubr.bf16.mxu0 0
      %772 = vmatmul.mubr.bf16.gmra.mrb[0].mxu0 %v737
      %v773 = vpop.f32.mrb[0].mxu0
      %v774 = vadd.f32 %v716, %v773
      %v775 = vpop.f32.mrb[0].mxu0
      %v776 = vpop.f32.mrb[0].mxu0
      %v777 = vadd.f32 %v716, %v776
      %v778 = vpop.f32.mrb[0].mxu0
      %779 = vdwg.mxu0
      %v780 = vlaneseq
      %v781 = vshrl.u32 %v780, 7
      %v782 = vadd.s32 %v781, 8
      %v783 = vlaneseq
      %v784 = vand.u32 %v783, 127
      %vm785 = vcmp.le.s32.totalorder %v784, %v781
      %vm786 = vcmp.le.s32.totalorder %v784, %v782
      %v787 = vsel %vm785, 0.0, -1e+30
      %v788 = vsel %vm786, 0.0, -1e+30
      %v789 = vpack.c.bf16 %v777, %v774
      %791 = vrot.lane.b32.xlu0 %v789, 96
      %v792 = vpop.permute.xlu0 %791
      %vm793 = vcmask 64512
      %v795 = vsel %vm793, %v789, 0
      %v798 = vsel %vm793, %v792, 0
      %800 = vmatprep.subr.bf16.mxu0 0
      %801 = vmatpush1.bf16.xpose.msra.mxu0 %v798
      %802 = vmatprep.subr.bf16.mxu0 0
      %803 = vmatpush1.bf16.xpose.msra.mxu0 0
      %804 = vmatprep.subr.bf16.mxu0 0
      %805 = vmatpush1.bf16.xpose.msra.mxu0 0
      %806 = vmatprep.subr.bf16.mxu0 0
      %807 = vmatpush1.bf16.xpose.msra.mxu0 0
      %808 = vmatprep.subr.bf16.mxu0 0
      %809 = vmatpush1.bf16.xpose.msra.mxu0 0
      %810 = vmatprep.subr.bf16.mxu0 0
      %811 = vmatpush1.bf16.xpose.msra.mxu0 0
      %812 = vmatprep.subr.bf16.mxu0 0
      %813 = vmatpush1.bf16.xpose.msra.mxu0 0
      %814 = vmatprep.subr.bf16.mxu0 0
      %815 = vmatpush1.bf16.xpose.msra.mxu0 0
      %816 = vmatprep.subr.bf16.mxu0 0
      %817 = vmatpush1.bf16.xpose.msra.mxu0 0
      %818 = vmatprep.subr.bf16.mxu0 0
      %819 = vmatpush1.bf16.xpose.msra.mxu0 0
      %820 = vmatprep.subr.bf16.mxu0 0
      %821 = vmatpush1.bf16.xpose.msra.mxu0 0
      %822 = vmatprep.subr.bf16.mxu0 0
      %823 = vmatpush1.bf16.xpose.msra.mxu0 0
      %824 = vmatprep.subr.bf16.mxu0 0
      %825 = vmatpush1.bf16.xpose.msra.mxu0 0
      %826 = vmatprep.subr.bf16.mxu0 0
      %827 = vmatpush1.bf16.xpose.msra.mxu0 0
      %828 = vmatprep.subr.bf16.mxu0 0
      %829 = vmatpush1.bf16.xpose.msra.mxu0 0
      %830 = vmatprep.subr.bf16.mxu0 0
      %831 = vmatpush1.bf16.xpose.msra.mxu0 0
      %832 = vmatprep.mubr.bf16.mxu0 0
      %833 = vmatmul.mubr.bf16.gmra.mrb[0].mxu0 %v795
      %v834 = vpop.f32.mrb[0].mxu0
      %v835 = vadd.f32 %v787, %v834
      %v836 = vpop.f32.mrb[0].mxu0
      %v837 = vpop.f32.mrb[0].mxu0
      %v838 = vadd.f32 %v788, %v837
      %v839 = vpop.f32.mrb[0].mxu0
      %840 = vdwg.mxu0
      %vm841 = vcmask 130048
      %v842 = vsel %vm841, %v835, -inf
      %843 = vmax.xlane.f32.xlu0 %v842
      %v844 = vpop.xlane.xlu0 %843
      %v845 = vsel %vm841, %v838, -inf
      %846 = vmax.xlane.f32.xlu0 %v845
      %v847 = vpop.xlane.xlu0 %846
      %v848 = vsub.f32 %v835, %v844
      %v849 = vsub.f32 %v838, %v847
      %v850 = vmul.f32 %v848, 1.442695
      %v851 = vpow.pop %v850
      %v852 = vmul.f32 %v849, 1.442695
      %v853 = vpow.pop %v852
      %v854 = vsel %vm841, %v851, 0.0
      %855 = vadd.xlane.f32.xlu0 %v854
      %v856 = vpop.xlane.xlu0 %855
      %v857 = vsel %vm841, %v853, 0.0
      %858 = vadd.xlane.f32.xlu0 %v857
      %v859 = vpop.xlane.xlu0 %858
      %v860 = vpack.c.bf16 %v853, %v851
      %861 = vrot.lane.b32.xlu0 %v789, 64
      %v862 = vpop.permute.xlu0 %861
      %v865 = vsel %vm841, %v860, 0
      %867 = vmatprep.subr.bf16.mxu0 0
      %868 = vmatpush1.bf16.msra.mxu0 %v862
      %869 = vmatprep.subr.bf16.mxu0 0
      %870 = vmatpush1.bf16.msra.mxu0 0
      %871 = vmatprep.subr.bf16.mxu0 0
      %872 = vmatpush1.bf16.msra.mxu0 0
      %873 = vmatprep.subr.bf16.mxu0 0
      %874 = vmatpush1.bf16.msra.mxu0 0
      %875 = vmatprep.subr.bf16.mxu0 0
      %876 = vmatpush1.bf16.msra.mxu0 0
      %877 = vmatprep.subr.bf16.mxu0 0
      %878 = vmatpush1.bf16.msra.mxu0 0
      %879 = vmatprep.subr.bf16.mxu0 0
      %880 = vmatpush1.bf16.msra.mxu0 0
      %881 = vmatprep.subr.bf16.mxu0 0
      %882 = vmatpush1.bf16.msra.mxu0 0
      %883 = vmatprep.subr.bf16.mxu0 0
      %884 = vmatpush1.bf16.msra.mxu0 0
      %885 = vmatprep.subr.bf16.mxu0 0
      %886 = vmatpush1.bf16.msra.mxu0 0
      %887 = vmatprep.subr.bf16.mxu0 0
      %888 = vmatpush1.bf16.msra.mxu0 0
      %889 = vmatprep.subr.bf16.mxu0 0
      %890 = vmatpush1.bf16.msra.mxu0 0
      %891 = vmatprep.subr.bf16.mxu0 0
      %892 = vmatpush1.bf16.msra.mxu0 0
      %893 = vmatprep.subr.bf16.mxu0 0
      %894 = vmatpush1.bf16.msra.mxu0 0
      %895 = vmatprep.subr.bf16.mxu0 0
      %896 = vmatpush1.bf16.msra.mxu0 0
      %897 = vmatprep.subr.bf16.mxu0 0
      %898 = vmatpush1.bf16.msra.mxu0 0
      %899 = vmatprep.mubr.bf16.mxu0 0
      %900 = vmatmul.mubr.bf16.gmra.mrb[0].mxu0 %v865
      %v901 = vpop.f32.mrb[0].mxu0
      %v902 = vadd.f32 0.0, %v901
      %v903 = vpop.f32.mrb[0].mxu0
      %v904 = vpop.f32.mrb[0].mxu0
      %v905 = vadd.f32 0.0, %v904
      %v906 = vpop.f32.mrb[0].mxu0
      %907 = vdwg.mxu0
      %v908 = vrcp.pop %v856
      %v909 = vrcp.pop %v859
      %v910 = vmul.f32 %v902, %v908
      %v911 = vmul.f32 %v905, %v909
      %912 = vrot.lane.b32.xlu0 %v789, 120
      %v913 = vpop.permute.xlu0 %912
      %914 = vrot.lane.b32.xlu0 %v789, 88
      %v915 = vpop.permute.xlu0 %914
      %v917 = vsel %vm793, %v913, 0
      %v920 = vsel %vm793, %v915, 0
      %922 = vmatprep.subr.bf16.mxu0 0
      %923 = vmatpush1.bf16.xpose.msra.mxu0 %v920
      %924 = vmatprep.subr.bf16.mxu0 0
      %925 = vmatpush1.bf16.xpose.msra.mxu0 0
      %926 = vmatprep.subr.bf16.mxu0 0
      %927 = vmatpush1.bf16.xpose.msra.mxu0 0
      %928 = vmatprep.subr.bf16.mxu0 0
      %929 = vmatpush1.bf16.xpose.msra.mxu0 0
      %930 = vmatprep.subr.bf16.mxu0 0
      %931 = vmatpush1.bf16.xpose.msra.mxu0 0
      %932 = vmatprep.subr.bf16.mxu0 0
      %933 = vmatpush1.bf16.xpose.msra.mxu0 0
      %934 = vmatprep.subr.bf16.mxu0 0
      %935 = vmatpush1.bf16.xpose.msra.mxu0 0
      %936 = vmatprep.subr.bf16.mxu0 0
      %937 = vmatpush1.bf16.xpose.msra.mxu0 0
      %938 = vmatprep.subr.bf16.mxu0 0
      %939 = vmatpush1.bf16.xpose.msra.mxu0 0
      %940 = vmatprep.subr.bf16.mxu0 0
      %941 = vmatpush1.bf16.xpose.msra.mxu0 0
      %942 = vmatprep.subr.bf16.mxu0 0
      %943 = vmatpush1.bf16.xpose.msra.mxu0 0
      %944 = vmatprep.subr.bf16.mxu0 0
      %945 = vmatpush1.bf16.xpose.msra.mxu0 0
      %946 = vmatprep.subr.bf16.mxu0 0
      %947 = vmatpush1.bf16.xpose.msra.mxu0 0
      %948 = vmatprep.subr.bf16.mxu0 0
      %949 = vmatpush1.bf16.xpose.msra.mxu0 0
      %950 = vmatprep.subr.bf16.mxu0 0
      %951 = vmatpush1.bf16.xpose.msra.mxu0 0
      %952 = vmatprep.subr.bf16.mxu0 0
      %953 = vmatpush1.bf16.xpose.msra.mxu0 0
      %954 = vmatprep.mubr.bf16.mxu0 0
      %955 = vmatmul.mubr.bf16.gmra.mrb[0].mxu0 %v917
      %v956 = vpop.f32.mrb[0].mxu0
      %v957 = vadd.f32 %v787, %v956
      %v958 = vpop.f32.mrb[0].mxu0
      %v959 = vpop.f32.mrb[0].mxu0
      %v960 = vadd.f32 %v788, %v959
      %v961 = vpop.f32.mrb[0].mxu0
      %962 = vdwg.mxu0
      %v963 = vsel %vm841, %v957, -inf
      %964 = vmax.xlane.f32.xlu0 %v963
      %v965 = vpop.xlane.xlu0 %964
      %v966 = vsel %vm841, %v960, -inf
      %967 = vmax.xlane.f32.xlu0 %v966
      %v968 = vpop.xlane.xlu0 %967
      %v969 = vsub.f32 %v957, %v965
      %v970 = vsub.f32 %v960, %v968
      %v971 = vmul.f32 %v969, 1.442695
      %v972 = vpow.pop %v971
      %v973 = vmul.f32 %v970, 1.442695
      %v974 = vpow.pop %v973
      %v975 = vsel %vm841, %v972, 0.0
      %976 = vadd.xlane.f32.xlu0 %v975
      %v977 = vpop.xlane.xlu0 %976
      %v978 = vsel %vm841, %v974, 0.0
      %979 = vadd.xlane.f32.xlu0 %v978
      %v980 = vpop.xlane.xlu0 %979
      %v981 = vpack.c.bf16 %v974, %v972
      %982 = vrot.lane.b32.xlu0 %v789, 56
      %v983 = vpop.permute.xlu0 %982
      %v986 = vsel %vm841, %v981, 0
      %988 = vmatprep.subr.bf16.mxu0 0
      %989 = vmatpush1.bf16.msra.mxu0 %v983
      %990 = vmatprep.subr.bf16.mxu0 0
      %991 = vmatpush1.bf16.msra.mxu0 0
      %992 = vmatprep.subr.bf16.mxu0 0
      %993 = vmatpush1.bf16.msra.mxu0 0
      %994 = vmatprep.subr.bf16.mxu0 0
      %995 = vmatpush1.bf16.msra.mxu0 0
      %996 = vmatprep.subr.bf16.mxu0 0
      %997 = vmatpush1.bf16.msra.mxu0 0
      %998 = vmatprep.subr.bf16.mxu0 0
      %999 = vmatpush1.bf16.msra.mxu0 0
      %1000 = vmatprep.subr.bf16.mxu0 0
      %1001 = vmatpush1.bf16.msra.mxu0 0
      %1002 = vmatprep.subr.bf16.mxu0 0
      %1003 = vmatpush1.bf16.msra.mxu0 0
      %1004 = vmatprep.subr.bf16.mxu0 0
      %1005 = vmatpush1.bf16.msra.mxu0 0
      %1006 = vmatprep.subr.bf16.mxu0 0
      %1007 = vmatpush1.bf16.msra.mxu0 0
      %1008 = vmatprep.subr.bf16.mxu0 0
      %1009 = vmatpush1.bf16.msra.mxu0 0
      %1010 = vmatprep.subr.bf16.mxu0 0
      %1011 = vmatpush1.bf16.msra.mxu0 0
      %1012 = vmatprep.subr.bf16.mxu0 0
      %1013 = vmatpush1.bf16.msra.mxu0 0
      %1014 = vmatprep.subr.bf16.mxu0 0
      %1015 = vmatpush1.bf16.msra.mxu0 0
      %1016 = vmatprep.subr.bf16.mxu0 0
      %1017 = vmatpush1.bf16.msra.mxu0 0
      %1018 = vmatprep.subr.bf16.mxu0 0
      %1019 = vmatpush1.bf16.msra.mxu0 0
      %1020 = vmatprep.mubr.bf16.mxu0 0
      %1021 = vmatmul.mubr.bf16.gmra.mrb[0].mxu0 %v986
      %v1022 = vpop.f32.mrb[0].mxu0
      %v1023 = vadd.f32 0.0, %v1022
      %v1024 = vpop.f32.mrb[0].mxu0
      %v1025 = vpop.f32.mrb[0].mxu0
      %v1026 = vadd.f32 0.0, %v1025
      %v1027 = vpop.f32.mrb[0].mxu0
      %1028 = vdwg.mxu0
      %v1029 = vrcp.pop %v977
      %v1030 = vrcp.pop %v980
      %v1031 = vmul.f32 %v1023, %v1029
      %v1032 = vmul.f32 %v1026, %v1030
      %1033 = vrot.lane.b32.xlu0 %v789, 112
      %v1034 = vpop.permute.xlu0 %1033
      %1035 = vrot.lane.b32.xlu0 %v789, 80
      %v1036 = vpop.permute.xlu0 %1035
      %v1038 = vsel %vm793, %v1034, 0
      %v1041 = vsel %vm793, %v1036, 0
      %1043 = vmatprep.subr.bf16.mxu0 0
      %1044 = vmatpush1.bf16.xpose.msra.mxu0 %v1041
      %1045 = vmatprep.subr.bf16.mxu0 0
      %1046 = vmatpush1.bf16.xpose.msra.mxu0 0
      %1047 = vmatprep.subr.bf16.mxu0 0
      %1048 = vmatpush1.bf16.xpose.msra.mxu0 0
      %1049 = vmatprep.subr.bf16.mxu0 0
      %1050 = vmatpush1.bf16.xpose.msra.mxu0 0
      %1051 = vmatprep.subr.bf16.mxu0 0
      %1052 = vmatpush1.bf16.xpose.msra.mxu0 0
      %1053 = vmatprep.subr.bf16.mxu0 0
      %1054 = vmatpush1.bf16.xpose.msra.mxu0 0
      %1055 = vmatprep.subr.bf16.mxu0 0
      %1056 = vmatpush1.bf16.xpose.msra.mxu0 0
      %1057 = vmatprep.subr.bf16.mxu0 0
      %1058 = vmatpush1.bf16.xpose.msra.mxu0 0
      %1059 = vmatprep.subr.bf16.mxu0 0
      %1060 = vmatpush1.bf16.xpose.msra.mxu0 0
      %1061 = vmatprep.subr.bf16.mxu0 0
      %1062 = vmatpush1.bf16.xpose.msra.mxu0 0
      %1063 = vmatprep.subr.bf16.mxu0 0
      %1064 = vmatpush1.bf16.xpose.msra.mxu0 0
      %1065 = vmatprep.subr.bf16.mxu0 0
      %1066 = vmatpush1.bf16.xpose.msra.mxu0 0
      %1067 = vmatprep.subr.bf16.mxu0 0
      %1068 = vmatpush1.bf16.xpose.msra.mxu0 0
      %1069 = vmatprep.subr.bf16.mxu0 0
      %1070 = vmatpush1.bf16.xpose.msra.mxu0 0
      %1071 = vmatprep.subr.bf16.mxu0 0
      %1072 = vmatpush1.bf16.xpose.msra.mxu0 0
      %1073 = vmatprep.subr.bf16.mxu0 0
      %1074 = vmatpush1.bf16.xpose.msra.mxu0 0
      %1075 = vmatprep.mubr.bf16.mxu0 0
      %1076 = vmatmul.mubr.bf16.gmra.mrb[0].mxu0 %v1038
      %v1077 = vpop.f32.mrb[0].mxu0
      %v1078 = vadd.f32 %v787, %v1077
      %v1079 = vpop.f32.mrb[0].mxu0
      %v1080 = vpop.f32.mrb[0].mxu0
      %v1081 = vadd.f32 %v788, %v1080
      %v1082 = vpop.f32.mrb[0].mxu0
      %1083 = vdwg.mxu0
      %v1084 = vsel %vm841, %v1078, -inf
      %1085 = vmax.xlane.f32.xlu0 %v1084
      %v1086 = vpop.xlane.xlu0 %1085
      %v1087 = vsel %vm841, %v1081, -inf
      %1088 = vmax.xlane.f32.xlu0 %v1087
      %v1089 = vpop.xlane.xlu0 %1088
      %v1090 = vsub.f32 %v1078, %v1086
      %v1091 = vsub.f32 %v1081, %v1089
      %v1092 = vmul.f32 %v1090, 1.442695
      %v1093 = vpow.pop %v1092
      %v1094 = vmul.f32 %v1091, 1.442695
      %v1095 = vpow.pop %v1094
      %v1096 = vsel %vm841, %v1093, 0.0
      %1097 = vadd.xlane.f32.xlu0 %v1096
      %v1098 = vpop.xlane.xlu0 %1097
      %v1099 = vsel %vm841, %v1095, 0.0
      %1100 = vadd.xlane.f32.xlu0 %v1099
      %v1101 = vpop.xlane.xlu0 %1100
      %v1102 = vpack.c.bf16 %v1095, %v1093
      %1103 = vrot.lane.b32.xlu0 %v789, 48
      %v1104 = vpop.permute.xlu0 %1103
      %v1107 = vsel %vm841, %v1102, 0
      %1109 = vmatprep.subr.bf16.mxu0 0
      %1110 = vmatpush1.bf16.msra.mxu0 %v1104
      %1111 = vmatprep.subr.bf16.mxu0 0
      %1112 = vmatpush1.bf16.msra.mxu0 0
      %1113 = vmatprep.subr.bf16.mxu0 0
      %1114 = vmatpush1.bf16.msra.mxu0 0
      %1115 = vmatprep.subr.bf16.mxu0 0
      %1116 = vmatpush1.bf16.msra.mxu0 0
      %1117 = vmatprep.subr.bf16.mxu0 0
      %1118 = vmatpush1.bf16.msra.mxu0 0
      %1119 = vmatprep.subr.bf16.mxu0 0
      %1120 = vmatpush1.bf16.msra.mxu0 0
      %1121 = vmatprep.subr.bf16.mxu0 0
      %1122 = vmatpush1.bf16.msra.mxu0 0
      %1123 = vmatprep.subr.bf16.mxu0 0
      %1124 = vmatpush1.bf16.msra.mxu0 0
      %1125 = vmatprep.subr.bf16.mxu0 0
      %1126 = vmatpush1.bf16.msra.mxu0 0
      %1127 = vmatprep.subr.bf16.mxu0 0
      %1128 = vmatpush1.bf16.msra.mxu0 0
      %1129 = vmatprep.subr.bf16.mxu0 0
      %1130 = vmatpush1.bf16.msra.mxu0 0
      %1131 = vmatprep.subr.bf16.mxu0 0
      %1132 = vmatpush1.bf16.msra.mxu0 0
      %1133 = vmatprep.subr.bf16.mxu0 0
      %1134 = vmatpush1.bf16.msra.mxu0 0
      %1135 = vmatprep.subr.bf16.mxu0 0
      %1136 = vmatpush1.bf16.msra.mxu0 0
      %1137 = vmatprep.subr.bf16.mxu0 0
      %1138 = vmatpush1.bf16.msra.mxu0 0
      %1139 = vmatprep.subr.bf16.mxu0 0
      %1140 = vmatpush1.bf16.msra.mxu0 0
      %1141 = vmatprep.mubr.bf16.mxu0 0
      %1142 = vmatmul.mubr.bf16.gmra.mrb[0].mxu0 %v1107
      %v1143 = vpop.f32.mrb[0].mxu0
      %v1144 = vadd.f32 0.0, %v1143
      %v1145 = vpop.f32.mrb[0].mxu0
      %v1146 = vpop.f32.mrb[0].mxu0
      %v1147 = vadd.f32 0.0, %v1146
      %v1148 = vpop.f32.mrb[0].mxu0
      %1149 = vdwg.mxu0
      %v1150 = vrcp.pop %v1098
      %v1151 = vrcp.pop %v1101
      %v1152 = vmul.f32 %v1144, %v1150
      %v1153 = vmul.f32 %v1147, %v1151
      %1154 = vrot.lane.b32.xlu0 %v789, 104
      %v1155 = vpop.permute.xlu0 %1154
      %1156 = vrot.lane.b32.xlu0 %v789, 72
      %v1157 = vpop.permute.xlu0 %1156
      %v1159 = vsel %vm793, %v1155, 0
      %v1162 = vsel %vm793, %v1157, 0
      %1164 = vmatprep.subr.bf16.mxu0 0
      %1165 = vmatpush1.bf16.xpose.msra.mxu0 %v1162
      %1166 = vmatprep.subr.bf16.mxu0 0
      %1167 = vmatpush1.bf16.xpose.msra.mxu0 0
      %1168 = vmatprep.subr.bf16.mxu0 0
      %1169 = vmatpush1.bf16.xpose.msra.mxu0 0
      %1170 = vmatprep.subr.bf16.mxu0 0
      %1171 = vmatpush1.bf16.xpose.msra.mxu0 0
      %1172 = vmatprep.subr.bf16.mxu0 0
      %1173 = vmatpush1.bf16.xpose.msra.mxu0 0
      %1174 = vmatprep.subr.bf16.mxu0 0
      %1175 = vmatpush1.bf16.xpose.msra.mxu0 0
      %1176 = vmatprep.subr.bf16.mxu0 0
      %1177 = vmatpush1.bf16.xpose.msra.mxu0 0
      %1178 = vmatprep.subr.bf16.mxu0 0
      %1179 = vmatpush1.bf16.xpose.msra.mxu0 0
      %1180 = vmatprep.subr.bf16.mxu0 0
      %1181 = vmatpush1.bf16.xpose.msra.mxu0 0
      %1182 = vmatprep.subr.bf16.mxu0 0
      %1183 = vmatpush1.bf16.xpose.msra.mxu0 0
      %1184 = vmatprep.subr.bf16.mxu0 0
      %1185 = vmatpush1.bf16.xpose.msra.mxu0 0
      %1186 = vmatprep.subr.bf16.mxu0 0
      %1187 = vmatpush1.bf16.xpose.msra.mxu0 0
      %1188 = vmatprep.subr.bf16.mxu0 0
      %1189 = vmatpush1.bf16.xpose.msra.mxu0 0
      %1190 = vmatprep.subr.bf16.mxu0 0
      %1191 = vmatpush1.bf16.xpose.msra.mxu0 0
      %1192 = vmatprep.subr.bf16.mxu0 0
      %1193 = vmatpush1.bf16.xpose.msra.mxu0 0
      %1194 = vmatprep.subr.bf16.mxu0 0
      %1195 = vmatpush1.bf16.xpose.msra.mxu0 0
      %1196 = vmatprep.mubr.bf16.mxu0 0
      %1197 = vmatmul.mubr.bf16.gmra.mrb[0].mxu0 %v1159
      %v1198 = vpop.f32.mrb[0].mxu0
      %v1199 = vadd.f32 %v787, %v1198
      %v1200 = vpop.f32.mrb[0].mxu0
      %v1201 = vpop.f32.mrb[0].mxu0
      %v1202 = vadd.f32 %v788, %v1201
      %v1203 = vpop.f32.mrb[0].mxu0
      %1204 = vdwg.mxu0
      %v1205 = vsel %vm841, %v1199, -inf
      %1206 = vmax.xlane.f32.xlu0 %v1205
      %v1207 = vpop.xlane.xlu0 %1206
      %v1208 = vsel %vm841, %v1202, -inf
      %1209 = vmax.xlane.f32.xlu0 %v1208
      %v1210 = vpop.xlane.xlu0 %1209
      %v1211 = vsub.f32 %v1199, %v1207
      %v1212 = vsub.f32 %v1202, %v1210
      %v1213 = vmul.f32 %v1211, 1.442695
      %v1214 = vpow.pop %v1213
      %v1215 = vmul.f32 %v1212, 1.442695
      %v1216 = vpow.pop %v1215
      %v1217 = vsel %vm841, %v1214, 0.0
      %1218 = vadd.xlane.f32.xlu0 %v1217
      %v1219 = vpop.xlane.xlu0 %1218
      %v1220 = vsel %vm841, %v1216, 0.0
      %1221 = vadd.xlane.f32.xlu0 %v1220
      %v1222 = vpop.xlane.xlu0 %1221
      %v1223 = vpack.c.bf16 %v1216, %v1214
      %1224 = vrot.lane.b32.xlu0 %v789, 40
      %v1225 = vpop.permute.xlu0 %1224
      %v1228 = vsel %vm841, %v1223, 0
      %1230 = vmatprep.subr.bf16.mxu0 0
      %1231 = vmatpush1.bf16.msra.mxu0 %v1225
      %1232 = vmatprep.subr.bf16.mxu0 0
      %1233 = vmatpush1.bf16.msra.mxu0 0
      %1234 = vmatprep.subr.bf16.mxu0 0
      %1235 = vmatpush1.bf16.msra.mxu0 0
      %1236 = vmatprep.subr.bf16.mxu0 0
      %1237 = vmatpush1.bf16.msra.mxu0 0
      %1238 = vmatprep.subr.bf16.mxu0 0
      %1239 = vmatpush1.bf16.msra.mxu0 0
      %1240 = vmatprep.subr.bf16.mxu0 0
      %1241 = vmatpush1.bf16.msra.mxu0 0
      %1242 = vmatprep.subr.bf16.mxu0 0
      %1243 = vmatpush1.bf16.msra.mxu0 0
      %1244 = vmatprep.subr.bf16.mxu0 0
      %1245 = vmatpush1.bf16.msra.mxu0 0
      %1246 = vmatprep.subr.bf16.mxu0 0
      %1247 = vmatpush1.bf16.msra.mxu0 0
      %1248 = vmatprep.subr.bf16.mxu0 0
      %1249 = vmatpush1.bf16.msra.mxu0 0
      %1250 = vmatprep.subr.bf16.mxu0 0
      %1251 = vmatpush1.bf16.msra.mxu0 0
      %1252 = vmatprep.subr.bf16.mxu0 0
      %1253 = vmatpush1.bf16.msra.mxu0 0
      %1254 = vmatprep.subr.bf16.mxu0 0
      %1255 = vmatpush1.bf16.msra.mxu0 0
      %1256 = vmatprep.subr.bf16.mxu0 0
      %1257 = vmatpush1.bf16.msra.mxu0 0
      %1258 = vmatprep.subr.bf16.mxu0 0
      %1259 = vmatpush1.bf16.msra.mxu0 0
      %1260 = vmatprep.subr.bf16.mxu0 0
      %1261 = vmatpush1.bf16.msra.mxu0 0
      %1262 = vmatprep.mubr.bf16.mxu0 0
      %1263 = vmatmul.mubr.bf16.gmra.mrb[0].mxu0 %v1228
      %v1264 = vpop.f32.mrb[0].mxu0
      %v1265 = vadd.f32 0.0, %v1264
      %v1266 = vpop.f32.mrb[0].mxu0
      %v1267 = vpop.f32.mrb[0].mxu0
      %v1268 = vadd.f32 0.0, %v1267
      %v1269 = vpop.f32.mrb[0].mxu0
      %1270 = vdwg.mxu0
      %v1271 = vrcp.pop %v1219
      %v1272 = vrcp.pop %v1222
      %v1273 = vmul.f32 %v1265, %v1271
      %v1274 = vmul.f32 %v1268, %v1272
      %1277 = vrot.lane.b32.xlu0 %v1031, 8
      %v1278 = vpop.permute.xlu0 %1277
      %1279 = vrot.lane.b32.xlu0 %v1032, 8
      %v1280 = vpop.permute.xlu0 %1279
      %1285 = vrot.lane.b32.xlu0 %v1152, 16
      %v1286 = vpop.permute.xlu0 %1285
      %1287 = vrot.lane.b32.xlu0 %v1153, 16
      %v1288 = vpop.permute.xlu0 %1287
      %1293 = vrot.lane.b32.xlu0 %v1273, 24
      %v1294 = vpop.permute.xlu0 %1293
      %1295 = vrot.lane.b32.xlu0 %v1274, 24
      %v1296 = vpop.permute.xlu0 %1295
      %v1299 = vsel %vm793, %v910, %v1278
      %v1300 = vsel %vm793, %v911, %v1280
      %v1301 = vsel %vm841, %v1299, %v1286
      %v1302 = vsel %vm841, %v1300, %v1288
      %vm1303 = vcmask 195584
      %v1304 = vsel %vm1303, %v1301, %v1294
      %v1305 = vsel %vm1303, %v1302, %v1296
      %v1306 = vld [vmem:[%s4] sm:$0xf]
      %v1307 = vld [vmem:[%s4 + $0x4] sm:$0xf]
      %v1308 = vld [vmem:[%s4 + $0x8] sm:$0xf]
      %v1309 = vld [vmem:[%s4 + $0xc] sm:$0xf]
      %v1310 = vpack.c.bf16 %v1305, %v1304
      %v1311 = vld [vmem:[%s5] sm:$0x1]
      %v1313 = vlaneseq
      %v1314 = vshrl.u32 %v1313, 7
      %v1315 = vsub.s32 0, %v1314
      %v1316 = vrot.slane %v1311, %v1315
      %v1322 = vunpack.c.l.b16 %v1306
      %v1323 = vunpack.c.l.b16 %v1307
      %v1324 = vunpack.c.l.b16 %v1308
      %v1325 = vunpack.c.l.b16 %v1309
      %v1326 = vpack.c.b16 %v1323, %v1322
      %v1327 = vpack.c.b16 %v1325, %v1324
      %v1331 = vsel %vm735, %v1310, 0
      %1333 = vmatprep.subr.bf16.mxu0 0
      %1334 = vmatpush1.bf16.msra.mxu0 %v1326
      %1335 = vmatprep.subr.bf16.mxu0 0
      %1336 = vmatpush1.bf16.msra.mxu0 %v1327
      %1337 = vmatprep.subr.bf16.mxu0 0
      %1338 = vmatpush1.bf16.msra.mxu0 0
      %1339 = vmatprep.subr.bf16.mxu0 0
      %1340 = vmatpush1.bf16.msra.mxu0 0
      %1341 = vmatprep.subr.bf16.mxu0 0
      %1342 = vmatpush1.bf16.msra.mxu0 0
      %1343 = vmatprep.subr.bf16.mxu0 0
      %1344 = vmatpush1.bf16.msra.mxu0 0
      %1345 = vmatprep.subr.bf16.mxu0 0
      %1346 = vmatpush1.bf16.msra.mxu0 0
      %1347 = vmatprep.subr.bf16.mxu0 0
      %1348 = vmatpush1.bf16.msra.mxu0 0
      %1349 = vmatprep.subr.bf16.mxu0 0
      %1350 = vmatpush1.bf16.msra.mxu0 0
      %1351 = vmatprep.subr.bf16.mxu0 0
      %1352 = vmatpush1.bf16.msra.mxu0 0
      %1353 = vmatprep.subr.bf16.mxu0 0
      %1354 = vmatpush1.bf16.msra.mxu0 0
      %1355 = vmatprep.subr.bf16.mxu0 0
      %1356 = vmatpush1.bf16.msra.mxu0 0
      %1357 = vmatprep.subr.bf16.mxu0 0
      %1358 = vmatpush1.bf16.msra.mxu0 0
      %1359 = vmatprep.subr.bf16.mxu0 0
      %1360 = vmatpush1.bf16.msra.mxu0 0
      %1361 = vmatprep.subr.bf16.mxu0 0
      %1362 = vmatpush1.bf16.msra.mxu0 0
      %1363 = vmatprep.subr.bf16.mxu0 0
      %1364 = vmatpush1.bf16.msra.mxu0 0
      %1365 = vmatprep.mubr.bf16.mxu0 0
      %1366 = vmatmul.mubr.bf16.gmra.mrb[0].mxu0 %v1331
      %v1367 = vpop.f32.mrb[0].mxu0
      %v1368 = vadd.f32 %v1316, %v1367
      %v1369 = vpop.f32.mrb[0].mxu0
      %v1370 = vpop.f32.mrb[0].mxu0
      %v1371 = vadd.f32 %v1316, %v1370
      %v1372 = vpop.f32.mrb[0].mxu0
      %1373 = vdwg.mxu0
      %v1374 = vadd.f32 %v704, %v1368
      %v1375 = vadd.f32 %v705, %v1371
      %v1376 = vld [vmem:[%s6] sm:$0x1]
      %v1377 = vld [vmem:[%s7] sm:$0x1]
      %v1378 = vsel %vm735, %v1374, 0.0
      %1379 = vadd.xlane.f32.xlu0 %v1378
      %v1380 = vpop.xlane.xlu0 %1379
      %v1381 = vsel %vm735, %v1375, 0.0
      %1382 = vadd.xlane.f32.xlu0 %v1381
      %v1383 = vpop.xlane.xlu0 %1382
      %v1384 = vrcp.pop 32.0
      %v1385 = vmul.f32 %v1380, %v1384
      %v1386 = vmul.f32 %v1383, %v1384
      %v1387 = vsub.f32 %v1374, %v1385
      %v1388 = vsub.f32 %v1375, %v1386
      %v1389 = vmul.f32 %v1387, %v1387
      %v1390 = vmul.f32 %v1388, %v1388
      %v1391 = vsel %vm735, %v1389, 0.0
      %1392 = vadd.xlane.f32.xlu0 %v1391
      %v1393 = vpop.xlane.xlu0 %1392
      %v1394 = vsel %vm735, %v1390, 0.0
      %1395 = vadd.xlane.f32.xlu0 %v1394
      %v1396 = vpop.xlane.xlu0 %1395
      %v1397 = vmul.f32 %v1393, %v1384
      %v1398 = vmul.f32 %v1396, %v1384
      %v1399 = vadd.f32 %v1397, 1e-05
      %v1400 = vadd.f32 %v1398, 1e-05
      %v1401 = vrsqrt.pop %v1399
      %v1402 = vrsqrt.pop %v1400
      %v1403 = vmul.f32 %v1387, %v1401
      %v1404 = vmul.f32 %v1388, %v1402
      %v1406 = vlaneseq
      %v1407 = vshrl.u32 %v1406, 7
      %v1408 = vsub.s32 0, %v1407
      %v1409 = vrot.slane %v1376, %v1408
      %v1411 = vmul.f32 %v1403, %v1409
      %v1412 = vmul.f32 %v1404, %v1409
      %v1414 = vlaneseq
      %v1415 = vshrl.u32 %v1414, 7
      %v1416 = vsub.s32 0, %v1415
      %v1417 = vrot.slane %v1377, %v1416
      %v1419 = vadd.f32 %v1411, %v1417
      %v1420 = vadd.f32 %v1412, %v1417
      %v1421 = vld [vmem:[%s8] sm:$0xf]
      %v1422 = vld [vmem:[%s8 + $0x4] sm:$0xf]
      %v1423 = vld [vmem:[%s8 + $0x8] sm:$0xf]
      %v1424 = vld [vmem:[%s8 + $0xc] sm:$0xf]
      %v1425 = vpack.c.bf16 %v1420, %v1419
      %v1426 = vld [vmem:[%s9] sm:$0x1]
      %v1428 = vlaneseq
      %v1429 = vshrl.u32 %v1428, 7
      %v1430 = vsub.s32 0, %v1429
      %v1431 = vrot.slane %v1426, %v1430
      %v1437 = vunpack.c.l.b16 %v1421
      %v1438 = vunpack.c.l.b16 %v1422
      %v1439 = vunpack.c.l.b16 %v1423
      %v1440 = vunpack.c.l.b16 %v1424
      %v1441 = vpack.c.b16 %v1438, %v1437
      %v1442 = vpack.c.b16 %v1440, %v1439
      %v1446 = vsel %vm735, %v1425, 0
      %1448 = vmatprep.subr.bf16.mxu0 0
      %1449 = vmatpush1.bf16.msra.mxu0 %v1441
      %1450 = vmatprep.subr.bf16.mxu0 0
      %1451 = vmatpush1.bf16.msra.mxu0 %v1442
      %1452 = vmatprep.subr.bf16.mxu0 0
      %1453 = vmatpush1.bf16.msra.mxu0 0
      %1454 = vmatprep.subr.bf16.mxu0 0
      %1455 = vmatpush1.bf16.msra.mxu0 0
      %1456 = vmatprep.subr.bf16.mxu0 0
      %1457 = vmatpush1.bf16.msra.mxu0 0
      %1458 = vmatprep.subr.bf16.mxu0 0
      %1459 = vmatpush1.bf16.msra.mxu0 0
      %1460 = vmatprep.subr.bf16.mxu0 0
      %1461 = vmatpush1.bf16.msra.mxu0 0
      %1462 = vmatprep.subr.bf16.mxu0 0
      %1463 = vmatpush1.bf16.msra.mxu0 0
      %1464 = vmatprep.subr.bf16.mxu0 0
      %1465 = vmatpush1.bf16.msra.mxu0 0
      %1466 = vmatprep.subr.bf16.mxu0 0
      %1467 = vmatpush1.bf16.msra.mxu0 0
      %1468 = vmatprep.subr.bf16.mxu0 0
      %1469 = vmatpush1.bf16.msra.mxu0 0
      %1470 = vmatprep.subr.bf16.mxu0 0
      %1471 = vmatpush1.bf16.msra.mxu0 0
      %1472 = vmatprep.subr.bf16.mxu0 0
      %1473 = vmatpush1.bf16.msra.mxu0 0
      %1474 = vmatprep.subr.bf16.mxu0 0
      %1475 = vmatpush1.bf16.msra.mxu0 0
      %1476 = vmatprep.subr.bf16.mxu0 0
      %1477 = vmatpush1.bf16.msra.mxu0 0
      %1478 = vmatprep.subr.bf16.mxu0 0
      %1479 = vmatpush1.bf16.msra.mxu0 0
      %1480 = vmatprep.mubr.bf16.mxu0 0
      %1481 = vmatmul.mubr.bf16.gmra.mrb[0].mxu0 %v1446
      %v1482 = vpop.f32.mrb[0].mxu0
      %v1483 = vadd.f32 %v1431, %v1482
      %v1484 = vpop.f32.mrb[0].mxu0
      %v1485 = vpop.f32.mrb[0].mxu0
      %v1486 = vadd.f32 %v1431, %v1485
      %v1487 = vpop.f32.mrb[0].mxu0
      %1488 = vdwg.mxu0
      %v1489 = vld [vmem:[%s10] sm:$0xf]
      %v1490 = vld [vmem:[%s10 + $0x4] sm:$0xf]
      %v1491 = vld [vmem:[%s10 + $0x8] sm:$0xf]
      %v1492 = vld [vmem:[%s10 + $0xc] sm:$0xf]
      %v1493 = vld [vmem:[%s11] sm:$0x1]
      %v1495 = vlaneseq
      %v1496 = vshrl.u32 %v1495, 7
      %v1497 = vsub.s32 0, %v1496
      %v1498 = vrot.slane %v1493, %v1497
      %v1504 = vunpack.c.l.b16 %v1489
      %v1505 = vunpack.c.l.b16 %v1490
      %v1506 = vunpack.c.l.b16 %v1491
      %v1507 = vunpack.c.l.b16 %v1492
      %v1508 = vpack.c.b16 %v1505, %v1504
      %v1509 = vpack.c.b16 %v1507, %v1506
      %v1513 = vsel %vm735, %v706, 0
      %1515 = vmatprep.subr.bf16.mxu0 0
      %1516 = vmatpush1.bf16.msra.mxu0 %v1508
      %1517 = vmatprep.subr.bf16.mxu0 0
      %1518 = vmatpush1.bf16.msra.mxu0 %v1509
      %1519 = vmatprep.subr.bf16.mxu0 0
      %1520 = vmatpush1.bf16.msra.mxu0 0
      %1521 = vmatprep.subr.bf16.mxu0 0
      %1522 = vmatpush1.bf16.msra.mxu0 0
      %1523 = vmatprep.subr.bf16.mxu0 0
      %1524 = vmatpush1.bf16.msra.mxu0 0
      %1525 = vmatprep.subr.bf16.mxu0 0
      %1526 = vmatpush1.bf16.msra.mxu0 0
      %1527 = vmatprep.subr.bf16.mxu0 0
      %1528 = vmatpush1.bf16.msra.mxu0 0
      %1529 = vmatprep.subr.bf16.mxu0 0
      %1530 = vmatpush1.bf16.msra.mxu0 0
      %1531 = vmatprep.subr.bf16.mxu0 0
      %1532 = vmatpush1.bf16.msra.mxu0 0
      %1533 = vmatprep.subr.bf16.mxu0 0
      %1534 = vmatpush1.bf16.msra.mxu0 0
      %1535 = vmatprep.subr.bf16.mxu0 0
      %1536 = vmatpush1.bf16.msra.mxu0 0
      %1537 = vmatprep.subr.bf16.mxu0 0
      %1538 = vmatpush1.bf16.msra.mxu0 0
      %1539 = vmatprep.subr.bf16.mxu0 0
      %1540 = vmatpush1.bf16.msra.mxu0 0
      %1541 = vmatprep.subr.bf16.mxu0 0
      %1542 = vmatpush1.bf16.msra.mxu0 0
      %1543 = vmatprep.subr.bf16.mxu0 0
      %1544 = vmatpush1.bf16.msra.mxu0 0
      %1545 = vmatprep.subr.bf16.mxu0 0
      %1546 = vmatpush1.bf16.msra.mxu0 0
      %1547 = vmatprep.mubr.bf16.mxu0 0
      %1548 = vmatmul.mubr.bf16.gmra.mrb[0].mxu0 %v1513
      %v1549 = vpop.f32.mrb[0].mxu0
      %v1550 = vadd.f32 %v1498, %v1549
      %v1551 = vpop.f32.mrb[0].mxu0
      %v1552 = vpop.f32.mrb[0].mxu0
      %v1553 = vpop.f32.mrb[0].mxu0
      %1554 = vdwg.mxu0
      %v1555 = vpack.c.bf16 %v1486, %v1483
      %v1556 = vpack.c.bf16 %v1550, %v1550
      %v1558 = vsel %vm793, %v1555, 0
      %v1561 = vsel %vm793, %v1556, 0
      %1563 = vmatprep.subr.bf16.mxu0 0
      %1564 = vmatpush1.bf16.xpose.msra.mxu0 %v1561
      %1565 = vmatprep.subr.bf16.mxu0 0
      %1566 = vmatpush1.bf16.xpose.msra.mxu0 0
      %1567 = vmatprep.subr.bf16.mxu0 0
      %1568 = vmatpush1.bf16.xpose.msra.mxu0 0
      %1569 = vmatprep.subr.bf16.mxu0 0
      %1570 = vmatpush1.bf16.xpose.msra.mxu0 0
      %1571 = vmatprep.subr.bf16.mxu0 0
      %1572 = vmatpush1.bf16.xpose.msra.mxu0 0
      %1573 = vmatprep.subr.bf16.mxu0 0
      %1574 = vmatpush1.bf16.xpose.msra.mxu0 0
      %1575 = vmatprep.subr.bf16.mxu0 0
      %1576 = vmatpush1.bf16.xpose.msra.mxu0 0
      %1577 = vmatprep.subr.bf16.mxu0 0
      %1578 = vmatpush1.bf16.xpose.msra.mxu0 0
      %1579 = vmatprep.subr.bf16.mxu0 0
      %1580 = vmatpush1.bf16.xpose.msra.mxu0 0
      %1581 = vmatprep.subr.bf16.mxu0 0
      %1582 = vmatpush1.bf16.xpose.msra.mxu0 0
      %1583 = vmatprep.subr.bf16.mxu0 0
      %1584 = vmatpush1.bf16.xpose.msra.mxu0 0
      %1585 = vmatprep.subr.bf16.mxu0 0
      %1586 = vmatpush1.bf16.xpose.msra.mxu0 0
      %1587 = vmatprep.subr.bf16.mxu0 0
      %1588 = vmatpush1.bf16.xpose.msra.mxu0 0
      %1589 = vmatprep.subr.bf16.mxu0 0
      %1590 = vmatpush1.bf16.xpose.msra.mxu0 0
      %1591 = vmatprep.subr.bf16.mxu0 0
      %1592 = vmatpush1.bf16.xpose.msra.mxu0 0
      %1593 = vmatprep.subr.bf16.mxu0 0
      %1594 = vmatpush1.bf16.xpose.msra.mxu0 0
      %1595 = vmatprep.mubr.bf16.mxu0 0
      %1596 = vmatmul.mubr.bf16.gmra.mrb[0].mxu0 %v1558
      %v1597 = vpop.f32.mrb[0].mxu0
      %v1598 = vadd.f32 0.0, %v1597
      %v1599 = vpop.f32.mrb[0].mxu0
      %v1600 = vpop.f32.mrb[0].mxu0
      %v1601 = vadd.f32 0.0, %v1600
      %v1602 = vpop.f32.mrb[0].mxu0
      %1603 = vdwg.mxu0
      %v1604 = vsel %vm793, %v1598, -inf
      %1605 = vmax.xlane.f32.xlu0 %v1604
      %v1606 = vpop.xlane.xlu0 %1605
      %v1607 = vsel %vm793, %v1601, -inf
      %1608 = vmax.xlane.f32.xlu0 %v1607
      %v1609 = vpop.xlane.xlu0 %1608
      %v1610 = vsub.f32 %v1598, %v1606
      %v1611 = vsub.f32 %v1601, %v1609
      %v1612 = vmul.f32 %v1610, 1.442695
      %v1613 = vpow.pop %v1612
      %v1614 = vmul.f32 %v1611, 1.442695
      %v1615 = vpow.pop %v1614
      %v1616 = vsel %vm793, %v1613, 0.0
      %1617 = vadd.xlane.f32.xlu0 %v1616
      %v1618 = vpop.xlane.xlu0 %1617
      %v1619 = vsel %vm793, %v1615, 0.0
      %1620 = vadd.xlane.f32.xlu0 %v1619
      %v1621 = vpop.xlane.xlu0 %1620
      %v1622 = vpack.c.bf16 %v1615, %v1613
      %1624 = vrot.lane.b32.xlu0 %v1556, 96
      %v1625 = vpop.permute.xlu0 %1624
      %v1627 = vsel %vm793, %v1622, 0
      %vm1629 = vcmask 1043456
      %v1631 = vsel %vm1629, %v1625, 0
      %1633 = vmatprep.subr.bf16.mxu0 0
      %1634 = vmatpush1.bf16.msra.mxu0 %v1631
      %1635 = vmatprep.subr.bf16.mxu0 0
      %1636 = vmatpush1.bf16.msra.mxu0 0
      %1637 = vmatprep.subr.bf16.mxu0 0
      %1638 = vmatpush1.bf16.msra.mxu0 0
      %1639 = vmatprep.subr.bf16.mxu0 0
      %1640 = vmatpush1.bf16.msra.mxu0 0
      %1641 = vmatprep.subr.bf16.mxu0 0
      %1642 = vmatpush1.bf16.msra.mxu0 0
      %1643 = vmatprep.subr.bf16.mxu0 0
      %1644 = vmatpush1.bf16.msra.mxu0 0
      %1645 = vmatprep.subr.bf16.mxu0 0
      %1646 = vmatpush1.bf16.msra.mxu0 0
      %1647 = vmatprep.subr.bf16.mxu0 0
      %1648 = vmatpush1.bf16.msra.mxu0 0
      %1649 = vmatprep.subr.bf16.mxu0 0
      %1650 = vmatpush1.bf16.msra.mxu0 0
      %1651 = vmatprep.subr.bf16.mxu0 0
      %1652 = vmatpush1.bf16.msra.mxu0 0
      %1653 = vmatprep.subr.bf16.mxu0 0
      %1654 = vmatpush1.bf16.msra.mxu0 0
      %1655 = vmatprep.subr.bf16.mxu0 0
      %1656 = vmatpush1.bf16.msra.mxu0 0
      %1657 = vmatprep.subr.bf16.mxu0 0
      %1658 = vmatpush1.bf16.msra.mxu0 0
      %1659 = vmatprep.subr.bf16.mxu0 0
      %1660 = vmatpush1.bf16.msra.mxu0 0
      %1661 = vmatprep.subr.bf16.mxu0 0
      %1662 = vmatpush1.bf16.msra.mxu0 0
      %1663 = vmatprep.subr.bf16.mxu0 0
      %1664 = vmatpush1.bf16.msra.mxu0 0
      %1665 = vmatprep.mubr.bf16.mxu0 0
      %1666 = vmatmul.mubr.bf16.gmra.mrb[0].mxu0 %v1627
      %v1667 = vpop.f32.mrb[0].mxu0
      %v1668 = vadd.f32 0.0, %v1667
      %v1669 = vpop.f32.mrb[0].mxu0
      %v1670 = vpop.f32.mrb[0].mxu0
      %v1671 = vadd.f32 0.0, %v1670
      %v1672 = vpop.f32.mrb[0].mxu0
      %1673 = vdwg.mxu0
      %v1674 = vrcp.pop %v1618
      %v1675 = vrcp.pop %v1621
      %v1676 = vmul.f32 %v1668, %v1674
      %v1677 = vmul.f32 %v1671, %v1675
      %1679 = vrot.lane.b32.xlu0 %v1555, 120
      %v1680 = vpop.permute.xlu0 %1679
      %1681 = vrot.lane.b32.xlu0 %v1556, 120
      %v1682 = vpop.permute.xlu0 %1681
      %v1684 = vsel %vm793, %v1680, 0
      %v1687 = vsel %vm793, %v1682, 0
      %1689 = vmatprep.subr.bf16.mxu0 0
      %1690 = vmatpush1.bf16.xpose.msra.mxu0 %v1687
      %1691 = vmatprep.subr.bf16.mxu0 0
      %1692 = vmatpush1.bf16.xpose.msra.mxu0 0
      %1693 = vmatprep.subr.bf16.mxu0 0
      %1694 = vmatpush1.bf16.xpose.msra.mxu0 0
      %1695 = vmatprep.subr.bf16.mxu0 0
      %1696 = vmatpush1.bf16.xpose.msra.mxu0 0
      %1697 = vmatprep.subr.bf16.mxu0 0
      %1698 = vmatpush1.bf16.xpose.msra.mxu0 0
      %1699 = vmatprep.subr.bf16.mxu0 0
      %1700 = vmatpush1.bf16.xpose.msra.mxu0 0
      %1701 = vmatprep.subr.bf16.mxu0 0
      %1702 = vmatpush1.bf16.xpose.msra.mxu0 0
      %1703 = vmatprep.subr.bf16.mxu0 0
      %1704 = vmatpush1.bf16.xpose.msra.mxu0 0
      %1705 = vmatprep.subr.bf16.mxu0 0
      %1706 = vmatpush1.bf16.xpose.msra.mxu0 0
      %1707 = vmatprep.subr.bf16.mxu0 0
      %1708 = vmatpush1.bf16.xpose.msra.mxu0 0
      %1709 = vmatprep.subr.bf16.mxu0 0
      %1710 = vmatpush1.bf16.xpose.msra.mxu0 0
      %1711 = vmatprep.subr.bf16.mxu0 0
      %1712 = vmatpush1.bf16.xpose.msra.mxu0 0
      %1713 = vmatprep.subr.bf16.mxu0 0
      %1714 = vmatpush1.bf16.xpose.msra.mxu0 0
      %1715 = vmatprep.subr.bf16.mxu0 0
      %1716 = vmatpush1.bf16.xpose.msra.mxu0 0
      %1717 = vmatprep.subr.bf16.mxu0 0
      %1718 = vmatpush1.bf16.xpose.msra.mxu0 0
      %1719 = vmatprep.subr.bf16.mxu0 0
      %1720 = vmatpush1.bf16.xpose.msra.mxu0 0
      %1721 = vmatprep.mubr.bf16.mxu0 0
      %1722 = vmatmul.mubr.bf16.gmra.mrb[0].mxu0 %v1684
      %v1723 = vpop.f32.mrb[0].mxu0
      %v1724 = vadd.f32 0.0, %v1723
      %v1725 = vpop.f32.mrb[0].mxu0
      %v1726 = vpop.f32.mrb[0].mxu0
      %v1727 = vadd.f32 0.0, %v1726
      %v1728 = vpop.f32.mrb[0].mxu0
      %1729 = vdwg.mxu0
      %v1730 = vsel %vm793, %v1724, -inf
      %1731 = vmax.xlane.f32.xlu0 %v1730
      %v1732 = vpop.xlane.xlu0 %1731
      %v1733 = vsel %vm793, %v1727, -inf
      %1734 = vmax.xlane.f32.xlu0 %v1733
      %v1735 = vpop.xlane.xlu0 %1734
      %v1736 = vsub.f32 %v1724, %v1732
      %v1737 = vsub.f32 %v1727, %v1735
      %v1738 = vmul.f32 %v1736, 1.442695
      %v1739 = vpow.pop %v1738
      %v1740 = vmul.f32 %v1737, 1.442695
      %v1741 = vpow.pop %v1740
      %v1742 = vsel %vm793, %v1739, 0.0
      %1743 = vadd.xlane.f32.xlu0 %v1742
      %v1744 = vpop.xlane.xlu0 %1743
      %v1745 = vsel %vm793, %v1741, 0.0
      %1746 = vadd.xlane.f32.xlu0 %v1745
      %v1747 = vpop.xlane.xlu0 %1746
      %v1748 = vpack.c.bf16 %v1741, %v1739
      %1749 = vrot.lane.b32.xlu0 %v1556, 88
      %v1750 = vpop.permute.xlu0 %1749
      %v1752 = vsel %vm793, %v1748, 0
      %v1755 = vsel %vm1629, %v1750, 0
      %1757 = vmatprep.subr.bf16.mxu0 0
      %1758 = vmatpush1.bf16.msra.mxu0 %v1755
      %1759 = vmatprep.subr.bf16.mxu0 0
      %1760 = vmatpush1.bf16.msra.mxu0 0
      %1761 = vmatprep.subr.bf16.mxu0 0
      %1762 = vmatpush1.bf16.msra.mxu0 0
      %1763 = vmatprep.subr.bf16.mxu0 0
      %1764 = vmatpush1.bf16.msra.mxu0 0
      %1765 = vmatprep.subr.bf16.mxu0 0
      %1766 = vmatpush1.bf16.msra.mxu0 0
      %1767 = vmatprep.subr.bf16.mxu0 0
      %1768 = vmatpush1.bf16.msra.mxu0 0
      %1769 = vmatprep.subr.bf16.mxu0 0
      %1770 = vmatpush1.bf16.msra.mxu0 0
      %1771 = vmatprep.subr.bf16.mxu0 0
      %1772 = vmatpush1.bf16.msra.mxu0 0
      %1773 = vmatprep.subr.bf16.mxu0 0
      %1774 = vmatpush1.bf16.msra.mxu0 0
      %1775 = vmatprep.subr.bf16.mxu0 0
      %1776 = vmatpush1.bf16.msra.mxu0 0
      %1777 = vmatprep.subr.bf16.mxu0 0
      %1778 = vmatpush1.bf16.msra.mxu0 0
      %1779 = vmatprep.subr.bf16.mxu0 0
      %1780 = vmatpush1.bf16.msra.mxu0 0
      %1781 = vmatprep.subr.bf16.mxu0 0
      %1782 = vmatpush1.bf16.msra.mxu0 0
      %1783 = vmatprep.subr.bf16.mxu0 0
      %1784 = vmatpush1.bf16.msra.mxu0 0
      %1785 = vmatprep.subr.bf16.mxu0 0
      %1786 = vmatpush1.bf16.msra.mxu0 0
      %1787 = vmatprep.subr.bf16.mxu0 0
      %1788 = vmatpush1.bf16.msra.mxu0 0
      %1789 = vmatprep.mubr.bf16.mxu0 0
      %1790 = vmatmul.mubr.bf16.gmra.mrb[0].mxu0 %v1752
      %v1791 = vpop.f32.mrb[0].mxu0
      %v1792 = vadd.f32 0.0, %v1791
      %v1793 = vpop.f32.mrb[0].mxu0
      %v1794 = vpop.f32.mrb[0].mxu0
      %v1795 = vadd.f32 0.0, %v1794
      %v1796 = vpop.f32.mrb[0].mxu0
      %1797 = vdwg.mxu0
      %v1798 = vrcp.pop %v1744
      %v1799 = vrcp.pop %v1747
      %v1800 = vmul.f32 %v1792, %v1798
      %v1801 = vmul.f32 %v1795, %v1799
      %1802 = vrot.lane.b32.xlu0 %v1555, 112
      %v1803 = vpop.permute.xlu0 %1802
      %1804 = vrot.lane.b32.xlu0 %v1556, 112
      %v1805 = vpop.permute.xlu0 %1804
      %v1807 = vsel %vm793, %v1803, 0
      %v1810 = vsel %vm793, %v1805, 0
      %1812 = vmatprep.subr.bf16.mxu0 0
      %1813 = vmatpush1.bf16.xpose.msra.mxu0 %v1810
      %1814 = vmatprep.subr.bf16.mxu0 0
      %1815 = vmatpush1.bf16.xpose.msra.mxu0 0
      %1816 = vmatprep.subr.bf16.mxu0 0
      %1817 = vmatpush1.bf16.xpose.msra.mxu0 0
      %1818 = vmatprep.subr.bf16.mxu0 0
      %1819 = vmatpush1.bf16.xpose.msra.mxu0 0
      %1820 = vmatprep.subr.bf16.mxu0 0
      %1821 = vmatpush1.bf16.xpose.msra.mxu0 0
      %1822 = vmatprep.subr.bf16.mxu0 0
      %1823 = vmatpush1.bf16.xpose.msra.mxu0 0
      %1824 = vmatprep.subr.bf16.mxu0 0
      %1825 = vmatpush1.bf16.xpose.msra.mxu0 0
      %1826 = vmatprep.subr.bf16.mxu0 0
      %1827 = vmatpush1.bf16.xpose.msra.mxu0 0
      %1828 = vmatprep.subr.bf16.mxu0 0
      %1829 = vmatpush1.bf16.xpose.msra.mxu0 0
      %1830 = vmatprep.subr.bf16.mxu0 0
      %1831 = vmatpush1.bf16.xpose.msra.mxu0 0
      %1832 = vmatprep.subr.bf16.mxu0 0
      %1833 = vmatpush1.bf16.xpose.msra.mxu0 0
      %1834 = vmatprep.subr.bf16.mxu0 0
      %1835 = vmatpush1.bf16.xpose.msra.mxu0 0
      %1836 = vmatprep.subr.bf16.mxu0 0
      %1837 = vmatpush1.bf16.xpose.msra.mxu0 0
      %1838 = vmatprep.subr.bf16.mxu0 0
      %1839 = vmatpush1.bf16.xpose.msra.mxu0 0
      %1840 = vmatprep.subr.bf16.mxu0 0
      %1841 = vmatpush1.bf16.xpose.msra.mxu0 0
      %1842 = vmatprep.subr.bf16.mxu0 0
      %1843 = vmatpush1.bf16.xpose.msra.mxu0 0
      %1844 = vmatprep.mubr.bf16.mxu0 0
      %1845 = vmatmul.mubr.bf16.gmra.mrb[0].mxu0 %v1807
      %v1846 = vpop.f32.mrb[0].mxu0
      %v1847 = vadd.f32 0.0, %v1846
      %v1848 = vpop.f32.mrb[0].mxu0
      %v1849 = vpop.f32.mrb[0].mxu0
      %v1850 = vadd.f32 0.0, %v1849
      %v1851 = vpop.f32.mrb[0].mxu0
      %1852 = vdwg.mxu0
      %v1853 = vsel %vm793, %v1847, -inf
      %1854 = vmax.xlane.f32.xlu0 %v1853
      %v1855 = vpop.xlane.xlu0 %1854
      %v1856 = vsel %vm793, %v1850, -inf
      %1857 = vmax.xlane.f32.xlu0 %v1856
      %v1858 = vpop.xlane.xlu0 %1857
      %v1859 = vsub.f32 %v1847, %v1855
      %v1860 = vsub.f32 %v1850, %v1858
      %v1861 = vmul.f32 %v1859, 1.442695
      %v1862 = vpow.pop %v1861
      %v1863 = vmul.f32 %v1860, 1.442695
      %v1864 = vpow.pop %v1863
      %v1865 = vsel %vm793, %v1862, 0.0
      %1866 = vadd.xlane.f32.xlu0 %v1865
      %v1867 = vpop.xlane.xlu0 %1866
      %v1868 = vsel %vm793, %v1864, 0.0
      %1869 = vadd.xlane.f32.xlu0 %v1868
      %v1870 = vpop.xlane.xlu0 %1869
      %v1871 = vpack.c.bf16 %v1864, %v1862
      %1872 = vrot.lane.b32.xlu0 %v1556, 80
      %v1873 = vpop.permute.xlu0 %1872
      %v1875 = vsel %vm793, %v1871, 0
      %v1878 = vsel %vm1629, %v1873, 0
      %1880 = vmatprep.subr.bf16.mxu0 0
      %1881 = vmatpush1.bf16.msra.mxu0 %v1878
      %1882 = vmatprep.subr.bf16.mxu0 0
      %1883 = vmatpush1.bf16.msra.mxu0 0
      %1884 = vmatprep.subr.bf16.mxu0 0
      %1885 = vmatpush1.bf16.msra.mxu0 0
      %1886 = vmatprep.subr.bf16.mxu0 0
      %1887 = vmatpush1.bf16.msra.mxu0 0
      %1888 = vmatprep.subr.bf16.mxu0 0
      %1889 = vmatpush1.bf16.msra.mxu0 0
      %1890 = vmatprep.subr.bf16.mxu0 0
      %1891 = vmatpush1.bf16.msra.mxu0 0
      %1892 = vmatprep.subr.bf16.mxu0 0
      %1893 = vmatpush1.bf16.msra.mxu0 0
      %1894 = vmatprep.subr.bf16.mxu0 0
      %1895 = vmatpush1.bf16.msra.mxu0 0
      %1896 = vmatprep.subr.bf16.mxu0 0
      %1897 = vmatpush1.bf16.msra.mxu0 0
      %1898 = vmatprep.subr.bf16.mxu0 0
      %1899 = vmatpush1.bf16.msra.mxu0 0
      %1900 = vmatprep.subr.bf16.mxu0 0
      %1901 = vmatpush1.bf16.msra.mxu0 0
      %1902 = vmatprep.subr.bf16.mxu0 0
      %1903 = vmatpush1.bf16.msra.mxu0 0
      %1904 = vmatprep.subr.bf16.mxu0 0
      %1905 = vmatpush1.bf16.msra.mxu0 0
      %1906 = vmatprep.subr.bf16.mxu0 0
      %1907 = vmatpush1.bf16.msra.mxu0 0
      %1908 = vmatprep.subr.bf16.mxu0 0
      %1909 = vmatpush1.bf16.msra.mxu0 0
      %1910 = vmatprep.subr.bf16.mxu0 0
      %1911 = vmatpush1.bf16.msra.mxu0 0
      %1912 = vmatprep.mubr.bf16.mxu0 0
      %1913 = vmatmul.mubr.bf16.gmra.mrb[0].mxu0 %v1875
      %v1914 = vpop.f32.mrb[0].mxu0
      %v1915 = vadd.f32 0.0, %v1914
      %v1916 = vpop.f32.mrb[0].mxu0
      %v1917 = vpop.f32.mrb[0].mxu0
      %v1918 = vadd.f32 0.0, %v1917
      %v1919 = vpop.f32.mrb[0].mxu0
      %1920 = vdwg.mxu0
      %v1921 = vrcp.pop %v1867
      %v1922 = vrcp.pop %v1870
      %v1923 = vmul.f32 %v1915, %v1921
      %v1924 = vmul.f32 %v1918, %v1922
      %1925 = vrot.lane.b32.xlu0 %v1555, 104
      %v1926 = vpop.permute.xlu0 %1925
      %1927 = vrot.lane.b32.xlu0 %v1556, 104
      %v1928 = vpop.permute.xlu0 %1927
      %v1930 = vsel %vm793, %v1926, 0
      %v1933 = vsel %vm793, %v1928, 0
      %1935 = vmatprep.subr.bf16.mxu0 0
      %1936 = vmatpush1.bf16.xpose.msra.mxu0 %v1933
      %1937 = vmatprep.subr.bf16.mxu0 0
      %1938 = vmatpush1.bf16.xpose.msra.mxu0 0
      %1939 = vmatprep.subr.bf16.mxu0 0
      %1940 = vmatpush1.bf16.xpose.msra.mxu0 0
      %1941 = vmatprep.subr.bf16.mxu0 0
      %1942 = vmatpush1.bf16.xpose.msra.mxu0 0
      %1943 = vmatprep.subr.bf16.mxu0 0
      %1944 = vmatpush1.bf16.xpose.msra.mxu0 0
      %1945 = vmatprep.subr.bf16.mxu0 0
      %1946 = vmatpush1.bf16.xpose.msra.mxu0 0
      %1947 = vmatprep.subr.bf16.mxu0 0
      %1948 = vmatpush1.bf16.xpose.msra.mxu0 0
      %1949 = vmatprep.subr.bf16.mxu0 0
      %1950 = vmatpush1.bf16.xpose.msra.mxu0 0
      %1951 = vmatprep.subr.bf16.mxu0 0
      %1952 = vmatpush1.bf16.xpose.msra.mxu0 0
      %1953 = vmatprep.subr.bf16.mxu0 0
      %1954 = vmatpush1.bf16.xpose.msra.mxu0 0
      %1955 = vmatprep.subr.bf16.mxu0 0
      %1956 = vmatpush1.bf16.xpose.msra.mxu0 0
      %1957 = vmatprep.subr.bf16.mxu0 0
      %1958 = vmatpush1.bf16.xpose.msra.mxu0 0
      %1959 = vmatprep.subr.bf16.mxu0 0
      %1960 = vmatpush1.bf16.xpose.msra.mxu0 0
      %1961 = vmatprep.subr.bf16.mxu0 0
      %1962 = vmatpush1.bf16.xpose.msra.mxu0 0
      %1963 = vmatprep.subr.bf16.mxu0 0
      %1964 = vmatpush1.bf16.xpose.msra.mxu0 0
      %1965 = vmatprep.subr.bf16.mxu0 0
      %1966 = vmatpush1.bf16.xpose.msra.mxu0 0
      %1967 = vmatprep.mubr.bf16.mxu0 0
      %1968 = vmatmul.mubr.bf16.gmra.mrb[0].mxu0 %v1930
      %v1969 = vpop.f32.mrb[0].mxu0
      %v1970 = vadd.f32 0.0, %v1969
      %v1971 = vpop.f32.mrb[0].mxu0
      %v1972 = vpop.f32.mrb[0].mxu0
      %v1973 = vadd.f32 0.0, %v1972
      %v1974 = vpop.f32.mrb[0].mxu0
      %1975 = vdwg.mxu0
      %v1976 = vsel %vm793, %v1970, -inf
      %1977 = vmax.xlane.f32.xlu0 %v1976
      %v1978 = vpop.xlane.xlu0 %1977
      %v1979 = vsel %vm793, %v1973, -inf
      %1980 = vmax.xlane.f32.xlu0 %v1979
      %v1981 = vpop.xlane.xlu0 %1980
      %v1982 = vsub.f32 %v1970, %v1978
      %v1983 = vsub.f32 %v1973, %v1981
      %v1984 = vmul.f32 %v1982, 1.442695
      %v1985 = vpow.pop %v1984
      %v1986 = vmul.f32 %v1983, 1.442695
      %v1987 = vpow.pop %v1986
      %v1988 = vsel %vm793, %v1985, 0.0
      %1989 = vadd.xlane.f32.xlu0 %v1988
      %v1990 = vpop.xlane.xlu0 %1989
      %v1991 = vsel %vm793, %v1987, 0.0
      %1992 = vadd.xlane.f32.xlu0 %v1991
      %v1993 = vpop.xlane.xlu0 %1992
      %v1994 = vpack.c.bf16 %v1987, %v1985
      %1995 = vrot.lane.b32.xlu0 %v1556, 72
      %v1996 = vpop.permute.xlu0 %1995
      %v1998 = vsel %vm793, %v1994, 0
      %v2001 = vsel %vm1629, %v1996, 0
      %2003 = vmatprep.subr.bf16.mxu0 0
      %2004 = vmatpush1.bf16.msra.mxu0 %v2001
      %2005 = vmatprep.subr.bf16.mxu0 0
      %2006 = vmatpush1.bf16.msra.mxu0 0
      %2007 = vmatprep.subr.bf16.mxu0 0
      %2008 = vmatpush1.bf16.msra.mxu0 0
      %2009 = vmatprep.subr.bf16.mxu0 0
      %2010 = vmatpush1.bf16.msra.mxu0 0
      %2011 = vmatprep.subr.bf16.mxu0 0
      %2012 = vmatpush1.bf16.msra.mxu0 0
      %2013 = vmatprep.subr.bf16.mxu0 0
      %2014 = vmatpush1.bf16.msra.mxu0 0
      %2015 = vmatprep.subr.bf16.mxu0 0
      %2016 = vmatpush1.bf16.msra.mxu0 0
      %2017 = vmatprep.subr.bf16.mxu0 0
      %2018 = vmatpush1.bf16.msra.mxu0 0
      %2019 = vmatprep.subr.bf16.mxu0 0
      %2020 = vmatpush1.bf16.msra.mxu0 0
      %2021 = vmatprep.subr.bf16.mxu0 0
      %2022 = vmatpush1.bf16.msra.mxu0 0
      %2023 = vmatprep.subr.bf16.mxu0 0
      %2024 = vmatpush1.bf16.msra.mxu0 0
      %2025 = vmatprep.subr.bf16.mxu0 0
      %2026 = vmatpush1.bf16.msra.mxu0 0
      %2027 = vmatprep.subr.bf16.mxu0 0
      %2028 = vmatpush1.bf16.msra.mxu0 0
      %2029 = vmatprep.subr.bf16.mxu0 0
      %2030 = vmatpush1.bf16.msra.mxu0 0
      %2031 = vmatprep.subr.bf16.mxu0 0
      %2032 = vmatpush1.bf16.msra.mxu0 0
      %2033 = vmatprep.subr.bf16.mxu0 0
      %2034 = vmatpush1.bf16.msra.mxu0 0
      %2035 = vmatprep.mubr.bf16.mxu0 0
      %2036 = vmatmul.mubr.bf16.gmra.mrb[0].mxu0 %v1998
      %v2037 = vpop.f32.mrb[0].mxu0
      %v2038 = vadd.f32 0.0, %v2037
      %v2039 = vpop.f32.mrb[0].mxu0
      %v2040 = vpop.f32.mrb[0].mxu0
      %v2041 = vadd.f32 0.0, %v2040
      %v2042 = vpop.f32.mrb[0].mxu0
      %2043 = vdwg.mxu0
      %v2044 = vrcp.pop %v1990
      %v2045 = vrcp.pop %v1993
      %v2046 = vmul.f32 %v2038, %v2044
      %v2047 = vmul.f32 %v2041, %v2045
      %2050 = vrot.lane.b32.xlu0 %v1800, 8
      %v2051 = vpop.permute.xlu0 %2050
      %2052 = vrot.lane.b32.xlu0 %v1801, 8
      %v2053 = vpop.permute.xlu0 %2052
      %2058 = vrot.lane.b32.xlu0 %v1923, 16
      %v2059 = vpop.permute.xlu0 %2058
      %2060 = vrot.lane.b32.xlu0 %v1924, 16
      %v2061 = vpop.permute.xlu0 %2060
      %2066 = vrot.lane.b32.xlu0 %v2046, 24
      %v2067 = vpop.permute.xlu0 %2066
      %2068 = vrot.lane.b32.xlu0 %v2047, 24
      %v2069 = vpop.permute.xlu0 %2068
      %v2072 = vsel %vm793, %v1676, %v2051
      %v2073 = vsel %vm793, %v1677, %v2053
      %v2074 = vsel %vm841, %v2072, %v2059
      %v2075 = vsel %vm841, %v2073, %v2061
      %v2076 = vsel %vm1303, %v2074, %v2067
      %v2077 = vsel %vm1303, %v2075, %v2069
      %v2078 = vld [vmem:[%s12] sm:$0xf]
      %v2079 = vld [vmem:[%s12 + $0x4] sm:$0xf]
      %v2080 = vld [vmem:[%s12 + $0x8] sm:$0xf]
      %v2081 = vld [vmem:[%s12 + $0xc] sm:$0xf]
      %v2082 = vpack.c.bf16 %v2077, %v2076
      %v2083 = vld [vmem:[%s13] sm:$0x1]
      %v2085 = vlaneseq
      %v2086 = vshrl.u32 %v2085, 7
      %v2087 = vsub.s32 0, %v2086
      %v2088 = vrot.slane %v2083, %v2087
      %v2094 = vunpack.c.l.b16 %v2078
      %v2095 = vunpack.c.l.b16 %v2079
      %v2096 = vunpack.c.l.b16 %v2080
      %v2097 = vunpack.c.l.b16 %v2081
      %v2098 = vpack.c.b16 %v2095, %v2094
      %v2099 = vpack.c.b16 %v2097, %v2096
      %v2103 = vsel %vm735, %v2082, 0
      %2105 = vmatprep.subr.bf16.mxu0 0
      %2106 = vmatpush1.bf16.msra.mxu0 %v2098
      %2107 = vmatprep.subr.bf16.mxu0 0
      %2108 = vmatpush1.bf16.msra.mxu0 %v2099
      %2109 = vmatprep.subr.bf16.mxu0 0
      %2110 = vmatpush1.bf16.msra.mxu0 0
      %2111 = vmatprep.subr.bf16.mxu0 0
      %2112 = vmatpush1.bf16.msra.mxu0 0
      %2113 = vmatprep.subr.bf16.mxu0 0
      %2114 = vmatpush1.bf16.msra.mxu0 0
      %2115 = vmatprep.subr.bf16.mxu0 0
      %2116 = vmatpush1.bf16.msra.mxu0 0
      %2117 = vmatprep.subr.bf16.mxu0 0
      %2118 = vmatpush1.bf16.msra.mxu0 0
      %2119 = vmatprep.subr.bf16.mxu0 0
      %2120 = vmatpush1.bf16.msra.mxu0 0
      %2121 = vmatprep.subr.bf16.mxu0 0
      %2122 = vmatpush1.bf16.msra.mxu0 0
      %2123 = vmatprep.subr.bf16.mxu0 0
      %2124 = vmatpush1.bf16.msra.mxu0 0
      %2125 = vmatprep.subr.bf16.mxu0 0
      %2126 = vmatpush1.bf16.msra.mxu0 0
      %2127 = vmatprep.subr.bf16.mxu0 0
      %2128 = vmatpush1.bf16.msra.mxu0 0
      %2129 = vmatprep.subr.bf16.mxu0 0
      %2130 = vmatpush1.bf16.msra.mxu0 0
      %2131 = vmatprep.subr.bf16.mxu0 0
      %2132 = vmatpush1.bf16.msra.mxu0 0
      %2133 = vmatprep.subr.bf16.mxu0 0
      %2134 = vmatpush1.bf16.msra.mxu0 0
      %2135 = vmatprep.subr.bf16.mxu0 0
      %2136 = vmatpush1.bf16.msra.mxu0 0
      %2137 = vmatprep.mubr.bf16.mxu0 0
      %2138 = vmatmul.mubr.bf16.gmra.mrb[0].mxu0 %v2103
      %v2139 = vpop.f32.mrb[0].mxu0
      %v2140 = vadd.f32 %v2088, %v2139
      %v2141 = vpop.f32.mrb[0].mxu0
      %v2142 = vpop.f32.mrb[0].mxu0
      %v2143 = vadd.f32 %v2088, %v2142
      %v2144 = vpop.f32.mrb[0].mxu0
      %2145 = vdwg.mxu0
      %v2146 = vadd.f32 %v1419, %v2140
      %v2147 = vadd.f32 %v1420, %v2143
      %v2148 = vld [vmem:[%s14] sm:$0x1]
      %v2149 = vld [vmem:[%s15] sm:$0x1]
      %v2150 = vsel %vm735, %v2146, 0.0
      %2151 = vadd.xlane.f32.xlu0 %v2150
      %v2152 = vpop.xlane.xlu0 %2151
      %v2153 = vsel %vm735, %v2147, 0.0
      %2154 = vadd.xlane.f32.xlu0 %v2153
      %v2155 = vpop.xlane.xlu0 %2154
      %v2156 = vmul.f32 %v2152, %v1384
      %v2157 = vmul.f32 %v2155, %v1384
      %v2158 = vsub.f32 %v2146, %v2156
      %v2159 = vsub.f32 %v2147, %v2157
      %v2160 = vmul.f32 %v2158, %v2158
      %v2161 = vmul.f32 %v2159, %v2159
      %v2162 = vsel %vm735, %v2160, 0.0
      %2163 = vadd.xlane.f32.xlu0 %v2162
      %v2164 = vpop.xlane.xlu0 %2163
      %v2165 = vsel %vm735, %v2161, 0.0
      %2166 = vadd.xlane.f32.xlu0 %v2165
      %v2167 = vpop.xlane.xlu0 %2166
      %v2168 = vmul.f32 %v2164, %v1384
      %v2169 = vmul.f32 %v2167, %v1384
      %v2170 = vadd.f32 %v2168, 1e-05
      %v2171 = vadd.f32 %v2169, 1e-05
      %v2172 = vrsqrt.pop %v2170
      %v2173 = vrsqrt.pop %v2171
      %v2174 = vmul.f32 %v2158, %v2172
      %v2175 = vmul.f32 %v2159, %v2173
      %v2177 = vlaneseq
      %v2178 = vshrl.u32 %v2177, 7
      %v2179 = vsub.s32 0, %v2178
      %v2180 = vrot.slane %v2148, %v2179
      %v2182 = vmul.f32 %v2174, %v2180
      %v2183 = vmul.f32 %v2175, %v2180
      %v2185 = vlaneseq
      %v2186 = vshrl.u32 %v2185, 7
      %v2187 = vsub.s32 0, %v2186
      %v2188 = vrot.slane %v2149, %v2187
      %v2190 = vadd.f32 %v2182, %v2188
      %v2191 = vadd.f32 %v2183, %v2188
      %v2192 = vld [vmem:[%s16] sm:$0xf]
      %v2193 = vld [vmem:[%s16 + $0x4] sm:$0xf]
      %v2194 = vld [vmem:[%s16 + $0x8] sm:$0xf]
      %v2195 = vld [vmem:[%s16 + $0xc] sm:$0xf]
      %v2196 = vpack.c.bf16 %v2191, %v2190
      %v2197 = vld [vmem:[%s17] sm:$0x1]
      %v2199 = vlaneseq
      %v2200 = vshrl.u32 %v2199, 7
      %v2201 = vsub.s32 0, %v2200
      %v2202 = vrot.slane %v2197, %v2201
      %v2208 = vunpack.c.l.b16 %v2192
      %v2209 = vunpack.c.l.b16 %v2193
      %v2210 = vunpack.c.l.b16 %v2194
      %v2211 = vunpack.c.l.b16 %v2195
      %v2212 = vpack.c.b16 %v2209, %v2208
      %v2213 = vpack.c.b16 %v2211, %v2210
      %v2217 = vsel %vm735, %v2196, 0
      %2219 = vmatprep.subr.bf16.mxu0 0
      %2220 = vmatpush1.bf16.msra.mxu0 %v2212
      %2221 = vmatprep.subr.bf16.mxu0 0
      %2222 = vmatpush1.bf16.msra.mxu0 %v2213
      %2223 = vmatprep.subr.bf16.mxu0 0
      %2224 = vmatpush1.bf16.msra.mxu0 0
      %2225 = vmatprep.subr.bf16.mxu0 0
      %2226 = vmatpush1.bf16.msra.mxu0 0
      %2227 = vmatprep.subr.bf16.mxu0 0
      %2228 = vmatpush1.bf16.msra.mxu0 0
      %2229 = vmatprep.subr.bf16.mxu0 0
      %2230 = vmatpush1.bf16.msra.mxu0 0
      %2231 = vmatprep.subr.bf16.mxu0 0
      %2232 = vmatpush1.bf16.msra.mxu0 0
      %2233 = vmatprep.subr.bf16.mxu0 0
      %2234 = vmatpush1.bf16.msra.mxu0 0
      %2235 = vmatprep.subr.bf16.mxu0 0
      %2236 = vmatpush1.bf16.msra.mxu0 0
      %2237 = vmatprep.subr.bf16.mxu0 0
      %2238 = vmatpush1.bf16.msra.mxu0 0
      %2239 = vmatprep.subr.bf16.mxu0 0
      %2240 = vmatpush1.bf16.msra.mxu0 0
      %2241 = vmatprep.subr.bf16.mxu0 0
      %2242 = vmatpush1.bf16.msra.mxu0 0
      %2243 = vmatprep.subr.bf16.mxu0 0
      %2244 = vmatpush1.bf16.msra.mxu0 0
      %2245 = vmatprep.subr.bf16.mxu0 0
      %2246 = vmatpush1.bf16.msra.mxu0 0
      %2247 = vmatprep.subr.bf16.mxu0 0
      %2248 = vmatpush1.bf16.msra.mxu0 0
      %2249 = vmatprep.subr.bf16.mxu0 0
      %2250 = vmatpush1.bf16.msra.mxu0 0
      %2251 = vmatprep.mubr.bf16.mxu0 0
      %2252 = vmatmul.mubr.bf16.gmra.mrb[0].mxu0 %v2217
      %v2253 = vpop.f32.mrb[0].mxu0
      %v2254 = vadd.f32 %v2202, %v2253
      %v2255 = vpop.f32.mrb[0].mxu0
      %v2256 = vpop.f32.mrb[0].mxu0
      %v2257 = vadd.f32 %v2202, %v2256
      %v2258 = vpop.f32.mrb[0].mxu0
      %2259 = vdwg.mxu0
      %v2260 = vmul.f32 %v2254, 0.5
      %v2261 = vmul.f32 %v2257, 0.5
      %v2262 = vmul.f32 %v2254, 0.70710677
      %v2263 = vmul.f32 %v2257, 0.70710677
      %v2264 = verf.f32.pop %v2262
      %v2265 = verf.f32.pop %v2263
      %v2266 = vadd.f32 %v2264, 1.0
      %v2267 = vadd.f32 %v2265, 1.0
      %v2268 = vmul.f32 %v2260, %v2266
      %v2269 = vmul.f32 %v2261, %v2267
      %v2270 = vld [vmem:[%s18] sm:$0xf]
      %v2271 = vld [vmem:[%s18 + $0x4] sm:$0xf]
      %v2272 = vld [vmem:[%s18 + $0x8] sm:$0xf]
      %v2273 = vld [vmem:[%s18 + $0xc] sm:$0xf]
      %v2274 = vld [vmem:[%s18 + $0x10] sm:$0xf]
      %v2275 = vld [vmem:[%s18 + $0x14] sm:$0xf]
      %v2276 = vld [vmem:[%s18 + $0x18] sm:$0xf]
      %v2277 = vld [vmem:[%s18 + $0x1c] sm:$0xf]
      %v2278 = vpack.c.bf16 %v2269, %v2268
      %v2279 = vld [vmem:[%s19] sm:$0x1]
      %v2281 = vlaneseq
      %v2282 = vshrl.u32 %v2281, 7
      %v2283 = vsub.s32 0, %v2282
      %v2284 = vrot.slane %v2279, %v2283
      %v2294 = vunpack.c.l.b16 %v2270
      %v2295 = vunpack.c.l.b16 %v2271
      %v2296 = vunpack.c.l.b16 %v2272
      %v2297 = vunpack.c.l.b16 %v2273
      %v2298 = vunpack.c.l.b16 %v2274
      %v2299 = vunpack.c.l.b16 %v2275
      %v2300 = vunpack.c.l.b16 %v2276
      %v2301 = vunpack.c.l.b16 %v2277
      %v2302 = vpack.c.b16 %v2295, %v2294
      %v2303 = vpack.c.b16 %v2297, %v2296
      %v2304 = vpack.c.b16 %v2299, %v2298
      %v2305 = vpack.c.b16 %v2301, %v2300
      %vm2310 = vcmask 523264
      %v2312 = vsel %vm2310, %v2278, 0
      %2314 = vmatprep.subr.bf16.mxu0 0
      %2315 = vmatpush1.bf16.msra.mxu0 %v2302
      %2316 = vmatprep.subr.bf16.mxu0 0
      %2317 = vmatpush1.bf16.msra.mxu0 %v2303
      %2318 = vmatprep.subr.bf16.mxu0 0
      %2319 = vmatpush1.bf16.msra.mxu0 %v2304
      %2320 = vmatprep.subr.bf16.mxu0 0
      %2321 = vmatpush1.bf16.msra.mxu0 %v2305
      %2322 = vmatprep.subr.bf16.mxu0 0
      %2323 = vmatpush1.bf16.msra.mxu0 0
      %2324 = vmatprep.subr.bf16.mxu0 0
      %2325 = vmatpush1.bf16.msra.mxu0 0
      %2326 = vmatprep.subr.bf16.mxu0 0
      %2327 = vmatpush1.bf16.msra.mxu0 0
      %2328 = vmatprep.subr.bf16.mxu0 0
      %2329 = vmatpush1.bf16.msra.mxu0 0
      %2330 = vmatprep.subr.bf16.mxu0 0
      %2331 = vmatpush1.bf16.msra.mxu0 0
      %2332 = vmatprep.subr.bf16.mxu0 0
      %2333 = vmatpush1.bf16.msra.mxu0 0
      %2334 = vmatprep.subr.bf16.mxu0 0
      %2335 = vmatpush1.bf16.msra.mxu0 0
      %2336 = vmatprep.subr.bf16.mxu0 0
      %2337 = vmatpush1.bf16.msra.mxu0 0
      %2338 = vmatprep.subr.bf16.mxu0 0
      %2339 = vmatpush1.bf16.msra.mxu0 0
      %2340 = vmatprep.subr.bf16.mxu0 0
      %2341 = vmatpush1.bf16.msra.mxu0 0
      %2342 = vmatprep.subr.bf16.mxu0 0
      %2343 = vmatpush1.bf16.msra.mxu0 0
      %2344 = vmatprep.subr.bf16.mxu0 0
      %2345 = vmatpush1.bf16.msra.mxu0 0
      %2346 = vmatprep.mubr.bf16.mxu0 0
      %2347 = vmatmul.mubr.bf16.gmra.mrb[0].mxu0 %v2312
      %v2348 = vpop.f32.mrb[0].mxu0
      %v2349 = vadd.f32 %v2284, %v2348
      %v2350 = vpop.f32.mrb[0].mxu0
      %v2351 = vpop.f32.mrb[0].mxu0
      %v2352 = vadd.f32 %v2284, %v2351
      %v2353 = vpop.f32.mrb[0].mxu0
      %2354 = vdwg.mxu0
      %v2355 = vadd.f32 %v2190, %v2349
      %v2356 = vadd.f32 %v2191, %v2352
      %v2357 = vld [vmem:[%s20] sm:$0x1]
      %v2358 = vld [vmem:[%s21] sm:$0x1]
      %v2359 = vsel %vm735, %v2355, 0.0
      %2360 = vadd.xlane.f32.xlu0 %v2359
      %v2361 = vpop.xlane.xlu0 %2360
      %v2362 = vsel %vm735, %v2356, 0.0
      %2363 = vadd.xlane.f32.xlu0 %v2362
      %v2364 = vpop.xlane.xlu0 %2363
      %v2365 = vmul.f32 %v2361, %v1384
      %v2366 = vmul.f32 %v2364, %v1384
      %v2367 = vsub.f32 %v2355, %v2365
      %v2368 = vsub.f32 %v2356, %v2366
      %v2369 = vmul.f32 %v2367, %v2367
      %v2370 = vmul.f32 %v2368, %v2368
      %v2371 = vsel %vm735, %v2369, 0.0
      %2372 = vadd.xlane.f32.xlu0 %v2371
      %v2373 = vpop.xlane.xlu0 %2372
      %v2374 = vsel %vm735, %v2370, 0.0
      %2375 = vadd.xlane.f32.xlu0 %v2374
      %v2376 = vpop.xlane.xlu0 %2375
      %v2377 = vmul.f32 %v2373, %v1384
      %v2378 = vmul.f32 %v2376, %v1384
      %v2379 = vadd.f32 %v2377, 1e-05
      %v2380 = vadd.f32 %v2378, 1e-05
      %v2381 = vrsqrt.pop %v2379
      %v2382 = vrsqrt.pop %v2380
      %v2383 = vmul.f32 %v2367, %v2381
      %v2384 = vmul.f32 %v2368, %v2382
      %v2386 = vlaneseq
      %v2387 = vshrl.u32 %v2386, 7
      %v2388 = vsub.s32 0, %v2387
      %v2389 = vrot.slane %v2357, %v2388
      %v2391 = vmul.f32 %v2383, %v2389
      %v2392 = vmul.f32 %v2384, %v2389
      %v2394 = vlaneseq
      %v2395 = vshrl.u32 %v2394, 7
      %v2396 = vsub.s32 0, %v2395
      %v2397 = vrot.slane %v2358, %v2396
      %v2399 = vadd.f32 %v2391, %v2397
      %v2400 = vadd.f32 %v2392, %v2397
      %v2401 = vpack.c.bf16 %v2400, %v2399
      %v2403 = vunpack.c.l.b16 %v2401
      %v2404 = vunpack.c.h.b16 %v2401
      %v2405 = vpack.c.b16 %v2403, %v2403
      %v2406 = vpack.c.b16 %v2404, %v2404
      %vm2409 = vcmask 257024
      %2410 = vst.msk [vmem:[%s700] sm:$0xf] %vm2409, %v2405
      %2411 = vst.msk [vmem:[%s700 + $0x4] sm:$0xf] %vm2409, %v2406
      %p2412 = scmp.lt.s32.totalorder %s33, 1
      %s2413 = scalar_select %p2412, %s33, 1
      %s2414 = smul.addr %s2413, 2
      %s2415 = smul.addr %s2414, 4
      %s2416 = scalar_lea.vmem %s22, %s2415
      // Predicated region
      $region109: #{_lambda_.12} parent=107 // pred_check
        %p2417 = pneg %p523
      $region110: #{_lambda_.12} parent=107 // pred_check_branch
        %2419 = sbr.rel (%p2417) target = $region112
      $region111: #{_lambda_.12} parent=107 // pred_region
        _
      $region112: #{_lambda_.12} parent=107 // pred_fallthru
        _
    $region108: #{_lambda_.12} parent=5 // pred_fallthru
      _
    %p2420 = scmp.le.s32.totalorder 2, %s28
    // Predicated region
    $region113: #{_lambda_.12} parent=5 // pred_check
      %p2421 = pneg %p2420
    $region114: #{_lambda_.12} parent=5 // pred_check_branch
      %2423 = sbr.rel (%p2421) target = $region116
    $region115: #{_lambda_.12} parent=5 // pred_region
      %s2424 = ssub.s32 %s28, 2
      // Predicated region
      $region117: #{_lambda_.12} parent=115 // pred_check
        %p2425 = pneg %p529
      $region118: #{_lambda_.12} parent=115 // pred_check_branch
        %2427 = sbr.rel (%p2425) target = $region120
      $region119: #{_lambda_.12} parent=115 // pred_region
        %p2428 = scmp.lt.s32.totalorder %s34, 1
        %s2429 = scalar_select %p2428, %s34, 1
        %s2430 = smul.addr %s2429, 2
        %s2431 = smul.addr %s2430, 4
        %s2432 = scalar_lea.vmem %s22, %s2431
      $region120: #{_lambda_.12} parent=115 // pred_fallthru
        _
    $region116: #{_lambda_.12} parent=5 // pred_fallthru
      _
  $region6: #{_lambda_.12} parent=0 // loop_footer
    %s32 = sadd.s32 1, %s28
  $region7: #{_lambda_.12} parent=0 // loop_footer_branch
    %27 = sbr.rel target = $region3
  $region8: #{_lambda_.12} parent=0 // loop_exit
    _

</llo_original>
